<compile_context>
chip_gen: v6e
topology: v6e:2x2x1
jax: 0.10.0
libtpu: 0.0.40
codegen_flags: <defaults>
</compile_context>

<pallas_src>
import functools
import math

import jax
import jax.numpy as jnp
from jax.experimental import pallas as pl
from jax.experimental.pallas import tpu as pltpu  # noqa: F401  (TPU backend)

# ---------------- model hyperparameters (small, synthetic) ----------------
VOCAB    = 16
D_MODEL  = 32
N_HEADS  = 4
D_K      = 8
D_V      = 8
D_FF     = 64
N_LAYERS = 2
PAD_ID   = 0
LN_EPS   = 1e-5
NEG_INF  = -1e9

# order of the stacked per-layer weight arrays passed to the fused kernel
WEIGHT_ORDER = (
    "w_qkv_s", "b_qkv_s", "w_o_s", "b_o_s", "g_s", "be_s",
    "w_q_c", "b_q_c", "w_kv_c", "b_kv_c", "w_o_c", "b_o_c", "g_c", "be_c",
    "w_f1", "b_f1", "w_f2", "b_f2", "g_f", "be_f",
)


# ======================= fused whole-decoder kernel ========================

def _decoder_kernel(
    # data inputs
    dec_ids_ref,     # [B*Lt, 1]  int32 token ids (for one-hot embedding)
    dec_pad_ref,     # [B, 1, Lt] f32  1.0 where decoder key is PAD
    enc_pad_ref,     # [B, 1, Ls] f32  1.0 where encoder key is PAD
    emb_ref,         # [VOCAB, D]
    pe_ref,          # [B*Lt, D]  positional encoding, pre-tiled over batch
    enc_ref,         # [B*Ls, D]  encoder output, flattened
    # stacked per-layer weights (leading dim N_LAYERS)
    w_qkv_s_ref, b_qkv_s_ref, w_o_s_ref, b_o_s_ref, g_s_ref, be_s_ref,
    w_q_c_ref, b_q_c_ref, w_kv_c_ref, b_kv_c_ref, w_o_c_ref, b_o_c_ref,
    g_c_ref, be_c_ref,
    w_f1_ref, b_f1_ref, w_f2_ref, b_f2_ref, g_f_ref, be_f_ref,
    # outputs
    out_ref,         # [B*Lt, D]
    self_attn_ref,   # [N_LAYERS, B, Lt, N_HEADS*Lt]   (lane-dense)
    enc_attn_ref,    # [N_LAYERS, B, Lt, N_HEADS*Ls]   (lane-dense)
    *, B, Lt, Ls):
    f32 = jnp.float32
    scale = 1.0 / math.sqrt(D_K)

    def layer_norm(v, g, b):
        mean = jnp.mean(v, axis=-1, keepdims=True)
        var = jnp.mean((v - mean) ** 2, axis=-1, keepdims=True)
        return (v - mean) * jax.lax.rsqrt(var + LN_EPS) * g + b

    def mha(q_all, k_all, v_all, mask, Lkv):
        """q_all:[B*Lt,H*dk] k_all:[B*Lkv,H*dk] v_all:[B*Lkv,H*dv]
        mask:[B,Lt,Lkv] bool. Returns ctx [B*Lt,H*dv], attn [B,Lt,H*Lkv]."""
        ctx_heads, attn_heads = [], []
        for h in range(N_HEADS):                       # static unroll (H=4)
            q_h = q_all[:, h * D_K:(h + 1) * D_K].reshape(B, Lt, D_K)
            k_h = k_all[:, h * D_K:(h + 1) * D_K].reshape(B, Lkv, D_K)
            v_h = v_all[:, h * D_V:(h + 1) * D_V].reshape(B, Lkv, D_V)
            s = jnp.einsum("bqd,bkd->bqk", q_h, k_h,
                           preferred_element_type=f32) * scale
            s = jnp.where(mask, f32(NEG_INF), s)
            m = jnp.max(s, axis=-1, keepdims=True)
            e = jnp.exp(s - m)
            p = e * pl.reciprocal(jnp.sum(e, axis=-1, keepdims=True),
                                  approx=True)
            ctx_h = jnp.einsum("bqk,bkd->bqd", p, v_h,
                               preferred_element_type=f32)
            ctx_heads.append(ctx_h.reshape(B * Lt, D_V))
            attn_heads.append(p)
        ctx = jnp.concatenate(ctx_heads, axis=-1)      # [B*Lt, H*dv]
        attn = jnp.concatenate(attn_heads, axis=-1)    # [B, Lt, H*Lkv]
        return ctx, attn

    # ---- embedding as one-hot matmul (keeps the gather inside the kernel) -
    ids = dec_ids_ref[...]                                       # [B*Lt, 1]
    vocab_iota = jax.lax.broadcasted_iota(jnp.int32, (B * Lt, VOCAB), 1)
    one_hot = (ids == vocab_iota).astype(f32)                    # [B*Lt, V]
    x = jnp.dot(one_hot, emb_ref[...], preferred_element_type=f32)
    x = x + pe_ref[...]                                          # [B*Lt, D]

    # ---- masks built in-kernel (pad rows + causal from iota) --------------
    row = jax.lax.broadcasted_iota(jnp.int32, (B, Lt, Lt), 1)
    col = jax.lax.broadcasted_iota(jnp.int32, (B, Lt, Lt), 2)
    causal = (col > row).astype(f32)
    self_mask = (dec_pad_ref[...] + causal) > 0.0                # [B,Lt,Lt]
    cross_mask = jnp.broadcast_to(enc_pad_ref[...], (B, Lt, Ls)) > 0.0

    enc = enc_ref[...]                                           # [B*Ls, D]

    for li in range(N_LAYERS):                         # static unroll (2)
        # ----- masked self-attention (fused QKV projection) ----------------
        qkv = jnp.dot(x, w_qkv_s_ref[li],
                      preferred_element_type=f32) + b_qkv_s_ref[li]
        q = qkv[:, 0:N_HEADS * D_K]
        k = qkv[:, N_HEADS * D_K:2 * N_HEADS * D_K]
        v = qkv[:, 2 * N_HEADS * D_K:3 * N_HEADS * D_K]
        ctx, attn_s = mha(q, k, v, self_mask, Lt)
        o = jnp.dot(ctx, w_o_s_ref[li],
                    preferred_element_type=f32) + b_o_s_ref[li]
        x = layer_norm(o + x, g_s_ref[li], be_s_ref[li])
        self_attn_ref[li] = attn_s

        # ----- encoder-decoder attention (fused KV projection) -------------
        qc = jnp.dot(x, w_q_c_ref[li],
                     preferred_element_type=f32) + b_q_c_ref[li]
        kvc = jnp.dot(enc, w_kv_c_ref[li],
                      preferred_element_type=f32) + b_kv_c_ref[li]
        kc = kvc[:, 0:N_HEADS * D_K]
        vc = kvc[:, N_HEADS * D_K:N_HEADS * (D_K + D_V)]
        ctx_c, attn_c = mha(qc, kc, vc, cross_mask, Ls)
        oc = jnp.dot(ctx_c, w_o_c_ref[li],
                     preferred_element_type=f32) + b_o_c_ref[li]
        x = layer_norm(oc + x, g_c_ref[li], be_c_ref[li])
        enc_attn_ref[li] = attn_c

        # ----- position-wise FFN (w1 + ReLU + w2 + add&LN) ------------------
        h1 = jnp.maximum(jnp.dot(x, w_f1_ref[li],
                                 preferred_element_type=f32) + b_f1_ref[li],
                         0.0)
        y = jnp.dot(h1, w_f2_ref[li],
                    preferred_element_type=f32) + b_f2_ref[li]
        x = layer_norm(y + x, g_f_ref[li], be_f_ref[li])

    out_ref[...] = x


# ============================ host-side glue ===============================

def positional_encoding_table(max_len, d_model):
    pos = jnp.arange(max_len, dtype=jnp.float32)[:, None]
    div = jnp.exp(jnp.arange(0, d_model, 2, dtype=jnp.float32)
                  * (-math.log(10000.0) / d_model))
    pe = jnp.zeros((max_len, d_model), dtype=jnp.float32)
    pe = pe.at[:, 0::2].set(jnp.sin(pos * div))
    pe = pe.at[:, 1::2].set(jnp.cos(pos * div))
    return pe


def init_params(key):
    k_emb, k_rest = jax.random.split(key)
    params = {"emb": jax.random.normal(k_emb, (VOCAB, D_MODEL),
                                       jnp.float32) * 0.02}

    def w(kk, fi, fo):
        return jax.random.normal(kk, (fi, fo), jnp.float32) * 0.02

    buf = {name: [] for name in WEIGHT_ORDER}
    layer_keys = jax.random.split(k_rest, N_LAYERS)
    for li in range(N_LAYERS):
        ks = jax.random.split(layer_keys[li], 7)
        buf["w_qkv_s"].append(w(ks[0], D_MODEL, 3 * N_HEADS * D_K))
        buf["b_qkv_s"].append(jnp.zeros((1, 3 * N_HEADS * D_K), jnp.float32))
        buf["w_o_s"].append(w(ks[1], N_HEADS * D_V, D_MODEL))
        buf["b_o_s"].append(jnp.zeros((1, D_MODEL), jnp.float32))
        buf["g_s"].append(jnp.ones((1, D_MODEL), jnp.float32))
        buf["be_s"].append(jnp.zeros((1, D_MODEL), jnp.float32))
        buf["w_q_c"].append(w(ks[2], D_MODEL, N_HEADS * D_K))
        buf["b_q_c"].append(jnp.zeros((1, N_HEADS * D_K), jnp.float32))
        buf["w_kv_c"].append(w(ks[3], D_MODEL, N_HEADS * (D_K + D_V)))
        buf["b_kv_c"].append(jnp.zeros((1, N_HEADS * (D_K + D_V)),
                                       jnp.float32))
        buf["w_o_c"].append(w(ks[4], N_HEADS * D_V, D_MODEL))
        buf["b_o_c"].append(jnp.zeros((1, D_MODEL), jnp.float32))
        buf["g_c"].append(jnp.ones((1, D_MODEL), jnp.float32))
        buf["be_c"].append(jnp.zeros((1, D_MODEL), jnp.float32))
        buf["w_f1"].append(w(ks[5], D_MODEL, D_FF))
        buf["b_f1"].append(jnp.zeros((1, D_FF), jnp.float32))
        buf["w_f2"].append(w(ks[6], D_FF, D_MODEL))
        buf["b_f2"].append(jnp.zeros((1, D_MODEL), jnp.float32))
        buf["g_f"].append(jnp.ones((1, D_MODEL), jnp.float32))
        buf["be_f"].append(jnp.zeros((1, D_MODEL), jnp.float32))
    for name in WEIGHT_ORDER:
        params[name] = jnp.stack(buf[name])
    return params


@jax.jit
def decoder_forward(params, decoder_input, encoder_input, encoder_output):
    """decoder_input:[B,Lt] int32, encoder_input:[B,Ls] int32,
    encoder_output:[B,Ls,D_MODEL] f32."""
    B, Lt = decoder_input.shape
    Ls = encoder_input.shape[1]

    dec_ids_col = decoder_input.reshape(B * Lt, 1).astype(jnp.int32)
    dec_pad = (decoder_input == PAD_ID).astype(jnp.float32).reshape(B, 1, Lt)
    enc_pad = (encoder_input == PAD_ID).astype(jnp.float32).reshape(B, 1, Ls)
    pe_flat = jnp.tile(positional_encoding_table(Lt, D_MODEL), (B, 1))
    enc_flat = encoder_output.reshape(B * Ls, D_MODEL).astype(jnp.float32)

    out_flat, self_attn_all, enc_attn_all = pl.pallas_call(
        functools.partial(_decoder_kernel, B=B, Lt=Lt, Ls=Ls),
        out_shape=(
            jax.ShapeDtypeStruct((B * Lt, D_MODEL), jnp.float32),
            jax.ShapeDtypeStruct((N_LAYERS, B, Lt, N_HEADS * Lt), jnp.float32),
            jax.ShapeDtypeStruct((N_LAYERS, B, Lt, N_HEADS * Ls), jnp.float32),
        ),
    )(dec_ids_col, dec_pad, enc_pad, params["emb"], pe_flat, enc_flat,
      *[params[name] for name in WEIGHT_ORDER])

    dec_out = out_flat.reshape(B, Lt, D_MODEL)
    self_attns = [self_attn_all[li].reshape(B, Lt, N_HEADS, Lt)
                  .transpose(0, 2, 1, 3) for li in range(N_LAYERS)]
    enc_attns = [enc_attn_all[li].reshape(B, Lt, N_HEADS, Ls)
                 .transpose(0, 2, 1, 3) for li in range(N_LAYERS)]
    return dec_out, self_attns, enc_attns


# ===================== pure-JAX reference (for checking) ===================

def decoder_reference(params, decoder_input, encoder_input, encoder_output):
    B, Lt = decoder_input.shape
    Ls = encoder_input.shape[1]
    x = jnp.take(params["emb"], decoder_input, axis=0)
    x = x + positional_encoding_table(Lt, D_MODEL)[None]

    pad_self = (decoder_input == PAD_ID).astype(jnp.float32)[:, None, :]
    causal = jnp.triu(jnp.ones((Lt, Lt), jnp.float32), k=1)[None]
    self_mask = (pad_self + causal) > 0.0
    cross_mask = jnp.broadcast_to((encoder_input == PAD_ID)[:, None, :],
                                  (B, Lt, Ls))

    def ln(v, g, b):
        m = v.mean(-1, keepdims=True)
        var = ((v - m) ** 2).mean(-1, keepdims=True)
        return (v - m) / jnp.sqrt(var + LN_EPS) * g + b

    def mha(q, k, v, mask, Lq, Lk):
        qh = q.reshape(B, Lq, N_HEADS, D_K).transpose(0, 2, 1, 3)
        kh = k.reshape(B, Lk, N_HEADS, D_K).transpose(0, 2, 1, 3)
        vh = v.reshape(B, Lk, N_HEADS, D_V).transpose(0, 2, 1, 3)
        s = jnp.einsum("bhqd,bhkd->bhqk", qh, kh) / math.sqrt(D_K)
        s = jnp.where(mask[:, None], NEG_INF, s)
        p = jax.nn.softmax(s, axis=-1)
        ctx = jnp.einsum("bhqk,bhkd->bhqd", p, vh)
        ctx = ctx.transpose(0, 2, 1, 3).reshape(B, Lq, N_HEADS * D_V)
        return ctx, p

    self_attns, enc_attns = [], []
    for li in range(N_LAYERS):
        qkv = x @ params["w_qkv_s"][li] + params["b_qkv_s"][li]
        q, k, v = jnp.split(qkv, 3, axis=-1)
        ctx, p = mha(q, k, v, self_mask, Lt, Lt)
        x = ln(ctx @ params["w_o_s"][li] + params["b_o_s"][li] + x,
               params["g_s"][li], params["be_s"][li])
        self_attns.append(p)

        qc = x @ params["w_q_c"][li] + params["b_q_c"][li]
        kvc = encoder_output @ params["w_kv_c"][li] + params["b_kv_c"][li]
        kc, vc = jnp.split(kvc, 2, axis=-1)
        ctxc, pc = mha(qc, kc, vc, cross_mask, Lt, Ls)
        x = ln(ctxc @ params["w_o_c"][li] + params["b_o_c"][li] + x,
               params["g_c"][li], params["be_c"][li])
        enc_attns.append(pc)

        h1 = jnp.maximum(x @ params["w_f1"][li] + params["b_f1"][li], 0.0)
        y = h1 @ params["w_f2"][li] + params["b_f2"][li]
        x = ln(y + x, params["g_f"][li], params["be_f"][li])
    return x, self_attns, enc_attns


# ================================ main =====================================

if __name__ == "__main__":
    key = jax.random.PRNGKey(0)
    k_par, k_dec, k_enc, k_eo = jax.random.split(key, 4)

    B, TGT_LEN, SRC_LEN = 2, 8, 8

    params = init_params(k_par)

    # token ids in [1, VOCAB); trailing PADs exercise the pad masks.
    decoder_input = jax.random.randint(k_dec, (B, TGT_LEN), 1, VOCAB,
                                       dtype=jnp.int32)
    decoder_input = decoder_input.at[:, -2:].set(PAD_ID)
    encoder_input = jax.random.randint(k_enc, (B, SRC_LEN), 1, VOCAB,
                                       dtype=jnp.int32)
    encoder_input = encoder_input.at[:, -1:].set(PAD_ID)
    encoder_output = jax.random.normal(k_eo, (B, SRC_LEN, D_MODEL),
                                       jnp.float32)

    dec_out, self_attns, enc_attns = decoder_forward(
        params, decoder_input, encoder_input, encoder_output)
    jax.block_until_ready(dec_out)

    # shape / sanity checks
    assert dec_out.shape == (B, TGT_LEN, D_MODEL)
    assert len(self_attns) == N_LAYERS and len(enc_attns) == N_LAYERS
    assert self_attns[0].shape == (B, N_HEADS, TGT_LEN, TGT_LEN)
    assert enc_attns[0].shape == (B, N_HEADS, TGT_LEN, SRC_LEN)
    assert bool(jnp.all(jnp.isfinite(dec_out)))

    # numerical check against a pure-JAX reference of the same decoder
    ref_out, ref_self, ref_enc = decoder_reference(
        params, decoder_input, encoder_input, encoder_output)
    assert bool(jnp.allclose(dec_out, ref_out, atol=2e-2, rtol=2e-2))
    for li in range(N_LAYERS):
        assert bool(jnp.allclose(self_attns[li], ref_self[li],
                                 atol=2e-2, rtol=2e-2))
        assert bool(jnp.allclose(enc_attns[li], ref_enc[li],
                                 atol=2e-2, rtol=2e-2))

    print("KERNEL_OK")
</pallas_src>

<mosaic_0001>
module attributes {stable_mosaic.version = 11 : i64} {
  func.func @_decoder_kernel(%arg0: memref<16x1xi32, #tpu.memory_space<vmem>>, %arg1: memref<2x1x8xf32, #tpu.memory_space<vmem>>, %arg2: memref<2x1x8xf32, #tpu.memory_space<vmem>>, %arg3: memref<16x32xf32, #tpu.memory_space<vmem>>, %arg4: memref<16x32xf32, #tpu.memory_space<vmem>>, %arg5: memref<16x32xf32, #tpu.memory_space<vmem>>, %arg6: memref<2x32x96xf32, #tpu.memory_space<vmem>>, %arg7: memref<2x1x96xf32, #tpu.memory_space<vmem>>, %arg8: memref<2x32x32xf32, #tpu.memory_space<vmem>>, %arg9: memref<2x1x32xf32, #tpu.memory_space<vmem>>, %arg10: memref<2x1x32xf32, #tpu.memory_space<vmem>>, %arg11: memref<2x1x32xf32, #tpu.memory_space<vmem>>, %arg12: memref<2x32x32xf32, #tpu.memory_space<vmem>>, %arg13: memref<2x1x32xf32, #tpu.memory_space<vmem>>, %arg14: memref<2x32x64xf32, #tpu.memory_space<vmem>>, %arg15: memref<2x1x64xf32, #tpu.memory_space<vmem>>, %arg16: memref<2x32x32xf32, #tpu.memory_space<vmem>>, %arg17: memref<2x1x32xf32, #tpu.memory_space<vmem>>, %arg18: memref<2x1x32xf32, #tpu.memory_space<vmem>>, %arg19: memref<2x1x32xf32, #tpu.memory_space<vmem>>, %arg20: memref<2x32x64xf32, #tpu.memory_space<vmem>>, %arg21: memref<2x1x64xf32, #tpu.memory_space<vmem>>, %arg22: memref<2x64x32xf32, #tpu.memory_space<vmem>>, %arg23: memref<2x1x32xf32, #tpu.memory_space<vmem>>, %arg24: memref<2x1x32xf32, #tpu.memory_space<vmem>>, %arg25: memref<2x1x32xf32, #tpu.memory_space<vmem>>, %arg26: memref<16x32xf32, #tpu.memory_space<vmem>>, %arg27: memref<2x2x8x32xf32, #tpu.memory_space<vmem>>, %arg28: memref<2x2x8x32xf32, #tpu.memory_space<vmem>>) attributes {dimension_semantics = [], scalar_prefetch = 0 : i64, scratch_operands = 0 : i64, tpu.core_type = #tpu.core_type<tc>} {
    %c0 = arith.constant 0 : index
    %c0_0 = arith.constant 0 : index
    %0 = vector.load %arg0[%c0, %c0_0] : memref<16x1xi32, #tpu.memory_space<vmem>>, vector<16x1xi32>
    %1 = tpu.iota {dimensions = array<i32: 1>} : vector<16x16xi32>
    %2 = vector.broadcast %0 : vector<16x1xi32> to vector<16x16xi32>
    %3 = arith.cmpi eq, %2, %1 : vector<16x16xi32>
    %4 = arith.extui %3 : vector<16x16xi1> to vector<16x16xi32>
    %5 = arith.sitofp %4 : vector<16x16xi32> to vector<16x16xf32>
    %c0_1 = arith.constant 0 : index
    %c0_2 = arith.constant 0 : index
    %6 = vector.load %arg3[%c0_1, %c0_2] : memref<16x32xf32, #tpu.memory_space<vmem>>, vector<16x32xf32>
    %cst = arith.constant dense<0.000000e+00> : vector<16x32xf32>
    %7 = tpu.matmul %5, %6, %cst {dimension_numbers = #tpu.dot_dimension_numbers<[1], [0], [0], [1], [0, 0, 1, 1], [], []>} : vector<16x16xf32>, vector<16x32xf32>, vector<16x32xf32> -> vector<16x32xf32>
    %c0_3 = arith.constant 0 : index
    %c0_4 = arith.constant 0 : index
    %8 = vector.load %arg4[%c0_3, %c0_4] : memref<16x32xf32, #tpu.memory_space<vmem>>, vector<16x32xf32>
    %9 = arith.addf %7, %8 : vector<16x32xf32>
    %10 = tpu.iota {dimensions = array<i32: 1>} : vector<2x8x8xi32>
    %11 = tpu.iota {dimensions = array<i32: 2>} : vector<2x8x8xi32>
    %12 = arith.cmpi sgt, %11, %10 : vector<2x8x8xi32>
    %13 = arith.extui %12 : vector<2x8x8xi1> to vector<2x8x8xi32>
    %14 = arith.sitofp %13 : vector<2x8x8xi32> to vector<2x8x8xf32>
    %c0_5 = arith.constant 0 : index
    %c0_6 = arith.constant 0 : index
    %c0_7 = arith.constant 0 : index
    %15 = vector.load %arg1[%c0_5, %c0_6, %c0_7] : memref<2x1x8xf32, #tpu.memory_space<vmem>>, vector<2x1x8xf32>
    %16 = vector.broadcast %15 : vector<2x1x8xf32> to vector<2x8x8xf32>
    %17 = arith.addf %16, %14 : vector<2x8x8xf32>
    %cst_8 = arith.constant 0.000000e+00 : f32
    %18 = vector.broadcast %cst_8 : f32 to vector<2x8x8xf32>
    %19 = arith.cmpf ogt, %17, %18 : vector<2x8x8xf32>
    %c0_9 = arith.constant 0 : index
    %c0_10 = arith.constant 0 : index
    %c0_11 = arith.constant 0 : index
    %20 = vector.load %arg2[%c0_9, %c0_10, %c0_11] : memref<2x1x8xf32, #tpu.memory_space<vmem>>, vector<2x1x8xf32>
    %21 = vector.shape_cast %20 : vector<2x1x8xf32> to vector<2x1x8xf32>
    %22 = vector.broadcast %21 : vector<2x1x8xf32> to vector<2x8x8xf32>
    %cst_12 = arith.constant 0.000000e+00 : f32
    %23 = vector.broadcast %cst_12 : f32 to vector<2x8x8xf32>
    %24 = arith.cmpf ogt, %22, %23 : vector<2x8x8xf32>
    %c0_13 = arith.constant 0 : index
    %c0_14 = arith.constant 0 : index
    %25 = vector.load %arg5[%c0_13, %c0_14] : memref<16x32xf32, #tpu.memory_space<vmem>>, vector<16x32xf32>
    %c0_15 = arith.constant 0 : index
    %c0_16 = arith.constant 0 : index
    %c0_17 = arith.constant 0 : index
    %26 = vector.load %arg6[%c0_15, %c0_16, %c0_17] : memref<2x32x96xf32, #tpu.memory_space<vmem>>, vector<1x32x96xf32>
    %27 = vector.shape_cast %26 : vector<1x32x96xf32> to vector<32x96xf32>
    %cst_18 = arith.constant dense<0.000000e+00> : vector<16x96xf32>
    %28 = tpu.matmul %9, %27, %cst_18 {dimension_numbers = #tpu.dot_dimension_numbers<[1], [0], [0], [1], [0, 0, 1, 1], [], []>} : vector<16x32xf32>, vector<32x96xf32>, vector<16x96xf32> -> vector<16x96xf32>
    %c0_19 = arith.constant 0 : index
    %c0_20 = arith.constant 0 : index
    %c0_21 = arith.constant 0 : index
    %29 = vector.load %arg7[%c0_19, %c0_20, %c0_21] : memref<2x1x96xf32, #tpu.memory_space<vmem>>, vector<1x1x96xf32>
    %30 = vector.shape_cast %29 : vector<1x1x96xf32> to vector<1x96xf32>
    %31 = vector.broadcast %30 : vector<1x96xf32> to vector<16x96xf32>
    %32 = arith.addf %28, %31 : vector<16x96xf32>
    %33 = vector.extract_strided_slice %32 {offsets = [0, 0], sizes = [16, 32], strides = [1, 1]} : vector<16x96xf32> to vector<16x32xf32>
    %34 = vector.extract_strided_slice %32 {offsets = [0, 32], sizes = [16, 32], strides = [1, 1]} : vector<16x96xf32> to vector<16x32xf32>
    %35 = vector.extract_strided_slice %32 {offsets = [0, 64], sizes = [16, 32], strides = [1, 1]} : vector<16x96xf32> to vector<16x32xf32>
    %36 = vector.extract_strided_slice %33 {offsets = [0, 0], sizes = [16, 8], strides = [1, 1]} : vector<16x32xf32> to vector<16x8xf32>
    %37 = vector.shape_cast %36 : vector<16x8xf32> to vector<2x8x8xf32>
    %38 = vector.extract_strided_slice %34 {offsets = [0, 0], sizes = [16, 8], strides = [1, 1]} : vector<16x32xf32> to vector<16x8xf32>
    %39 = vector.shape_cast %38 : vector<16x8xf32> to vector<2x8x8xf32>
    %40 = vector.extract_strided_slice %35 {offsets = [0, 0], sizes = [16, 8], strides = [1, 1]} : vector<16x32xf32> to vector<16x8xf32>
    %41 = vector.shape_cast %40 : vector<16x8xf32> to vector<2x8x8xf32>
    "tpu.trace_start"() <{level = 10 : i32, message = "bqd,bkd->bqk"}> : () -> ()
    %cst_22 = arith.constant dense<0.000000e+00> : vector<2x8x8xf32>
    %42 = tpu.matmul %37, %39, %cst_22 {dimension_numbers = #tpu.dot_dimension_numbers<[2], [2], [1], [1], [0, 0, 0, 1, 1, 1], [0], [0]>} : vector<2x8x8xf32>, vector<2x8x8xf32>, vector<2x8x8xf32> -> vector<2x8x8xf32>
    "tpu.trace_stop"() : () -> ()
    %cst_23 = arith.constant 0.353553385 : f32
    %43 = vector.broadcast %cst_23 : f32 to vector<2x8x8xf32>
    %44 = arith.mulf %42, %43 : vector<2x8x8xf32>
    %cst_24 = arith.constant -1.000000e+09 : f32
    %45 = vector.broadcast %cst_24 : f32 to vector<2x8x8xf32>
    %46 = arith.select %19, %45, %44 : vector<2x8x8xi1>, vector<2x8x8xf32>
    %cst_25 = arith.constant dense<0xFF800000> : vector<2x8xf32>
    %47 = vector.multi_reduction <maximumf>, %46, %cst_25 [2] : vector<2x8x8xf32> to vector<2x8xf32>
    %48 = vector.shape_cast %47 : vector<2x8xf32> to vector<2x8x1xf32>
    %49 = vector.broadcast %48 : vector<2x8x1xf32> to vector<2x8x8xf32>
    %50 = arith.subf %46, %49 : vector<2x8x8xf32>
    %51 = math.exp %50 : vector<2x8x8xf32>
    %cst_26 = arith.constant dense<0.000000e+00> : vector<2x8xf32>
    %52 = vector.multi_reduction <add>, %51, %cst_26 [2] : vector<2x8x8xf32> to vector<2x8xf32>
    %53 = vector.shape_cast %52 : vector<2x8xf32> to vector<2x8x1xf32>
    %54 = tpu.reciprocal %53 {approx = true} : vector<2x8x1xf32> -> vector<2x8x1xf32>
    %55 = vector.broadcast %54 : vector<2x8x1xf32> to vector<2x8x8xf32>
    %56 = arith.mulf %51, %55 : vector<2x8x8xf32>
    "tpu.trace_start"() <{level = 10 : i32, message = "bqk,bkd->bqd"}> : () -> ()
    %cst_27 = arith.constant dense<0.000000e+00> : vector<2x8x8xf32>
    %57 = tpu.matmul %56, %41, %cst_27 {dimension_numbers = #tpu.dot_dimension_numbers<[2], [1], [1], [2], [0, 0, 0, 1, 1, 2], [0], [0]>} : vector<2x8x8xf32>, vector<2x8x8xf32>, vector<2x8x8xf32> -> vector<2x8x8xf32>
    "tpu.trace_stop"() : () -> ()
    %58 = vector.shape_cast %57 : vector<2x8x8xf32> to vector<16x8xf32>
    %59 = vector.extract_strided_slice %33 {offsets = [0, 8], sizes = [16, 8], strides = [1, 1]} : vector<16x32xf32> to vector<16x8xf32>
    %60 = vector.shape_cast %59 : vector<16x8xf32> to vector<2x8x8xf32>
    %61 = vector.extract_strided_slice %34 {offsets = [0, 8], sizes = [16, 8], strides = [1, 1]} : vector<16x32xf32> to vector<16x8xf32>
    %62 = vector.shape_cast %61 : vector<16x8xf32> to vector<2x8x8xf32>
    %63 = vector.extract_strided_slice %35 {offsets = [0, 8], sizes = [16, 8], strides = [1, 1]} : vector<16x32xf32> to vector<16x8xf32>
    %64 = vector.shape_cast %63 : vector<16x8xf32> to vector<2x8x8xf32>
    "tpu.trace_start"() <{level = 10 : i32, message = "bqd,bkd->bqk"}> : () -> ()
    %cst_28 = arith.constant dense<0.000000e+00> : vector<2x8x8xf32>
    %65 = tpu.matmul %60, %62, %cst_28 {dimension_numbers = #tpu.dot_dimension_numbers<[2], [2], [1], [1], [0, 0, 0, 1, 1, 1], [0], [0]>} : vector<2x8x8xf32>, vector<2x8x8xf32>, vector<2x8x8xf32> -> vector<2x8x8xf32>
    "tpu.trace_stop"() : () -> ()
    %cst_29 = arith.constant 0.353553385 : f32
    %66 = vector.broadcast %cst_29 : f32 to vector<2x8x8xf32>
    %67 = arith.mulf %65, %66 : vector<2x8x8xf32>
    %cst_30 = arith.constant -1.000000e+09 : f32
    %68 = vector.broadcast %cst_30 : f32 to vector<2x8x8xf32>
    %69 = arith.select %19, %68, %67 : vector<2x8x8xi1>, vector<2x8x8xf32>
    %cst_31 = arith.constant dense<0xFF800000> : vector<2x8xf32>
    %70 = vector.multi_reduction <maximumf>, %69, %cst_31 [2] : vector<2x8x8xf32> to vector<2x8xf32>
    %71 = vector.shape_cast %70 : vector<2x8xf32> to vector<2x8x1xf32>
    %72 = vector.broadcast %71 : vector<2x8x1xf32> to vector<2x8x8xf32>
    %73 = arith.subf %69, %72 : vector<2x8x8xf32>
    %74 = math.exp %73 : vector<2x8x8xf32>
    %cst_32 = arith.constant dense<0.000000e+00> : vector<2x8xf32>
    %75 = vector.multi_reduction <add>, %74, %cst_32 [2] : vector<2x8x8xf32> to vector<2x8xf32>
    %76 = vector.shape_cast %75 : vector<2x8xf32> to vector<2x8x1xf32>
    %77 = tpu.reciprocal %76 {approx = true} : vector<2x8x1xf32> -> vector<2x8x1xf32>
    %78 = vector.broadcast %77 : vector<2x8x1xf32> to vector<2x8x8xf32>
    %79 = arith.mulf %74, %78 : vector<2x8x8xf32>
    "tpu.trace_start"() <{level = 10 : i32, message = "bqk,bkd->bqd"}> : () -> ()
    %cst_33 = arith.constant dense<0.000000e+00> : vector<2x8x8xf32>
    %80 = tpu.matmul %79, %64, %cst_33 {dimension_numbers = #tpu.dot_dimension_numbers<[2], [1], [1], [2], [0, 0, 0, 1, 1, 2], [0], [0]>} : vector<2x8x8xf32>, vector<2x8x8xf32>, vector<2x8x8xf32> -> vector<2x8x8xf32>
    "tpu.trace_stop"() : () -> ()
    %81 = vector.shape_cast %80 : vector<2x8x8xf32> to vector<16x8xf32>
    %82 = vector.extract_strided_slice %33 {offsets = [0, 16], sizes = [16, 8], strides = [1, 1]} : vector<16x32xf32> to vector<16x8xf32>
    %83 = vector.shape_cast %82 : vector<16x8xf32> to vector<2x8x8xf32>
    %84 = vector.extract_strided_slice %34 {offsets = [0, 16], sizes = [16, 8], strides = [1, 1]} : vector<16x32xf32> to vector<16x8xf32>
    %85 = vector.shape_cast %84 : vector<16x8xf32> to vector<2x8x8xf32>
    %86 = vector.extract_strided_slice %35 {offsets = [0, 16], sizes = [16, 8], strides = [1, 1]} : vector<16x32xf32> to vector<16x8xf32>
    %87 = vector.shape_cast %86 : vector<16x8xf32> to vector<2x8x8xf32>
    "tpu.trace_start"() <{level = 10 : i32, message = "bqd,bkd->bqk"}> : () -> ()
    %cst_34 = arith.constant dense<0.000000e+00> : vector<2x8x8xf32>
    %88 = tpu.matmul %83, %85, %cst_34 {dimension_numbers = #tpu.dot_dimension_numbers<[2], [2], [1], [1], [0, 0, 0, 1, 1, 1], [0], [0]>} : vector<2x8x8xf32>, vector<2x8x8xf32>, vector<2x8x8xf32> -> vector<2x8x8xf32>
    "tpu.trace_stop"() : () -> ()
    %cst_35 = arith.constant 0.353553385 : f32
    %89 = vector.broadcast %cst_35 : f32 to vector<2x8x8xf32>
    %90 = arith.mulf %88, %89 : vector<2x8x8xf32>
    %cst_36 = arith.constant -1.000000e+09 : f32
    %91 = vector.broadcast %cst_36 : f32 to vector<2x8x8xf32>
    %92 = arith.select %19, %91, %90 : vector<2x8x8xi1>, vector<2x8x8xf32>
    %cst_37 = arith.constant dense<0xFF800000> : vector<2x8xf32>
    %93 = vector.multi_reduction <maximumf>, %92, %cst_37 [2] : vector<2x8x8xf32> to vector<2x8xf32>
    %94 = vector.shape_cast %93 : vector<2x8xf32> to vector<2x8x1xf32>
    %95 = vector.broadcast %94 : vector<2x8x1xf32> to vector<2x8x8xf32>
    %96 = arith.subf %92, %95 : vector<2x8x8xf32>
    %97 = math.exp %96 : vector<2x8x8xf32>
    %cst_38 = arith.constant dense<0.000000e+00> : vector<2x8xf32>
    %98 = vector.multi_reduction <add>, %97, %cst_38 [2] : vector<2x8x8xf32> to vector<2x8xf32>
    %99 = vector.shape_cast %98 : vector<2x8xf32> to vector<2x8x1xf32>
    %100 = tpu.reciprocal %99 {approx = true} : vector<2x8x1xf32> -> vector<2x8x1xf32>
    %101 = vector.broadcast %100 : vector<2x8x1xf32> to vector<2x8x8xf32>
    %102 = arith.mulf %97, %101 : vector<2x8x8xf32>
    "tpu.trace_start"() <{level = 10 : i32, message = "bqk,bkd->bqd"}> : () -> ()
    %cst_39 = arith.constant dense<0.000000e+00> : vector<2x8x8xf32>
    %103 = tpu.matmul %102, %87, %cst_39 {dimension_numbers = #tpu.dot_dimension_numbers<[2], [1], [1], [2], [0, 0, 0, 1, 1, 2], [0], [0]>} : vector<2x8x8xf32>, vector<2x8x8xf32>, vector<2x8x8xf32> -> vector<2x8x8xf32>
    "tpu.trace_stop"() : () -> ()
    %104 = vector.shape_cast %103 : vector<2x8x8xf32> to vector<16x8xf32>
    %105 = vector.extract_strided_slice %33 {offsets = [0, 24], sizes = [16, 8], strides = [1, 1]} : vector<16x32xf32> to vector<16x8xf32>
    %106 = vector.shape_cast %105 : vector<16x8xf32> to vector<2x8x8xf32>
    %107 = vector.extract_strided_slice %34 {offsets = [0, 24], sizes = [16, 8], strides = [1, 1]} : vector<16x32xf32> to vector<16x8xf32>
    %108 = vector.shape_cast %107 : vector<16x8xf32> to vector<2x8x8xf32>
    %109 = vector.extract_strided_slice %35 {offsets = [0, 24], sizes = [16, 8], strides = [1, 1]} : vector<16x32xf32> to vector<16x8xf32>
    %110 = vector.shape_cast %109 : vector<16x8xf32> to vector<2x8x8xf32>
    "tpu.trace_start"() <{level = 10 : i32, message = "bqd,bkd->bqk"}> : () -> ()
    %cst_40 = arith.constant dense<0.000000e+00> : vector<2x8x8xf32>
    %111 = tpu.matmul %106, %108, %cst_40 {dimension_numbers = #tpu.dot_dimension_numbers<[2], [2], [1], [1], [0, 0, 0, 1, 1, 1], [0], [0]>} : vector<2x8x8xf32>, vector<2x8x8xf32>, vector<2x8x8xf32> -> vector<2x8x8xf32>
    "tpu.trace_stop"() : () -> ()
    %cst_41 = arith.constant 0.353553385 : f32
    %112 = vector.broadcast %cst_41 : f32 to vector<2x8x8xf32>
    %113 = arith.mulf %111, %112 : vector<2x8x8xf32>
    %cst_42 = arith.constant -1.000000e+09 : f32
    %114 = vector.broadcast %cst_42 : f32 to vector<2x8x8xf32>
    %115 = arith.select %19, %114, %113 : vector<2x8x8xi1>, vector<2x8x8xf32>
    %cst_43 = arith.constant dense<0xFF800000> : vector<2x8xf32>
    %116 = vector.multi_reduction <maximumf>, %115, %cst_43 [2] : vector<2x8x8xf32> to vector<2x8xf32>
    %117 = vector.shape_cast %116 : vector<2x8xf32> to vector<2x8x1xf32>
    %118 = vector.broadcast %117 : vector<2x8x1xf32> to vector<2x8x8xf32>
    %119 = arith.subf %115, %118 : vector<2x8x8xf32>
    %120 = math.exp %119 : vector<2x8x8xf32>
    %cst_44 = arith.constant dense<0.000000e+00> : vector<2x8xf32>
    %121 = vector.multi_reduction <add>, %120, %cst_44 [2] : vector<2x8x8xf32> to vector<2x8xf32>
    %122 = vector.shape_cast %121 : vector<2x8xf32> to vector<2x8x1xf32>
    %123 = tpu.reciprocal %122 {approx = true} : vector<2x8x1xf32> -> vector<2x8x1xf32>
    %124 = vector.broadcast %123 : vector<2x8x1xf32> to vector<2x8x8xf32>
    %125 = arith.mulf %120, %124 : vector<2x8x8xf32>
    "tpu.trace_start"() <{level = 10 : i32, message = "bqk,bkd->bqd"}> : () -> ()
    %cst_45 = arith.constant dense<0.000000e+00> : vector<2x8x8xf32>
    %126 = tpu.matmul %125, %110, %cst_45 {dimension_numbers = #tpu.dot_dimension_numbers<[2], [1], [1], [2], [0, 0, 0, 1, 1, 2], [0], [0]>} : vector<2x8x8xf32>, vector<2x8x8xf32>, vector<2x8x8xf32> -> vector<2x8x8xf32>
    "tpu.trace_stop"() : () -> ()
    %127 = vector.shape_cast %126 : vector<2x8x8xf32> to vector<16x8xf32>
    %128 = tpu.concatenate %58, %81, %104, %127 in 1 : vector<16x8xf32>, vector<16x8xf32>, vector<16x8xf32>, vector<16x8xf32> -> vector<16x32xf32>
    %129 = tpu.concatenate %56, %79, %102, %125 in 2 : vector<2x8x8xf32>, vector<2x8x8xf32>, vector<2x8x8xf32>, vector<2x8x8xf32> -> vector<2x8x32xf32>
    %c0_46 = arith.constant 0 : index
    %c0_47 = arith.constant 0 : index
    %c0_48 = arith.constant 0 : index
    %130 = vector.load %arg8[%c0_46, %c0_47, %c0_48] : memref<2x32x32xf32, #tpu.memory_space<vmem>>, vector<1x32x32xf32>
    %131 = vector.shape_cast %130 : vector<1x32x32xf32> to vector<32x32xf32>
    %cst_49 = arith.constant dense<0.000000e+00> : vector<16x32xf32>
    %132 = tpu.matmul %128, %131, %cst_49 {dimension_numbers = #tpu.dot_dimension_numbers<[1], [0], [0], [1], [0, 0, 1, 1], [], []>} : vector<16x32xf32>, vector<32x32xf32>, vector<16x32xf32> -> vector<16x32xf32>
    %c0_50 = arith.constant 0 : index
    %c0_51 = arith.constant 0 : index
    %c0_52 = arith.constant 0 : index
    %133 = vector.load %arg9[%c0_50, %c0_51, %c0_52] : memref<2x1x32xf32, #tpu.memory_space<vmem>>, vector<1x1x32xf32>
    %134 = vector.shape_cast %133 : vector<1x1x32xf32> to vector<1x32xf32>
    %135 = vector.broadcast %134 : vector<1x32xf32> to vector<16x32xf32>
    %136 = arith.addf %132, %135 : vector<16x32xf32>
    %137 = arith.addf %136, %9 : vector<16x32xf32>
    %c0_53 = arith.constant 0 : index
    %c0_54 = arith.constant 0 : index
    %c0_55 = arith.constant 0 : index
    %138 = vector.load %arg10[%c0_53, %c0_54, %c0_55] : memref<2x1x32xf32, #tpu.memory_space<vmem>>, vector<1x1x32xf32>
    %139 = vector.shape_cast %138 : vector<1x1x32xf32> to vector<1x32xf32>
    %c0_56 = arith.constant 0 : index
    %c0_57 = arith.constant 0 : index
    %c0_58 = arith.constant 0 : index
    %140 = vector.load %arg11[%c0_56, %c0_57, %c0_58] : memref<2x1x32xf32, #tpu.memory_space<vmem>>, vector<1x1x32xf32>
    %141 = vector.shape_cast %140 : vector<1x1x32xf32> to vector<1x32xf32>
    %cst_59 = arith.constant dense<0.000000e+00> : vector<16xf32>
    %142 = vector.multi_reduction <add>, %137, %cst_59 [1] : vector<16x32xf32> to vector<16xf32>
    %143 = vector.shape_cast %142 : vector<16xf32> to vector<16x1xf32>
    %cst_60 = arith.constant 3.200000e+01 : f32
    %144 = vector.broadcast %cst_60 : f32 to vector<16x1xf32>
    %145 = arith.divf %143, %144 : vector<16x1xf32>
    %146 = vector.broadcast %145 : vector<16x1xf32> to vector<16x32xf32>
    %147 = arith.subf %137, %146 : vector<16x32xf32>
    %148 = arith.mulf %147, %147 : vector<16x32xf32>
    %cst_61 = arith.constant dense<0.000000e+00> : vector<16xf32>
    %149 = vector.multi_reduction <add>, %148, %cst_61 [1] : vector<16x32xf32> to vector<16xf32>
    %150 = vector.shape_cast %149 : vector<16xf32> to vector<16x1xf32>
    %cst_62 = arith.constant 3.200000e+01 : f32
    %151 = vector.broadcast %cst_62 : f32 to vector<16x1xf32>
    %152 = arith.divf %150, %151 : vector<16x1xf32>
    %153 = vector.broadcast %145 : vector<16x1xf32> to vector<16x32xf32>
    %154 = arith.subf %137, %153 : vector<16x32xf32>
    %cst_63 = arith.constant 9.99999974E-6 : f32
    %155 = vector.broadcast %cst_63 : f32 to vector<16x1xf32>
    %156 = arith.addf %152, %155 : vector<16x1xf32>
    %157 = math.rsqrt %156 : vector<16x1xf32>
    %158 = vector.broadcast %157 : vector<16x1xf32> to vector<16x32xf32>
    %159 = arith.mulf %154, %158 : vector<16x32xf32>
    %160 = vector.broadcast %139 : vector<1x32xf32> to vector<16x32xf32>
    %161 = arith.mulf %159, %160 : vector<16x32xf32>
    %162 = vector.broadcast %141 : vector<1x32xf32> to vector<16x32xf32>
    %163 = arith.addf %161, %162 : vector<16x32xf32>
    %c0_64 = arith.constant 0 : index
    %c0_65 = arith.constant 0 : index
    %c0_66 = arith.constant 0 : index
    %c0_67 = arith.constant 0 : index
    %164 = vector.load %arg27[%c0_64, %c0_65, %c0_66, %c0_67] : memref<2x2x8x32xf32, #tpu.memory_space<vmem>>, vector<1x2x8x32xf32>
    %165 = vector.shape_cast %164 : vector<1x2x8x32xf32> to vector<2x8x32xf32>
    %166 = vector.shape_cast %129 : vector<2x8x32xf32> to vector<1x2x8x32xf32>
    tpu.vector_store %arg27[%c0_64, %c0_65, %c0_66, %c0_67], %166 {strides = array<i32>} : memref<2x2x8x32xf32, #tpu.memory_space<vmem>>, vector<1x2x8x32xf32>,
    %c0_68 = arith.constant 0 : index
    %c0_69 = arith.constant 0 : index
    %c0_70 = arith.constant 0 : index
    %167 = vector.load %arg12[%c0_68, %c0_69, %c0_70] : memref<2x32x32xf32, #tpu.memory_space<vmem>>, vector<1x32x32xf32>
    %168 = vector.shape_cast %167 : vector<1x32x32xf32> to vector<32x32xf32>
    %cst_71 = arith.constant dense<0.000000e+00> : vector<16x32xf32>
    %169 = tpu.matmul %163, %168, %cst_71 {dimension_numbers = #tpu.dot_dimension_numbers<[1], [0], [0], [1], [0, 0, 1, 1], [], []>} : vector<16x32xf32>, vector<32x32xf32>, vector<16x32xf32> -> vector<16x32xf32>
    %c0_72 = arith.constant 0 : index
    %c0_73 = arith.constant 0 : index
    %c0_74 = arith.constant 0 : index
    %170 = vector.load %arg13[%c0_72, %c0_73, %c0_74] : memref<2x1x32xf32, #tpu.memory_space<vmem>>, vector<1x1x32xf32>
    %171 = vector.shape_cast %170 : vector<1x1x32xf32> to vector<1x32xf32>
    %172 = vector.broadcast %171 : vector<1x32xf32> to vector<16x32xf32>
    %173 = arith.addf %169, %172 : vector<16x32xf32>
    %c0_75 = arith.constant 0 : index
    %c0_76 = arith.constant 0 : index
    %c0_77 = arith.constant 0 : index
    %174 = vector.load %arg14[%c0_75, %c0_76, %c0_77] : memref<2x32x64xf32, #tpu.memory_space<vmem>>, vector<1x32x64xf32>
    %175 = vector.shape_cast %174 : vector<1x32x64xf32> to vector<32x64xf32>
    %cst_78 = arith.constant dense<0.000000e+00> : vector<16x64xf32>
    %176 = tpu.matmul %25, %175, %cst_78 {dimension_numbers = #tpu.dot_dimension_numbers<[1], [0], [0], [1], [0, 0, 1, 1], [], []>} : vector<16x32xf32>, vector<32x64xf32>, vector<16x64xf32> -> vector<16x64xf32>
    %c0_79 = arith.constant 0 : index
    %c0_80 = arith.constant 0 : index
    %c0_81 = arith.constant 0 : index
    %177 = vector.load %arg15[%c0_79, %c0_80, %c0_81] : memref<2x1x64xf32, #tpu.memory_space<vmem>>, vector<1x1x64xf32>
    %178 = vector.shape_cast %177 : vector<1x1x64xf32> to vector<1x64xf32>
    %179 = vector.broadcast %178 : vector<1x64xf32> to vector<16x64xf32>
    %180 = arith.addf %176, %179 : vector<16x64xf32>
    %181 = vector.extract_strided_slice %180 {offsets = [0, 0], sizes = [16, 32], strides = [1, 1]} : vector<16x64xf32> to vector<16x32xf32>
    %182 = vector.extract_strided_slice %180 {offsets = [0, 32], sizes = [16, 32], strides = [1, 1]} : vector<16x64xf32> to vector<16x32xf32>
    %183 = vector.extract_strided_slice %173 {offsets = [0, 0], sizes = [16, 8], strides = [1, 1]} : vector<16x32xf32> to vector<16x8xf32>
    %184 = vector.shape_cast %183 : vector<16x8xf32> to vector<2x8x8xf32>
    %185 = vector.extract_strided_slice %181 {offsets = [0, 0], sizes = [16, 8], strides = [1, 1]} : vector<16x32xf32> to vector<16x8xf32>
    %186 = vector.shape_cast %185 : vector<16x8xf32> to vector<2x8x8xf32>
    %187 = vector.extract_strided_slice %182 {offsets = [0, 0], sizes = [16, 8], strides = [1, 1]} : vector<16x32xf32> to vector<16x8xf32>
    %188 = vector.shape_cast %187 : vector<16x8xf32> to vector<2x8x8xf32>
    "tpu.trace_start"() <{level = 10 : i32, message = "bqd,bkd->bqk"}> : () -> ()
    %cst_82 = arith.constant dense<0.000000e+00> : vector<2x8x8xf32>
    %189 = tpu.matmul %184, %186, %cst_82 {dimension_numbers = #tpu.dot_dimension_numbers<[2], [2], [1], [1], [0, 0, 0, 1, 1, 1], [0], [0]>} : vector<2x8x8xf32>, vector<2x8x8xf32>, vector<2x8x8xf32> -> vector<2x8x8xf32>
    "tpu.trace_stop"() : () -> ()
    %cst_83 = arith.constant 0.353553385 : f32
    %190 = vector.broadcast %cst_83 : f32 to vector<2x8x8xf32>
    %191 = arith.mulf %189, %190 : vector<2x8x8xf32>
    %cst_84 = arith.constant -1.000000e+09 : f32
    %192 = vector.broadcast %cst_84 : f32 to vector<2x8x8xf32>
    %193 = arith.select %24, %192, %191 : vector<2x8x8xi1>, vector<2x8x8xf32>
    %cst_85 = arith.constant dense<0xFF800000> : vector<2x8xf32>
    %194 = vector.multi_reduction <maximumf>, %193, %cst_85 [2] : vector<2x8x8xf32> to vector<2x8xf32>
    %195 = vector.shape_cast %194 : vector<2x8xf32> to vector<2x8x1xf32>
    %196 = vector.broadcast %195 : vector<2x8x1xf32> to vector<2x8x8xf32>
    %197 = arith.subf %193, %196 : vector<2x8x8xf32>
    %198 = math.exp %197 : vector<2x8x8xf32>
    %cst_86 = arith.constant dense<0.000000e+00> : vector<2x8xf32>
    %199 = vector.multi_reduction <add>, %198, %cst_86 [2] : vector<2x8x8xf32> to vector<2x8xf32>
    %200 = vector.shape_cast %199 : vector<2x8xf32> to vector<2x8x1xf32>
    %201 = tpu.reciprocal %200 {approx = true} : vector<2x8x1xf32> -> vector<2x8x1xf32>
    %202 = vector.broadcast %201 : vector<2x8x1xf32> to vector<2x8x8xf32>
    %203 = arith.mulf %198, %202 : vector<2x8x8xf32>
    "tpu.trace_start"() <{level = 10 : i32, message = "bqk,bkd->bqd"}> : () -> ()
    %cst_87 = arith.constant dense<0.000000e+00> : vector<2x8x8xf32>
    %204 = tpu.matmul %203, %188, %cst_87 {dimension_numbers = #tpu.dot_dimension_numbers<[2], [1], [1], [2], [0, 0, 0, 1, 1, 2], [0], [0]>} : vector<2x8x8xf32>, vector<2x8x8xf32>, vector<2x8x8xf32> -> vector<2x8x8xf32>
    "tpu.trace_stop"() : () -> ()
    %205 = vector.shape_cast %204 : vector<2x8x8xf32> to vector<16x8xf32>
    %206 = vector.extract_strided_slice %173 {offsets = [0, 8], sizes = [16, 8], strides = [1, 1]} : vector<16x32xf32> to vector<16x8xf32>
    %207 = vector.shape_cast %206 : vector<16x8xf32> to vector<2x8x8xf32>
    %208 = vector.extract_strided_slice %181 {offsets = [0, 8], sizes = [16, 8], strides = [1, 1]} : vector<16x32xf32> to vector<16x8xf32>
    %209 = vector.shape_cast %208 : vector<16x8xf32> to vector<2x8x8xf32>
    %210 = vector.extract_strided_slice %182 {offsets = [0, 8], sizes = [16, 8], strides = [1, 1]} : vector<16x32xf32> to vector<16x8xf32>
    %211 = vector.shape_cast %210 : vector<16x8xf32> to vector<2x8x8xf32>
    "tpu.trace_start"() <{level = 10 : i32, message = "bqd,bkd->bqk"}> : () -> ()
    %cst_88 = arith.constant dense<0.000000e+00> : vector<2x8x8xf32>
    %212 = tpu.matmul %207, %209, %cst_88 {dimension_numbers = #tpu.dot_dimension_numbers<[2], [2], [1], [1], [0, 0, 0, 1, 1, 1], [0], [0]>} : vector<2x8x8xf32>, vector<2x8x8xf32>, vector<2x8x8xf32> -> vector<2x8x8xf32>
    "tpu.trace_stop"() : () -> ()
    %cst_89 = arith.constant 0.353553385 : f32
    %213 = vector.broadcast %cst_89 : f32 to vector<2x8x8xf32>
    %214 = arith.mulf %212, %213 : vector<2x8x8xf32>
    %cst_90 = arith.constant -1.000000e+09 : f32
    %215 = vector.broadcast %cst_90 : f32 to vector<2x8x8xf32>
    %216 = arith.select %24, %215, %214 : vector<2x8x8xi1>, vector<2x8x8xf32>
    %cst_91 = arith.constant dense<0xFF800000> : vector<2x8xf32>
    %217 = vector.multi_reduction <maximumf>, %216, %cst_91 [2] : vector<2x8x8xf32> to vector<2x8xf32>
    %218 = vector.shape_cast %217 : vector<2x8xf32> to vector<2x8x1xf32>
    %219 = vector.broadcast %218 : vector<2x8x1xf32> to vector<2x8x8xf32>
    %220 = arith.subf %216, %219 : vector<2x8x8xf32>
    %221 = math.exp %220 : vector<2x8x8xf32>
    %cst_92 = arith.constant dense<0.000000e+00> : vector<2x8xf32>
    %222 = vector.multi_reduction <add>, %221, %cst_92 [2] : vector<2x8x8xf32> to vector<2x8xf32>
    %223 = vector.shape_cast %222 : vector<2x8xf32> to vector<2x8x1xf32>
    %224 = tpu.reciprocal %223 {approx = true} : vector<2x8x1xf32> -> vector<2x8x1xf32>
    %225 = vector.broadcast %224 : vector<2x8x1xf32> to vector<2x8x8xf32>
    %226 = arith.mulf %221, %225 : vector<2x8x8xf32>
    "tpu.trace_start"() <{level = 10 : i32, message = "bqk,bkd->bqd"}> : () -> ()
    %cst_93 = arith.constant dense<0.000000e+00> : vector<2x8x8xf32>
    %227 = tpu.matmul %226, %211, %cst_93 {dimension_numbers = #tpu.dot_dimension_numbers<[2], [1], [1], [2], [0, 0, 0, 1, 1, 2], [0], [0]>} : vector<2x8x8xf32>, vector<2x8x8xf32>, vector<2x8x8xf32> -> vector<2x8x8xf32>
    "tpu.trace_stop"() : () -> ()
    %228 = vector.shape_cast %227 : vector<2x8x8xf32> to vector<16x8xf32>
    %229 = vector.extract_strided_slice %173 {offsets = [0, 16], sizes = [16, 8], strides = [1, 1]} : vector<16x32xf32> to vector<16x8xf32>
    %230 = vector.shape_cast %229 : vector<16x8xf32> to vector<2x8x8xf32>
    %231 = vector.extract_strided_slice %181 {offsets = [0, 16], sizes = [16, 8], strides = [1, 1]} : vector<16x32xf32> to vector<16x8xf32>
    %232 = vector.shape_cast %231 : vector<16x8xf32> to vector<2x8x8xf32>
    %233 = vector.extract_strided_slice %182 {offsets = [0, 16], sizes = [16, 8], strides = [1, 1]} : vector<16x32xf32> to vector<16x8xf32>
    %234 = vector.shape_cast %233 : vector<16x8xf32> to vector<2x8x8xf32>
    "tpu.trace_start"() <{level = 10 : i32, message = "bqd,bkd->bqk"}> : () -> ()
    %cst_94 = arith.constant dense<0.000000e+00> : vector<2x8x8xf32>
    %235 = tpu.matmul %230, %232, %cst_94 {dimension_numbers = #tpu.dot_dimension_numbers<[2], [2], [1], [1], [0, 0, 0, 1, 1, 1], [0], [0]>} : vector<2x8x8xf32>, vector<2x8x8xf32>, vector<2x8x8xf32> -> vector<2x8x8xf32>
    "tpu.trace_stop"() : () -> ()
    %cst_95 = arith.constant 0.353553385 : f32
    %236 = vector.broadcast %cst_95 : f32 to vector<2x8x8xf32>
    %237 = arith.mulf %235, %236 : vector<2x8x8xf32>
    %cst_96 = arith.constant -1.000000e+09 : f32
    %238 = vector.broadcast %cst_96 : f32 to vector<2x8x8xf32>
    %239 = arith.select %24, %238, %237 : vector<2x8x8xi1>, vector<2x8x8xf32>
    %cst_97 = arith.constant dense<0xFF800000> : vector<2x8xf32>
    %240 = vector.multi_reduction <maximumf>, %239, %cst_97 [2] : vector<2x8x8xf32> to vector<2x8xf32>
    %241 = vector.shape_cast %240 : vector<2x8xf32> to vector<2x8x1xf32>
    %242 = vector.broadcast %241 : vector<2x8x1xf32> to vector<2x8x8xf32>
    %243 = arith.subf %239, %242 : vector<2x8x8xf32>
    %244 = math.exp %243 : vector<2x8x8xf32>
    %cst_98 = arith.constant dense<0.000000e+00> : vector<2x8xf32>
    %245 = vector.multi_reduction <add>, %244, %cst_98 [2] : vector<2x8x8xf32> to vector<2x8xf32>
    %246 = vector.shape_cast %245 : vector<2x8xf32> to vector<2x8x1xf32>
    %247 = tpu.reciprocal %246 {approx = true} : vector<2x8x1xf32> -> vector<2x8x1xf32>
    %248 = vector.broadcast %247 : vector<2x8x1xf32> to vector<2x8x8xf32>
    %249 = arith.mulf %244, %248 : vector<2x8x8xf32>
    "tpu.trace_start"() <{level = 10 : i32, message = "bqk,bkd->bqd"}> : () -> ()
    %cst_99 = arith.constant dense<0.000000e+00> : vector<2x8x8xf32>
    %250 = tpu.matmul %249, %234, %cst_99 {dimension_numbers = #tpu.dot_dimension_numbers<[2], [1], [1], [2], [0, 0, 0, 1, 1, 2], [0], [0]>} : vector<2x8x8xf32>, vector<2x8x8xf32>, vector<2x8x8xf32> -> vector<2x8x8xf32>
    "tpu.trace_stop"() : () -> ()
    %251 = vector.shape_cast %250 : vector<2x8x8xf32> to vector<16x8xf32>
    %252 = vector.extract_strided_slice %173 {offsets = [0, 24], sizes = [16, 8], strides = [1, 1]} : vector<16x32xf32> to vector<16x8xf32>
    %253 = vector.shape_cast %252 : vector<16x8xf32> to vector<2x8x8xf32>
    %254 = vector.extract_strided_slice %181 {offsets = [0, 24], sizes = [16, 8], strides = [1, 1]} : vector<16x32xf32> to vector<16x8xf32>
    %255 = vector.shape_cast %254 : vector<16x8xf32> to vector<2x8x8xf32>
    %256 = vector.extract_strided_slice %182 {offsets = [0, 24], sizes = [16, 8], strides = [1, 1]} : vector<16x32xf32> to vector<16x8xf32>
    %257 = vector.shape_cast %256 : vector<16x8xf32> to vector<2x8x8xf32>
    "tpu.trace_start"() <{level = 10 : i32, message = "bqd,bkd->bqk"}> : () -> ()
    %cst_100 = arith.constant dense<0.000000e+00> : vector<2x8x8xf32>
    %258 = tpu.matmul %253, %255, %cst_100 {dimension_numbers = #tpu.dot_dimension_numbers<[2], [2], [1], [1], [0, 0, 0, 1, 1, 1], [0], [0]>} : vector<2x8x8xf32>, vector<2x8x8xf32>, vector<2x8x8xf32> -> vector<2x8x8xf32>
    "tpu.trace_stop"() : () -> ()
    %cst_101 = arith.constant 0.353553385 : f32
    %259 = vector.broadcast %cst_101 : f32 to vector<2x8x8xf32>
    %260 = arith.mulf %258, %259 : vector<2x8x8xf32>
    %cst_102 = arith.constant -1.000000e+09 : f32
    %261 = vector.broadcast %cst_102 : f32 to vector<2x8x8xf32>
    %262 = arith.select %24, %261, %260 : vector<2x8x8xi1>, vector<2x8x8xf32>
    %cst_103 = arith.constant dense<0xFF800000> : vector<2x8xf32>
    %263 = vector.multi_reduction <maximumf>, %262, %cst_103 [2] : vector<2x8x8xf32> to vector<2x8xf32>
    %264 = vector.shape_cast %263 : vector<2x8xf32> to vector<2x8x1xf32>
    %265 = vector.broadcast %264 : vector<2x8x1xf32> to vector<2x8x8xf32>
    %266 = arith.subf %262, %265 : vector<2x8x8xf32>
    %267 = math.exp %266 : vector<2x8x8xf32>
    %cst_104 = arith.constant dense<0.000000e+00> : vector<2x8xf32>
    %268 = vector.multi_reduction <add>, %267, %cst_104 [2] : vector<2x8x8xf32> to vector<2x8xf32>
    %269 = vector.shape_cast %268 : vector<2x8xf32> to vector<2x8x1xf32>
    %270 = tpu.reciprocal %269 {approx = true} : vector<2x8x1xf32> -> vector<2x8x1xf32>
    %271 = vector.broadcast %270 : vector<2x8x1xf32> to vector<2x8x8xf32>
    %272 = arith.mulf %267, %271 : vector<2x8x8xf32>
    "tpu.trace_start"() <{level = 10 : i32, message = "bqk,bkd->bqd"}> : () -> ()
    %cst_105 = arith.constant dense<0.000000e+00> : vector<2x8x8xf32>
    %273 = tpu.matmul %272, %257, %cst_105 {dimension_numbers = #tpu.dot_dimension_numbers<[2], [1], [1], [2], [0, 0, 0, 1, 1, 2], [0], [0]>} : vector<2x8x8xf32>, vector<2x8x8xf32>, vector<2x8x8xf32> -> vector<2x8x8xf32>
    "tpu.trace_stop"() : () -> ()
    %274 = vector.shape_cast %273 : vector<2x8x8xf32> to vector<16x8xf32>
    %275 = tpu.concatenate %205, %228, %251, %274 in 1 : vector<16x8xf32>, vector<16x8xf32>, vector<16x8xf32>, vector<16x8xf32> -> vector<16x32xf32>
    %276 = tpu.concatenate %203, %226, %249, %272 in 2 : vector<2x8x8xf32>, vector<2x8x8xf32>, vector<2x8x8xf32>, vector<2x8x8xf32> -> vector<2x8x32xf32>
    %c0_106 = arith.constant 0 : index
    %c0_107 = arith.constant 0 : index
    %c0_108 = arith.constant 0 : index
    %277 = vector.load %arg16[%c0_106, %c0_107, %c0_108] : memref<2x32x32xf32, #tpu.memory_space<vmem>>, vector<1x32x32xf32>
    %278 = vector.shape_cast %277 : vector<1x32x32xf32> to vector<32x32xf32>
    %cst_109 = arith.constant dense<0.000000e+00> : vector<16x32xf32>
    %279 = tpu.matmul %275, %278, %cst_109 {dimension_numbers = #tpu.dot_dimension_numbers<[1], [0], [0], [1], [0, 0, 1, 1], [], []>} : vector<16x32xf32>, vector<32x32xf32>, vector<16x32xf32> -> vector<16x32xf32>
    %c0_110 = arith.constant 0 : index
    %c0_111 = arith.constant 0 : index
    %c0_112 = arith.constant 0 : index
    %280 = vector.load %arg17[%c0_110, %c0_111, %c0_112] : memref<2x1x32xf32, #tpu.memory_space<vmem>>, vector<1x1x32xf32>
    %281 = vector.shape_cast %280 : vector<1x1x32xf32> to vector<1x32xf32>
    %282 = vector.broadcast %281 : vector<1x32xf32> to vector<16x32xf32>
    %283 = arith.addf %279, %282 : vector<16x32xf32>
    %284 = arith.addf %283, %163 : vector<16x32xf32>
    %c0_113 = arith.constant 0 : index
    %c0_114 = arith.constant 0 : index
    %c0_115 = arith.constant 0 : index
    %285 = vector.load %arg18[%c0_113, %c0_114, %c0_115] : memref<2x1x32xf32, #tpu.memory_space<vmem>>, vector<1x1x32xf32>
    %286 = vector.shape_cast %285 : vector<1x1x32xf32> to vector<1x32xf32>
    %c0_116 = arith.constant 0 : index
    %c0_117 = arith.constant 0 : index
    %c0_118 = arith.constant 0 : index
    %287 = vector.load %arg19[%c0_116, %c0_117, %c0_118] : memref<2x1x32xf32, #tpu.memory_space<vmem>>, vector<1x1x32xf32>
    %288 = vector.shape_cast %287 : vector<1x1x32xf32> to vector<1x32xf32>
    %cst_119 = arith.constant dense<0.000000e+00> : vector<16xf32>
    %289 = vector.multi_reduction <add>, %284, %cst_119 [1] : vector<16x32xf32> to vector<16xf32>
    %290 = vector.shape_cast %289 : vector<16xf32> to vector<16x1xf32>
    %cst_120 = arith.constant 3.200000e+01 : f32
    %291 = vector.broadcast %cst_120 : f32 to vector<16x1xf32>
    %292 = arith.divf %290, %291 : vector<16x1xf32>
    %293 = vector.broadcast %292 : vector<16x1xf32> to vector<16x32xf32>
    %294 = arith.subf %284, %293 : vector<16x32xf32>
    %295 = arith.mulf %294, %294 : vector<16x32xf32>
    %cst_121 = arith.constant dense<0.000000e+00> : vector<16xf32>
    %296 = vector.multi_reduction <add>, %295, %cst_121 [1] : vector<16x32xf32> to vector<16xf32>
    %297 = vector.shape_cast %296 : vector<16xf32> to vector<16x1xf32>
    %cst_122 = arith.constant 3.200000e+01 : f32
    %298 = vector.broadcast %cst_122 : f32 to vector<16x1xf32>
    %299 = arith.divf %297, %298 : vector<16x1xf32>
    %300 = vector.broadcast %292 : vector<16x1xf32> to vector<16x32xf32>
    %301 = arith.subf %284, %300 : vector<16x32xf32>
    %cst_123 = arith.constant 9.99999974E-6 : f32
    %302 = vector.broadcast %cst_123 : f32 to vector<16x1xf32>
    %303 = arith.addf %299, %302 : vector<16x1xf32>
    %304 = math.rsqrt %303 : vector<16x1xf32>
    %305 = vector.broadcast %304 : vector<16x1xf32> to vector<16x32xf32>
    %306 = arith.mulf %301, %305 : vector<16x32xf32>
    %307 = vector.broadcast %286 : vector<1x32xf32> to vector<16x32xf32>
    %308 = arith.mulf %306, %307 : vector<16x32xf32>
    %309 = vector.broadcast %288 : vector<1x32xf32> to vector<16x32xf32>
    %310 = arith.addf %308, %309 : vector<16x32xf32>
    %c0_124 = arith.constant 0 : index
    %c0_125 = arith.constant 0 : index
    %c0_126 = arith.constant 0 : index
    %c0_127 = arith.constant 0 : index
    %311 = vector.load %arg28[%c0_124, %c0_125, %c0_126, %c0_127] : memref<2x2x8x32xf32, #tpu.memory_space<vmem>>, vector<1x2x8x32xf32>
    %312 = vector.shape_cast %311 : vector<1x2x8x32xf32> to vector<2x8x32xf32>
    %313 = vector.shape_cast %276 : vector<2x8x32xf32> to vector<1x2x8x32xf32>
    tpu.vector_store %arg28[%c0_124, %c0_125, %c0_126, %c0_127], %313 {strides = array<i32>} : memref<2x2x8x32xf32, #tpu.memory_space<vmem>>, vector<1x2x8x32xf32>,
    %c0_128 = arith.constant 0 : index
    %c0_129 = arith.constant 0 : index
    %c0_130 = arith.constant 0 : index
    %314 = vector.load %arg20[%c0_128, %c0_129, %c0_130] : memref<2x32x64xf32, #tpu.memory_space<vmem>>, vector<1x32x64xf32>
    %315 = vector.shape_cast %314 : vector<1x32x64xf32> to vector<32x64xf32>
    %cst_131 = arith.constant dense<0.000000e+00> : vector<16x64xf32>
    %316 = tpu.matmul %310, %315, %cst_131 {dimension_numbers = #tpu.dot_dimension_numbers<[1], [0], [0], [1], [0, 0, 1, 1], [], []>} : vector<16x32xf32>, vector<32x64xf32>, vector<16x64xf32> -> vector<16x64xf32>
    %c0_132 = arith.constant 0 : index
    %c0_133 = arith.constant 0 : index
    %c0_134 = arith.constant 0 : index
    %317 = vector.load %arg21[%c0_132, %c0_133, %c0_134] : memref<2x1x64xf32, #tpu.memory_space<vmem>>, vector<1x1x64xf32>
    %318 = vector.shape_cast %317 : vector<1x1x64xf32> to vector<1x64xf32>
    %319 = vector.broadcast %318 : vector<1x64xf32> to vector<16x64xf32>
    %320 = arith.addf %316, %319 : vector<16x64xf32>
    %cst_135 = arith.constant 0.000000e+00 : f32
    %321 = vector.broadcast %cst_135 : f32 to vector<16x64xf32>
    %322 = arith.maximumf %320, %321 : vector<16x64xf32>
    %c0_136 = arith.constant 0 : index
    %c0_137 = arith.constant 0 : index
    %c0_138 = arith.constant 0 : index
    %323 = vector.load %arg22[%c0_136, %c0_137, %c0_138] : memref<2x64x32xf32, #tpu.memory_space<vmem>>, vector<1x64x32xf32>
    %324 = vector.shape_cast %323 : vector<1x64x32xf32> to vector<64x32xf32>
    %cst_139 = arith.constant dense<0.000000e+00> : vector<16x32xf32>
    %325 = tpu.matmul %322, %324, %cst_139 {dimension_numbers = #tpu.dot_dimension_numbers<[1], [0], [0], [1], [0, 0, 1, 1], [], []>} : vector<16x64xf32>, vector<64x32xf32>, vector<16x32xf32> -> vector<16x32xf32>
    %c0_140 = arith.constant 0 : index
    %c0_141 = arith.constant 0 : index
    %c0_142 = arith.constant 0 : index
    %326 = vector.load %arg23[%c0_140, %c0_141, %c0_142] : memref<2x1x32xf32, #tpu.memory_space<vmem>>, vector<1x1x32xf32>
    %327 = vector.shape_cast %326 : vector<1x1x32xf32> to vector<1x32xf32>
    %328 = vector.broadcast %327 : vector<1x32xf32> to vector<16x32xf32>
    %329 = arith.addf %325, %328 : vector<16x32xf32>
    %330 = arith.addf %329, %310 : vector<16x32xf32>
    %c0_143 = arith.constant 0 : index
    %c0_144 = arith.constant 0 : index
    %c0_145 = arith.constant 0 : index
    %331 = vector.load %arg24[%c0_143, %c0_144, %c0_145] : memref<2x1x32xf32, #tpu.memory_space<vmem>>, vector<1x1x32xf32>
    %332 = vector.shape_cast %331 : vector<1x1x32xf32> to vector<1x32xf32>
    %c0_146 = arith.constant 0 : index
    %c0_147 = arith.constant 0 : index
    %c0_148 = arith.constant 0 : index
    %333 = vector.load %arg25[%c0_146, %c0_147, %c0_148] : memref<2x1x32xf32, #tpu.memory_space<vmem>>, vector<1x1x32xf32>
    %334 = vector.shape_cast %333 : vector<1x1x32xf32> to vector<1x32xf32>
    %cst_149 = arith.constant dense<0.000000e+00> : vector<16xf32>
    %335 = vector.multi_reduction <add>, %330, %cst_149 [1] : vector<16x32xf32> to vector<16xf32>
    %336 = vector.shape_cast %335 : vector<16xf32> to vector<16x1xf32>
    %cst_150 = arith.constant 3.200000e+01 : f32
    %337 = vector.broadcast %cst_150 : f32 to vector<16x1xf32>
    %338 = arith.divf %336, %337 : vector<16x1xf32>
    %339 = vector.broadcast %338 : vector<16x1xf32> to vector<16x32xf32>
    %340 = arith.subf %330, %339 : vector<16x32xf32>
    %341 = arith.mulf %340, %340 : vector<16x32xf32>
    %cst_151 = arith.constant dense<0.000000e+00> : vector<16xf32>
    %342 = vector.multi_reduction <add>, %341, %cst_151 [1] : vector<16x32xf32> to vector<16xf32>
    %343 = vector.shape_cast %342 : vector<16xf32> to vector<16x1xf32>
    %cst_152 = arith.constant 3.200000e+01 : f32
    %344 = vector.broadcast %cst_152 : f32 to vector<16x1xf32>
    %345 = arith.divf %343, %344 : vector<16x1xf32>
    %346 = vector.broadcast %338 : vector<16x1xf32> to vector<16x32xf32>
    %347 = arith.subf %330, %346 : vector<16x32xf32>
    %cst_153 = arith.constant 9.99999974E-6 : f32
    %348 = vector.broadcast %cst_153 : f32 to vector<16x1xf32>
    %349 = arith.addf %345, %348 : vector<16x1xf32>
    %350 = math.rsqrt %349 : vector<16x1xf32>
    %351 = vector.broadcast %350 : vector<16x1xf32> to vector<16x32xf32>
    %352 = arith.mulf %347, %351 : vector<16x32xf32>
    %353 = vector.broadcast %332 : vector<1x32xf32> to vector<16x32xf32>
    %354 = arith.mulf %352, %353 : vector<16x32xf32>
    %355 = vector.broadcast %334 : vector<1x32xf32> to vector<16x32xf32>
    %356 = arith.addf %354, %355 : vector<16x32xf32>
    %c1 = arith.constant 1 : index
    %c0_154 = arith.constant 0 : index
    %c0_155 = arith.constant 0 : index
    %357 = vector.load %arg6[%c1, %c0_154, %c0_155] : memref<2x32x96xf32, #tpu.memory_space<vmem>>, vector<1x32x96xf32>
    %358 = vector.shape_cast %357 : vector<1x32x96xf32> to vector<32x96xf32>
    %cst_156 = arith.constant dense<0.000000e+00> : vector<16x96xf32>
    %359 = tpu.matmul %356, %358, %cst_156 {dimension_numbers = #tpu.dot_dimension_numbers<[1], [0], [0], [1], [0, 0, 1, 1], [], []>} : vector<16x32xf32>, vector<32x96xf32>, vector<16x96xf32> -> vector<16x96xf32>
    %c1_157 = arith.constant 1 : index
    %c0_158 = arith.constant 0 : index
    %c0_159 = arith.constant 0 : index
    %360 = vector.load %arg7[%c1_157, %c0_158, %c0_159] : memref<2x1x96xf32, #tpu.memory_space<vmem>>, vector<1x1x96xf32>
    %361 = vector.shape_cast %360 : vector<1x1x96xf32> to vector<1x96xf32>
    %362 = vector.broadcast %361 : vector<1x96xf32> to vector<16x96xf32>
    %363 = arith.addf %359, %362 : vector<16x96xf32>
    %364 = vector.extract_strided_slice %363 {offsets = [0, 0], sizes = [16, 32], strides = [1, 1]} : vector<16x96xf32> to vector<16x32xf32>
    %365 = vector.extract_strided_slice %363 {offsets = [0, 32], sizes = [16, 32], strides = [1, 1]} : vector<16x96xf32> to vector<16x32xf32>
    %366 = vector.extract_strided_slice %363 {offsets = [0, 64], sizes = [16, 32], strides = [1, 1]} : vector<16x96xf32> to vector<16x32xf32>
    %367 = vector.extract_strided_slice %364 {offsets = [0, 0], sizes = [16, 8], strides = [1, 1]} : vector<16x32xf32> to vector<16x8xf32>
    %368 = vector.shape_cast %367 : vector<16x8xf32> to vector<2x8x8xf32>
    %369 = vector.extract_strided_slice %365 {offsets = [0, 0], sizes = [16, 8], strides = [1, 1]} : vector<16x32xf32> to vector<16x8xf32>
    %370 = vector.shape_cast %369 : vector<16x8xf32> to vector<2x8x8xf32>
    %371 = vector.extract_strided_slice %366 {offsets = [0, 0], sizes = [16, 8], strides = [1, 1]} : vector<16x32xf32> to vector<16x8xf32>
    %372 = vector.shape_cast %371 : vector<16x8xf32> to vector<2x8x8xf32>
    "tpu.trace_start"() <{level = 10 : i32, message = "bqd,bkd->bqk"}> : () -> ()
    %cst_160 = arith.constant dense<0.000000e+00> : vector<2x8x8xf32>
    %373 = tpu.matmul %368, %370, %cst_160 {dimension_numbers = #tpu.dot_dimension_numbers<[2], [2], [1], [1], [0, 0, 0, 1, 1, 1], [0], [0]>} : vector<2x8x8xf32>, vector<2x8x8xf32>, vector<2x8x8xf32> -> vector<2x8x8xf32>
    "tpu.trace_stop"() : () -> ()
    %cst_161 = arith.constant 0.353553385 : f32
    %374 = vector.broadcast %cst_161 : f32 to vector<2x8x8xf32>
    %375 = arith.mulf %373, %374 : vector<2x8x8xf32>
    %cst_162 = arith.constant -1.000000e+09 : f32
    %376 = vector.broadcast %cst_162 : f32 to vector<2x8x8xf32>
    %377 = arith.select %19, %376, %375 : vector<2x8x8xi1>, vector<2x8x8xf32>
    %cst_163 = arith.constant dense<0xFF800000> : vector<2x8xf32>
    %378 = vector.multi_reduction <maximumf>, %377, %cst_163 [2] : vector<2x8x8xf32> to vector<2x8xf32>
    %379 = vector.shape_cast %378 : vector<2x8xf32> to vector<2x8x1xf32>
    %380 = vector.broadcast %379 : vector<2x8x1xf32> to vector<2x8x8xf32>
    %381 = arith.subf %377, %380 : vector<2x8x8xf32>
    %382 = math.exp %381 : vector<2x8x8xf32>
    %cst_164 = arith.constant dense<0.000000e+00> : vector<2x8xf32>
    %383 = vector.multi_reduction <add>, %382, %cst_164 [2] : vector<2x8x8xf32> to vector<2x8xf32>
    %384 = vector.shape_cast %383 : vector<2x8xf32> to vector<2x8x1xf32>
    %385 = tpu.reciprocal %384 {approx = true} : vector<2x8x1xf32> -> vector<2x8x1xf32>
    %386 = vector.broadcast %385 : vector<2x8x1xf32> to vector<2x8x8xf32>
    %387 = arith.mulf %382, %386 : vector<2x8x8xf32>
    "tpu.trace_start"() <{level = 10 : i32, message = "bqk,bkd->bqd"}> : () -> ()
    %cst_165 = arith.constant dense<0.000000e+00> : vector<2x8x8xf32>
    %388 = tpu.matmul %387, %372, %cst_165 {dimension_numbers = #tpu.dot_dimension_numbers<[2], [1], [1], [2], [0, 0, 0, 1, 1, 2], [0], [0]>} : vector<2x8x8xf32>, vector<2x8x8xf32>, vector<2x8x8xf32> -> vector<2x8x8xf32>
    "tpu.trace_stop"() : () -> ()
    %389 = vector.shape_cast %388 : vector<2x8x8xf32> to vector<16x8xf32>
    %390 = vector.extract_strided_slice %364 {offsets = [0, 8], sizes = [16, 8], strides = [1, 1]} : vector<16x32xf32> to vector<16x8xf32>
    %391 = vector.shape_cast %390 : vector<16x8xf32> to vector<2x8x8xf32>
    %392 = vector.extract_strided_slice %365 {offsets = [0, 8], sizes = [16, 8], strides = [1, 1]} : vector<16x32xf32> to vector<16x8xf32>
    %393 = vector.shape_cast %392 : vector<16x8xf32> to vector<2x8x8xf32>
    %394 = vector.extract_strided_slice %366 {offsets = [0, 8], sizes = [16, 8], strides = [1, 1]} : vector<16x32xf32> to vector<16x8xf32>
    %395 = vector.shape_cast %394 : vector<16x8xf32> to vector<2x8x8xf32>
    "tpu.trace_start"() <{level = 10 : i32, message = "bqd,bkd->bqk"}> : () -> ()
    %cst_166 = arith.constant dense<0.000000e+00> : vector<2x8x8xf32>
    %396 = tpu.matmul %391, %393, %cst_166 {dimension_numbers = #tpu.dot_dimension_numbers<[2], [2], [1], [1], [0, 0, 0, 1, 1, 1], [0], [0]>} : vector<2x8x8xf32>, vector<2x8x8xf32>, vector<2x8x8xf32> -> vector<2x8x8xf32>
    "tpu.trace_stop"() : () -> ()
    %cst_167 = arith.constant 0.353553385 : f32
    %397 = vector.broadcast %cst_167 : f32 to vector<2x8x8xf32>
    %398 = arith.mulf %396, %397 : vector<2x8x8xf32>
    %cst_168 = arith.constant -1.000000e+09 : f32
    %399 = vector.broadcast %cst_168 : f32 to vector<2x8x8xf32>
    %400 = arith.select %19, %399, %398 : vector<2x8x8xi1>, vector<2x8x8xf32>
    %cst_169 = arith.constant dense<0xFF800000> : vector<2x8xf32>
    %401 = vector.multi_reduction <maximumf>, %400, %cst_169 [2] : vector<2x8x8xf32> to vector<2x8xf32>
    %402 = vector.shape_cast %401 : vector<2x8xf32> to vector<2x8x1xf32>
    %403 = vector.broadcast %402 : vector<2x8x1xf32> to vector<2x8x8xf32>
    %404 = arith.subf %400, %403 : vector<2x8x8xf32>
    %405 = math.exp %404 : vector<2x8x8xf32>
    %cst_170 = arith.constant dense<0.000000e+00> : vector<2x8xf32>
    %406 = vector.multi_reduction <add>, %405, %cst_170 [2] : vector<2x8x8xf32> to vector<2x8xf32>
    %407 = vector.shape_cast %406 : vector<2x8xf32> to vector<2x8x1xf32>
    %408 = tpu.reciprocal %407 {approx = true} : vector<2x8x1xf32> -> vector<2x8x1xf32>
    %409 = vector.broadcast %408 : vector<2x8x1xf32> to vector<2x8x8xf32>
    %410 = arith.mulf %405, %409 : vector<2x8x8xf32>
    "tpu.trace_start"() <{level = 10 : i32, message = "bqk,bkd->bqd"}> : () -> ()
    %cst_171 = arith.constant dense<0.000000e+00> : vector<2x8x8xf32>
    %411 = tpu.matmul %410, %395, %cst_171 {dimension_numbers = #tpu.dot_dimension_numbers<[2], [1], [1], [2], [0, 0, 0, 1, 1, 2], [0], [0]>} : vector<2x8x8xf32>, vector<2x8x8xf32>, vector<2x8x8xf32> -> vector<2x8x8xf32>
    "tpu.trace_stop"() : () -> ()
    %412 = vector.shape_cast %411 : vector<2x8x8xf32> to vector<16x8xf32>
    %413 = vector.extract_strided_slice %364 {offsets = [0, 16], sizes = [16, 8], strides = [1, 1]} : vector<16x32xf32> to vector<16x8xf32>
    %414 = vector.shape_cast %413 : vector<16x8xf32> to vector<2x8x8xf32>
    %415 = vector.extract_strided_slice %365 {offsets = [0, 16], sizes = [16, 8], strides = [1, 1]} : vector<16x32xf32> to vector<16x8xf32>
    %416 = vector.shape_cast %415 : vector<16x8xf32> to vector<2x8x8xf32>
    %417 = vector.extract_strided_slice %366 {offsets = [0, 16], sizes = [16, 8], strides = [1, 1]} : vector<16x32xf32> to vector<16x8xf32>
    %418 = vector.shape_cast %417 : vector<16x8xf32> to vector<2x8x8xf32>
    "tpu.trace_start"() <{level = 10 : i32, message = "bqd,bkd->bqk"}> : () -> ()
    %cst_172 = arith.constant dense<0.000000e+00> : vector<2x8x8xf32>
    %419 = tpu.matmul %414, %416, %cst_172 {dimension_numbers = #tpu.dot_dimension_numbers<[2], [2], [1], [1], [0, 0, 0, 1, 1, 1], [0], [0]>} : vector<2x8x8xf32>, vector<2x8x8xf32>, vector<2x8x8xf32> -> vector<2x8x8xf32>
    "tpu.trace_stop"() : () -> ()
    %cst_173 = arith.constant 0.353553385 : f32
    %420 = vector.broadcast %cst_173 : f32 to vector<2x8x8xf32>
    %421 = arith.mulf %419, %420 : vector<2x8x8xf32>
    %cst_174 = arith.constant -1.000000e+09 : f32
    %422 = vector.broadcast %cst_174 : f32 to vector<2x8x8xf32>
    %423 = arith.select %19, %422, %421 : vector<2x8x8xi1>, vector<2x8x8xf32>
    %cst_175 = arith.constant dense<0xFF800000> : vector<2x8xf32>
    %424 = vector.multi_reduction <maximumf>, %423, %cst_175 [2] : vector<2x8x8xf32> to vector<2x8xf32>
    %425 = vector.shape_cast %424 : vector<2x8xf32> to vector<2x8x1xf32>
    %426 = vector.broadcast %425 : vector<2x8x1xf32> to vector<2x8x8xf32>
    %427 = arith.subf %423, %426 : vector<2x8x8xf32>
    %428 = math.exp %427 : vector<2x8x8xf32>
    %cst_176 = arith.constant dense<0.000000e+00> : vector<2x8xf32>
    %429 = vector.multi_reduction <add>, %428, %cst_176 [2] : vector<2x8x8xf32> to vector<2x8xf32>
    %430 = vector.shape_cast %429 : vector<2x8xf32> to vector<2x8x1xf32>
    %431 = tpu.reciprocal %430 {approx = true} : vector<2x8x1xf32> -> vector<2x8x1xf32>
    %432 = vector.broadcast %431 : vector<2x8x1xf32> to vector<2x8x8xf32>
    %433 = arith.mulf %428, %432 : vector<2x8x8xf32>
    "tpu.trace_start"() <{level = 10 : i32, message = "bqk,bkd->bqd"}> : () -> ()
    %cst_177 = arith.constant dense<0.000000e+00> : vector<2x8x8xf32>
    %434 = tpu.matmul %433, %418, %cst_177 {dimension_numbers = #tpu.dot_dimension_numbers<[2], [1], [1], [2], [0, 0, 0, 1, 1, 2], [0], [0]>} : vector<2x8x8xf32>, vector<2x8x8xf32>, vector<2x8x8xf32> -> vector<2x8x8xf32>
    "tpu.trace_stop"() : () -> ()
    %435 = vector.shape_cast %434 : vector<2x8x8xf32> to vector<16x8xf32>
    %436 = vector.extract_strided_slice %364 {offsets = [0, 24], sizes = [16, 8], strides = [1, 1]} : vector<16x32xf32> to vector<16x8xf32>
    %437 = vector.shape_cast %436 : vector<16x8xf32> to vector<2x8x8xf32>
    %438 = vector.extract_strided_slice %365 {offsets = [0, 24], sizes = [16, 8], strides = [1, 1]} : vector<16x32xf32> to vector<16x8xf32>
    %439 = vector.shape_cast %438 : vector<16x8xf32> to vector<2x8x8xf32>
    %440 = vector.extract_strided_slice %366 {offsets = [0, 24], sizes = [16, 8], strides = [1, 1]} : vector<16x32xf32> to vector<16x8xf32>
    %441 = vector.shape_cast %440 : vector<16x8xf32> to vector<2x8x8xf32>
    "tpu.trace_start"() <{level = 10 : i32, message = "bqd,bkd->bqk"}> : () -> ()
    %cst_178 = arith.constant dense<0.000000e+00> : vector<2x8x8xf32>
    %442 = tpu.matmul %437, %439, %cst_178 {dimension_numbers = #tpu.dot_dimension_numbers<[2], [2], [1], [1], [0, 0, 0, 1, 1, 1], [0], [0]>} : vector<2x8x8xf32>, vector<2x8x8xf32>, vector<2x8x8xf32> -> vector<2x8x8xf32>
    "tpu.trace_stop"() : () -> ()
    %cst_179 = arith.constant 0.353553385 : f32
    %443 = vector.broadcast %cst_179 : f32 to vector<2x8x8xf32>
    %444 = arith.mulf %442, %443 : vector<2x8x8xf32>
    %cst_180 = arith.constant -1.000000e+09 : f32
    %445 = vector.broadcast %cst_180 : f32 to vector<2x8x8xf32>
    %446 = arith.select %19, %445, %444 : vector<2x8x8xi1>, vector<2x8x8xf32>
    %cst_181 = arith.constant dense<0xFF800000> : vector<2x8xf32>
    %447 = vector.multi_reduction <maximumf>, %446, %cst_181 [2] : vector<2x8x8xf32> to vector<2x8xf32>
    %448 = vector.shape_cast %447 : vector<2x8xf32> to vector<2x8x1xf32>
    %449 = vector.broadcast %448 : vector<2x8x1xf32> to vector<2x8x8xf32>
    %450 = arith.subf %446, %449 : vector<2x8x8xf32>
    %451 = math.exp %450 : vector<2x8x8xf32>
    %cst_182 = arith.constant dense<0.000000e+00> : vector<2x8xf32>
    %452 = vector.multi_reduction <add>, %451, %cst_182 [2] : vector<2x8x8xf32> to vector<2x8xf32>
    %453 = vector.shape_cast %452 : vector<2x8xf32> to vector<2x8x1xf32>
    %454 = tpu.reciprocal %453 {approx = true} : vector<2x8x1xf32> -> vector<2x8x1xf32>
    %455 = vector.broadcast %454 : vector<2x8x1xf32> to vector<2x8x8xf32>
    %456 = arith.mulf %451, %455 : vector<2x8x8xf32>
    "tpu.trace_start"() <{level = 10 : i32, message = "bqk,bkd->bqd"}> : () -> ()
    %cst_183 = arith.constant dense<0.000000e+00> : vector<2x8x8xf32>
    %457 = tpu.matmul %456, %441, %cst_183 {dimension_numbers = #tpu.dot_dimension_numbers<[2], [1], [1], [2], [0, 0, 0, 1, 1, 2], [0], [0]>} : vector<2x8x8xf32>, vector<2x8x8xf32>, vector<2x8x8xf32> -> vector<2x8x8xf32>
    "tpu.trace_stop"() : () -> ()
    %458 = vector.shape_cast %457 : vector<2x8x8xf32> to vector<16x8xf32>
    %459 = tpu.concatenate %389, %412, %435, %458 in 1 : vector<16x8xf32>, vector<16x8xf32>, vector<16x8xf32>, vector<16x8xf32> -> vector<16x32xf32>
    %460 = tpu.concatenate %387, %410, %433, %456 in 2 : vector<2x8x8xf32>, vector<2x8x8xf32>, vector<2x8x8xf32>, vector<2x8x8xf32> -> vector<2x8x32xf32>
    %c1_184 = arith.constant 1 : index
    %c0_185 = arith.constant 0 : index
    %c0_186 = arith.constant 0 : index
    %461 = vector.load %arg8[%c1_184, %c0_185, %c0_186] : memref<2x32x32xf32, #tpu.memory_space<vmem>>, vector<1x32x32xf32>
    %462 = vector.shape_cast %461 : vector<1x32x32xf32> to vector<32x32xf32>
    %cst_187 = arith.constant dense<0.000000e+00> : vector<16x32xf32>
    %463 = tpu.matmul %459, %462, %cst_187 {dimension_numbers = #tpu.dot_dimension_numbers<[1], [0], [0], [1], [0, 0, 1, 1], [], []>} : vector<16x32xf32>, vector<32x32xf32>, vector<16x32xf32> -> vector<16x32xf32>
    %c1_188 = arith.constant 1 : index
    %c0_189 = arith.constant 0 : index
    %c0_190 = arith.constant 0 : index
    %464 = vector.load %arg9[%c1_188, %c0_189, %c0_190] : memref<2x1x32xf32, #tpu.memory_space<vmem>>, vector<1x1x32xf32>
    %465 = vector.shape_cast %464 : vector<1x1x32xf32> to vector<1x32xf32>
    %466 = vector.broadcast %465 : vector<1x32xf32> to vector<16x32xf32>
    %467 = arith.addf %463, %466 : vector<16x32xf32>
    %468 = arith.addf %467, %356 : vector<16x32xf32>
    %c1_191 = arith.constant 1 : index
    %c0_192 = arith.constant 0 : index
    %c0_193 = arith.constant 0 : index
    %469 = vector.load %arg10[%c1_191, %c0_192, %c0_193] : memref<2x1x32xf32, #tpu.memory_space<vmem>>, vector<1x1x32xf32>
    %470 = vector.shape_cast %469 : vector<1x1x32xf32> to vector<1x32xf32>
    %c1_194 = arith.constant 1 : index
    %c0_195 = arith.constant 0 : index
    %c0_196 = arith.constant 0 : index
    %471 = vector.load %arg11[%c1_194, %c0_195, %c0_196] : memref<2x1x32xf32, #tpu.memory_space<vmem>>, vector<1x1x32xf32>
    %472 = vector.shape_cast %471 : vector<1x1x32xf32> to vector<1x32xf32>
    %cst_197 = arith.constant dense<0.000000e+00> : vector<16xf32>
    %473 = vector.multi_reduction <add>, %468, %cst_197 [1] : vector<16x32xf32> to vector<16xf32>
    %474 = vector.shape_cast %473 : vector<16xf32> to vector<16x1xf32>
    %cst_198 = arith.constant 3.200000e+01 : f32
    %475 = vector.broadcast %cst_198 : f32 to vector<16x1xf32>
    %476 = arith.divf %474, %475 : vector<16x1xf32>
    %477 = vector.broadcast %476 : vector<16x1xf32> to vector<16x32xf32>
    %478 = arith.subf %468, %477 : vector<16x32xf32>
    %479 = arith.mulf %478, %478 : vector<16x32xf32>
    %cst_199 = arith.constant dense<0.000000e+00> : vector<16xf32>
    %480 = vector.multi_reduction <add>, %479, %cst_199 [1] : vector<16x32xf32> to vector<16xf32>
    %481 = vector.shape_cast %480 : vector<16xf32> to vector<16x1xf32>
    %cst_200 = arith.constant 3.200000e+01 : f32
    %482 = vector.broadcast %cst_200 : f32 to vector<16x1xf32>
    %483 = arith.divf %481, %482 : vector<16x1xf32>
    %484 = vector.broadcast %476 : vector<16x1xf32> to vector<16x32xf32>
    %485 = arith.subf %468, %484 : vector<16x32xf32>
    %cst_201 = arith.constant 9.99999974E-6 : f32
    %486 = vector.broadcast %cst_201 : f32 to vector<16x1xf32>
    %487 = arith.addf %483, %486 : vector<16x1xf32>
    %488 = math.rsqrt %487 : vector<16x1xf32>
    %489 = vector.broadcast %488 : vector<16x1xf32> to vector<16x32xf32>
    %490 = arith.mulf %485, %489 : vector<16x32xf32>
    %491 = vector.broadcast %470 : vector<1x32xf32> to vector<16x32xf32>
    %492 = arith.mulf %490, %491 : vector<16x32xf32>
    %493 = vector.broadcast %472 : vector<1x32xf32> to vector<16x32xf32>
    %494 = arith.addf %492, %493 : vector<16x32xf32>
    %c1_202 = arith.constant 1 : index
    %c0_203 = arith.constant 0 : index
    %c0_204 = arith.constant 0 : index
    %c0_205 = arith.constant 0 : index
    %495 = vector.load %arg27[%c1_202, %c0_203, %c0_204, %c0_205] : memref<2x2x8x32xf32, #tpu.memory_space<vmem>>, vector<1x2x8x32xf32>
    %496 = vector.shape_cast %495 : vector<1x2x8x32xf32> to vector<2x8x32xf32>
    %497 = vector.shape_cast %460 : vector<2x8x32xf32> to vector<1x2x8x32xf32>
    tpu.vector_store %arg27[%c1_202, %c0_203, %c0_204, %c0_205], %497 {strides = array<i32>} : memref<2x2x8x32xf32, #tpu.memory_space<vmem>>, vector<1x2x8x32xf32>,
    %c1_206 = arith.constant 1 : index
    %c0_207 = arith.constant 0 : index
    %c0_208 = arith.constant 0 : index
    %498 = vector.load %arg12[%c1_206, %c0_207, %c0_208] : memref<2x32x32xf32, #tpu.memory_space<vmem>>, vector<1x32x32xf32>
    %499 = vector.shape_cast %498 : vector<1x32x32xf32> to vector<32x32xf32>
    %cst_209 = arith.constant dense<0.000000e+00> : vector<16x32xf32>
    %500 = tpu.matmul %494, %499, %cst_209 {dimension_numbers = #tpu.dot_dimension_numbers<[1], [0], [0], [1], [0, 0, 1, 1], [], []>} : vector<16x32xf32>, vector<32x32xf32>, vector<16x32xf32> -> vector<16x32xf32>
    %c1_210 = arith.constant 1 : index
    %c0_211 = arith.constant 0 : index
    %c0_212 = arith.constant 0 : index
    %501 = vector.load %arg13[%c1_210, %c0_211, %c0_212] : memref<2x1x32xf32, #tpu.memory_space<vmem>>, vector<1x1x32xf32>
    %502 = vector.shape_cast %501 : vector<1x1x32xf32> to vector<1x32xf32>
    %503 = vector.broadcast %502 : vector<1x32xf32> to vector<16x32xf32>
    %504 = arith.addf %500, %503 : vector<16x32xf32>
    %c1_213 = arith.constant 1 : index
    %c0_214 = arith.constant 0 : index
    %c0_215 = arith.constant 0 : index
    %505 = vector.load %arg14[%c1_213, %c0_214, %c0_215] : memref<2x32x64xf32, #tpu.memory_space<vmem>>, vector<1x32x64xf32>
    %506 = vector.shape_cast %505 : vector<1x32x64xf32> to vector<32x64xf32>
    %cst_216 = arith.constant dense<0.000000e+00> : vector<16x64xf32>
    %507 = tpu.matmul %25, %506, %cst_216 {dimension_numbers = #tpu.dot_dimension_numbers<[1], [0], [0], [1], [0, 0, 1, 1], [], []>} : vector<16x32xf32>, vector<32x64xf32>, vector<16x64xf32> -> vector<16x64xf32>
    %c1_217 = arith.constant 1 : index
    %c0_218 = arith.constant 0 : index
    %c0_219 = arith.constant 0 : index
    %508 = vector.load %arg15[%c1_217, %c0_218, %c0_219] : memref<2x1x64xf32, #tpu.memory_space<vmem>>, vector<1x1x64xf32>
    %509 = vector.shape_cast %508 : vector<1x1x64xf32> to vector<1x64xf32>
    %510 = vector.broadcast %509 : vector<1x64xf32> to vector<16x64xf32>
    %511 = arith.addf %507, %510 : vector<16x64xf32>
    %512 = vector.extract_strided_slice %511 {offsets = [0, 0], sizes = [16, 32], strides = [1, 1]} : vector<16x64xf32> to vector<16x32xf32>
    %513 = vector.extract_strided_slice %511 {offsets = [0, 32], sizes = [16, 32], strides = [1, 1]} : vector<16x64xf32> to vector<16x32xf32>
    %514 = vector.extract_strided_slice %504 {offsets = [0, 0], sizes = [16, 8], strides = [1, 1]} : vector<16x32xf32> to vector<16x8xf32>
    %515 = vector.shape_cast %514 : vector<16x8xf32> to vector<2x8x8xf32>
    %516 = vector.extract_strided_slice %512 {offsets = [0, 0], sizes = [16, 8], strides = [1, 1]} : vector<16x32xf32> to vector<16x8xf32>
    %517 = vector.shape_cast %516 : vector<16x8xf32> to vector<2x8x8xf32>
    %518 = vector.extract_strided_slice %513 {offsets = [0, 0], sizes = [16, 8], strides = [1, 1]} : vector<16x32xf32> to vector<16x8xf32>
    %519 = vector.shape_cast %518 : vector<16x8xf32> to vector<2x8x8xf32>
    "tpu.trace_start"() <{level = 10 : i32, message = "bqd,bkd->bqk"}> : () -> ()
    %cst_220 = arith.constant dense<0.000000e+00> : vector<2x8x8xf32>
    %520 = tpu.matmul %515, %517, %cst_220 {dimension_numbers = #tpu.dot_dimension_numbers<[2], [2], [1], [1], [0, 0, 0, 1, 1, 1], [0], [0]>} : vector<2x8x8xf32>, vector<2x8x8xf32>, vector<2x8x8xf32> -> vector<2x8x8xf32>
    "tpu.trace_stop"() : () -> ()
    %cst_221 = arith.constant 0.353553385 : f32
    %521 = vector.broadcast %cst_221 : f32 to vector<2x8x8xf32>
    %522 = arith.mulf %520, %521 : vector<2x8x8xf32>
    %cst_222 = arith.constant -1.000000e+09 : f32
    %523 = vector.broadcast %cst_222 : f32 to vector<2x8x8xf32>
    %524 = arith.select %24, %523, %522 : vector<2x8x8xi1>, vector<2x8x8xf32>
    %cst_223 = arith.constant dense<0xFF800000> : vector<2x8xf32>
    %525 = vector.multi_reduction <maximumf>, %524, %cst_223 [2] : vector<2x8x8xf32> to vector<2x8xf32>
    %526 = vector.shape_cast %525 : vector<2x8xf32> to vector<2x8x1xf32>
    %527 = vector.broadcast %526 : vector<2x8x1xf32> to vector<2x8x8xf32>
    %528 = arith.subf %524, %527 : vector<2x8x8xf32>
    %529 = math.exp %528 : vector<2x8x8xf32>
    %cst_224 = arith.constant dense<0.000000e+00> : vector<2x8xf32>
    %530 = vector.multi_reduction <add>, %529, %cst_224 [2] : vector<2x8x8xf32> to vector<2x8xf32>
    %531 = vector.shape_cast %530 : vector<2x8xf32> to vector<2x8x1xf32>
    %532 = tpu.reciprocal %531 {approx = true} : vector<2x8x1xf32> -> vector<2x8x1xf32>
    %533 = vector.broadcast %532 : vector<2x8x1xf32> to vector<2x8x8xf32>
    %534 = arith.mulf %529, %533 : vector<2x8x8xf32>
    "tpu.trace_start"() <{level = 10 : i32, message = "bqk,bkd->bqd"}> : () -> ()
    %cst_225 = arith.constant dense<0.000000e+00> : vector<2x8x8xf32>
    %535 = tpu.matmul %534, %519, %cst_225 {dimension_numbers = #tpu.dot_dimension_numbers<[2], [1], [1], [2], [0, 0, 0, 1, 1, 2], [0], [0]>} : vector<2x8x8xf32>, vector<2x8x8xf32>, vector<2x8x8xf32> -> vector<2x8x8xf32>
    "tpu.trace_stop"() : () -> ()
    %536 = vector.shape_cast %535 : vector<2x8x8xf32> to vector<16x8xf32>
    %537 = vector.extract_strided_slice %504 {offsets = [0, 8], sizes = [16, 8], strides = [1, 1]} : vector<16x32xf32> to vector<16x8xf32>
    %538 = vector.shape_cast %537 : vector<16x8xf32> to vector<2x8x8xf32>
    %539 = vector.extract_strided_slice %512 {offsets = [0, 8], sizes = [16, 8], strides = [1, 1]} : vector<16x32xf32> to vector<16x8xf32>
    %540 = vector.shape_cast %539 : vector<16x8xf32> to vector<2x8x8xf32>
    %541 = vector.extract_strided_slice %513 {offsets = [0, 8], sizes = [16, 8], strides = [1, 1]} : vector<16x32xf32> to vector<16x8xf32>
    %542 = vector.shape_cast %541 : vector<16x8xf32> to vector<2x8x8xf32>
    "tpu.trace_start"() <{level = 10 : i32, message = "bqd,bkd->bqk"}> : () -> ()
    %cst_226 = arith.constant dense<0.000000e+00> : vector<2x8x8xf32>
    %543 = tpu.matmul %538, %540, %cst_226 {dimension_numbers = #tpu.dot_dimension_numbers<[2], [2], [1], [1], [0, 0, 0, 1, 1, 1], [0], [0]>} : vector<2x8x8xf32>, vector<2x8x8xf32>, vector<2x8x8xf32> -> vector<2x8x8xf32>
    "tpu.trace_stop"() : () -> ()
    %cst_227 = arith.constant 0.353553385 : f32
    %544 = vector.broadcast %cst_227 : f32 to vector<2x8x8xf32>
    %545 = arith.mulf %543, %544 : vector<2x8x8xf32>
    %cst_228 = arith.constant -1.000000e+09 : f32
    %546 = vector.broadcast %cst_228 : f32 to vector<2x8x8xf32>
    %547 = arith.select %24, %546, %545 : vector<2x8x8xi1>, vector<2x8x8xf32>
    %cst_229 = arith.constant dense<0xFF800000> : vector<2x8xf32>
    %548 = vector.multi_reduction <maximumf>, %547, %cst_229 [2] : vector<2x8x8xf32> to vector<2x8xf32>
    %549 = vector.shape_cast %548 : vector<2x8xf32> to vector<2x8x1xf32>
    %550 = vector.broadcast %549 : vector<2x8x1xf32> to vector<2x8x8xf32>
    %551 = arith.subf %547, %550 : vector<2x8x8xf32>
    %552 = math.exp %551 : vector<2x8x8xf32>
    %cst_230 = arith.constant dense<0.000000e+00> : vector<2x8xf32>
    %553 = vector.multi_reduction <add>, %552, %cst_230 [2] : vector<2x8x8xf32> to vector<2x8xf32>
    %554 = vector.shape_cast %553 : vector<2x8xf32> to vector<2x8x1xf32>
    %555 = tpu.reciprocal %554 {approx = true} : vector<2x8x1xf32> -> vector<2x8x1xf32>
    %556 = vector.broadcast %555 : vector<2x8x1xf32> to vector<2x8x8xf32>
    %557 = arith.mulf %552, %556 : vector<2x8x8xf32>
    "tpu.trace_start"() <{level = 10 : i32, message = "bqk,bkd->bqd"}> : () -> ()
    %cst_231 = arith.constant dense<0.000000e+00> : vector<2x8x8xf32>
    %558 = tpu.matmul %557, %542, %cst_231 {dimension_numbers = #tpu.dot_dimension_numbers<[2], [1], [1], [2], [0, 0, 0, 1, 1, 2], [0], [0]>} : vector<2x8x8xf32>, vector<2x8x8xf32>, vector<2x8x8xf32> -> vector<2x8x8xf32>
    "tpu.trace_stop"() : () -> ()
    %559 = vector.shape_cast %558 : vector<2x8x8xf32> to vector<16x8xf32>
    %560 = vector.extract_strided_slice %504 {offsets = [0, 16], sizes = [16, 8], strides = [1, 1]} : vector<16x32xf32> to vector<16x8xf32>
    %561 = vector.shape_cast %560 : vector<16x8xf32> to vector<2x8x8xf32>
    %562 = vector.extract_strided_slice %512 {offsets = [0, 16], sizes = [16, 8], strides = [1, 1]} : vector<16x32xf32> to vector<16x8xf32>
    %563 = vector.shape_cast %562 : vector<16x8xf32> to vector<2x8x8xf32>
    %564 = vector.extract_strided_slice %513 {offsets = [0, 16], sizes = [16, 8], strides = [1, 1]} : vector<16x32xf32> to vector<16x8xf32>
    %565 = vector.shape_cast %564 : vector<16x8xf32> to vector<2x8x8xf32>
    "tpu.trace_start"() <{level = 10 : i32, message = "bqd,bkd->bqk"}> : () -> ()
    %cst_232 = arith.constant dense<0.000000e+00> : vector<2x8x8xf32>
    %566 = tpu.matmul %561, %563, %cst_232 {dimension_numbers = #tpu.dot_dimension_numbers<[2], [2], [1], [1], [0, 0, 0, 1, 1, 1], [0], [0]>} : vector<2x8x8xf32>, vector<2x8x8xf32>, vector<2x8x8xf32> -> vector<2x8x8xf32>
    "tpu.trace_stop"() : () -> ()
    %cst_233 = arith.constant 0.353553385 : f32
    %567 = vector.broadcast %cst_233 : f32 to vector<2x8x8xf32>
    %568 = arith.mulf %566, %567 : vector<2x8x8xf32>
    %cst_234 = arith.constant -1.000000e+09 : f32
    %569 = vector.broadcast %cst_234 : f32 to vector<2x8x8xf32>
    %570 = arith.select %24, %569, %568 : vector<2x8x8xi1>, vector<2x8x8xf32>
    %cst_235 = arith.constant dense<0xFF800000> : vector<2x8xf32>
    %571 = vector.multi_reduction <maximumf>, %570, %cst_235 [2] : vector<2x8x8xf32> to vector<2x8xf32>
    %572 = vector.shape_cast %571 : vector<2x8xf32> to vector<2x8x1xf32>
    %573 = vector.broadcast %572 : vector<2x8x1xf32> to vector<2x8x8xf32>
    %574 = arith.subf %570, %573 : vector<2x8x8xf32>
    %575 = math.exp %574 : vector<2x8x8xf32>
    %cst_236 = arith.constant dense<0.000000e+00> : vector<2x8xf32>
    %576 = vector.multi_reduction <add>, %575, %cst_236 [2] : vector<2x8x8xf32> to vector<2x8xf32>
    %577 = vector.shape_cast %576 : vector<2x8xf32> to vector<2x8x1xf32>
    %578 = tpu.reciprocal %577 {approx = true} : vector<2x8x1xf32> -> vector<2x8x1xf32>
    %579 = vector.broadcast %578 : vector<2x8x1xf32> to vector<2x8x8xf32>
    %580 = arith.mulf %575, %579 : vector<2x8x8xf32>
    "tpu.trace_start"() <{level = 10 : i32, message = "bqk,bkd->bqd"}> : () -> ()
    %cst_237 = arith.constant dense<0.000000e+00> : vector<2x8x8xf32>
    %581 = tpu.matmul %580, %565, %cst_237 {dimension_numbers = #tpu.dot_dimension_numbers<[2], [1], [1], [2], [0, 0, 0, 1, 1, 2], [0], [0]>} : vector<2x8x8xf32>, vector<2x8x8xf32>, vector<2x8x8xf32> -> vector<2x8x8xf32>
    "tpu.trace_stop"() : () -> ()
    %582 = vector.shape_cast %581 : vector<2x8x8xf32> to vector<16x8xf32>
    %583 = vector.extract_strided_slice %504 {offsets = [0, 24], sizes = [16, 8], strides = [1, 1]} : vector<16x32xf32> to vector<16x8xf32>
    %584 = vector.shape_cast %583 : vector<16x8xf32> to vector<2x8x8xf32>
    %585 = vector.extract_strided_slice %512 {offsets = [0, 24], sizes = [16, 8], strides = [1, 1]} : vector<16x32xf32> to vector<16x8xf32>
    %586 = vector.shape_cast %585 : vector<16x8xf32> to vector<2x8x8xf32>
    %587 = vector.extract_strided_slice %513 {offsets = [0, 24], sizes = [16, 8], strides = [1, 1]} : vector<16x32xf32> to vector<16x8xf32>
    %588 = vector.shape_cast %587 : vector<16x8xf32> to vector<2x8x8xf32>
    "tpu.trace_start"() <{level = 10 : i32, message = "bqd,bkd->bqk"}> : () -> ()
    %cst_238 = arith.constant dense<0.000000e+00> : vector<2x8x8xf32>
    %589 = tpu.matmul %584, %586, %cst_238 {dimension_numbers = #tpu.dot_dimension_numbers<[2], [2], [1], [1], [0, 0, 0, 1, 1, 1], [0], [0]>} : vector<2x8x8xf32>, vector<2x8x8xf32>, vector<2x8x8xf32> -> vector<2x8x8xf32>
    "tpu.trace_stop"() : () -> ()
    %cst_239 = arith.constant 0.353553385 : f32
    %590 = vector.broadcast %cst_239 : f32 to vector<2x8x8xf32>
    %591 = arith.mulf %589, %590 : vector<2x8x8xf32>
    %cst_240 = arith.constant -1.000000e+09 : f32
    %592 = vector.broadcast %cst_240 : f32 to vector<2x8x8xf32>
    %593 = arith.select %24, %592, %591 : vector<2x8x8xi1>, vector<2x8x8xf32>
    %cst_241 = arith.constant dense<0xFF800000> : vector<2x8xf32>
    %594 = vector.multi_reduction <maximumf>, %593, %cst_241 [2] : vector<2x8x8xf32> to vector<2x8xf32>
    %595 = vector.shape_cast %594 : vector<2x8xf32> to vector<2x8x1xf32>
    %596 = vector.broadcast %595 : vector<2x8x1xf32> to vector<2x8x8xf32>
    %597 = arith.subf %593, %596 : vector<2x8x8xf32>
    %598 = math.exp %597 : vector<2x8x8xf32>
    %cst_242 = arith.constant dense<0.000000e+00> : vector<2x8xf32>
    %599 = vector.multi_reduction <add>, %598, %cst_242 [2] : vector<2x8x8xf32> to vector<2x8xf32>
    %600 = vector.shape_cast %599 : vector<2x8xf32> to vector<2x8x1xf32>
    %601 = tpu.reciprocal %600 {approx = true} : vector<2x8x1xf32> -> vector<2x8x1xf32>
    %602 = vector.broadcast %601 : vector<2x8x1xf32> to vector<2x8x8xf32>
    %603 = arith.mulf %598, %602 : vector<2x8x8xf32>
    "tpu.trace_start"() <{level = 10 : i32, message = "bqk,bkd->bqd"}> : () -> ()
    %cst_243 = arith.constant dense<0.000000e+00> : vector<2x8x8xf32>
    %604 = tpu.matmul %603, %588, %cst_243 {dimension_numbers = #tpu.dot_dimension_numbers<[2], [1], [1], [2], [0, 0, 0, 1, 1, 2], [0], [0]>} : vector<2x8x8xf32>, vector<2x8x8xf32>, vector<2x8x8xf32> -> vector<2x8x8xf32>
    "tpu.trace_stop"() : () -> ()
    %605 = vector.shape_cast %604 : vector<2x8x8xf32> to vector<16x8xf32>
    %606 = tpu.concatenate %536, %559, %582, %605 in 1 : vector<16x8xf32>, vector<16x8xf32>, vector<16x8xf32>, vector<16x8xf32> -> vector<16x32xf32>
    %607 = tpu.concatenate %534, %557, %580, %603 in 2 : vector<2x8x8xf32>, vector<2x8x8xf32>, vector<2x8x8xf32>, vector<2x8x8xf32> -> vector<2x8x32xf32>
    %c1_244 = arith.constant 1 : index
    %c0_245 = arith.constant 0 : index
    %c0_246 = arith.constant 0 : index
    %608 = vector.load %arg16[%c1_244, %c0_245, %c0_246] : memref<2x32x32xf32, #tpu.memory_space<vmem>>, vector<1x32x32xf32>
    %609 = vector.shape_cast %608 : vector<1x32x32xf32> to vector<32x32xf32>
    %cst_247 = arith.constant dense<0.000000e+00> : vector<16x32xf32>
    %610 = tpu.matmul %606, %609, %cst_247 {dimension_numbers = #tpu.dot_dimension_numbers<[1], [0], [0], [1], [0, 0, 1, 1], [], []>} : vector<16x32xf32>, vector<32x32xf32>, vector<16x32xf32> -> vector<16x32xf32>
    %c1_248 = arith.constant 1 : index
    %c0_249 = arith.constant 0 : index
    %c0_250 = arith.constant 0 : index
    %611 = vector.load %arg17[%c1_248, %c0_249, %c0_250] : memref<2x1x32xf32, #tpu.memory_space<vmem>>, vector<1x1x32xf32>
    %612 = vector.shape_cast %611 : vector<1x1x32xf32> to vector<1x32xf32>
    %613 = vector.broadcast %612 : vector<1x32xf32> to vector<16x32xf32>
    %614 = arith.addf %610, %613 : vector<16x32xf32>
    %615 = arith.addf %614, %494 : vector<16x32xf32>
    %c1_251 = arith.constant 1 : index
    %c0_252 = arith.constant 0 : index
    %c0_253 = arith.constant 0 : index
    %616 = vector.load %arg18[%c1_251, %c0_252, %c0_253] : memref<2x1x32xf32, #tpu.memory_space<vmem>>, vector<1x1x32xf32>
    %617 = vector.shape_cast %616 : vector<1x1x32xf32> to vector<1x32xf32>
    %c1_254 = arith.constant 1 : index
    %c0_255 = arith.constant 0 : index
    %c0_256 = arith.constant 0 : index
    %618 = vector.load %arg19[%c1_254, %c0_255, %c0_256] : memref<2x1x32xf32, #tpu.memory_space<vmem>>, vector<1x1x32xf32>
    %619 = vector.shape_cast %618 : vector<1x1x32xf32> to vector<1x32xf32>
    %cst_257 = arith.constant dense<0.000000e+00> : vector<16xf32>
    %620 = vector.multi_reduction <add>, %615, %cst_257 [1] : vector<16x32xf32> to vector<16xf32>
    %621 = vector.shape_cast %620 : vector<16xf32> to vector<16x1xf32>
    %cst_258 = arith.constant 3.200000e+01 : f32
    %622 = vector.broadcast %cst_258 : f32 to vector<16x1xf32>
    %623 = arith.divf %621, %622 : vector<16x1xf32>
    %624 = vector.broadcast %623 : vector<16x1xf32> to vector<16x32xf32>
    %625 = arith.subf %615, %624 : vector<16x32xf32>
    %626 = arith.mulf %625, %625 : vector<16x32xf32>
    %cst_259 = arith.constant dense<0.000000e+00> : vector<16xf32>
    %627 = vector.multi_reduction <add>, %626, %cst_259 [1] : vector<16x32xf32> to vector<16xf32>
    %628 = vector.shape_cast %627 : vector<16xf32> to vector<16x1xf32>
    %cst_260 = arith.constant 3.200000e+01 : f32
    %629 = vector.broadcast %cst_260 : f32 to vector<16x1xf32>
    %630 = arith.divf %628, %629 : vector<16x1xf32>
    %631 = vector.broadcast %623 : vector<16x1xf32> to vector<16x32xf32>
    %632 = arith.subf %615, %631 : vector<16x32xf32>
    %cst_261 = arith.constant 9.99999974E-6 : f32
    %633 = vector.broadcast %cst_261 : f32 to vector<16x1xf32>
    %634 = arith.addf %630, %633 : vector<16x1xf32>
    %635 = math.rsqrt %634 : vector<16x1xf32>
    %636 = vector.broadcast %635 : vector<16x1xf32> to vector<16x32xf32>
    %637 = arith.mulf %632, %636 : vector<16x32xf32>
    %638 = vector.broadcast %617 : vector<1x32xf32> to vector<16x32xf32>
    %639 = arith.mulf %637, %638 : vector<16x32xf32>
    %640 = vector.broadcast %619 : vector<1x32xf32> to vector<16x32xf32>
    %641 = arith.addf %639, %640 : vector<16x32xf32>
    %c1_262 = arith.constant 1 : index
    %c0_263 = arith.constant 0 : index
    %c0_264 = arith.constant 0 : index
    %c0_265 = arith.constant 0 : index
    %642 = vector.load %arg28[%c1_262, %c0_263, %c0_264, %c0_265] : memref<2x2x8x32xf32, #tpu.memory_space<vmem>>, vector<1x2x8x32xf32>
    %643 = vector.shape_cast %642 : vector<1x2x8x32xf32> to vector<2x8x32xf32>
    %644 = vector.shape_cast %607 : vector<2x8x32xf32> to vector<1x2x8x32xf32>
    tpu.vector_store %arg28[%c1_262, %c0_263, %c0_264, %c0_265], %644 {strides = array<i32>} : memref<2x2x8x32xf32, #tpu.memory_space<vmem>>, vector<1x2x8x32xf32>,
    %c1_266 = arith.constant 1 : index
    %c0_267 = arith.constant 0 : index
    %c0_268 = arith.constant 0 : index
    %645 = vector.load %arg20[%c1_266, %c0_267, %c0_268] : memref<2x32x64xf32, #tpu.memory_space<vmem>>, vector<1x32x64xf32>
    %646 = vector.shape_cast %645 : vector<1x32x64xf32> to vector<32x64xf32>
    %cst_269 = arith.constant dense<0.000000e+00> : vector<16x64xf32>
    %647 = tpu.matmul %641, %646, %cst_269 {dimension_numbers = #tpu.dot_dimension_numbers<[1], [0], [0], [1], [0, 0, 1, 1], [], []>} : vector<16x32xf32>, vector<32x64xf32>, vector<16x64xf32> -> vector<16x64xf32>
    %c1_270 = arith.constant 1 : index
    %c0_271 = arith.constant 0 : index
    %c0_272 = arith.constant 0 : index
    %648 = vector.load %arg21[%c1_270, %c0_271, %c0_272] : memref<2x1x64xf32, #tpu.memory_space<vmem>>, vector<1x1x64xf32>
    %649 = vector.shape_cast %648 : vector<1x1x64xf32> to vector<1x64xf32>
    %650 = vector.broadcast %649 : vector<1x64xf32> to vector<16x64xf32>
    %651 = arith.addf %647, %650 : vector<16x64xf32>
    %cst_273 = arith.constant 0.000000e+00 : f32
    %652 = vector.broadcast %cst_273 : f32 to vector<16x64xf32>
    %653 = arith.maximumf %651, %652 : vector<16x64xf32>
    %c1_274 = arith.constant 1 : index
    %c0_275 = arith.constant 0 : index
    %c0_276 = arith.constant 0 : index
    %654 = vector.load %arg22[%c1_274, %c0_275, %c0_276] : memref<2x64x32xf32, #tpu.memory_space<vmem>>, vector<1x64x32xf32>
    %655 = vector.shape_cast %654 : vector<1x64x32xf32> to vector<64x32xf32>
    %cst_277 = arith.constant dense<0.000000e+00> : vector<16x32xf32>
    %656 = tpu.matmul %653, %655, %cst_277 {dimension_numbers = #tpu.dot_dimension_numbers<[1], [0], [0], [1], [0, 0, 1, 1], [], []>} : vector<16x64xf32>, vector<64x32xf32>, vector<16x32xf32> -> vector<16x32xf32>
    %c1_278 = arith.constant 1 : index
    %c0_279 = arith.constant 0 : index
    %c0_280 = arith.constant 0 : index
    %657 = vector.load %arg23[%c1_278, %c0_279, %c0_280] : memref<2x1x32xf32, #tpu.memory_space<vmem>>, vector<1x1x32xf32>
    %658 = vector.shape_cast %657 : vector<1x1x32xf32> to vector<1x32xf32>
    %659 = vector.broadcast %658 : vector<1x32xf32> to vector<16x32xf32>
    %660 = arith.addf %656, %659 : vector<16x32xf32>
    %661 = arith.addf %660, %641 : vector<16x32xf32>
    %c1_281 = arith.constant 1 : index
    %c0_282 = arith.constant 0 : index
    %c0_283 = arith.constant 0 : index
    %662 = vector.load %arg24[%c1_281, %c0_282, %c0_283] : memref<2x1x32xf32, #tpu.memory_space<vmem>>, vector<1x1x32xf32>
    %663 = vector.shape_cast %662 : vector<1x1x32xf32> to vector<1x32xf32>
    %c1_284 = arith.constant 1 : index
    %c0_285 = arith.constant 0 : index
    %c0_286 = arith.constant 0 : index
    %664 = vector.load %arg25[%c1_284, %c0_285, %c0_286] : memref<2x1x32xf32, #tpu.memory_space<vmem>>, vector<1x1x32xf32>
    %665 = vector.shape_cast %664 : vector<1x1x32xf32> to vector<1x32xf32>
    %cst_287 = arith.constant dense<0.000000e+00> : vector<16xf32>
    %666 = vector.multi_reduction <add>, %661, %cst_287 [1] : vector<16x32xf32> to vector<16xf32>
    %667 = vector.shape_cast %666 : vector<16xf32> to vector<16x1xf32>
    %cst_288 = arith.constant 3.200000e+01 : f32
    %668 = vector.broadcast %cst_288 : f32 to vector<16x1xf32>
    %669 = arith.divf %667, %668 : vector<16x1xf32>
    %670 = vector.broadcast %669 : vector<16x1xf32> to vector<16x32xf32>
    %671 = arith.subf %661, %670 : vector<16x32xf32>
    %672 = arith.mulf %671, %671 : vector<16x32xf32>
    %cst_289 = arith.constant dense<0.000000e+00> : vector<16xf32>
    %673 = vector.multi_reduction <add>, %672, %cst_289 [1] : vector<16x32xf32> to vector<16xf32>
    %674 = vector.shape_cast %673 : vector<16xf32> to vector<16x1xf32>
    %cst_290 = arith.constant 3.200000e+01 : f32
    %675 = vector.broadcast %cst_290 : f32 to vector<16x1xf32>
    %676 = arith.divf %674, %675 : vector<16x1xf32>
    %677 = vector.broadcast %669 : vector<16x1xf32> to vector<16x32xf32>
    %678 = arith.subf %661, %677 : vector<16x32xf32>
    %cst_291 = arith.constant 9.99999974E-6 : f32
    %679 = vector.broadcast %cst_291 : f32 to vector<16x1xf32>
    %680 = arith.addf %676, %679 : vector<16x1xf32>
    %681 = math.rsqrt %680 : vector<16x1xf32>
    %682 = vector.broadcast %681 : vector<16x1xf32> to vector<16x32xf32>
    %683 = arith.mulf %678, %682 : vector<16x32xf32>
    %684 = vector.broadcast %663 : vector<1x32xf32> to vector<16x32xf32>
    %685 = arith.mulf %683, %684 : vector<16x32xf32>
    %686 = vector.broadcast %665 : vector<1x32xf32> to vector<16x32xf32>
    %687 = arith.addf %685, %686 : vector<16x32xf32>
    %c0_292 = arith.constant 0 : index
    %c0_293 = arith.constant 0 : index
    %688 = vector.load %arg26[%c0_292, %c0_293] : memref<16x32xf32, #tpu.memory_space<vmem>>, vector<16x32xf32>
    tpu.vector_store %arg26[%c0_292, %c0_293], %687 {strides = array<i32>} : memref<16x32xf32, #tpu.memory_space<vmem>>, vector<16x32xf32>,
    return
  }
}

</mosaic_0001>

<llo_original>
// kernel: squeeze.7
$region0: #{squeeze.7}
  %s0 = inlined_call_operand.vmem [shape: f32[1,2,8,32], index: 0, kind: input, shape index: {}]
  %s1 = inlined_call_operand.vmem [shape: f32[2,8,4,8], index: 1, kind: output, shape index: {}]
  $region1: #{squeeze.7} parent=0
    #allocation0 [shape = 'u8[65536]{0}', space=vmem, size = 0x10000, scoped, tag = 'scoped mem for output reshape']
    %v2 = vld [vmem:[%s0] sm:$0xff]
    %vm3 = vcmask 64512
    %4 = vst.msk [vmem:[#allocation0] ss:$8 sm:$0xf] %vm3, %v2
    %5 = vst.msk [vmem:[#allocation0] ss:$8 sm:$0xf0] %vm3, %v2
    %s6 = scalar_lea.vmem %s0, 8
    %v7 = vld [vmem:[%s6] sm:$0xff]
    %vm8 = vcmask 64512
    %s9 = scalar_lea.vmem [#allocation0], 64
    %10 = vst.msk [vmem:[%s9] ss:$8 sm:$0xf] %vm8, %v7
    %s11 = scalar_lea.vmem [#allocation0], 64
    %12 = vst.msk [vmem:[%s11] ss:$8 sm:$0xf0] %vm8, %v7
    %v13 = vld [vmem:[%s0] sm:$0xff]
    %14 = vrot.lane.b32.xlu0 %v13, 120
    %v15 = vpop.permute.xlu0 %14
    %vm16 = vcmask 64512
    %s17 = scalar_lea.vmem [#allocation0], 1
    %18 = vst.msk [vmem:[%s17] ss:$8 sm:$0xf] %vm16, %v15
    %s19 = scalar_lea.vmem [#allocation0], 1
    %20 = vst.msk [vmem:[%s19] ss:$8 sm:$0xf0] %vm16, %v15
    %s21 = scalar_lea.vmem %s0, 8
    %v22 = vld [vmem:[%s21] sm:$0xff]
    %23 = vrot.lane.b32.xlu0 %v22, 120
    %v24 = vpop.permute.xlu0 %23
    %vm25 = vcmask 64512
    %s26 = scalar_lea.vmem [#allocation0], 65
    %27 = vst.msk [vmem:[%s26] ss:$8 sm:$0xf] %vm25, %v24
    %s28 = scalar_lea.vmem [#allocation0], 65
    %29 = vst.msk [vmem:[%s28] ss:$8 sm:$0xf0] %vm25, %v24
    %v30 = vld [vmem:[%s0] sm:$0xff]
    %31 = vrot.lane.b32.xlu0 %v30, 112
    %v32 = vpop.permute.xlu0 %31
    %vm33 = vcmask 64512
    %s34 = scalar_lea.vmem [#allocation0], 2
    %35 = vst.msk [vmem:[%s34] ss:$8 sm:$0xf] %vm33, %v32
    %s36 = scalar_lea.vmem [#allocation0], 2
    %37 = vst.msk [vmem:[%s36] ss:$8 sm:$0xf0] %vm33, %v32
    %s38 = scalar_lea.vmem %s0, 8
    %v39 = vld [vmem:[%s38] sm:$0xff]
    %40 = vrot.lane.b32.xlu0 %v39, 112
    %v41 = vpop.permute.xlu0 %40
    %vm42 = vcmask 64512
    %s43 = scalar_lea.vmem [#allocation0], 66
    %44 = vst.msk [vmem:[%s43] ss:$8 sm:$0xf] %vm42, %v41
    %s45 = scalar_lea.vmem [#allocation0], 66
    %46 = vst.msk [vmem:[%s45] ss:$8 sm:$0xf0] %vm42, %v41
    %v47 = vld [vmem:[%s0] sm:$0xff]
    %48 = vrot.lane.b32.xlu0 %v47, 104
    %v49 = vpop.permute.xlu0 %48
    %vm50 = vcmask 64512
    %s51 = scalar_lea.vmem [#allocation0], 3
    %52 = vst.msk [vmem:[%s51] ss:$8 sm:$0xf] %vm50, %v49
    %s53 = scalar_lea.vmem [#allocation0], 3
    %54 = vst.msk [vmem:[%s53] ss:$8 sm:$0xf0] %vm50, %v49
    %s55 = scalar_lea.vmem %s0, 8
    %v56 = vld [vmem:[%s55] sm:$0xff]
    %57 = vrot.lane.b32.xlu0 %v56, 104
    %v58 = vpop.permute.xlu0 %57
    %vm59 = vcmask 64512
    %s60 = scalar_lea.vmem [#allocation0], 67
    %61 = vst.msk [vmem:[%s60] ss:$8 sm:$0xf] %vm59, %v58
    %s62 = scalar_lea.vmem [#allocation0], 67
    %63 = vst.msk [vmem:[%s62] ss:$8 sm:$0xf0] %vm59, %v58
    %s65 = sshll.u32 1, 4
    %s66 = ssub.s32 %s65, 1
    %v68 = vld [vmem:[#allocation0] sm:%s66]
    %s69 = sshll.u32 1, 4
    %s70 = ssub.s32 %s69, 1
    %71 = vst [vmem:[%s1] sm:%s70] %v68
    %s72 = scalar_lea.vmem [#allocation0], 8
    %v73 = vld [vmem:[%s72] sm:%s66]
    %s74 = sshll.u32 1, 4
    %s75 = ssub.s32 %s74, 1
    %s76 = scalar_lea.vmem %s1, 4
    %77 = vst [vmem:[%s76] sm:%s75] %v73
    %s78 = scalar_lea.vmem [#allocation0], 16
    %v79 = vld [vmem:[%s78] sm:%s66]
    %s80 = sshll.u32 1, 4
    %s81 = ssub.s32 %s80, 1
    %s82 = smul.addr 4, 2
    %s83 = scalar_lea.vmem %s1, %s82
    %84 = vst [vmem:[%s83] sm:%s81] %v79
    %s85 = scalar_lea.vmem [#allocation0], 24
    %v86 = vld [vmem:[%s85] sm:%s66]
    %s87 = sshll.u32 1, 4
    %s88 = ssub.s32 %s87, 1
    %s89 = smul.addr 4, 3
    %s90 = scalar_lea.vmem %s1, %s89
    %91 = vst [vmem:[%s90] sm:%s88] %v86
    %s92 = scalar_lea.vmem [#allocation0], 32
    %v93 = vld [vmem:[%s92] sm:%s66]
    %s94 = sshll.u32 1, 4
    %s95 = ssub.s32 %s94, 1
    %s96 = smul.addr 4, 4
    %s97 = scalar_lea.vmem %s1, %s96
    %98 = vst [vmem:[%s97] sm:%s95] %v93
    %s99 = scalar_lea.vmem [#allocation0], 40
    %v100 = vld [vmem:[%s99] sm:%s66]
    %s101 = sshll.u32 1, 4
    %s102 = ssub.s32 %s101, 1
    %s103 = smul.addr 4, 5
    %s104 = scalar_lea.vmem %s1, %s103
    %105 = vst [vmem:[%s104] sm:%s102] %v100
    %s106 = scalar_lea.vmem [#allocation0], 48
    %v107 = vld [vmem:[%s106] sm:%s66]
    %s108 = sshll.u32 1, 4
    %s109 = ssub.s32 %s108, 1
    %s110 = smul.addr 4, 6
    %s111 = scalar_lea.vmem %s1, %s110
    %112 = vst [vmem:[%s111] sm:%s109] %v107
    %s113 = scalar_lea.vmem [#allocation0], 56
    %v114 = vld [vmem:[%s113] sm:%s66]
    %s115 = sshll.u32 1, 4
    %s116 = ssub.s32 %s115, 1
    %s117 = smul.addr 4, 7
    %s118 = scalar_lea.vmem %s1, %s117
    %119 = vst [vmem:[%s118] sm:%s116] %v114
    %s120 = scalar_lea.vmem [#allocation0], 64
    %v121 = vld [vmem:[%s120] sm:%s66]
    %s122 = sshll.u32 1, 4
    %s123 = ssub.s32 %s122, 1
    %s124 = smul.addr 4, 8
    %s125 = scalar_lea.vmem %s1, %s124
    %126 = vst [vmem:[%s125] sm:%s123] %v121
    %s127 = scalar_lea.vmem [#allocation0], 72
    %v128 = vld [vmem:[%s127] sm:%s66]
    %s129 = sshll.u32 1, 4
    %s130 = ssub.s32 %s129, 1
    %s131 = smul.addr 4, 9
    %s132 = scalar_lea.vmem %s1, %s131
    %133 = vst [vmem:[%s132] sm:%s130] %v128
    %s134 = scalar_lea.vmem [#allocation0], 80
    %v135 = vld [vmem:[%s134] sm:%s66]
    %s136 = sshll.u32 1, 4
    %s137 = ssub.s32 %s136, 1
    %s138 = smul.addr 4, 10
    %s139 = scalar_lea.vmem %s1, %s138
    %140 = vst [vmem:[%s139] sm:%s137] %v135
    %s141 = scalar_lea.vmem [#allocation0], 88
    %v142 = vld [vmem:[%s141] sm:%s66]
    %s143 = sshll.u32 1, 4
    %s144 = ssub.s32 %s143, 1
    %s145 = smul.addr 4, 11
    %s146 = scalar_lea.vmem %s1, %s145
    %147 = vst [vmem:[%s146] sm:%s144] %v142
    %s148 = scalar_lea.vmem [#allocation0], 96
    %v149 = vld [vmem:[%s148] sm:%s66]
    %s150 = sshll.u32 1, 4
    %s151 = ssub.s32 %s150, 1
    %s152 = smul.addr 4, 12
    %s153 = scalar_lea.vmem %s1, %s152
    %154 = vst [vmem:[%s153] sm:%s151] %v149
    %s155 = scalar_lea.vmem [#allocation0], 104
    %v156 = vld [vmem:[%s155] sm:%s66]
    %s157 = sshll.u32 1, 4
    %s158 = ssub.s32 %s157, 1
    %s159 = smul.addr 4, 13
    %s160 = scalar_lea.vmem %s1, %s159
    %161 = vst [vmem:[%s160] sm:%s158] %v156
    %s162 = scalar_lea.vmem [#allocation0], 112
    %v163 = vld [vmem:[%s162] sm:%s66]
    %s164 = sshll.u32 1, 4
    %s165 = ssub.s32 %s164, 1
    %s166 = smul.addr 4, 14
    %s167 = scalar_lea.vmem %s1, %s166
    %168 = vst [vmem:[%s167] sm:%s165] %v163
    %s169 = scalar_lea.vmem [#allocation0], 120
    %v170 = vld [vmem:[%s169] sm:%s66]
    %s171 = sshll.u32 1, 4
    %s172 = ssub.s32 %s171, 1
    %s173 = smul.addr 4, 15
    %s174 = scalar_lea.vmem %s1, %s173
    %175 = vst [vmem:[%s174] sm:%s172] %v170

// kernel: decoder_forward.1
$region0: #{decoder_forward.1}
  #allocation0 [shape = 'u32[]', space=smem, size = 0x4, offset = 0x4, fixed_abs, tag = 'smem constant byte address 0x4 - core index']
  #allocation1 [shape = 'u32[144,128]{1,0:T(1,128)}', space=vmem, size = 0x12000, scoped, tag = 'internal scratch']
  %s0 = inlined_call_operand.vmem [shape: s32[16,1], index: 0, kind: input, shape index: {}]
  %s1 = inlined_call_operand.vmem [shape: f32[2,1,8], index: 1, kind: input, shape index: {}]
  %s2 = inlined_call_operand.vmem [shape: f32[2,1,8], index: 2, kind: input, shape index: {}]
  %s3 = inlined_call_operand.hbm [shape: f32[16,32], index: 3, kind: input, shape index: {}]
  %s4 = inlined_call_operand.vmem [shape: f32[16,32], index: 4, kind: input, shape index: {}]
  %s5 = inlined_call_operand.hbm [shape: f32[16,32], index: 5, kind: input, shape index: {}]
  %s6 = inlined_call_operand.vmem [shape: f32[2,32,96], index: 6, kind: input, shape index: {}]
  %s7 = inlined_call_operand.hbm [shape: f32[2,1,96], index: 7, kind: input, shape index: {}]
  %s8 = inlined_call_operand.vmem [shape: f32[2,32,32], index: 8, kind: input, shape index: {}]
  %s9 = inlined_call_operand.hbm [shape: f32[2,1,32], index: 9, kind: input, shape index: {}]
  %s10 = inlined_call_operand.hbm [shape: f32[2,1,32], index: 10, kind: input, shape index: {}]
  %s11 = inlined_call_operand.hbm [shape: f32[2,1,32], index: 11, kind: input, shape index: {}]
  %s12 = inlined_call_operand.vmem [shape: f32[2,32,32], index: 12, kind: input, shape index: {}]
  %s13 = inlined_call_operand.hbm [shape: f32[2,1,32], index: 13, kind: input, shape index: {}]
  %s14 = inlined_call_operand.vmem [shape: f32[2,32,64], index: 14, kind: input, shape index: {}]
  %s15 = inlined_call_operand.hbm [shape: f32[2,1,64], index: 15, kind: input, shape index: {}]
  %s16 = inlined_call_operand.vmem [shape: f32[2,32,32], index: 16, kind: input, shape index: {}]
  %s17 = inlined_call_operand.hbm [shape: f32[2,1,32], index: 17, kind: input, shape index: {}]
  %s18 = inlined_call_operand.hbm [shape: f32[2,1,32], index: 18, kind: input, shape index: {}]
  %s19 = inlined_call_operand.hbm [shape: f32[2,1,32], index: 19, kind: input, shape index: {}]
  %s20 = inlined_call_operand.hbm [shape: f32[2,32,64], index: 20, kind: input, shape index: {}]
  %s21 = inlined_call_operand.hbm [shape: f32[2,1,64], index: 21, kind: input, shape index: {}]
  %s22 = inlined_call_operand.vmem [shape: f32[2,64,32], index: 22, kind: input, shape index: {}]
  %s23 = inlined_call_operand.hbm [shape: f32[2,1,32], index: 23, kind: input, shape index: {}]
  %s24 = inlined_call_operand.hbm [shape: f32[2,1,32], index: 24, kind: input, shape index: {}]
  %s25 = inlined_call_operand.hbm [shape: f32[2,1,32], index: 25, kind: input, shape index: {}]
  %s26 = inlined_call_operand.hbm [shape: f32[16,32], index: 26, kind: output, shape index: {0}]
  %s27 = inlined_call_operand.vmem [shape: f32[2,2,8,32], index: 27, kind: output, shape index: {1}]
  %s28 = inlined_call_operand.vmem [shape: f32[2,2,8,32], index: 28, kind: output, shape index: {2}]
  %29 = xla_tuple %s26, %s27, %s28
  %s30 = sld [smem:[#allocation0]]
  $region194: #{decoder_forward.1} parent=0
    _
  %s32 = ssub.s32 1, %s30
  %s33 = scalar_select 0, %s32, %s30
  $region1: #{decoder_forward.1} parent=0
    #allocation2 [shape = 'u8[8192]{0}', space=vmem, size = 0x2000, scoped, tag = 'input window, operand 3, single buffered']
    #allocation3 [shape = 's32[1]{0}', space=sflag, size = 0x4, scoped, tag = 'scoped memory for decoder_forward.1']
    #allocation4 [shape = 's32[1]{0}', space=sflag, size = 0x4, scoped, tag = 'scoped memory for decoder_forward.1']
    #allocation5 [shape = 'u8[8192]{0}', space=vmem, size = 0x2000, scoped, tag = 'input window, operand 5, single buffered']
    #allocation6 [shape = 's32[1]{0}', space=sflag, size = 0x4, scoped, tag = 'scoped memory for decoder_forward.1']
    #allocation7 [shape = 'u8[1024]{0}', space=vmem, size = 0x400, scoped, tag = 'input window, operand 7, single buffered']
    #allocation8 [shape = 'u8[1024]{0}', space=vmem, size = 0x400, scoped, tag = 'input window, operand 9, single buffered']
    #allocation9 [shape = 's32[1]{0}', space=sflag, size = 0x4, scoped, tag = 'scoped memory for decoder_forward.1']
    #allocation10 [shape = 'u8[1024]{0}', space=vmem, size = 0x400, scoped, tag = 'input window, operand 10, single buffered']
    #allocation11 [shape = 'u8[1024]{0}', space=vmem, size = 0x400, scoped, tag = 'input window, operand 11, single buffered']
    #allocation12 [shape = 's32[1]{0}', space=sflag, size = 0x4, scoped, tag = 'scoped memory for decoder_forward.1']
    #allocation13 [shape = 'u8[1024]{0}', space=vmem, size = 0x400, scoped, tag = 'input window, operand 13, single buffered']
    #allocation14 [shape = 'u8[1024]{0}', space=vmem, size = 0x400, scoped, tag = 'input window, operand 15, single buffered']
    #allocation15 [shape = 's32[1]{0}', space=sflag, size = 0x4, scoped, tag = 'scoped memory for decoder_forward.1']
    #allocation16 [shape = 'u8[1024]{0}', space=vmem, size = 0x400, scoped, tag = 'input window, operand 17, single buffered']
    #allocation17 [shape = 'u8[1024]{0}', space=vmem, size = 0x400, scoped, tag = 'input window, operand 18, single buffered']
    #allocation18 [shape = 's32[1]{0}', space=sflag, size = 0x4, scoped, tag = 'scoped memory for decoder_forward.1']
    #allocation19 [shape = 'u8[1024]{0}', space=vmem, size = 0x400, scoped, tag = 'input window, operand 19, single buffered']
    #allocation20 [shape = 'u8[32768]{0}', space=vmem, size = 0x8000, scoped, tag = 'input window, operand 20, single buffered']
    #allocation21 [shape = 's32[1]{0}', space=sflag, size = 0x4, scoped, tag = 'scoped memory for decoder_forward.1']
    #allocation22 [shape = 'u8[1024]{0}', space=vmem, size = 0x400, scoped, tag = 'input window, operand 21, single buffered']
    #allocation23 [shape = 'u8[1024]{0}', space=vmem, size = 0x400, scoped, tag = 'input window, operand 23, single buffered']
    #allocation24 [shape = 's32[1]{0}', space=sflag, size = 0x4, scoped, tag = 'scoped memory for decoder_forward.1']
    #allocation25 [shape = 'u8[1024]{0}', space=vmem, size = 0x400, scoped, tag = 'input window, operand 24, single buffered']
    #allocation26 [shape = 'u8[1024]{0}', space=vmem, size = 0x400, scoped, tag = 'input window, operand 25, single buffered']
    #allocation27 [shape = 's32[1]{0}', space=sflag, size = 0x4, scoped, tag = 'scoped memory for decoder_forward.1']
    #allocation28 [shape = 'u8[8192]{0}', space=vmem, size = 0x2000, scoped, tag = 'output window, operand 0, single buffered']
    %34 = vsyncpa [#allocation3], 0
    %35 = vsyncpa [#allocation6], 0
    %36 = vsyncpa [#allocation9], 0
    %37 = vsyncpa [#allocation12], 0
    %38 = vsyncpa [#allocation15], 0
    %39 = vsyncpa [#allocation18], 0
    %40 = vsyncpa [#allocation21], 0
    %41 = vsyncpa [#allocation24], 0
    %42 = vsyncpa [#allocation27], 0
    %43 = vsyncpa [#allocation4], 0
    // Predicated region
    $region2: #{decoder_forward.1} parent=1 // pred_check
      _
    $region3: #{decoder_forward.1} parent=1 // pred_check_branch
      %45 = sbr.rel (0) target = $region5
    $region4: #{decoder_forward.1} parent=1 // pred_region
      _
    $region5: #{decoder_forward.1} parent=1 // pred_fallthru
      _
    // Predicated region
    $region6: #{decoder_forward.1} parent=1 // pred_check
      _
    $region7: #{decoder_forward.1} parent=1 // pred_check_branch
      %47 = sbr.rel (0) target = $region9
    $region8: #{decoder_forward.1} parent=1 // pred_region
      _
    $region9: #{decoder_forward.1} parent=1 // pred_fallthru
      _
    // Predicated region
    $region10: #{decoder_forward.1} parent=1 // pred_check
      _
    $region11: #{decoder_forward.1} parent=1 // pred_check_branch
      %49 = sbr.rel (0) target = $region13
    $region12: #{decoder_forward.1} parent=1 // pred_region
      _
    $region13: #{decoder_forward.1} parent=1 // pred_fallthru
      _
    // Predicated region
    $region14: #{decoder_forward.1} parent=1 // pred_check
      _
    $region15: #{decoder_forward.1} parent=1 // pred_check_branch
      %51 = sbr.rel (0) target = $region17
    $region16: #{decoder_forward.1} parent=1 // pred_region
      %s53 = ssub.s32 256, 256
      %54 = vsyncadd [#allocation3], %s53
      %s55 = sshll.u32 [#allocation2], 4
      %s56 = int_to_ptr.vmem [resolvable:$true] %s55
      %61 = dma.hbm_to_vmem [thread:$0]  %s3, 256, %s56, [#allocation3], 128, 128, 8
    $region17: #{decoder_forward.1} parent=1 // pred_fallthru
      _
    // Predicated region
    $region18: #{decoder_forward.1} parent=1 // pred_check
      _
    $region19: #{decoder_forward.1} parent=1 // pred_check_branch
      %63 = sbr.rel (0) target = $region21
    $region20: #{decoder_forward.1} parent=1 // pred_region
      _
    $region21: #{decoder_forward.1} parent=1 // pred_fallthru
      _
    // Predicated region
    $region22: #{decoder_forward.1} parent=1 // pred_check
      _
    $region23: #{decoder_forward.1} parent=1 // pred_check_branch
      %65 = sbr.rel (0) target = $region25
    $region24: #{decoder_forward.1} parent=1 // pred_region
      %s67 = ssub.s32 256, 256
      %68 = vsyncadd [#allocation6], %s67
      %s69 = sshll.u32 [#allocation5], 4
      %s70 = int_to_ptr.vmem [resolvable:$true] %s69
      %75 = dma.hbm_to_vmem [thread:$0]  %s5, 256, %s70, [#allocation6], 128, 128, 8
    $region25: #{decoder_forward.1} parent=1 // pred_fallthru
      _
    // Predicated region
    $region26: #{decoder_forward.1} parent=1 // pred_check
      _
    $region27: #{decoder_forward.1} parent=1 // pred_check_branch
      %77 = sbr.rel (0) target = $region29
    $region28: #{decoder_forward.1} parent=1 // pred_region
      _
    $region29: #{decoder_forward.1} parent=1 // pred_fallthru
      _
    // Predicated region
    $region30: #{decoder_forward.1} parent=1 // pred_check
      _
    $region31: #{decoder_forward.1} parent=1 // pred_check_branch
      %79 = sbr.rel (0) target = $region33
    $region32: #{decoder_forward.1} parent=1 // pred_region
      %s81 = ssub.s32 32, 32
      %82 = vsyncadd [#allocation6], %s81
      %s83 = sshll.u32 [#allocation7], 4
      %s84 = int_to_ptr.vmem [resolvable:$true] %s83
      %89 = dma.hbm_to_vmem [thread:$0]  %s7, 32, %s84, [#allocation6], 16, 16, 1
    $region33: #{decoder_forward.1} parent=1 // pred_fallthru
      _
    // Predicated region
    $region34: #{decoder_forward.1} parent=1 // pred_check
      _
    $region35: #{decoder_forward.1} parent=1 // pred_check_branch
      %91 = sbr.rel (0) target = $region37
    $region36: #{decoder_forward.1} parent=1 // pred_region
      _
    $region37: #{decoder_forward.1} parent=1 // pred_fallthru
      _
    // Predicated region
    $region38: #{decoder_forward.1} parent=1 // pred_check
      _
    $region39: #{decoder_forward.1} parent=1 // pred_check_branch
      %93 = sbr.rel (0) target = $region41
    $region40: #{decoder_forward.1} parent=1 // pred_region
      %s95 = ssub.s32 32, 32
      %96 = vsyncadd [#allocation9], %s95
      %s97 = sshll.u32 [#allocation8], 4
      %s98 = int_to_ptr.vmem [resolvable:$true] %s97
      %103 = dma.hbm_to_vmem [thread:$0]  %s9, 32, %s98, [#allocation9], 16, 16, 1
    $region41: #{decoder_forward.1} parent=1 // pred_fallthru
      _
    // Predicated region
    $region42: #{decoder_forward.1} parent=1 // pred_check
      _
    $region43: #{decoder_forward.1} parent=1 // pred_check_branch
      %105 = sbr.rel (0) target = $region45
    $region44: #{decoder_forward.1} parent=1 // pred_region
      %s107 = ssub.s32 32, 32
      %108 = vsyncadd [#allocation9], %s107
      %s109 = sshll.u32 [#allocation10], 4
      %s110 = int_to_ptr.vmem [resolvable:$true] %s109
      %115 = dma.hbm_to_vmem [thread:$0]  %s10, 32, %s110, [#allocation9], 16, 16, 1
    $region45: #{decoder_forward.1} parent=1 // pred_fallthru
      _
    // Predicated region
    $region46: #{decoder_forward.1} parent=1 // pred_check
      _
    $region47: #{decoder_forward.1} parent=1 // pred_check_branch
      %117 = sbr.rel (0) target = $region49
    $region48: #{decoder_forward.1} parent=1 // pred_region
      %s119 = ssub.s32 32, 32
      %120 = vsyncadd [#allocation12], %s119
      %s121 = sshll.u32 [#allocation11], 4
      %s122 = int_to_ptr.vmem [resolvable:$true] %s121
      %127 = dma.hbm_to_vmem [thread:$0]  %s11, 32, %s122, [#allocation12], 16, 16, 1
    $region49: #{decoder_forward.1} parent=1 // pred_fallthru
      _
    // Predicated region
    $region50: #{decoder_forward.1} parent=1 // pred_check
      _
    $region51: #{decoder_forward.1} parent=1 // pred_check_branch
      %129 = sbr.rel (0) target = $region53
    $region52: #{decoder_forward.1} parent=1 // pred_region
      _
    $region53: #{decoder_forward.1} parent=1 // pred_fallthru
      _
    // Predicated region
    $region54: #{decoder_forward.1} parent=1 // pred_check
      _
    $region55: #{decoder_forward.1} parent=1 // pred_check_branch
      %131 = sbr.rel (0) target = $region57
    $region56: #{decoder_forward.1} parent=1 // pred_region
      %s133 = ssub.s32 32, 32
      %134 = vsyncadd [#allocation12], %s133
      %s135 = sshll.u32 [#allocation13], 4
      %s136 = int_to_ptr.vmem [resolvable:$true] %s135
      %141 = dma.hbm_to_vmem [thread:$0]  %s13, 32, %s136, [#allocation12], 16, 16, 1
    $region57: #{decoder_forward.1} parent=1 // pred_fallthru
      _
    // Predicated region
    $region58: #{decoder_forward.1} parent=1 // pred_check
      _
    $region59: #{decoder_forward.1} parent=1 // pred_check_branch
      %143 = sbr.rel (0) target = $region61
    $region60: #{decoder_forward.1} parent=1 // pred_region
      _
    $region61: #{decoder_forward.1} parent=1 // pred_fallthru
      _
    // Predicated region
    $region62: #{decoder_forward.1} parent=1 // pred_check
      _
    $region63: #{decoder_forward.1} parent=1 // pred_check_branch
      %145 = sbr.rel (0) target = $region65
    $region64: #{decoder_forward.1} parent=1 // pred_region
      %s147 = ssub.s32 32, 32
      %148 = vsyncadd [#allocation15], %s147
      %s149 = sshll.u32 [#allocation14], 4
      %s150 = int_to_ptr.vmem [resolvable:$true] %s149
      %155 = dma.hbm_to_vmem [thread:$0]  %s15, 32, %s150, [#allocation15], 16, 16, 1
    $region65: #{decoder_forward.1} parent=1 // pred_fallthru
      _
    // Predicated region
    $region66: #{decoder_forward.1} parent=1 // pred_check
      _
    $region67: #{decoder_forward.1} parent=1 // pred_check_branch
      %157 = sbr.rel (0) target = $region69
    $region68: #{decoder_forward.1} parent=1 // pred_region
      _
    $region69: #{decoder_forward.1} parent=1 // pred_fallthru
      _
    // Predicated region
    $region70: #{decoder_forward.1} parent=1 // pred_check
      _
    $region71: #{decoder_forward.1} parent=1 // pred_check_branch
      %159 = sbr.rel (0) target = $region73
    $region72: #{decoder_forward.1} parent=1 // pred_region
      %s161 = ssub.s32 32, 32
      %162 = vsyncadd [#allocation15], %s161
      %s163 = sshll.u32 [#allocation16], 4
      %s164 = int_to_ptr.vmem [resolvable:$true] %s163
      %169 = dma.hbm_to_vmem [thread:$0]  %s17, 32, %s164, [#allocation15], 16, 16, 1
    $region73: #{decoder_forward.1} parent=1 // pred_fallthru
      _
    // Predicated region
    $region74: #{decoder_forward.1} parent=1 // pred_check
      _
    $region75: #{decoder_forward.1} parent=1 // pred_check_branch
      %171 = sbr.rel (0) target = $region77
    $region76: #{decoder_forward.1} parent=1 // pred_region
      %s173 = ssub.s32 32, 32
      %174 = vsyncadd [#allocation18], %s173
      %s175 = sshll.u32 [#allocation17], 4
      %s176 = int_to_ptr.vmem [resolvable:$true] %s175
      %181 = dma.hbm_to_vmem [thread:$0]  %s18, 32, %s176, [#allocation18], 16, 16, 1
    $region77: #{decoder_forward.1} parent=1 // pred_fallthru
      _
    // Predicated region
    $region78: #{decoder_forward.1} parent=1 // pred_check
      _
    $region79: #{decoder_forward.1} parent=1 // pred_check_branch
      %183 = sbr.rel (0) target = $region81
    $region80: #{decoder_forward.1} parent=1 // pred_region
      %s185 = ssub.s32 32, 32
      %186 = vsyncadd [#allocation18], %s185
      %s187 = sshll.u32 [#allocation19], 4
      %s188 = int_to_ptr.vmem [resolvable:$true] %s187
      %193 = dma.hbm_to_vmem [thread:$0]  %s19, 32, %s188, [#allocation18], 16, 16, 1
    $region81: #{decoder_forward.1} parent=1 // pred_fallthru
      _
    // Predicated region
    $region82: #{decoder_forward.1} parent=1 // pred_check
      _
    $region83: #{decoder_forward.1} parent=1 // pred_check_branch
      %195 = sbr.rel (0) target = $region85
    $region84: #{decoder_forward.1} parent=1 // pred_region
      %s197 = ssub.s32 1024, 1024
      %198 = vsyncadd [#allocation21], %s197
      %s199 = sshll.u32 [#allocation20], 4
      %s200 = int_to_ptr.vmem [resolvable:$true] %s199
      %205 = dma.hbm_to_vmem [thread:$0]  %s20, 1024, %s200, [#allocation21], 128, 128, 8
    $region85: #{decoder_forward.1} parent=1 // pred_fallthru
      _
    // Predicated region
    $region86: #{decoder_forward.1} parent=1 // pred_check
      _
    $region87: #{decoder_forward.1} parent=1 // pred_check_branch
      %207 = sbr.rel (0) target = $region89
    $region88: #{decoder_forward.1} parent=1 // pred_region
      %s209 = ssub.s32 32, 32
      %210 = vsyncadd [#allocation21], %s209
      %s211 = sshll.u32 [#allocation22], 4
      %s212 = int_to_ptr.vmem [resolvable:$true] %s211
      %217 = dma.hbm_to_vmem [thread:$0]  %s21, 32, %s212, [#allocation21], 16, 16, 1
    $region89: #{decoder_forward.1} parent=1 // pred_fallthru
      _
    // Predicated region
    $region90: #{decoder_forward.1} parent=1 // pred_check
      _
    $region91: #{decoder_forward.1} parent=1 // pred_check_branch
      %219 = sbr.rel (0) target = $region93
    $region92: #{decoder_forward.1} parent=1 // pred_region
      _
    $region93: #{decoder_forward.1} parent=1 // pred_fallthru
      _
    // Predicated region
    $region94: #{decoder_forward.1} parent=1 // pred_check
      _
    $region95: #{decoder_forward.1} parent=1 // pred_check_branch
      %221 = sbr.rel (0) target = $region97
    $region96: #{decoder_forward.1} parent=1 // pred_region
      %s223 = ssub.s32 32, 32
      %224 = vsyncadd [#allocation24], %s223
      %s225 = sshll.u32 [#allocation23], 4
      %s226 = int_to_ptr.vmem [resolvable:$true] %s225
      %231 = dma.hbm_to_vmem [thread:$0]  %s23, 32, %s226, [#allocation24], 16, 16, 1
    $region97: #{decoder_forward.1} parent=1 // pred_fallthru
      _
    // Predicated region
    $region98: #{decoder_forward.1} parent=1 // pred_check
      _
    $region99: #{decoder_forward.1} parent=1 // pred_check_branch
      %233 = sbr.rel (0) target = $region101
    $region100: #{decoder_forward.1} parent=1 // pred_region
      %s235 = ssub.s32 32, 32
      %236 = vsyncadd [#allocation24], %s235
      %s237 = sshll.u32 [#allocation25], 4
      %s238 = int_to_ptr.vmem [resolvable:$true] %s237
      %243 = dma.hbm_to_vmem [thread:$0]  %s24, 32, %s238, [#allocation24], 16, 16, 1
    $region101: #{decoder_forward.1} parent=1 // pred_fallthru
      _
    // Predicated region
    $region102: #{decoder_forward.1} parent=1 // pred_check
      _
    $region103: #{decoder_forward.1} parent=1 // pred_check_branch
      %245 = sbr.rel (0) target = $region105
    $region104: #{decoder_forward.1} parent=1 // pred_region
      %s247 = ssub.s32 32, 32
      %248 = vsyncadd [#allocation27], %s247
      %s249 = sshll.u32 [#allocation26], 4
      %s250 = int_to_ptr.vmem [resolvable:$true] %s249
      %255 = dma.hbm_to_vmem [thread:$0]  %s25, 32, %s250, [#allocation27], 16, 16, 1
    $region105: #{decoder_forward.1} parent=1 // pred_fallthru
      _
    // Predicated region
    $region106: #{decoder_forward.1} parent=1 // pred_check
      _
    $region107: #{decoder_forward.1} parent=1 // pred_check_branch
      %257 = sbr.rel (0) target = $region109
    $region108: #{decoder_forward.1} parent=1 // pred_region
      %258 = dma.done [#allocation3], 256
    $region109: #{decoder_forward.1} parent=1 // pred_fallthru
      _
    // Predicated region
    $region110: #{decoder_forward.1} parent=1 // pred_check
      _
    $region111: #{decoder_forward.1} parent=1 // pred_check_branch
      %260 = sbr.rel (0) target = $region113
    $region112: #{decoder_forward.1} parent=1 // pred_region
      %261 = dma.done [#allocation6], 256
    $region113: #{decoder_forward.1} parent=1 // pred_fallthru
      _
    // Predicated region
    $region114: #{decoder_forward.1} parent=1 // pred_check
      _
    $region115: #{decoder_forward.1} parent=1 // pred_check_branch
      %263 = sbr.rel (0) target = $region117
    $region116: #{decoder_forward.1} parent=1 // pred_region
      %264 = dma.done [#allocation6], 32
    $region117: #{decoder_forward.1} parent=1 // pred_fallthru
      _
    // Predicated region
    $region118: #{decoder_forward.1} parent=1 // pred_check
      _
    $region119: #{decoder_forward.1} parent=1 // pred_check_branch
      %266 = sbr.rel (0) target = $region121
    $region120: #{decoder_forward.1} parent=1 // pred_region
      %267 = dma.done [#allocation9], 32
    $region121: #{decoder_forward.1} parent=1 // pred_fallthru
      _
    // Predicated region
    $region122: #{decoder_forward.1} parent=1 // pred_check
      _
    $region123: #{decoder_forward.1} parent=1 // pred_check_branch
      %269 = sbr.rel (0) target = $region125
    $region124: #{decoder_forward.1} parent=1 // pred_region
      %270 = dma.done [#allocation9], 32
    $region125: #{decoder_forward.1} parent=1 // pred_fallthru
      _
    // Predicated region
    $region126: #{decoder_forward.1} parent=1 // pred_check
      _
    $region127: #{decoder_forward.1} parent=1 // pred_check_branch
      %272 = sbr.rel (0) target = $region129
    $region128: #{decoder_forward.1} parent=1 // pred_region
      %273 = dma.done [#allocation12], 32
    $region129: #{decoder_forward.1} parent=1 // pred_fallthru
      _
    // Predicated region
    $region130: #{decoder_forward.1} parent=1 // pred_check
      _
    $region131: #{decoder_forward.1} parent=1 // pred_check_branch
      %275 = sbr.rel (0) target = $region133
    $region132: #{decoder_forward.1} parent=1 // pred_region
      %276 = dma.done [#allocation12], 32
    $region133: #{decoder_forward.1} parent=1 // pred_fallthru
      _
    // Predicated region
    $region134: #{decoder_forward.1} parent=1 // pred_check
      _
    $region135: #{decoder_forward.1} parent=1 // pred_check_branch
      %278 = sbr.rel (0) target = $region137
    $region136: #{decoder_forward.1} parent=1 // pred_region
      %279 = dma.done [#allocation15], 32
    $region137: #{decoder_forward.1} parent=1 // pred_fallthru
      _
    // Predicated region
    $region138: #{decoder_forward.1} parent=1 // pred_check
      _
    $region139: #{decoder_forward.1} parent=1 // pred_check_branch
      %281 = sbr.rel (0) target = $region141
    $region140: #{decoder_forward.1} parent=1 // pred_region
      %282 = dma.done [#allocation15], 32
    $region141: #{decoder_forward.1} parent=1 // pred_fallthru
      _
    // Predicated region
    $region142: #{decoder_forward.1} parent=1 // pred_check
      _
    $region143: #{decoder_forward.1} parent=1 // pred_check_branch
      %284 = sbr.rel (0) target = $region145
    $region144: #{decoder_forward.1} parent=1 // pred_region
      %285 = dma.done [#allocation18], 32
    $region145: #{decoder_forward.1} parent=1 // pred_fallthru
      _
    // Predicated region
    $region146: #{decoder_forward.1} parent=1 // pred_check
      _
    $region147: #{decoder_forward.1} parent=1 // pred_check_branch
      %287 = sbr.rel (0) target = $region149
    $region148: #{decoder_forward.1} parent=1 // pred_region
      %288 = dma.done [#allocation18], 32
    $region149: #{decoder_forward.1} parent=1 // pred_fallthru
      _
    // Predicated region
    $region150: #{decoder_forward.1} parent=1 // pred_check
      _
    $region151: #{decoder_forward.1} parent=1 // pred_check_branch
      %290 = sbr.rel (0) target = $region153
    $region152: #{decoder_forward.1} parent=1 // pred_region
      %291 = dma.done [#allocation21], 1024
    $region153: #{decoder_forward.1} parent=1 // pred_fallthru
      _
    // Predicated region
    $region154: #{decoder_forward.1} parent=1 // pred_check
      _
    $region155: #{decoder_forward.1} parent=1 // pred_check_branch
      %293 = sbr.rel (0) target = $region157
    $region156: #{decoder_forward.1} parent=1 // pred_region
      %294 = dma.done [#allocation21], 32
    $region157: #{decoder_forward.1} parent=1 // pred_fallthru
      _
    // Predicated region
    $region158: #{decoder_forward.1} parent=1 // pred_check
      _
    $region159: #{decoder_forward.1} parent=1 // pred_check_branch
      %296 = sbr.rel (0) target = $region161
    $region160: #{decoder_forward.1} parent=1 // pred_region
      %297 = dma.done [#allocation24], 32
    $region161: #{decoder_forward.1} parent=1 // pred_fallthru
      _
    // Predicated region
    $region162: #{decoder_forward.1} parent=1 // pred_check
      _
    $region163: #{decoder_forward.1} parent=1 // pred_check_branch
      %299 = sbr.rel (0) target = $region165
    $region164: #{decoder_forward.1} parent=1 // pred_region
      %300 = dma.done [#allocation24], 32
    $region165: #{decoder_forward.1} parent=1 // pred_fallthru
      _
    // Predicated region
    $region166: #{decoder_forward.1} parent=1 // pred_check
      _
    $region167: #{decoder_forward.1} parent=1 // pred_check_branch
      %302 = sbr.rel (0) target = $region169
    $region168: #{decoder_forward.1} parent=1 // pred_region
      %303 = dma.done [#allocation27], 32
    $region169: #{decoder_forward.1} parent=1 // pred_fallthru
      _
    %v304 = vld [vmem:[%s0] sm:$0xff]
    %v305 = vld [vmem:[%s0 + $0x8] sm:$0xff]
    %v306 = vlaneseq
    %v307 = vand.u32 %v306, 127
    %308 = vset.pattern.permute.xlu0 0
    %309 = vperm.xlu0 %308, %v304
    %v310 = vpop.permute.xlu0 %309
    %311 = vset.pattern.permute.xlu0 0
    %312 = vperm.xlu0 %311, %v305
    %v313 = vpop.permute.xlu0 %312
    %vm314 = vcmp.eq.s32.totalorder %v310, %v307
    %vm315 = vcmp.eq.s32.totalorder %v313, %v307
    %v316 = vsel %vm314, 1, 0
    %v317 = vsel %vm315, 1, 0
    %v318 = vcvt.s32.f32 %v316
    %v319 = vcvt.s32.f32 %v317
    %v320 = vld [vmem:[#allocation2] sm:$0xff]
    %v321 = vld [vmem:[#allocation2 + $0x8] sm:$0xff]
    %v322 = vld [vmem:[%s4] sm:$0xff]
    %v323 = vld [vmem:[%s4 + $0x8] sm:$0xff]
    %vm324 = vcmask 130048
    %v326 = vsel %vm324, %v318, 0
    %v329 = vsel %vm324, %v319, 0
    %331 = vmatprep.subr.mxu0 0.0
    %332 = vmatpush1.msra.mxu0 0.0
    %333 = vmatprep.subr.mxu0 0.0
    %334 = vmatpush1.msra.mxu0 0.0
    %335 = vmatprep.subr.mxu0 0.0
    %336 = vmatpush1.msra.mxu0 0.0
    %337 = vmatprep.subr.mxu0 0.0
    %338 = vmatpush1.msra.mxu0 0.0
    %339 = vmatprep.subr.mxu0 0.0
    %340 = vmatpush1.msra.mxu0 0.0
    %341 = vmatprep.subr.mxu0 0.0
    %342 = vmatpush1.msra.mxu0 0.0
    %343 = vmatprep.subr.mxu0 0.0
    %344 = vmatpush1.msra.mxu0 0.0
    %345 = vmatprep.subr.mxu0 0.0
    %346 = vmatpush1.msra.mxu0 0.0
    %347 = vmatprep.subr.mxu0 0.0
    %348 = vmatpush1.msra.mxu0 0.0
    %349 = vmatprep.subr.mxu0 0.0
    %350 = vmatpush1.msra.mxu0 0.0
    %351 = vmatprep.subr.mxu0 0.0
    %352 = vmatpush1.msra.mxu0 0.0
    %353 = vmatprep.subr.mxu0 0.0
    %354 = vmatpush1.msra.mxu0 0.0
    %355 = vmatprep.subr.mxu0 0.0
    %356 = vmatpush1.msra.mxu0 0.0
    %357 = vmatprep.subr.mxu0 0.0
    %358 = vmatpush1.msra.mxu0 0.0
    %359 = vmatprep.subr.mxu0 0.0
    %360 = vmatpush1.msra.mxu0 %v321
    %361 = vmatprep.subr.mxu0 0.0
    %362 = vmatpush1.msra.mxu0 %v320
    %363 = vmatprep.subr.mxu0 0.0
    %364 = vmatpush2.msra.mxu0 0.0
    %365 = vmatprep.subr.mxu0 0.0
    %366 = vmatpush2.msra.mxu0 0.0
    %367 = vmatprep.subr.mxu0 0.0
    %368 = vmatpush2.msra.mxu0 0.0
    %369 = vmatprep.subr.mxu0 0.0
    %370 = vmatpush2.msra.mxu0 0.0
    %371 = vmatprep.subr.mxu0 0.0
    %372 = vmatpush2.msra.mxu0 0.0
    %373 = vmatprep.subr.mxu0 0.0
    %374 = vmatpush2.msra.mxu0 0.0
    %375 = vmatprep.subr.mxu0 0.0
    %376 = vmatpush2.msra.mxu0 0.0
    %377 = vmatprep.subr.mxu0 0.0
    %378 = vmatpush2.msra.mxu0 0.0
    %379 = vmatprep.subr.mxu0 0.0
    %380 = vmatpush2.msra.mxu0 0.0
    %381 = vmatprep.subr.mxu0 0.0
    %382 = vmatpush2.msra.mxu0 0.0
    %383 = vmatprep.subr.mxu0 0.0
    %384 = vmatpush2.msra.mxu0 0.0
    %385 = vmatprep.subr.mxu0 0.0
    %386 = vmatpush2.msra.mxu0 0.0
    %387 = vmatprep.subr.mxu0 0.0
    %388 = vmatpush2.msra.mxu0 0.0
    %389 = vmatprep.subr.mxu0 0.0
    %390 = vmatpush2.msra.mxu0 0.0
    %391 = vmatprep.subr.mxu0 0.0
    %392 = vmatpush2.msra.mxu0 0.0
    %393 = vmatprep.subr.mxu0 0.0
    %394 = vmatpush2.msra.mxu0 0.0
    %395 = vmatprep.mubr.f32.mxu0 0.0
    %396 = vmatmul.mubr.f32.gmra.mxu0 %v326
    %v397 = vpop.f32.mrf.mxu0
    %v398 = vadd.f32 %v322, %v397
    %v399 = vpop.f32.mrf.mxu0
    %400 = vmatprep.mubr.f32.mxu0 0.0
    %401 = vmatmul.mubr.f32.gmra.mxu0 %v329
    %v402 = vpop.f32.mrf.mxu0
    %v403 = vadd.f32 %v323, %v402
    %v404 = vpop.f32.mrf.mxu0
    %405 = vdwg.mxu0
    %v406 = vlaneseq
    %v407 = vshrl.u32 %v406, 7
    %vm408 = vcmp.gt.s32.totalorder %v307, %v407
    %v409 = vsel %vm408, 1, 0
    %v410 = vcvt.s32.f32 %v409
    %v411 = vld [vmem:[%s1] sm:$0x1]
    %v412 = vld [vmem:[%s1 + $0x1] sm:$0x1]
    %v415 = vlaneseq
    %v416 = vshrl.u32 %v415, 7
    %v417 = vsub.s32 0, %v416
    %v418 = vrot.slane %v411, %v417
    %v419 = vlaneseq
    %v420 = vshrl.u32 %v419, 7
    %v421 = vsub.s32 0, %v420
    %v422 = vrot.slane %v412, %v421
    %v425 = vadd.f32 %v418, %v410
    %v426 = vadd.f32 %v422, %v410
    %vm427 = vcmp.gt.f32.partialorder %v425, 0.0
    %vm428 = vcmp.gt.f32.partialorder %v426, 0.0
    %v429 = vld [vmem:[%s2] sm:$0x1]
    %v430 = vld [vmem:[%s2 + $0x1] sm:$0x1]
    %v433 = vlaneseq
    %v434 = vshrl.u32 %v433, 7
    %v435 = vsub.s32 0, %v434
    %v436 = vrot.slane %v429, %v435
    %v437 = vlaneseq
    %v438 = vshrl.u32 %v437, 7
    %v439 = vsub.s32 0, %v438
    %v440 = vrot.slane %v430, %v439
    %vm443 = vcmp.gt.f32.partialorder %v436, 0.0
    %vm444 = vcmp.gt.f32.partialorder %v440, 0.0
    %v445 = vld [vmem:[#allocation5] sm:$0xff]
    %v446 = vld [vmem:[#allocation5 + $0x8] sm:$0xff]
    %v447 = vld [vmem:[%s6] sm:$0xff]
    %v448 = vld [vmem:[%s6 + $0x8] sm:$0xff]
    %v449 = vld [vmem:[%s6 + $0x10] sm:$0xff]
    %v450 = vld [vmem:[%s6 + $0x18] sm:$0xff]
    %v451 = vld [vmem:[#allocation7] sm:$0x1]
    %v453 = vlaneseq
    %v454 = vshrl.u32 %v453, 7
    %v455 = vsub.s32 0, %v454
    %v456 = vrot.slane %v451, %v455
    %vm458 = vcmask 261120
    %v460 = vsel %vm458, %v398, 0
    %v463 = vsel %vm458, %v403, 0
    %465 = vmatprep.subr.mxu0 0.0
    %466 = vmatpush1.msra.mxu0 0.0
    %467 = vmatprep.subr.mxu0 0.0
    %468 = vmatpush1.msra.mxu0 0.0
    %469 = vmatprep.subr.mxu0 0.0
    %470 = vmatpush1.msra.mxu0 0.0
    %471 = vmatprep.subr.mxu0 0.0
    %472 = vmatpush1.msra.mxu0 0.0
    %473 = vmatprep.subr.mxu0 0.0
    %474 = vmatpush1.msra.mxu0 0.0
    %475 = vmatprep.subr.mxu0 0.0
    %476 = vmatpush1.msra.mxu0 0.0
    %477 = vmatprep.subr.mxu0 0.0
    %478 = vmatpush1.msra.mxu0 0.0
    %479 = vmatprep.subr.mxu0 0.0
    %480 = vmatpush1.msra.mxu0 0.0
    %481 = vmatprep.subr.mxu0 0.0
    %482 = vmatpush1.msra.mxu0 0.0
    %483 = vmatprep.subr.mxu0 0.0
    %484 = vmatpush1.msra.mxu0 0.0
    %485 = vmatprep.subr.mxu0 0.0
    %486 = vmatpush1.msra.mxu0 0.0
    %487 = vmatprep.subr.mxu0 0.0
    %488 = vmatpush1.msra.mxu0 0.0
    %489 = vmatprep.subr.mxu0 0.0
    %490 = vmatpush1.msra.mxu0 %v450
    %491 = vmatprep.subr.mxu0 0.0
    %492 = vmatpush1.msra.mxu0 %v449
    %493 = vmatprep.subr.mxu0 0.0
    %494 = vmatpush1.msra.mxu0 %v448
    %495 = vmatprep.subr.mxu0 0.0
    %496 = vmatpush1.msra.mxu0 %v447
    %497 = vmatprep.subr.mxu0 0.0
    %498 = vmatpush2.msra.mxu0 0.0
    %499 = vmatprep.subr.mxu0 0.0
    %500 = vmatpush2.msra.mxu0 0.0
    %501 = vmatprep.subr.mxu0 0.0
    %502 = vmatpush2.msra.mxu0 0.0
    %503 = vmatprep.subr.mxu0 0.0
    %504 = vmatpush2.msra.mxu0 0.0
    %505 = vmatprep.subr.mxu0 0.0
    %506 = vmatpush2.msra.mxu0 0.0
    %507 = vmatprep.subr.mxu0 0.0
    %508 = vmatpush2.msra.mxu0 0.0
    %509 = vmatprep.subr.mxu0 0.0
    %510 = vmatpush2.msra.mxu0 0.0
    %511 = vmatprep.subr.mxu0 0.0
    %512 = vmatpush2.msra.mxu0 0.0
    %513 = vmatprep.subr.mxu0 0.0
    %514 = vmatpush2.msra.mxu0 0.0
    %515 = vmatprep.subr.mxu0 0.0
    %516 = vmatpush2.msra.mxu0 0.0
    %517 = vmatprep.subr.mxu0 0.0
    %518 = vmatpush2.msra.mxu0 0.0
    %519 = vmatprep.subr.mxu0 0.0
    %520 = vmatpush2.msra.mxu0 0.0
    %521 = vmatprep.subr.mxu0 0.0
    %522 = vmatpush2.msra.mxu0 0.0
    %523 = vmatprep.subr.mxu0 0.0
    %524 = vmatpush2.msra.mxu0 0.0
    %525 = vmatprep.subr.mxu0 0.0
    %526 = vmatpush2.msra.mxu0 0.0
    %527 = vmatprep.subr.mxu0 0.0
    %528 = vmatpush2.msra.mxu0 0.0
    %529 = vmatprep.mubr.f32.mxu0 0.0
    %530 = vmatmul.mubr.f32.gmra.mxu0 %v460
    %v531 = vpop.f32.mrf.mxu0
    %v532 = vadd.f32 %v456, %v531
    %v533 = vpop.f32.mrf.mxu0
    %534 = vmatprep.mubr.f32.mxu0 0.0
    %535 = vmatmul.mubr.f32.gmra.mxu0 %v463
    %v536 = vpop.f32.mrf.mxu0
    %v537 = vadd.f32 %v456, %v536
    %v538 = vpop.f32.mrf.mxu0
    %539 = vdwg.mxu0
    %541 = vrot.lane.b32.xlu0 %v532, 96
    %v542 = vpop.permute.xlu0 %541
    %vm543 = vcmask 64512
    %v544 = vsel %vm543, %v532, 0
    %v546 = vsel %vm543, %v542, 0
    %548 = vmatprep.subr.mxu0 0.0
    %549 = vmatpush1.xpose.msra.mxu0 0.0
    %550 = vmatprep.subr.mxu0 0.0
    %551 = vmatpush1.xpose.msra.mxu0 0.0
    %552 = vmatprep.subr.mxu0 0.0
    %553 = vmatpush1.xpose.msra.mxu0 0.0
    %554 = vmatprep.subr.mxu0 0.0
    %555 = vmatpush1.xpose.msra.mxu0 0.0
    %556 = vmatprep.subr.mxu0 0.0
    %557 = vmatpush1.xpose.msra.mxu0 0.0
    %558 = vmatprep.subr.mxu0 0.0
    %559 = vmatpush1.xpose.msra.mxu0 0.0
    %560 = vmatprep.subr.mxu0 0.0
    %561 = vmatpush1.xpose.msra.mxu0 0.0
    %562 = vmatprep.subr.mxu0 0.0
    %563 = vmatpush1.xpose.msra.mxu0 0.0
    %564 = vmatprep.subr.mxu0 0.0
    %565 = vmatpush1.xpose.msra.mxu0 0.0
    %566 = vmatprep.subr.mxu0 0.0
    %567 = vmatpush1.xpose.msra.mxu0 0.0
    %568 = vmatprep.subr.mxu0 0.0
    %569 = vmatpush1.xpose.msra.mxu0 0.0
    %570 = vmatprep.subr.mxu0 0.0
    %571 = vmatpush1.xpose.msra.mxu0 0.0
    %572 = vmatprep.subr.mxu0 0.0
    %573 = vmatpush1.xpose.msra.mxu0 0.0
    %574 = vmatprep.subr.mxu0 0.0
    %575 = vmatpush1.xpose.msra.mxu0 0.0
    %576 = vmatprep.subr.mxu0 0.0
    %577 = vmatpush1.xpose.msra.mxu0 0.0
    %578 = vmatprep.subr.mxu0 0.0
    %579 = vmatpush1.xpose.msra.mxu0 %v546
    %580 = vmatprep.subr.mxu0 0.0
    %581 = vmatpush2.xpose.msra.mxu0 0.0
    %582 = vmatprep.subr.mxu0 0.0
    %583 = vmatpush2.xpose.msra.mxu0 0.0
    %584 = vmatprep.subr.mxu0 0.0
    %585 = vmatpush2.xpose.msra.mxu0 0.0
    %586 = vmatprep.subr.mxu0 0.0
    %587 = vmatpush2.xpose.msra.mxu0 0.0
    %588 = vmatprep.subr.mxu0 0.0
    %589 = vmatpush2.xpose.msra.mxu0 0.0
    %590 = vmatprep.subr.mxu0 0.0
    %591 = vmatpush2.xpose.msra.mxu0 0.0
    %592 = vmatprep.subr.mxu0 0.0
    %593 = vmatpush2.xpose.msra.mxu0 0.0
    %594 = vmatprep.subr.mxu0 0.0
    %595 = vmatpush2.xpose.msra.mxu0 0.0
    %596 = vmatprep.subr.mxu0 0.0
    %597 = vmatpush2.xpose.msra.mxu0 0.0
    %598 = vmatprep.subr.mxu0 0.0
    %599 = vmatpush2.xpose.msra.mxu0 0.0
    %600 = vmatprep.subr.mxu0 0.0
    %601 = vmatpush2.xpose.msra.mxu0 0.0
    %602 = vmatprep.subr.mxu0 0.0
    %603 = vmatpush2.xpose.msra.mxu0 0.0
    %604 = vmatprep.subr.mxu0 0.0
    %605 = vmatpush2.xpose.msra.mxu0 0.0
    %606 = vmatprep.subr.mxu0 0.0
    %607 = vmatpush2.xpose.msra.mxu0 0.0
    %608 = vmatprep.subr.mxu0 0.0
    %609 = vmatpush2.xpose.msra.mxu0 0.0
    %610 = vmatprep.subr.mxu0 0.0
    %611 = vmatpush2.xpose.msra.mxu0 0.0
    %612 = vmatprep.mubr.f32.mxu0 0.0
    %613 = vmatmul.mubr.f32.gmra.mxu0 %v544
    %v614 = vpop.f32.mrf.mxu0
    %v615 = vadd.f32 0.0, %v614
    %v616 = vpop.f32.mrf.mxu0
    %617 = vdwg.mxu0
    %619 = vrot.lane.b32.xlu0 %v537, 96
    %v620 = vpop.permute.xlu0 %619
    %v621 = vsel %vm543, %v537, 0
    %v623 = vsel %vm543, %v620, 0
    %625 = vmatprep.subr.mxu0 0.0
    %626 = vmatpush1.xpose.msra.mxu0 0.0
    %627 = vmatprep.subr.mxu0 0.0
    %628 = vmatpush1.xpose.msra.mxu0 0.0
    %629 = vmatprep.subr.mxu0 0.0
    %630 = vmatpush1.xpose.msra.mxu0 0.0
    %631 = vmatprep.subr.mxu0 0.0
    %632 = vmatpush1.xpose.msra.mxu0 0.0
    %633 = vmatprep.subr.mxu0 0.0
    %634 = vmatpush1.xpose.msra.mxu0 0.0
    %635 = vmatprep.subr.mxu0 0.0
    %636 = vmatpush1.xpose.msra.mxu0 0.0
    %637 = vmatprep.subr.mxu0 0.0
    %638 = vmatpush1.xpose.msra.mxu0 0.0
    %639 = vmatprep.subr.mxu0 0.0
    %640 = vmatpush1.xpose.msra.mxu0 0.0
    %641 = vmatprep.subr.mxu0 0.0
    %642 = vmatpush1.xpose.msra.mxu0 0.0
    %643 = vmatprep.subr.mxu0 0.0
    %644 = vmatpush1.xpose.msra.mxu0 0.0
    %645 = vmatprep.subr.mxu0 0.0
    %646 = vmatpush1.xpose.msra.mxu0 0.0
    %647 = vmatprep.subr.mxu0 0.0
    %648 = vmatpush1.xpose.msra.mxu0 0.0
    %649 = vmatprep.subr.mxu0 0.0
    %650 = vmatpush1.xpose.msra.mxu0 0.0
    %651 = vmatprep.subr.mxu0 0.0
    %652 = vmatpush1.xpose.msra.mxu0 0.0
    %653 = vmatprep.subr.mxu0 0.0
    %654 = vmatpush1.xpose.msra.mxu0 0.0
    %655 = vmatprep.subr.mxu0 0.0
    %656 = vmatpush1.xpose.msra.mxu0 %v623
    %657 = vmatprep.subr.mxu0 0.0
    %658 = vmatpush2.xpose.msra.mxu0 0.0
    %659 = vmatprep.subr.mxu0 0.0
    %660 = vmatpush2.xpose.msra.mxu0 0.0
    %661 = vmatprep.subr.mxu0 0.0
    %662 = vmatpush2.xpose.msra.mxu0 0.0
    %663 = vmatprep.subr.mxu0 0.0
    %664 = vmatpush2.xpose.msra.mxu0 0.0
    %665 = vmatprep.subr.mxu0 0.0
    %666 = vmatpush2.xpose.msra.mxu0 0.0
    %667 = vmatprep.subr.mxu0 0.0
    %668 = vmatpush2.xpose.msra.mxu0 0.0
    %669 = vmatprep.subr.mxu0 0.0
    %670 = vmatpush2.xpose.msra.mxu0 0.0
    %671 = vmatprep.subr.mxu0 0.0
    %672 = vmatpush2.xpose.msra.mxu0 0.0
    %673 = vmatprep.subr.mxu0 0.0
    %674 = vmatpush2.xpose.msra.mxu0 0.0
    %675 = vmatprep.subr.mxu0 0.0
    %676 = vmatpush2.xpose.msra.mxu0 0.0
    %677 = vmatprep.subr.mxu0 0.0
    %678 = vmatpush2.xpose.msra.mxu0 0.0
    %679 = vmatprep.subr.mxu0 0.0
    %680 = vmatpush2.xpose.msra.mxu0 0.0
    %681 = vmatprep.subr.mxu0 0.0
    %682 = vmatpush2.xpose.msra.mxu0 0.0
    %683 = vmatprep.subr.mxu0 0.0
    %684 = vmatpush2.xpose.msra.mxu0 0.0
    %685 = vmatprep.subr.mxu0 0.0
    %686 = vmatpush2.xpose.msra.mxu0 0.0
    %687 = vmatprep.subr.mxu0 0.0
    %688 = vmatpush2.xpose.msra.mxu0 0.0
    %689 = vmatprep.mubr.f32.mxu0 0.0
    %690 = vmatmul.mubr.f32.gmra.mxu0 %v621
    %v691 = vpop.f32.mrf.mxu0
    %v692 = vadd.f32 0.0, %v691
    %v693 = vpop.f32.mrf.mxu0
    %694 = vdwg.mxu0
    %v695 = vmul.f32 %v615, 0.35355338
    %v696 = vmul.f32 %v692, 0.35355338
    %v697 = vsel %vm427, -1e+09, %v695
    %v698 = vsel %vm428, -1e+09, %v696
    %v699 = vsel %vm543, %v697, -inf
    %700 = vmax.xlane.f32.xlu0 %v699
    %v701 = vpop.xlane.xlu0 %700
    %v702 = vsel %vm543, %v698, -inf
    %703 = vmax.xlane.f32.xlu0 %v702
    %v704 = vpop.xlane.xlu0 %703
    %v705 = vsub.f32 %v697, %v701
    %v706 = vsub.f32 %v698, %v704
    %v707 = vmul.f32 %v705, 1.442695
    %v708 = vpow.pop %v707
    %v709 = vmul.f32 %v706, 1.442695
    %v710 = vpow.pop %v709
    %v711 = vsel %vm543, %v708, 0.0
    %712 = vadd.xlane.f32.xlu0 %v711
    %v713 = vpop.xlane.xlu0 %712
    %v714 = vsel %vm543, %v710, 0.0
    %715 = vadd.xlane.f32.xlu0 %v714
    %v716 = vpop.xlane.xlu0 %715
    %v717 = vrcp.pop %v713
    %v718 = vrcp.pop %v716
    %v719 = vmul.f32 %v708, %v717
    %v720 = vmul.f32 %v710, %v718
    %721 = vrot.lane.b32.xlu0 %v532, 64
    %v722 = vpop.permute.xlu0 %721
    %v725 = vsel %vm543, %v719, 0
    %727 = vmatprep.subr.mxu0 0.0
    %728 = vmatpush1.msra.mxu0 0.0
    %729 = vmatprep.subr.mxu0 0.0
    %730 = vmatpush1.msra.mxu0 0.0
    %731 = vmatprep.subr.mxu0 0.0
    %732 = vmatpush1.msra.mxu0 0.0
    %733 = vmatprep.subr.mxu0 0.0
    %734 = vmatpush1.msra.mxu0 0.0
    %735 = vmatprep.subr.mxu0 0.0
    %736 = vmatpush1.msra.mxu0 0.0
    %737 = vmatprep.subr.mxu0 0.0
    %738 = vmatpush1.msra.mxu0 0.0
    %739 = vmatprep.subr.mxu0 0.0
    %740 = vmatpush1.msra.mxu0 0.0
    %741 = vmatprep.subr.mxu0 0.0
    %742 = vmatpush1.msra.mxu0 0.0
    %743 = vmatprep.subr.mxu0 0.0
    %744 = vmatpush1.msra.mxu0 0.0
    %745 = vmatprep.subr.mxu0 0.0
    %746 = vmatpush1.msra.mxu0 0.0
    %747 = vmatprep.subr.mxu0 0.0
    %748 = vmatpush1.msra.mxu0 0.0
    %749 = vmatprep.subr.mxu0 0.0
    %750 = vmatpush1.msra.mxu0 0.0
    %751 = vmatprep.subr.mxu0 0.0
    %752 = vmatpush1.msra.mxu0 0.0
    %753 = vmatprep.subr.mxu0 0.0
    %754 = vmatpush1.msra.mxu0 0.0
    %755 = vmatprep.subr.mxu0 0.0
    %756 = vmatpush1.msra.mxu0 0.0
    %757 = vmatprep.subr.mxu0 0.0
    %758 = vmatpush1.msra.mxu0 %v722
    %759 = vmatprep.subr.mxu0 0.0
    %760 = vmatpush2.msra.mxu0 0.0
    %761 = vmatprep.subr.mxu0 0.0
    %762 = vmatpush2.msra.mxu0 0.0
    %763 = vmatprep.subr.mxu0 0.0
    %764 = vmatpush2.msra.mxu0 0.0
    %765 = vmatprep.subr.mxu0 0.0
    %766 = vmatpush2.msra.mxu0 0.0
    %767 = vmatprep.subr.mxu0 0.0
    %768 = vmatpush2.msra.mxu0 0.0
    %769 = vmatprep.subr.mxu0 0.0
    %770 = vmatpush2.msra.mxu0 0.0
    %771 = vmatprep.subr.mxu0 0.0
    %772 = vmatpush2.msra.mxu0 0.0
    %773 = vmatprep.subr.mxu0 0.0
    %774 = vmatpush2.msra.mxu0 0.0
    %775 = vmatprep.subr.mxu0 0.0
    %776 = vmatpush2.msra.mxu0 0.0
    %777 = vmatprep.subr.mxu0 0.0
    %778 = vmatpush2.msra.mxu0 0.0
    %779 = vmatprep.subr.mxu0 0.0
    %780 = vmatpush2.msra.mxu0 0.0
    %781 = vmatprep.subr.mxu0 0.0
    %782 = vmatpush2.msra.mxu0 0.0
    %783 = vmatprep.subr.mxu0 0.0
    %784 = vmatpush2.msra.mxu0 0.0
    %785 = vmatprep.subr.mxu0 0.0
    %786 = vmatpush2.msra.mxu0 0.0
    %787 = vmatprep.subr.mxu0 0.0
    %788 = vmatpush2.msra.mxu0 0.0
    %789 = vmatprep.subr.mxu0 0.0
    %790 = vmatpush2.msra.mxu0 0.0
    %791 = vmatprep.mubr.f32.mxu0 0.0
    %792 = vmatmul.mubr.f32.gmra.mxu0 %v725
    %v793 = vpop.f32.mrf.mxu0
    %v794 = vadd.f32 0.0, %v793
    %v795 = vpop.f32.mrf.mxu0
    %796 = vdwg.mxu0
    %797 = vrot.lane.b32.xlu0 %v537, 64
    %v798 = vpop.permute.xlu0 %797
    %v801 = vsel %vm543, %v720, 0
    %803 = vmatprep.subr.mxu0 0.0
    %804 = vmatpush1.msra.mxu0 0.0
    %805 = vmatprep.subr.mxu0 0.0
    %806 = vmatpush1.msra.mxu0 0.0
    %807 = vmatprep.subr.mxu0 0.0
    %808 = vmatpush1.msra.mxu0 0.0
    %809 = vmatprep.subr.mxu0 0.0
    %810 = vmatpush1.msra.mxu0 0.0
    %811 = vmatprep.subr.mxu0 0.0
    %812 = vmatpush1.msra.mxu0 0.0
    %813 = vmatprep.subr.mxu0 0.0
    %814 = vmatpush1.msra.mxu0 0.0
    %815 = vmatprep.subr.mxu0 0.0
    %816 = vmatpush1.msra.mxu0 0.0
    %817 = vmatprep.subr.mxu0 0.0
    %818 = vmatpush1.msra.mxu0 0.0
    %819 = vmatprep.subr.mxu0 0.0
    %820 = vmatpush1.msra.mxu0 0.0
    %821 = vmatprep.subr.mxu0 0.0
    %822 = vmatpush1.msra.mxu0 0.0
    %823 = vmatprep.subr.mxu0 0.0
    %824 = vmatpush1.msra.mxu0 0.0
    %825 = vmatprep.subr.mxu0 0.0
    %826 = vmatpush1.msra.mxu0 0.0
    %827 = vmatprep.subr.mxu0 0.0
    %828 = vmatpush1.msra.mxu0 0.0
    %829 = vmatprep.subr.mxu0 0.0
    %830 = vmatpush1.msra.mxu0 0.0
    %831 = vmatprep.subr.mxu0 0.0
    %832 = vmatpush1.msra.mxu0 0.0
    %833 = vmatprep.subr.mxu0 0.0
    %834 = vmatpush1.msra.mxu0 %v798
    %835 = vmatprep.subr.mxu0 0.0
    %836 = vmatpush2.msra.mxu0 0.0
    %837 = vmatprep.subr.mxu0 0.0
    %838 = vmatpush2.msra.mxu0 0.0
    %839 = vmatprep.subr.mxu0 0.0
    %840 = vmatpush2.msra.mxu0 0.0
    %841 = vmatprep.subr.mxu0 0.0
    %842 = vmatpush2.msra.mxu0 0.0
    %843 = vmatprep.subr.mxu0 0.0
    %844 = vmatpush2.msra.mxu0 0.0
    %845 = vmatprep.subr.mxu0 0.0
    %846 = vmatpush2.msra.mxu0 0.0
    %847 = vmatprep.subr.mxu0 0.0
    %848 = vmatpush2.msra.mxu0 0.0
    %849 = vmatprep.subr.mxu0 0.0
    %850 = vmatpush2.msra.mxu0 0.0
    %851 = vmatprep.subr.mxu0 0.0
    %852 = vmatpush2.msra.mxu0 0.0
    %853 = vmatprep.subr.mxu0 0.0
    %854 = vmatpush2.msra.mxu0 0.0
    %855 = vmatprep.subr.mxu0 0.0
    %856 = vmatpush2.msra.mxu0 0.0
    %857 = vmatprep.subr.mxu0 0.0
    %858 = vmatpush2.msra.mxu0 0.0
    %859 = vmatprep.subr.mxu0 0.0
    %860 = vmatpush2.msra.mxu0 0.0
    %861 = vmatprep.subr.mxu0 0.0
    %862 = vmatpush2.msra.mxu0 0.0
    %863 = vmatprep.subr.mxu0 0.0
    %864 = vmatpush2.msra.mxu0 0.0
    %865 = vmatprep.subr.mxu0 0.0
    %866 = vmatpush2.msra.mxu0 0.0
    %867 = vmatprep.mubr.f32.mxu0 0.0
    %868 = vmatmul.mubr.f32.gmra.mxu0 %v801
    %v869 = vpop.f32.mrf.mxu0
    %v870 = vadd.f32 0.0, %v869
    %v871 = vpop.f32.mrf.mxu0
    %872 = vdwg.mxu0
    %873 = vrot.lane.b32.xlu0 %v532, 120
    %v874 = vpop.permute.xlu0 %873
    %875 = vrot.lane.b32.xlu0 %v532, 88
    %v876 = vpop.permute.xlu0 %875
    %v877 = vsel %vm543, %v874, 0
    %v879 = vsel %vm543, %v876, 0
    %881 = vmatprep.subr.mxu0 0.0
    %882 = vmatpush1.xpose.msra.mxu0 0.0
    %883 = vmatprep.subr.mxu0 0.0
    %884 = vmatpush1.xpose.msra.mxu0 0.0
    %885 = vmatprep.subr.mxu0 0.0
    %886 = vmatpush1.xpose.msra.mxu0 0.0
    %887 = vmatprep.subr.mxu0 0.0
    %888 = vmatpush1.xpose.msra.mxu0 0.0
    %889 = vmatprep.subr.mxu0 0.0
    %890 = vmatpush1.xpose.msra.mxu0 0.0
    %891 = vmatprep.subr.mxu0 0.0
    %892 = vmatpush1.xpose.msra.mxu0 0.0
    %893 = vmatprep.subr.mxu0 0.0
    %894 = vmatpush1.xpose.msra.mxu0 0.0
    %895 = vmatprep.subr.mxu0 0.0
    %896 = vmatpush1.xpose.msra.mxu0 0.0
    %897 = vmatprep.subr.mxu0 0.0
    %898 = vmatpush1.xpose.msra.mxu0 0.0
    %899 = vmatprep.subr.mxu0 0.0
    %900 = vmatpush1.xpose.msra.mxu0 0.0
    %901 = vmatprep.subr.mxu0 0.0
    %902 = vmatpush1.xpose.msra.mxu0 0.0
    %903 = vmatprep.subr.mxu0 0.0
    %904 = vmatpush1.xpose.msra.mxu0 0.0
    %905 = vmatprep.subr.mxu0 0.0
    %906 = vmatpush1.xpose.msra.mxu0 0.0
    %907 = vmatprep.subr.mxu0 0.0
    %908 = vmatpush1.xpose.msra.mxu0 0.0
    %909 = vmatprep.subr.mxu0 0.0
    %910 = vmatpush1.xpose.msra.mxu0 0.0
    %911 = vmatprep.subr.mxu0 0.0
    %912 = vmatpush1.xpose.msra.mxu0 %v879
    %913 = vmatprep.subr.mxu0 0.0
    %914 = vmatpush2.xpose.msra.mxu0 0.0
    %915 = vmatprep.subr.mxu0 0.0
    %916 = vmatpush2.xpose.msra.mxu0 0.0
    %917 = vmatprep.subr.mxu0 0.0
    %918 = vmatpush2.xpose.msra.mxu0 0.0
    %919 = vmatprep.subr.mxu0 0.0
    %920 = vmatpush2.xpose.msra.mxu0 0.0
    %921 = vmatprep.subr.mxu0 0.0
    %922 = vmatpush2.xpose.msra.mxu0 0.0
    %923 = vmatprep.subr.mxu0 0.0
    %924 = vmatpush2.xpose.msra.mxu0 0.0
    %925 = vmatprep.subr.mxu0 0.0
    %926 = vmatpush2.xpose.msra.mxu0 0.0
    %927 = vmatprep.subr.mxu0 0.0
    %928 = vmatpush2.xpose.msra.mxu0 0.0
    %929 = vmatprep.subr.mxu0 0.0
    %930 = vmatpush2.xpose.msra.mxu0 0.0
    %931 = vmatprep.subr.mxu0 0.0
    %932 = vmatpush2.xpose.msra.mxu0 0.0
    %933 = vmatprep.subr.mxu0 0.0
    %934 = vmatpush2.xpose.msra.mxu0 0.0
    %935 = vmatprep.subr.mxu0 0.0
    %936 = vmatpush2.xpose.msra.mxu0 0.0
    %937 = vmatprep.subr.mxu0 0.0
    %938 = vmatpush2.xpose.msra.mxu0 0.0
    %939 = vmatprep.subr.mxu0 0.0
    %940 = vmatpush2.xpose.msra.mxu0 0.0
    %941 = vmatprep.subr.mxu0 0.0
    %942 = vmatpush2.xpose.msra.mxu0 0.0
    %943 = vmatprep.subr.mxu0 0.0
    %944 = vmatpush2.xpose.msra.mxu0 0.0
    %945 = vmatprep.mubr.f32.mxu0 0.0
    %946 = vmatmul.mubr.f32.gmra.mxu0 %v877
    %v947 = vpop.f32.mrf.mxu0
    %v948 = vadd.f32 0.0, %v947
    %v949 = vpop.f32.mrf.mxu0
    %950 = vdwg.mxu0
    %951 = vrot.lane.b32.xlu0 %v537, 120
    %v952 = vpop.permute.xlu0 %951
    %953 = vrot.lane.b32.xlu0 %v537, 88
    %v954 = vpop.permute.xlu0 %953
    %v955 = vsel %vm543, %v952, 0
    %v957 = vsel %vm543, %v954, 0
    %959 = vmatprep.subr.mxu0 0.0
    %960 = vmatpush1.xpose.msra.mxu0 0.0
    %961 = vmatprep.subr.mxu0 0.0
    %962 = vmatpush1.xpose.msra.mxu0 0.0
    %963 = vmatprep.subr.mxu0 0.0
    %964 = vmatpush1.xpose.msra.mxu0 0.0
    %965 = vmatprep.subr.mxu0 0.0
    %966 = vmatpush1.xpose.msra.mxu0 0.0
    %967 = vmatprep.subr.mxu0 0.0
    %968 = vmatpush1.xpose.msra.mxu0 0.0
    %969 = vmatprep.subr.mxu0 0.0
    %970 = vmatpush1.xpose.msra.mxu0 0.0
    %971 = vmatprep.subr.mxu0 0.0
    %972 = vmatpush1.xpose.msra.mxu0 0.0
    %973 = vmatprep.subr.mxu0 0.0
    %974 = vmatpush1.xpose.msra.mxu0 0.0
    %975 = vmatprep.subr.mxu0 0.0
    %976 = vmatpush1.xpose.msra.mxu0 0.0
    %977 = vmatprep.subr.mxu0 0.0
    %978 = vmatpush1.xpose.msra.mxu0 0.0
    %979 = vmatprep.subr.mxu0 0.0
    %980 = vmatpush1.xpose.msra.mxu0 0.0
    %981 = vmatprep.subr.mxu0 0.0
    %982 = vmatpush1.xpose.msra.mxu0 0.0
    %983 = vmatprep.subr.mxu0 0.0
    %984 = vmatpush1.xpose.msra.mxu0 0.0
    %985 = vmatprep.subr.mxu0 0.0
    %986 = vmatpush1.xpose.msra.mxu0 0.0
    %987 = vmatprep.subr.mxu0 0.0
    %988 = vmatpush1.xpose.msra.mxu0 0.0
    %989 = vmatprep.subr.mxu0 0.0
    %990 = vmatpush1.xpose.msra.mxu0 %v957
    %991 = vmatprep.subr.mxu0 0.0
    %992 = vmatpush2.xpose.msra.mxu0 0.0
    %993 = vmatprep.subr.mxu0 0.0
    %994 = vmatpush2.xpose.msra.mxu0 0.0
    %995 = vmatprep.subr.mxu0 0.0
    %996 = vmatpush2.xpose.msra.mxu0 0.0
    %997 = vmatprep.subr.mxu0 0.0
    %998 = vmatpush2.xpose.msra.mxu0 0.0
    %999 = vmatprep.subr.mxu0 0.0
    %1000 = vmatpush2.xpose.msra.mxu0 0.0
    %1001 = vmatprep.subr.mxu0 0.0
    %1002 = vmatpush2.xpose.msra.mxu0 0.0
    %1003 = vmatprep.subr.mxu0 0.0
    %1004 = vmatpush2.xpose.msra.mxu0 0.0
    %1005 = vmatprep.subr.mxu0 0.0
    %1006 = vmatpush2.xpose.msra.mxu0 0.0
    %1007 = vmatprep.subr.mxu0 0.0
    %1008 = vmatpush2.xpose.msra.mxu0 0.0
    %1009 = vmatprep.subr.mxu0 0.0
    %1010 = vmatpush2.xpose.msra.mxu0 0.0
    %1011 = vmatprep.subr.mxu0 0.0
    %1012 = vmatpush2.xpose.msra.mxu0 0.0
    %1013 = vmatprep.subr.mxu0 0.0
    %1014 = vmatpush2.xpose.msra.mxu0 0.0
    %1015 = vmatprep.subr.mxu0 0.0
    %1016 = vmatpush2.xpose.msra.mxu0 0.0
    %1017 = vmatprep.subr.mxu0 0.0
    %1018 = vmatpush2.xpose.msra.mxu0 0.0
    %1019 = vmatprep.subr.mxu0 0.0
    %1020 = vmatpush2.xpose.msra.mxu0 0.0
    %1021 = vmatprep.subr.mxu0 0.0
    %1022 = vmatpush2.xpose.msra.mxu0 0.0
    %1023 = vmatprep.mubr.f32.mxu0 0.0
    %1024 = vmatmul.mubr.f32.gmra.mxu0 %v955
    %v1025 = vpop.f32.mrf.mxu0
    %v1026 = vadd.f32 0.0, %v1025
    %v1027 = vpop.f32.mrf.mxu0
    %1028 = vdwg.mxu0
    %v1029 = vmul.f32 %v948, 0.35355338
    %v1030 = vmul.f32 %v1026, 0.35355338
    %v1031 = vsel %vm427, -1e+09, %v1029
    %v1032 = vsel %vm428, -1e+09, %v1030
    %v1033 = vsel %vm543, %v1031, -inf
    %1034 = vmax.xlane.f32.xlu0 %v1033
    %v1035 = vpop.xlane.xlu0 %1034
    %v1036 = vsel %vm543, %v1032, -inf
    %1037 = vmax.xlane.f32.xlu0 %v1036
    %v1038 = vpop.xlane.xlu0 %1037
    %v1039 = vsub.f32 %v1031, %v1035
    %v1040 = vsub.f32 %v1032, %v1038
    %v1041 = vmul.f32 %v1039, 1.442695
    %v1042 = vpow.pop %v1041
    %v1043 = vmul.f32 %v1040, 1.442695
    %v1044 = vpow.pop %v1043
    %v1045 = vsel %vm543, %v1042, 0.0
    %1046 = vadd.xlane.f32.xlu0 %v1045
    %v1047 = vpop.xlane.xlu0 %1046
    %v1048 = vsel %vm543, %v1044, 0.0
    %1049 = vadd.xlane.f32.xlu0 %v1048
    %v1050 = vpop.xlane.xlu0 %1049
    %v1051 = vrcp.pop %v1047
    %v1052 = vrcp.pop %v1050
    %v1053 = vmul.f32 %v1042, %v1051
    %v1054 = vmul.f32 %v1044, %v1052
    %1055 = vrot.lane.b32.xlu0 %v532, 56
    %v1056 = vpop.permute.xlu0 %1055
    %v1059 = vsel %vm543, %v1053, 0
    %1061 = vmatprep.subr.mxu0 0.0
    %1062 = vmatpush1.msra.mxu0 0.0
    %1063 = vmatprep.subr.mxu0 0.0
    %1064 = vmatpush1.msra.mxu0 0.0
    %1065 = vmatprep.subr.mxu0 0.0
    %1066 = vmatpush1.msra.mxu0 0.0
    %1067 = vmatprep.subr.mxu0 0.0
    %1068 = vmatpush1.msra.mxu0 0.0
    %1069 = vmatprep.subr.mxu0 0.0
    %1070 = vmatpush1.msra.mxu0 0.0
    %1071 = vmatprep.subr.mxu0 0.0
    %1072 = vmatpush1.msra.mxu0 0.0
    %1073 = vmatprep.subr.mxu0 0.0
    %1074 = vmatpush1.msra.mxu0 0.0
    %1075 = vmatprep.subr.mxu0 0.0
    %1076 = vmatpush1.msra.mxu0 0.0
    %1077 = vmatprep.subr.mxu0 0.0
    %1078 = vmatpush1.msra.mxu0 0.0
    %1079 = vmatprep.subr.mxu0 0.0
    %1080 = vmatpush1.msra.mxu0 0.0
    %1081 = vmatprep.subr.mxu0 0.0
    %1082 = vmatpush1.msra.mxu0 0.0
    %1083 = vmatprep.subr.mxu0 0.0
    %1084 = vmatpush1.msra.mxu0 0.0
    %1085 = vmatprep.subr.mxu0 0.0
    %1086 = vmatpush1.msra.mxu0 0.0
    %1087 = vmatprep.subr.mxu0 0.0
    %1088 = vmatpush1.msra.mxu0 0.0
    %1089 = vmatprep.subr.mxu0 0.0
    %1090 = vmatpush1.msra.mxu0 0.0
    %1091 = vmatprep.subr.mxu0 0.0
    %1092 = vmatpush1.msra.mxu0 %v1056
    %1093 = vmatprep.subr.mxu0 0.0
    %1094 = vmatpush2.msra.mxu0 0.0
    %1095 = vmatprep.subr.mxu0 0.0
    %1096 = vmatpush2.msra.mxu0 0.0
    %1097 = vmatprep.subr.mxu0 0.0
    %1098 = vmatpush2.msra.mxu0 0.0
    %1099 = vmatprep.subr.mxu0 0.0
    %1100 = vmatpush2.msra.mxu0 0.0
    %1101 = vmatprep.subr.mxu0 0.0
    %1102 = vmatpush2.msra.mxu0 0.0
    %1103 = vmatprep.subr.mxu0 0.0
    %1104 = vmatpush2.msra.mxu0 0.0
    %1105 = vmatprep.subr.mxu0 0.0
    %1106 = vmatpush2.msra.mxu0 0.0
    %1107 = vmatprep.subr.mxu0 0.0
    %1108 = vmatpush2.msra.mxu0 0.0
    %1109 = vmatprep.subr.mxu0 0.0
    %1110 = vmatpush2.msra.mxu0 0.0
    %1111 = vmatprep.subr.mxu0 0.0
    %1112 = vmatpush2.msra.mxu0 0.0
    %1113 = vmatprep.subr.mxu0 0.0
    %1114 = vmatpush2.msra.mxu0 0.0
    %1115 = vmatprep.subr.mxu0 0.0
    %1116 = vmatpush2.msra.mxu0 0.0
    %1117 = vmatprep.subr.mxu0 0.0
    %1118 = vmatpush2.msra.mxu0 0.0
    %1119 = vmatprep.subr.mxu0 0.0
    %1120 = vmatpush2.msra.mxu0 0.0
    %1121 = vmatprep.subr.mxu0 0.0
    %1122 = vmatpush2.msra.mxu0 0.0
    %1123 = vmatprep.subr.mxu0 0.0
    %1124 = vmatpush2.msra.mxu0 0.0
    %1125 = vmatprep.mubr.f32.mxu0 0.0
    %1126 = vmatmul.mubr.f32.gmra.mxu0 %v1059
    %v1127 = vpop.f32.mrf.mxu0
    %v1128 = vadd.f32 0.0, %v1127
    %v1129 = vpop.f32.mrf.mxu0
    %1130 = vdwg.mxu0
    %1131 = vrot.lane.b32.xlu0 %v537, 56
    %v1132 = vpop.permute.xlu0 %1131
    %v1135 = vsel %vm543, %v1054, 0
    %1137 = vmatprep.subr.mxu0 0.0
    %1138 = vmatpush1.msra.mxu0 0.0
    %1139 = vmatprep.subr.mxu0 0.0
    %1140 = vmatpush1.msra.mxu0 0.0
    %1141 = vmatprep.subr.mxu0 0.0
    %1142 = vmatpush1.msra.mxu0 0.0
    %1143 = vmatprep.subr.mxu0 0.0
    %1144 = vmatpush1.msra.mxu0 0.0
    %1145 = vmatprep.subr.mxu0 0.0
    %1146 = vmatpush1.msra.mxu0 0.0
    %1147 = vmatprep.subr.mxu0 0.0
    %1148 = vmatpush1.msra.mxu0 0.0
    %1149 = vmatprep.subr.mxu0 0.0
    %1150 = vmatpush1.msra.mxu0 0.0
    %1151 = vmatprep.subr.mxu0 0.0
    %1152 = vmatpush1.msra.mxu0 0.0
    %1153 = vmatprep.subr.mxu0 0.0
    %1154 = vmatpush1.msra.mxu0 0.0
    %1155 = vmatprep.subr.mxu0 0.0
    %1156 = vmatpush1.msra.mxu0 0.0
    %1157 = vmatprep.subr.mxu0 0.0
    %1158 = vmatpush1.msra.mxu0 0.0
    %1159 = vmatprep.subr.mxu0 0.0
    %1160 = vmatpush1.msra.mxu0 0.0
    %1161 = vmatprep.subr.mxu0 0.0
    %1162 = vmatpush1.msra.mxu0 0.0
    %1163 = vmatprep.subr.mxu0 0.0
    %1164 = vmatpush1.msra.mxu0 0.0
    %1165 = vmatprep.subr.mxu0 0.0
    %1166 = vmatpush1.msra.mxu0 0.0
    %1167 = vmatprep.subr.mxu0 0.0
    %1168 = vmatpush1.msra.mxu0 %v1132
    %1169 = vmatprep.subr.mxu0 0.0
    %1170 = vmatpush2.msra.mxu0 0.0
    %1171 = vmatprep.subr.mxu0 0.0
    %1172 = vmatpush2.msra.mxu0 0.0
    %1173 = vmatprep.subr.mxu0 0.0
    %1174 = vmatpush2.msra.mxu0 0.0
    %1175 = vmatprep.subr.mxu0 0.0
    %1176 = vmatpush2.msra.mxu0 0.0
    %1177 = vmatprep.subr.mxu0 0.0
    %1178 = vmatpush2.msra.mxu0 0.0
    %1179 = vmatprep.subr.mxu0 0.0
    %1180 = vmatpush2.msra.mxu0 0.0
    %1181 = vmatprep.subr.mxu0 0.0
    %1182 = vmatpush2.msra.mxu0 0.0
    %1183 = vmatprep.subr.mxu0 0.0
    %1184 = vmatpush2.msra.mxu0 0.0
    %1185 = vmatprep.subr.mxu0 0.0
    %1186 = vmatpush2.msra.mxu0 0.0
    %1187 = vmatprep.subr.mxu0 0.0
    %1188 = vmatpush2.msra.mxu0 0.0
    %1189 = vmatprep.subr.mxu0 0.0
    %1190 = vmatpush2.msra.mxu0 0.0
    %1191 = vmatprep.subr.mxu0 0.0
    %1192 = vmatpush2.msra.mxu0 0.0
    %1193 = vmatprep.subr.mxu0 0.0
    %1194 = vmatpush2.msra.mxu0 0.0
    %1195 = vmatprep.subr.mxu0 0.0
    %1196 = vmatpush2.msra.mxu0 0.0
    %1197 = vmatprep.subr.mxu0 0.0
    %1198 = vmatpush2.msra.mxu0 0.0
    %1199 = vmatprep.subr.mxu0 0.0
    %1200 = vmatpush2.msra.mxu0 0.0
    %1201 = vmatprep.mubr.f32.mxu0 0.0
    %1202 = vmatmul.mubr.f32.gmra.mxu0 %v1135
    %v1203 = vpop.f32.mrf.mxu0
    %v1204 = vadd.f32 0.0, %v1203
    %v1205 = vpop.f32.mrf.mxu0
    %1206 = vdwg.mxu0
    %1207 = vrot.lane.b32.xlu0 %v532, 112
    %v1208 = vpop.permute.xlu0 %1207
    %1209 = vrot.lane.b32.xlu0 %v532, 80
    %v1210 = vpop.permute.xlu0 %1209
    %v1211 = vsel %vm543, %v1208, 0
    %v1213 = vsel %vm543, %v1210, 0
    %1215 = vmatprep.subr.mxu0 0.0
    %1216 = vmatpush1.xpose.msra.mxu0 0.0
    %1217 = vmatprep.subr.mxu0 0.0
    %1218 = vmatpush1.xpose.msra.mxu0 0.0
    %1219 = vmatprep.subr.mxu0 0.0
    %1220 = vmatpush1.xpose.msra.mxu0 0.0
    %1221 = vmatprep.subr.mxu0 0.0
    %1222 = vmatpush1.xpose.msra.mxu0 0.0
    %1223 = vmatprep.subr.mxu0 0.0
    %1224 = vmatpush1.xpose.msra.mxu0 0.0
    %1225 = vmatprep.subr.mxu0 0.0
    %1226 = vmatpush1.xpose.msra.mxu0 0.0
    %1227 = vmatprep.subr.mxu0 0.0
    %1228 = vmatpush1.xpose.msra.mxu0 0.0
    %1229 = vmatprep.subr.mxu0 0.0
    %1230 = vmatpush1.xpose.msra.mxu0 0.0
    %1231 = vmatprep.subr.mxu0 0.0
    %1232 = vmatpush1.xpose.msra.mxu0 0.0
    %1233 = vmatprep.subr.mxu0 0.0
    %1234 = vmatpush1.xpose.msra.mxu0 0.0
    %1235 = vmatprep.subr.mxu0 0.0
    %1236 = vmatpush1.xpose.msra.mxu0 0.0
    %1237 = vmatprep.subr.mxu0 0.0
    %1238 = vmatpush1.xpose.msra.mxu0 0.0
    %1239 = vmatprep.subr.mxu0 0.0
    %1240 = vmatpush1.xpose.msra.mxu0 0.0
    %1241 = vmatprep.subr.mxu0 0.0
    %1242 = vmatpush1.xpose.msra.mxu0 0.0
    %1243 = vmatprep.subr.mxu0 0.0
    %1244 = vmatpush1.xpose.msra.mxu0 0.0
    %1245 = vmatprep.subr.mxu0 0.0
    %1246 = vmatpush1.xpose.msra.mxu0 %v1213
    %1247 = vmatprep.subr.mxu0 0.0
    %1248 = vmatpush2.xpose.msra.mxu0 0.0
    %1249 = vmatprep.subr.mxu0 0.0
    %1250 = vmatpush2.xpose.msra.mxu0 0.0
    %1251 = vmatprep.subr.mxu0 0.0
    %1252 = vmatpush2.xpose.msra.mxu0 0.0
    %1253 = vmatprep.subr.mxu0 0.0
    %1254 = vmatpush2.xpose.msra.mxu0 0.0
    %1255 = vmatprep.subr.mxu0 0.0
    %1256 = vmatpush2.xpose.msra.mxu0 0.0
    %1257 = vmatprep.subr.mxu0 0.0
    %1258 = vmatpush2.xpose.msra.mxu0 0.0
    %1259 = vmatprep.subr.mxu0 0.0
    %1260 = vmatpush2.xpose.msra.mxu0 0.0
    %1261 = vmatprep.subr.mxu0 0.0
    %1262 = vmatpush2.xpose.msra.mxu0 0.0
    %1263 = vmatprep.subr.mxu0 0.0
    %1264 = vmatpush2.xpose.msra.mxu0 0.0
    %1265 = vmatprep.subr.mxu0 0.0
    %1266 = vmatpush2.xpose.msra.mxu0 0.0
    %1267 = vmatprep.subr.mxu0 0.0
    %1268 = vmatpush2.xpose.msra.mxu0 0.0
    %1269 = vmatprep.subr.mxu0 0.0
    %1270 = vmatpush2.xpose.msra.mxu0 0.0
    %1271 = vmatprep.subr.mxu0 0.0
    %1272 = vmatpush2.xpose.msra.mxu0 0.0
    %1273 = vmatprep.subr.mxu0 0.0
    %1274 = vmatpush2.xpose.msra.mxu0 0.0
    %1275 = vmatprep.subr.mxu0 0.0
    %1276 = vmatpush2.xpose.msra.mxu0 0.0
    %1277 = vmatprep.subr.mxu0 0.0
    %1278 = vmatpush2.xpose.msra.mxu0 0.0
    %1279 = vmatprep.mubr.f32.mxu0 0.0
    %1280 = vmatmul.mubr.f32.gmra.mxu0 %v1211
    %v1281 = vpop.f32.mrf.mxu0
    %v1282 = vadd.f32 0.0, %v1281
    %v1283 = vpop.f32.mrf.mxu0
    %1284 = vdwg.mxu0
    %1285 = vrot.lane.b32.xlu0 %v537, 112
    %v1286 = vpop.permute.xlu0 %1285
    %1287 = vrot.lane.b32.xlu0 %v537, 80
    %v1288 = vpop.permute.xlu0 %1287
    %v1289 = vsel %vm543, %v1286, 0
    %v1291 = vsel %vm543, %v1288, 0
    %1293 = vmatprep.subr.mxu0 0.0
    %1294 = vmatpush1.xpose.msra.mxu0 0.0
    %1295 = vmatprep.subr.mxu0 0.0
    %1296 = vmatpush1.xpose.msra.mxu0 0.0
    %1297 = vmatprep.subr.mxu0 0.0
    %1298 = vmatpush1.xpose.msra.mxu0 0.0
    %1299 = vmatprep.subr.mxu0 0.0
    %1300 = vmatpush1.xpose.msra.mxu0 0.0
    %1301 = vmatprep.subr.mxu0 0.0
    %1302 = vmatpush1.xpose.msra.mxu0 0.0
    %1303 = vmatprep.subr.mxu0 0.0
    %1304 = vmatpush1.xpose.msra.mxu0 0.0
    %1305 = vmatprep.subr.mxu0 0.0
    %1306 = vmatpush1.xpose.msra.mxu0 0.0
    %1307 = vmatprep.subr.mxu0 0.0
    %1308 = vmatpush1.xpose.msra.mxu0 0.0
    %1309 = vmatprep.subr.mxu0 0.0
    %1310 = vmatpush1.xpose.msra.mxu0 0.0
    %1311 = vmatprep.subr.mxu0 0.0
    %1312 = vmatpush1.xpose.msra.mxu0 0.0
    %1313 = vmatprep.subr.mxu0 0.0
    %1314 = vmatpush1.xpose.msra.mxu0 0.0
    %1315 = vmatprep.subr.mxu0 0.0
    %1316 = vmatpush1.xpose.msra.mxu0 0.0
    %1317 = vmatprep.subr.mxu0 0.0
    %1318 = vmatpush1.xpose.msra.mxu0 0.0
    %1319 = vmatprep.subr.mxu0 0.0
    %1320 = vmatpush1.xpose.msra.mxu0 0.0
    %1321 = vmatprep.subr.mxu0 0.0
    %1322 = vmatpush1.xpose.msra.mxu0 0.0
    %1323 = vmatprep.subr.mxu0 0.0
    %1324 = vmatpush1.xpose.msra.mxu0 %v1291
    %1325 = vmatprep.subr.mxu0 0.0
    %1326 = vmatpush2.xpose.msra.mxu0 0.0
    %1327 = vmatprep.subr.mxu0 0.0
    %1328 = vmatpush2.xpose.msra.mxu0 0.0
    %1329 = vmatprep.subr.mxu0 0.0
    %1330 = vmatpush2.xpose.msra.mxu0 0.0
    %1331 = vmatprep.subr.mxu0 0.0
    %1332 = vmatpush2.xpose.msra.mxu0 0.0
    %1333 = vmatprep.subr.mxu0 0.0
    %1334 = vmatpush2.xpose.msra.mxu0 0.0
    %1335 = vmatprep.subr.mxu0 0.0
    %1336 = vmatpush2.xpose.msra.mxu0 0.0
    %1337 = vmatprep.subr.mxu0 0.0
    %1338 = vmatpush2.xpose.msra.mxu0 0.0
    %1339 = vmatprep.subr.mxu0 0.0
    %1340 = vmatpush2.xpose.msra.mxu0 0.0
    %1341 = vmatprep.subr.mxu0 0.0
    %1342 = vmatpush2.xpose.msra.mxu0 0.0
    %1343 = vmatprep.subr.mxu0 0.0
    %1344 = vmatpush2.xpose.msra.mxu0 0.0
    %1345 = vmatprep.subr.mxu0 0.0
    %1346 = vmatpush2.xpose.msra.mxu0 0.0
    %1347 = vmatprep.subr.mxu0 0.0
    %1348 = vmatpush2.xpose.msra.mxu0 0.0
    %1349 = vmatprep.subr.mxu0 0.0
    %1350 = vmatpush2.xpose.msra.mxu0 0.0
    %1351 = vmatprep.subr.mxu0 0.0
    %1352 = vmatpush2.xpose.msra.mxu0 0.0
    %1353 = vmatprep.subr.mxu0 0.0
    %1354 = vmatpush2.xpose.msra.mxu0 0.0
    %1355 = vmatprep.subr.mxu0 0.0
    %1356 = vmatpush2.xpose.msra.mxu0 0.0
    %1357 = vmatprep.mubr.f32.mxu0 0.0
    %1358 = vmatmul.mubr.f32.gmra.mxu0 %v1289
    %v1359 = vpop.f32.mrf.mxu0
    %v1360 = vadd.f32 0.0, %v1359
    %v1361 = vpop.f32.mrf.mxu0
    %1362 = vdwg.mxu0
    %v1363 = vmul.f32 %v1282, 0.35355338
    %v1364 = vmul.f32 %v1360, 0.35355338
    %v1365 = vsel %vm427, -1e+09, %v1363
    %v1366 = vsel %vm428, -1e+09, %v1364
    %v1367 = vsel %vm543, %v1365, -inf
    %1368 = vmax.xlane.f32.xlu0 %v1367
    %v1369 = vpop.xlane.xlu0 %1368
    %v1370 = vsel %vm543, %v1366, -inf
    %1371 = vmax.xlane.f32.xlu0 %v1370
    %v1372 = vpop.xlane.xlu0 %1371
    %v1373 = vsub.f32 %v1365, %v1369
    %v1374 = vsub.f32 %v1366, %v1372
    %v1375 = vmul.f32 %v1373, 1.442695
    %v1376 = vpow.pop %v1375
    %v1377 = vmul.f32 %v1374, 1.442695
    %v1378 = vpow.pop %v1377
    %v1379 = vsel %vm543, %v1376, 0.0
    %1380 = vadd.xlane.f32.xlu0 %v1379
    %v1381 = vpop.xlane.xlu0 %1380
    %v1382 = vsel %vm543, %v1378, 0.0
    %1383 = vadd.xlane.f32.xlu0 %v1382
    %v1384 = vpop.xlane.xlu0 %1383
    %v1385 = vrcp.pop %v1381
    %v1386 = vrcp.pop %v1384
    %v1387 = vmul.f32 %v1376, %v1385
    %v1388 = vmul.f32 %v1378, %v1386
    %1389 = vrot.lane.b32.xlu0 %v532, 48
    %v1390 = vpop.permute.xlu0 %1389
    %v1393 = vsel %vm543, %v1387, 0
    %1395 = vmatprep.subr.mxu0 0.0
    %1396 = vmatpush1.msra.mxu0 0.0
    %1397 = vmatprep.subr.mxu0 0.0
    %1398 = vmatpush1.msra.mxu0 0.0
    %1399 = vmatprep.subr.mxu0 0.0
    %1400 = vmatpush1.msra.mxu0 0.0
    %1401 = vmatprep.subr.mxu0 0.0
    %1402 = vmatpush1.msra.mxu0 0.0
    %1403 = vmatprep.subr.mxu0 0.0
    %1404 = vmatpush1.msra.mxu0 0.0
    %1405 = vmatprep.subr.mxu0 0.0
    %1406 = vmatpush1.msra.mxu0 0.0
    %1407 = vmatprep.subr.mxu0 0.0
    %1408 = vmatpush1.msra.mxu0 0.0
    %1409 = vmatprep.subr.mxu0 0.0
    %1410 = vmatpush1.msra.mxu0 0.0
    %1411 = vmatprep.subr.mxu0 0.0
    %1412 = vmatpush1.msra.mxu0 0.0
    %1413 = vmatprep.subr.mxu0 0.0
    %1414 = vmatpush1.msra.mxu0 0.0
    %1415 = vmatprep.subr.mxu0 0.0
    %1416 = vmatpush1.msra.mxu0 0.0
    %1417 = vmatprep.subr.mxu0 0.0
    %1418 = vmatpush1.msra.mxu0 0.0
    %1419 = vmatprep.subr.mxu0 0.0
    %1420 = vmatpush1.msra.mxu0 0.0
    %1421 = vmatprep.subr.mxu0 0.0
    %1422 = vmatpush1.msra.mxu0 0.0
    %1423 = vmatprep.subr.mxu0 0.0
    %1424 = vmatpush1.msra.mxu0 0.0
    %1425 = vmatprep.subr.mxu0 0.0
    %1426 = vmatpush1.msra.mxu0 %v1390
    %1427 = vmatprep.subr.mxu0 0.0
    %1428 = vmatpush2.msra.mxu0 0.0
    %1429 = vmatprep.subr.mxu0 0.0
    %1430 = vmatpush2.msra.mxu0 0.0
    %1431 = vmatprep.subr.mxu0 0.0
    %1432 = vmatpush2.msra.mxu0 0.0
    %1433 = vmatprep.subr.mxu0 0.0
    %1434 = vmatpush2.msra.mxu0 0.0
    %1435 = vmatprep.subr.mxu0 0.0
    %1436 = vmatpush2.msra.mxu0 0.0
    %1437 = vmatprep.subr.mxu0 0.0
    %1438 = vmatpush2.msra.mxu0 0.0
    %1439 = vmatprep.subr.mxu0 0.0
    %1440 = vmatpush2.msra.mxu0 0.0
    %1441 = vmatprep.subr.mxu0 0.0
    %1442 = vmatpush2.msra.mxu0 0.0
    %1443 = vmatprep.subr.mxu0 0.0
    %1444 = vmatpush2.msra.mxu0 0.0
    %1445 = vmatprep.subr.mxu0 0.0
    %1446 = vmatpush2.msra.mxu0 0.0
    %1447 = vmatprep.subr.mxu0 0.0
    %1448 = vmatpush2.msra.mxu0 0.0
    %1449 = vmatprep.subr.mxu0 0.0
    %1450 = vmatpush2.msra.mxu0 0.0
    %1451 = vmatprep.subr.mxu0 0.0
    %1452 = vmatpush2.msra.mxu0 0.0
    %1453 = vmatprep.subr.mxu0 0.0
    %1454 = vmatpush2.msra.mxu0 0.0
    %1455 = vmatprep.subr.mxu0 0.0
    %1456 = vmatpush2.msra.mxu0 0.0
    %1457 = vmatprep.subr.mxu0 0.0
    %1458 = vmatpush2.msra.mxu0 0.0
    %1459 = vmatprep.mubr.f32.mxu0 0.0
    %1460 = vmatmul.mubr.f32.gmra.mxu0 %v1393
    %v1461 = vpop.f32.mrf.mxu0
    %v1462 = vadd.f32 0.0, %v1461
    %v1463 = vpop.f32.mrf.mxu0
    %1464 = vdwg.mxu0
    %1465 = vrot.lane.b32.xlu0 %v537, 48
    %v1466 = vpop.permute.xlu0 %1465
    %v1469 = vsel %vm543, %v1388, 0
    %1471 = vmatprep.subr.mxu0 0.0
    %1472 = vmatpush1.msra.mxu0 0.0
    %1473 = vmatprep.subr.mxu0 0.0
    %1474 = vmatpush1.msra.mxu0 0.0
    %1475 = vmatprep.subr.mxu0 0.0
    %1476 = vmatpush1.msra.mxu0 0.0
    %1477 = vmatprep.subr.mxu0 0.0
    %1478 = vmatpush1.msra.mxu0 0.0
    %1479 = vmatprep.subr.mxu0 0.0
    %1480 = vmatpush1.msra.mxu0 0.0
    %1481 = vmatprep.subr.mxu0 0.0
    %1482 = vmatpush1.msra.mxu0 0.0
    %1483 = vmatprep.subr.mxu0 0.0
    %1484 = vmatpush1.msra.mxu0 0.0
    %1485 = vmatprep.subr.mxu0 0.0
    %1486 = vmatpush1.msra.mxu0 0.0
    %1487 = vmatprep.subr.mxu0 0.0
    %1488 = vmatpush1.msra.mxu0 0.0
    %1489 = vmatprep.subr.mxu0 0.0
    %1490 = vmatpush1.msra.mxu0 0.0
    %1491 = vmatprep.subr.mxu0 0.0
    %1492 = vmatpush1.msra.mxu0 0.0
    %1493 = vmatprep.subr.mxu0 0.0
    %1494 = vmatpush1.msra.mxu0 0.0
    %1495 = vmatprep.subr.mxu0 0.0
    %1496 = vmatpush1.msra.mxu0 0.0
    %1497 = vmatprep.subr.mxu0 0.0
    %1498 = vmatpush1.msra.mxu0 0.0
    %1499 = vmatprep.subr.mxu0 0.0
    %1500 = vmatpush1.msra.mxu0 0.0
    %1501 = vmatprep.subr.mxu0 0.0
    %1502 = vmatpush1.msra.mxu0 %v1466
    %1503 = vmatprep.subr.mxu0 0.0
    %1504 = vmatpush2.msra.mxu0 0.0
    %1505 = vmatprep.subr.mxu0 0.0
    %1506 = vmatpush2.msra.mxu0 0.0
    %1507 = vmatprep.subr.mxu0 0.0
    %1508 = vmatpush2.msra.mxu0 0.0
    %1509 = vmatprep.subr.mxu0 0.0
    %1510 = vmatpush2.msra.mxu0 0.0
    %1511 = vmatprep.subr.mxu0 0.0
    %1512 = vmatpush2.msra.mxu0 0.0
    %1513 = vmatprep.subr.mxu0 0.0
    %1514 = vmatpush2.msra.mxu0 0.0
    %1515 = vmatprep.subr.mxu0 0.0
    %1516 = vmatpush2.msra.mxu0 0.0
    %1517 = vmatprep.subr.mxu0 0.0
    %1518 = vmatpush2.msra.mxu0 0.0
    %1519 = vmatprep.subr.mxu0 0.0
    %1520 = vmatpush2.msra.mxu0 0.0
    %1521 = vmatprep.subr.mxu0 0.0
    %1522 = vmatpush2.msra.mxu0 0.0
    %1523 = vmatprep.subr.mxu0 0.0
    %1524 = vmatpush2.msra.mxu0 0.0
    %1525 = vmatprep.subr.mxu0 0.0
    %1526 = vmatpush2.msra.mxu0 0.0
    %1527 = vmatprep.subr.mxu0 0.0
    %1528 = vmatpush2.msra.mxu0 0.0
    %1529 = vmatprep.subr.mxu0 0.0
    %1530 = vmatpush2.msra.mxu0 0.0
    %1531 = vmatprep.subr.mxu0 0.0
    %1532 = vmatpush2.msra.mxu0 0.0
    %1533 = vmatprep.subr.mxu0 0.0
    %1534 = vmatpush2.msra.mxu0 0.0
    %1535 = vmatprep.mubr.f32.mxu0 0.0
    %1536 = vmatmul.mubr.f32.gmra.mxu0 %v1469
    %v1537 = vpop.f32.mrf.mxu0
    %v1538 = vadd.f32 0.0, %v1537
    %v1539 = vpop.f32.mrf.mxu0
    %1540 = vdwg.mxu0
    %1541 = vrot.lane.b32.xlu0 %v532, 104
    %v1542 = vpop.permute.xlu0 %1541
    %1543 = vrot.lane.b32.xlu0 %v532, 72
    %v1544 = vpop.permute.xlu0 %1543
    %v1545 = vsel %vm543, %v1542, 0
    %v1547 = vsel %vm543, %v1544, 0
    %1549 = vmatprep.subr.mxu0 0.0
    %1550 = vmatpush1.xpose.msra.mxu0 0.0
    %1551 = vmatprep.subr.mxu0 0.0
    %1552 = vmatpush1.xpose.msra.mxu0 0.0
    %1553 = vmatprep.subr.mxu0 0.0
    %1554 = vmatpush1.xpose.msra.mxu0 0.0
    %1555 = vmatprep.subr.mxu0 0.0
    %1556 = vmatpush1.xpose.msra.mxu0 0.0
    %1557 = vmatprep.subr.mxu0 0.0
    %1558 = vmatpush1.xpose.msra.mxu0 0.0
    %1559 = vmatprep.subr.mxu0 0.0
    %1560 = vmatpush1.xpose.msra.mxu0 0.0
    %1561 = vmatprep.subr.mxu0 0.0
    %1562 = vmatpush1.xpose.msra.mxu0 0.0
    %1563 = vmatprep.subr.mxu0 0.0
    %1564 = vmatpush1.xpose.msra.mxu0 0.0
    %1565 = vmatprep.subr.mxu0 0.0
    %1566 = vmatpush1.xpose.msra.mxu0 0.0
    %1567 = vmatprep.subr.mxu0 0.0
    %1568 = vmatpush1.xpose.msra.mxu0 0.0
    %1569 = vmatprep.subr.mxu0 0.0
    %1570 = vmatpush1.xpose.msra.mxu0 0.0
    %1571 = vmatprep.subr.mxu0 0.0
    %1572 = vmatpush1.xpose.msra.mxu0 0.0
    %1573 = vmatprep.subr.mxu0 0.0
    %1574 = vmatpush1.xpose.msra.mxu0 0.0
    %1575 = vmatprep.subr.mxu0 0.0
    %1576 = vmatpush1.xpose.msra.mxu0 0.0
    %1577 = vmatprep.subr.mxu0 0.0
    %1578 = vmatpush1.xpose.msra.mxu0 0.0
    %1579 = vmatprep.subr.mxu0 0.0
    %1580 = vmatpush1.xpose.msra.mxu0 %v1547
    %1581 = vmatprep.subr.mxu0 0.0
    %1582 = vmatpush2.xpose.msra.mxu0 0.0
    %1583 = vmatprep.subr.mxu0 0.0
    %1584 = vmatpush2.xpose.msra.mxu0 0.0
    %1585 = vmatprep.subr.mxu0 0.0
    %1586 = vmatpush2.xpose.msra.mxu0 0.0
    %1587 = vmatprep.subr.mxu0 0.0
    %1588 = vmatpush2.xpose.msra.mxu0 0.0
    %1589 = vmatprep.subr.mxu0 0.0
    %1590 = vmatpush2.xpose.msra.mxu0 0.0
    %1591 = vmatprep.subr.mxu0 0.0
    %1592 = vmatpush2.xpose.msra.mxu0 0.0
    %1593 = vmatprep.subr.mxu0 0.0
    %1594 = vmatpush2.xpose.msra.mxu0 0.0
    %1595 = vmatprep.subr.mxu0 0.0
    %1596 = vmatpush2.xpose.msra.mxu0 0.0
    %1597 = vmatprep.subr.mxu0 0.0
    %1598 = vmatpush2.xpose.msra.mxu0 0.0
    %1599 = vmatprep.subr.mxu0 0.0
    %1600 = vmatpush2.xpose.msra.mxu0 0.0
    %1601 = vmatprep.subr.mxu0 0.0
    %1602 = vmatpush2.xpose.msra.mxu0 0.0
    %1603 = vmatprep.subr.mxu0 0.0
    %1604 = vmatpush2.xpose.msra.mxu0 0.0
    %1605 = vmatprep.subr.mxu0 0.0
    %1606 = vmatpush2.xpose.msra.mxu0 0.0
    %1607 = vmatprep.subr.mxu0 0.0
    %1608 = vmatpush2.xpose.msra.mxu0 0.0
    %1609 = vmatprep.subr.mxu0 0.0
    %1610 = vmatpush2.xpose.msra.mxu0 0.0
    %1611 = vmatprep.subr.mxu0 0.0
    %1612 = vmatpush2.xpose.msra.mxu0 0.0
    %1613 = vmatprep.mubr.f32.mxu0 0.0
    %1614 = vmatmul.mubr.f32.gmra.mxu0 %v1545
    %v1615 = vpop.f32.mrf.mxu0
    %v1616 = vadd.f32 0.0, %v1615
    %v1617 = vpop.f32.mrf.mxu0
    %1618 = vdwg.mxu0
    %1619 = vrot.lane.b32.xlu0 %v537, 104
    %v1620 = vpop.permute.xlu0 %1619
    %1621 = vrot.lane.b32.xlu0 %v537, 72
    %v1622 = vpop.permute.xlu0 %1621
    %v1623 = vsel %vm543, %v1620, 0
    %v1625 = vsel %vm543, %v1622, 0
    %1627 = vmatprep.subr.mxu0 0.0
    %1628 = vmatpush1.xpose.msra.mxu0 0.0
    %1629 = vmatprep.subr.mxu0 0.0
    %1630 = vmatpush1.xpose.msra.mxu0 0.0
    %1631 = vmatprep.subr.mxu0 0.0
    %1632 = vmatpush1.xpose.msra.mxu0 0.0
    %1633 = vmatprep.subr.mxu0 0.0
    %1634 = vmatpush1.xpose.msra.mxu0 0.0
    %1635 = vmatprep.subr.mxu0 0.0
    %1636 = vmatpush1.xpose.msra.mxu0 0.0
    %1637 = vmatprep.subr.mxu0 0.0
    %1638 = vmatpush1.xpose.msra.mxu0 0.0
    %1639 = vmatprep.subr.mxu0 0.0
    %1640 = vmatpush1.xpose.msra.mxu0 0.0
    %1641 = vmatprep.subr.mxu0 0.0
    %1642 = vmatpush1.xpose.msra.mxu0 0.0
    %1643 = vmatprep.subr.mxu0 0.0
    %1644 = vmatpush1.xpose.msra.mxu0 0.0
    %1645 = vmatprep.subr.mxu0 0.0
    %1646 = vmatpush1.xpose.msra.mxu0 0.0
    %1647 = vmatprep.subr.mxu0 0.0
    %1648 = vmatpush1.xpose.msra.mxu0 0.0
    %1649 = vmatprep.subr.mxu0 0.0
    %1650 = vmatpush1.xpose.msra.mxu0 0.0
    %1651 = vmatprep.subr.mxu0 0.0
    %1652 = vmatpush1.xpose.msra.mxu0 0.0
    %1653 = vmatprep.subr.mxu0 0.0
    %1654 = vmatpush1.xpose.msra.mxu0 0.0
    %1655 = vmatprep.subr.mxu0 0.0
    %1656 = vmatpush1.xpose.msra.mxu0 0.0
    %1657 = vmatprep.subr.mxu0 0.0
    %1658 = vmatpush1.xpose.msra.mxu0 %v1625
    %1659 = vmatprep.subr.mxu0 0.0
    %1660 = vmatpush2.xpose.msra.mxu0 0.0
    %1661 = vmatprep.subr.mxu0 0.0
    %1662 = vmatpush2.xpose.msra.mxu0 0.0
    %1663 = vmatprep.subr.mxu0 0.0
    %1664 = vmatpush2.xpose.msra.mxu0 0.0
    %1665 = vmatprep.subr.mxu0 0.0
    %1666 = vmatpush2.xpose.msra.mxu0 0.0
    %1667 = vmatprep.subr.mxu0 0.0
    %1668 = vmatpush2.xpose.msra.mxu0 0.0
    %1669 = vmatprep.subr.mxu0 0.0
    %1670 = vmatpush2.xpose.msra.mxu0 0.0
    %1671 = vmatprep.subr.mxu0 0.0
    %1672 = vmatpush2.xpose.msra.mxu0 0.0
    %1673 = vmatprep.subr.mxu0 0.0
    %1674 = vmatpush2.xpose.msra.mxu0 0.0
    %1675 = vmatprep.subr.mxu0 0.0
    %1676 = vmatpush2.xpose.msra.mxu0 0.0
    %1677 = vmatprep.subr.mxu0 0.0
    %1678 = vmatpush2.xpose.msra.mxu0 0.0
    %1679 = vmatprep.subr.mxu0 0.0
    %1680 = vmatpush2.xpose.msra.mxu0 0.0
    %1681 = vmatprep.subr.mxu0 0.0
    %1682 = vmatpush2.xpose.msra.mxu0 0.0
    %1683 = vmatprep.subr.mxu0 0.0
    %1684 = vmatpush2.xpose.msra.mxu0 0.0
    %1685 = vmatprep.subr.mxu0 0.0
    %1686 = vmatpush2.xpose.msra.mxu0 0.0
    %1687 = vmatprep.subr.mxu0 0.0
    %1688 = vmatpush2.xpose.msra.mxu0 0.0
    %1689 = vmatprep.subr.mxu0 0.0
    %1690 = vmatpush2.xpose.msra.mxu0 0.0
    %1691 = vmatprep.mubr.f32.mxu0 0.0
    %1692 = vmatmul.mubr.f32.gmra.mxu0 %v1623
    %v1693 = vpop.f32.mrf.mxu0
    %v1694 = vadd.f32 0.0, %v1693
    %v1695 = vpop.f32.mrf.mxu0
    %1696 = vdwg.mxu0
    %v1697 = vmul.f32 %v1616, 0.35355338
    %v1698 = vmul.f32 %v1694, 0.35355338
    %v1699 = vsel %vm427, -1e+09, %v1697
    %v1700 = vsel %vm428, -1e+09, %v1698
    %v1701 = vsel %vm543, %v1699, -inf
    %1702 = vmax.xlane.f32.xlu0 %v1701
    %v1703 = vpop.xlane.xlu0 %1702
    %v1704 = vsel %vm543, %v1700, -inf
    %1705 = vmax.xlane.f32.xlu0 %v1704
    %v1706 = vpop.xlane.xlu0 %1705
    %v1707 = vsub.f32 %v1699, %v1703
    %v1708 = vsub.f32 %v1700, %v1706
    %v1709 = vmul.f32 %v1707, 1.442695
    %v1710 = vpow.pop %v1709
    %v1711 = vmul.f32 %v1708, 1.442695
    %v1712 = vpow.pop %v1711
    %v1713 = vsel %vm543, %v1710, 0.0
    %1714 = vadd.xlane.f32.xlu0 %v1713
    %v1715 = vpop.xlane.xlu0 %1714
    %v1716 = vsel %vm543, %v1712, 0.0
    %1717 = vadd.xlane.f32.xlu0 %v1716
    %v1718 = vpop.xlane.xlu0 %1717
    %v1719 = vrcp.pop %v1715
    %v1720 = vrcp.pop %v1718
    %v1721 = vmul.f32 %v1710, %v1719
    %v1722 = vmul.f32 %v1712, %v1720
    %1723 = vrot.lane.b32.xlu0 %v532, 40
    %v1724 = vpop.permute.xlu0 %1723
    %v1727 = vsel %vm543, %v1721, 0
    %1729 = vmatprep.subr.mxu0 0.0
    %1730 = vmatpush1.msra.mxu0 0.0
    %1731 = vmatprep.subr.mxu0 0.0
    %1732 = vmatpush1.msra.mxu0 0.0
    %1733 = vmatprep.subr.mxu0 0.0
    %1734 = vmatpush1.msra.mxu0 0.0
    %1735 = vmatprep.subr.mxu0 0.0
    %1736 = vmatpush1.msra.mxu0 0.0
    %1737 = vmatprep.subr.mxu0 0.0
    %1738 = vmatpush1.msra.mxu0 0.0
    %1739 = vmatprep.subr.mxu0 0.0
    %1740 = vmatpush1.msra.mxu0 0.0
    %1741 = vmatprep.subr.mxu0 0.0
    %1742 = vmatpush1.msra.mxu0 0.0
    %1743 = vmatprep.subr.mxu0 0.0
    %1744 = vmatpush1.msra.mxu0 0.0
    %1745 = vmatprep.subr.mxu0 0.0
    %1746 = vmatpush1.msra.mxu0 0.0
    %1747 = vmatprep.subr.mxu0 0.0
    %1748 = vmatpush1.msra.mxu0 0.0
    %1749 = vmatprep.subr.mxu0 0.0
    %1750 = vmatpush1.msra.mxu0 0.0
    %1751 = vmatprep.subr.mxu0 0.0
    %1752 = vmatpush1.msra.mxu0 0.0
    %1753 = vmatprep.subr.mxu0 0.0
    %1754 = vmatpush1.msra.mxu0 0.0
    %1755 = vmatprep.subr.mxu0 0.0
    %1756 = vmatpush1.msra.mxu0 0.0
    %1757 = vmatprep.subr.mxu0 0.0
    %1758 = vmatpush1.msra.mxu0 0.0
    %1759 = vmatprep.subr.mxu0 0.0
    %1760 = vmatpush1.msra.mxu0 %v1724
    %1761 = vmatprep.subr.mxu0 0.0
    %1762 = vmatpush2.msra.mxu0 0.0
    %1763 = vmatprep.subr.mxu0 0.0
    %1764 = vmatpush2.msra.mxu0 0.0
    %1765 = vmatprep.subr.mxu0 0.0
    %1766 = vmatpush2.msra.mxu0 0.0
    %1767 = vmatprep.subr.mxu0 0.0
    %1768 = vmatpush2.msra.mxu0 0.0
    %1769 = vmatprep.subr.mxu0 0.0
    %1770 = vmatpush2.msra.mxu0 0.0
    %1771 = vmatprep.subr.mxu0 0.0
    %1772 = vmatpush2.msra.mxu0 0.0
    %1773 = vmatprep.subr.mxu0 0.0
    %1774 = vmatpush2.msra.mxu0 0.0
    %1775 = vmatprep.subr.mxu0 0.0
    %1776 = vmatpush2.msra.mxu0 0.0
    %1777 = vmatprep.subr.mxu0 0.0
    %1778 = vmatpush2.msra.mxu0 0.0
    %1779 = vmatprep.subr.mxu0 0.0
    %1780 = vmatpush2.msra.mxu0 0.0
    %1781 = vmatprep.subr.mxu0 0.0
    %1782 = vmatpush2.msra.mxu0 0.0
    %1783 = vmatprep.subr.mxu0 0.0
    %1784 = vmatpush2.msra.mxu0 0.0
    %1785 = vmatprep.subr.mxu0 0.0
    %1786 = vmatpush2.msra.mxu0 0.0
    %1787 = vmatprep.subr.mxu0 0.0
    %1788 = vmatpush2.msra.mxu0 0.0
    %1789 = vmatprep.subr.mxu0 0.0
    %1790 = vmatpush2.msra.mxu0 0.0
    %1791 = vmatprep.subr.mxu0 0.0
    %1792 = vmatpush2.msra.mxu0 0.0
    %1793 = vmatprep.mubr.f32.mxu0 0.0
    %1794 = vmatmul.mubr.f32.gmra.mxu0 %v1727
    %v1795 = vpop.f32.mrf.mxu0
    %v1796 = vadd.f32 0.0, %v1795
    %v1797 = vpop.f32.mrf.mxu0
    %1798 = vdwg.mxu0
    %1799 = vrot.lane.b32.xlu0 %v537, 40
    %v1800 = vpop.permute.xlu0 %1799
    %v1803 = vsel %vm543, %v1722, 0
    %1805 = vmatprep.subr.mxu0 0.0
    %1806 = vmatpush1.msra.mxu0 0.0
    %1807 = vmatprep.subr.mxu0 0.0
    %1808 = vmatpush1.msra.mxu0 0.0
    %1809 = vmatprep.subr.mxu0 0.0
    %1810 = vmatpush1.msra.mxu0 0.0
    %1811 = vmatprep.subr.mxu0 0.0
    %1812 = vmatpush1.msra.mxu0 0.0
    %1813 = vmatprep.subr.mxu0 0.0
    %1814 = vmatpush1.msra.mxu0 0.0
    %1815 = vmatprep.subr.mxu0 0.0
    %1816 = vmatpush1.msra.mxu0 0.0
    %1817 = vmatprep.subr.mxu0 0.0
    %1818 = vmatpush1.msra.mxu0 0.0
    %1819 = vmatprep.subr.mxu0 0.0
    %1820 = vmatpush1.msra.mxu0 0.0
    %1821 = vmatprep.subr.mxu0 0.0
    %1822 = vmatpush1.msra.mxu0 0.0
    %1823 = vmatprep.subr.mxu0 0.0
    %1824 = vmatpush1.msra.mxu0 0.0
    %1825 = vmatprep.subr.mxu0 0.0
    %1826 = vmatpush1.msra.mxu0 0.0
    %1827 = vmatprep.subr.mxu0 0.0
    %1828 = vmatpush1.msra.mxu0 0.0
    %1829 = vmatprep.subr.mxu0 0.0
    %1830 = vmatpush1.msra.mxu0 0.0
    %1831 = vmatprep.subr.mxu0 0.0
    %1832 = vmatpush1.msra.mxu0 0.0
    %1833 = vmatprep.subr.mxu0 0.0
    %1834 = vmatpush1.msra.mxu0 0.0
    %1835 = vmatprep.subr.mxu0 0.0
    %1836 = vmatpush1.msra.mxu0 %v1800
    %1837 = vmatprep.subr.mxu0 0.0
    %1838 = vmatpush2.msra.mxu0 0.0
    %1839 = vmatprep.subr.mxu0 0.0
    %1840 = vmatpush2.msra.mxu0 0.0
    %1841 = vmatprep.subr.mxu0 0.0
    %1842 = vmatpush2.msra.mxu0 0.0
    %1843 = vmatprep.subr.mxu0 0.0
    %1844 = vmatpush2.msra.mxu0 0.0
    %1845 = vmatprep.subr.mxu0 0.0
    %1846 = vmatpush2.msra.mxu0 0.0
    %1847 = vmatprep.subr.mxu0 0.0
    %1848 = vmatpush2.msra.mxu0 0.0
    %1849 = vmatprep.subr.mxu0 0.0
    %1850 = vmatpush2.msra.mxu0 0.0
    %1851 = vmatprep.subr.mxu0 0.0
    %1852 = vmatpush2.msra.mxu0 0.0
    %1853 = vmatprep.subr.mxu0 0.0
    %1854 = vmatpush2.msra.mxu0 0.0
    %1855 = vmatprep.subr.mxu0 0.0
    %1856 = vmatpush2.msra.mxu0 0.0
    %1857 = vmatprep.subr.mxu0 0.0
    %1858 = vmatpush2.msra.mxu0 0.0
    %1859 = vmatprep.subr.mxu0 0.0
    %1860 = vmatpush2.msra.mxu0 0.0
    %1861 = vmatprep.subr.mxu0 0.0
    %1862 = vmatpush2.msra.mxu0 0.0
    %1863 = vmatprep.subr.mxu0 0.0
    %1864 = vmatpush2.msra.mxu0 0.0
    %1865 = vmatprep.subr.mxu0 0.0
    %1866 = vmatpush2.msra.mxu0 0.0
    %1867 = vmatprep.subr.mxu0 0.0
    %1868 = vmatpush2.msra.mxu0 0.0
    %1869 = vmatprep.mubr.f32.mxu0 0.0
    %1870 = vmatmul.mubr.f32.gmra.mxu0 %v1803
    %v1871 = vpop.f32.mrf.mxu0
    %v1872 = vadd.f32 0.0, %v1871
    %v1873 = vpop.f32.mrf.mxu0
    %1874 = vdwg.mxu0
    %1877 = vrot.lane.b32.xlu0 %v1128, 8
    %v1878 = vpop.permute.xlu0 %1877
    %1879 = vrot.lane.b32.xlu0 %v1204, 8
    %v1880 = vpop.permute.xlu0 %1879
    %1885 = vrot.lane.b32.xlu0 %v1462, 16
    %v1886 = vpop.permute.xlu0 %1885
    %1887 = vrot.lane.b32.xlu0 %v1538, 16
    %v1888 = vpop.permute.xlu0 %1887
    %1893 = vrot.lane.b32.xlu0 %v1796, 24
    %v1894 = vpop.permute.xlu0 %1893
    %1895 = vrot.lane.b32.xlu0 %v1872, 24
    %v1896 = vpop.permute.xlu0 %1895
    %v1899 = vsel %vm543, %v794, %v1878
    %v1900 = vsel %vm543, %v870, %v1880
    %v1901 = vsel %vm324, %v1899, %v1886
    %v1902 = vsel %vm324, %v1900, %v1888
    %vm1903 = vcmask 195584
    %v1904 = vsel %vm1903, %v1901, %v1894
    %v1905 = vsel %vm1903, %v1902, %v1896
    %1906 = vrot.lane.b32.xlu0 %v1053, 8
    %v1907 = vpop.permute.xlu0 %1906
    %1908 = vrot.lane.b32.xlu0 %v1054, 8
    %v1909 = vpop.permute.xlu0 %1908
    %1912 = vrot.lane.b32.xlu0 %v1387, 16
    %v1913 = vpop.permute.xlu0 %1912
    %1914 = vrot.lane.b32.xlu0 %v1388, 16
    %v1915 = vpop.permute.xlu0 %1914
    %1918 = vrot.lane.b32.xlu0 %v1721, 24
    %v1919 = vpop.permute.xlu0 %1918
    %1920 = vrot.lane.b32.xlu0 %v1722, 24
    %v1921 = vpop.permute.xlu0 %1920
    %v1924 = vsel %vm543, %v719, %v1907
    %v1925 = vsel %vm543, %v720, %v1909
    %v1926 = vsel %vm324, %v1924, %v1913
    %v1927 = vsel %vm324, %v1925, %v1915
    %v1928 = vsel %vm1903, %v1926, %v1919
    %v1929 = vsel %vm1903, %v1927, %v1921
    %v1930 = vld [vmem:[%s8] sm:$0xff]
    %v1931 = vld [vmem:[%s8 + $0x8] sm:$0xff]
    %v1932 = vld [vmem:[%s8 + $0x10] sm:$0xff]
    %v1933 = vld [vmem:[%s8 + $0x18] sm:$0xff]
    %v1934 = vld [vmem:[#allocation8] sm:$0x1]
    %v1936 = vlaneseq
    %v1937 = vshrl.u32 %v1936, 7
    %v1938 = vsub.s32 0, %v1937
    %v1939 = vrot.slane %v1934, %v1938
    %v1942 = vsel %vm458, %v1904, 0
    %v1945 = vsel %vm458, %v1905, 0
    %1947 = vmatprep.subr.mxu0 0.0
    %1948 = vmatpush1.msra.mxu0 0.0
    %1949 = vmatprep.subr.mxu0 0.0
    %1950 = vmatpush1.msra.mxu0 0.0
    %1951 = vmatprep.subr.mxu0 0.0
    %1952 = vmatpush1.msra.mxu0 0.0
    %1953 = vmatprep.subr.mxu0 0.0
    %1954 = vmatpush1.msra.mxu0 0.0
    %1955 = vmatprep.subr.mxu0 0.0
    %1956 = vmatpush1.msra.mxu0 0.0
    %1957 = vmatprep.subr.mxu0 0.0
    %1958 = vmatpush1.msra.mxu0 0.0
    %1959 = vmatprep.subr.mxu0 0.0
    %1960 = vmatpush1.msra.mxu0 0.0
    %1961 = vmatprep.subr.mxu0 0.0
    %1962 = vmatpush1.msra.mxu0 0.0
    %1963 = vmatprep.subr.mxu0 0.0
    %1964 = vmatpush1.msra.mxu0 0.0
    %1965 = vmatprep.subr.mxu0 0.0
    %1966 = vmatpush1.msra.mxu0 0.0
    %1967 = vmatprep.subr.mxu0 0.0
    %1968 = vmatpush1.msra.mxu0 0.0
    %1969 = vmatprep.subr.mxu0 0.0
    %1970 = vmatpush1.msra.mxu0 0.0
    %1971 = vmatprep.subr.mxu0 0.0
    %1972 = vmatpush1.msra.mxu0 %v1933
    %1973 = vmatprep.subr.mxu0 0.0
    %1974 = vmatpush1.msra.mxu0 %v1932
    %1975 = vmatprep.subr.mxu0 0.0
    %1976 = vmatpush1.msra.mxu0 %v1931
    %1977 = vmatprep.subr.mxu0 0.0
    %1978 = vmatpush1.msra.mxu0 %v1930
    %1979 = vmatprep.subr.mxu0 0.0
    %1980 = vmatpush2.msra.mxu0 0.0
    %1981 = vmatprep.subr.mxu0 0.0
    %1982 = vmatpush2.msra.mxu0 0.0
    %1983 = vmatprep.subr.mxu0 0.0
    %1984 = vmatpush2.msra.mxu0 0.0
    %1985 = vmatprep.subr.mxu0 0.0
    %1986 = vmatpush2.msra.mxu0 0.0
    %1987 = vmatprep.subr.mxu0 0.0
    %1988 = vmatpush2.msra.mxu0 0.0
    %1989 = vmatprep.subr.mxu0 0.0
    %1990 = vmatpush2.msra.mxu0 0.0
    %1991 = vmatprep.subr.mxu0 0.0
    %1992 = vmatpush2.msra.mxu0 0.0
    %1993 = vmatprep.subr.mxu0 0.0
    %1994 = vmatpush2.msra.mxu0 0.0
    %1995 = vmatprep.subr.mxu0 0.0
    %1996 = vmatpush2.msra.mxu0 0.0
    %1997 = vmatprep.subr.mxu0 0.0
    %1998 = vmatpush2.msra.mxu0 0.0
    %1999 = vmatprep.subr.mxu0 0.0
    %2000 = vmatpush2.msra.mxu0 0.0
    %2001 = vmatprep.subr.mxu0 0.0
    %2002 = vmatpush2.msra.mxu0 0.0
    %2003 = vmatprep.subr.mxu0 0.0
    %2004 = vmatpush2.msra.mxu0 0.0
    %2005 = vmatprep.subr.mxu0 0.0
    %2006 = vmatpush2.msra.mxu0 0.0
    %2007 = vmatprep.subr.mxu0 0.0
    %2008 = vmatpush2.msra.mxu0 0.0
    %2009 = vmatprep.subr.mxu0 0.0
    %2010 = vmatpush2.msra.mxu0 0.0
    %2011 = vmatprep.mubr.f32.mxu0 0.0
    %2012 = vmatmul.mubr.f32.gmra.mxu0 %v1942
    %v2013 = vpop.f32.mrf.mxu0
    %v2014 = vadd.f32 %v1939, %v2013
    %v2015 = vpop.f32.mrf.mxu0
    %2016 = vmatprep.mubr.f32.mxu0 0.0
    %2017 = vmatmul.mubr.f32.gmra.mxu0 %v1945
    %v2018 = vpop.f32.mrf.mxu0
    %v2019 = vadd.f32 %v1939, %v2018
    %v2020 = vpop.f32.mrf.mxu0
    %2021 = vdwg.mxu0
    %v2022 = vadd.f32 %v2014, %v398
    %v2023 = vadd.f32 %v2019, %v403
    %v2024 = vld [vmem:[#allocation10] sm:$0x1]
    %v2025 = vld [vmem:[#allocation11] sm:$0x1]
    %v2026 = vsel %vm458, %v2022, 0.0
    %2027 = vadd.xlane.f32.xlu0 %v2026
    %v2028 = vpop.xlane.xlu0 %2027
    %v2029 = vsel %vm458, %v2023, 0.0
    %2030 = vadd.xlane.f32.xlu0 %v2029
    %v2031 = vpop.xlane.xlu0 %2030
    %v2032 = vrcp.pop 32.0
    %v2033 = vmul.f32 %v2028, %v2032
    %v2034 = vmul.f32 %v2031, %v2032
    %v2035 = vsub.f32 %v2022, %v2033
    %v2036 = vsub.f32 %v2023, %v2034
    %v2037 = vmul.f32 %v2035, %v2035
    %v2038 = vmul.f32 %v2036, %v2036
    %v2039 = vsel %vm458, %v2037, 0.0
    %2040 = vadd.xlane.f32.xlu0 %v2039
    %v2041 = vpop.xlane.xlu0 %2040
    %v2042 = vsel %vm458, %v2038, 0.0
    %2043 = vadd.xlane.f32.xlu0 %v2042
    %v2044 = vpop.xlane.xlu0 %2043
    %v2045 = vmul.f32 %v2041, %v2032
    %v2046 = vmul.f32 %v2044, %v2032
    %v2047 = vadd.f32 %v2045, 1e-05
    %v2048 = vadd.f32 %v2046, 1e-05
    %v2049 = vrsqrt.pop %v2047
    %v2050 = vrsqrt.pop %v2048
    %v2051 = vmul.f32 %v2035, %v2049
    %v2052 = vmul.f32 %v2036, %v2050
    %v2054 = vlaneseq
    %v2055 = vshrl.u32 %v2054, 7
    %v2056 = vsub.s32 0, %v2055
    %v2057 = vrot.slane %v2024, %v2056
    %v2059 = vmul.f32 %v2051, %v2057
    %v2060 = vmul.f32 %v2052, %v2057
    %v2062 = vlaneseq
    %v2063 = vshrl.u32 %v2062, 7
    %v2064 = vsub.s32 0, %v2063
    %v2065 = vrot.slane %v2025, %v2064
    %v2067 = vadd.f32 %v2059, %v2065
    %v2068 = vadd.f32 %v2060, %v2065
    %2069 = vst.msk [vmem:[%s27] sm:$0xff] %vm458, %v1928
    %2070 = vst.msk [vmem:[%s27 + $0x8] sm:$0xff] %vm458, %v1929
    %v2071 = vld [vmem:[%s12] sm:$0xff]
    %v2072 = vld [vmem:[%s12 + $0x8] sm:$0xff]
    %v2073 = vld [vmem:[%s12 + $0x10] sm:$0xff]
    %v2074 = vld [vmem:[%s12 + $0x18] sm:$0xff]
    %v2075 = vld [vmem:[#allocation13] sm:$0x1]
    %v2077 = vlaneseq
    %v2078 = vshrl.u32 %v2077, 7
    %v2079 = vsub.s32 0, %v2078
    %v2080 = vrot.slane %v2075, %v2079
    %v2083 = vsel %vm458, %v2067, 0
    %v2086 = vsel %vm458, %v2068, 0
    %2088 = vmatprep.subr.mxu0 0.0
    %2089 = vmatpush1.msra.mxu0 0.0
    %2090 = vmatprep.subr.mxu0 0.0
    %2091 = vmatpush1.msra.mxu0 0.0
    %2092 = vmatprep.subr.mxu0 0.0
    %2093 = vmatpush1.msra.mxu0 0.0
    %2094 = vmatprep.subr.mxu0 0.0
    %2095 = vmatpush1.msra.mxu0 0.0
    %2096 = vmatprep.subr.mxu0 0.0
    %2097 = vmatpush1.msra.mxu0 0.0
    %2098 = vmatprep.subr.mxu0 0.0
    %2099 = vmatpush1.msra.mxu0 0.0
    %2100 = vmatprep.subr.mxu0 0.0
    %2101 = vmatpush1.msra.mxu0 0.0
    %2102 = vmatprep.subr.mxu0 0.0
    %2103 = vmatpush1.msra.mxu0 0.0
    %2104 = vmatprep.subr.mxu0 0.0
    %2105 = vmatpush1.msra.mxu0 0.0
    %2106 = vmatprep.subr.mxu0 0.0
    %2107 = vmatpush1.msra.mxu0 0.0
    %2108 = vmatprep.subr.mxu0 0.0
    %2109 = vmatpush1.msra.mxu0 0.0
    %2110 = vmatprep.subr.mxu0 0.0
    %2111 = vmatpush1.msra.mxu0 0.0
    %2112 = vmatprep.subr.mxu0 0.0
    %2113 = vmatpush1.msra.mxu0 %v2074
    %2114 = vmatprep.subr.mxu0 0.0
    %2115 = vmatpush1.msra.mxu0 %v2073
    %2116 = vmatprep.subr.mxu0 0.0
    %2117 = vmatpush1.msra.mxu0 %v2072
    %2118 = vmatprep.subr.mxu0 0.0
    %2119 = vmatpush1.msra.mxu0 %v2071
    %2120 = vmatprep.subr.mxu0 0.0
    %2121 = vmatpush2.msra.mxu0 0.0
    %2122 = vmatprep.subr.mxu0 0.0
    %2123 = vmatpush2.msra.mxu0 0.0
    %2124 = vmatprep.subr.mxu0 0.0
    %2125 = vmatpush2.msra.mxu0 0.0
    %2126 = vmatprep.subr.mxu0 0.0
    %2127 = vmatpush2.msra.mxu0 0.0
    %2128 = vmatprep.subr.mxu0 0.0
    %2129 = vmatpush2.msra.mxu0 0.0
    %2130 = vmatprep.subr.mxu0 0.0
    %2131 = vmatpush2.msra.mxu0 0.0
    %2132 = vmatprep.subr.mxu0 0.0
    %2133 = vmatpush2.msra.mxu0 0.0
    %2134 = vmatprep.subr.mxu0 0.0
    %2135 = vmatpush2.msra.mxu0 0.0
    %2136 = vmatprep.subr.mxu0 0.0
    %2137 = vmatpush2.msra.mxu0 0.0
    %2138 = vmatprep.subr.mxu0 0.0
    %2139 = vmatpush2.msra.mxu0 0.0
    %2140 = vmatprep.subr.mxu0 0.0
    %2141 = vmatpush2.msra.mxu0 0.0
    %2142 = vmatprep.subr.mxu0 0.0
    %2143 = vmatpush2.msra.mxu0 0.0
    %2144 = vmatprep.subr.mxu0 0.0
    %2145 = vmatpush2.msra.mxu0 0.0
    %2146 = vmatprep.subr.mxu0 0.0
    %2147 = vmatpush2.msra.mxu0 0.0
    %2148 = vmatprep.subr.mxu0 0.0
    %2149 = vmatpush2.msra.mxu0 0.0
    %2150 = vmatprep.subr.mxu0 0.0
    %2151 = vmatpush2.msra.mxu0 0.0
    %2152 = vmatprep.mubr.f32.mxu0 0.0
    %2153 = vmatmul.mubr.f32.gmra.mxu0 %v2083
    %v2154 = vpop.f32.mrf.mxu0
    %v2155 = vadd.f32 %v2080, %v2154
    %v2156 = vpop.f32.mrf.mxu0
    %2157 = vmatprep.mubr.f32.mxu0 0.0
    %2158 = vmatmul.mubr.f32.gmra.mxu0 %v2086
    %v2159 = vpop.f32.mrf.mxu0
    %v2160 = vadd.f32 %v2080, %v2159
    %v2161 = vpop.f32.mrf.mxu0
    %2162 = vdwg.mxu0
    %v2163 = vld [vmem:[%s14] sm:$0xff]
    %v2164 = vld [vmem:[%s14 + $0x8] sm:$0xff]
    %v2165 = vld [vmem:[%s14 + $0x10] sm:$0xff]
    %v2166 = vld [vmem:[%s14 + $0x18] sm:$0xff]
    %v2167 = vld [vmem:[#allocation14] sm:$0x1]
    %v2169 = vlaneseq
    %v2170 = vshrl.u32 %v2169, 7
    %v2171 = vsub.s32 0, %v2170
    %v2172 = vrot.slane %v2167, %v2171
    %v2175 = vsel %vm458, %v445, 0
    %v2178 = vsel %vm458, %v446, 0
    %2180 = vmatprep.subr.mxu0 0.0
    %2181 = vmatpush1.msra.mxu0 0.0
    %2182 = vmatprep.subr.mxu0 0.0
    %2183 = vmatpush1.msra.mxu0 0.0
    %2184 = vmatprep.subr.mxu0 0.0
    %2185 = vmatpush1.msra.mxu0 0.0
    %2186 = vmatprep.subr.mxu0 0.0
    %2187 = vmatpush1.msra.mxu0 0.0
    %2188 = vmatprep.subr.mxu0 0.0
    %2189 = vmatpush1.msra.mxu0 0.0
    %2190 = vmatprep.subr.mxu0 0.0
    %2191 = vmatpush1.msra.mxu0 0.0
    %2192 = vmatprep.subr.mxu0 0.0
    %2193 = vmatpush1.msra.mxu0 0.0
    %2194 = vmatprep.subr.mxu0 0.0
    %2195 = vmatpush1.msra.mxu0 0.0
    %2196 = vmatprep.subr.mxu0 0.0
    %2197 = vmatpush1.msra.mxu0 0.0
    %2198 = vmatprep.subr.mxu0 0.0
    %2199 = vmatpush1.msra.mxu0 0.0
    %2200 = vmatprep.subr.mxu0 0.0
    %2201 = vmatpush1.msra.mxu0 0.0
    %2202 = vmatprep.subr.mxu0 0.0
    %2203 = vmatpush1.msra.mxu0 0.0
    %2204 = vmatprep.subr.mxu0 0.0
    %2205 = vmatpush1.msra.mxu0 %v2166
    %2206 = vmatprep.subr.mxu0 0.0
    %2207 = vmatpush1.msra.mxu0 %v2165
    %2208 = vmatprep.subr.mxu0 0.0
    %2209 = vmatpush1.msra.mxu0 %v2164
    %2210 = vmatprep.subr.mxu0 0.0
    %2211 = vmatpush1.msra.mxu0 %v2163
    %2212 = vmatprep.subr.mxu0 0.0
    %2213 = vmatpush2.msra.mxu0 0.0
    %2214 = vmatprep.subr.mxu0 0.0
    %2215 = vmatpush2.msra.mxu0 0.0
    %2216 = vmatprep.subr.mxu0 0.0
    %2217 = vmatpush2.msra.mxu0 0.0
    %2218 = vmatprep.subr.mxu0 0.0
    %2219 = vmatpush2.msra.mxu0 0.0
    %2220 = vmatprep.subr.mxu0 0.0
    %2221 = vmatpush2.msra.mxu0 0.0
    %2222 = vmatprep.subr.mxu0 0.0
    %2223 = vmatpush2.msra.mxu0 0.0
    %2224 = vmatprep.subr.mxu0 0.0
    %2225 = vmatpush2.msra.mxu0 0.0
    %2226 = vmatprep.subr.mxu0 0.0
    %2227 = vmatpush2.msra.mxu0 0.0
    %2228 = vmatprep.subr.mxu0 0.0
    %2229 = vmatpush2.msra.mxu0 0.0
    %2230 = vmatprep.subr.mxu0 0.0
    %2231 = vmatpush2.msra.mxu0 0.0
    %2232 = vmatprep.subr.mxu0 0.0
    %2233 = vmatpush2.msra.mxu0 0.0
    %2234 = vmatprep.subr.mxu0 0.0
    %2235 = vmatpush2.msra.mxu0 0.0
    %2236 = vmatprep.subr.mxu0 0.0
    %2237 = vmatpush2.msra.mxu0 0.0
    %2238 = vmatprep.subr.mxu0 0.0
    %2239 = vmatpush2.msra.mxu0 0.0
    %2240 = vmatprep.subr.mxu0 0.0
    %2241 = vmatpush2.msra.mxu0 0.0
    %2242 = vmatprep.subr.mxu0 0.0
    %2243 = vmatpush2.msra.mxu0 0.0
    %2244 = vmatprep.mubr.f32.mxu0 0.0
    %2245 = vmatmul.mubr.f32.gmra.mxu0 %v2175
    %v2246 = vpop.f32.mrf.mxu0
    %v2247 = vadd.f32 %v2172, %v2246
    %v2248 = vpop.f32.mrf.mxu0
    %2249 = vmatprep.mubr.f32.mxu0 0.0
    %2250 = vmatmul.mubr.f32.gmra.mxu0 %v2178
    %v2251 = vpop.f32.mrf.mxu0
    %v2252 = vadd.f32 %v2172, %v2251
    %v2253 = vpop.f32.mrf.mxu0
    %2254 = vdwg.mxu0
    %v2256 = vsel %vm543, %v2155, 0
    %v2259 = vsel %vm543, %v2247, 0
    %2261 = vmatprep.subr.mxu0 0.0
    %2262 = vmatpush1.xpose.msra.mxu0 0.0
    %2263 = vmatprep.subr.mxu0 0.0
    %2264 = vmatpush1.xpose.msra.mxu0 0.0
    %2265 = vmatprep.subr.mxu0 0.0
    %2266 = vmatpush1.xpose.msra.mxu0 0.0
    %2267 = vmatprep.subr.mxu0 0.0
    %2268 = vmatpush1.xpose.msra.mxu0 0.0
    %2269 = vmatprep.subr.mxu0 0.0
    %2270 = vmatpush1.xpose.msra.mxu0 0.0
    %2271 = vmatprep.subr.mxu0 0.0
    %2272 = vmatpush1.xpose.msra.mxu0 0.0
    %2273 = vmatprep.subr.mxu0 0.0
    %2274 = vmatpush1.xpose.msra.mxu0 0.0
    %2275 = vmatprep.subr.mxu0 0.0
    %2276 = vmatpush1.xpose.msra.mxu0 0.0
    %2277 = vmatprep.subr.mxu0 0.0
    %2278 = vmatpush1.xpose.msra.mxu0 0.0
    %2279 = vmatprep.subr.mxu0 0.0
    %2280 = vmatpush1.xpose.msra.mxu0 0.0
    %2281 = vmatprep.subr.mxu0 0.0
    %2282 = vmatpush1.xpose.msra.mxu0 0.0
    %2283 = vmatprep.subr.mxu0 0.0
    %2284 = vmatpush1.xpose.msra.mxu0 0.0
    %2285 = vmatprep.subr.mxu0 0.0
    %2286 = vmatpush1.xpose.msra.mxu0 0.0
    %2287 = vmatprep.subr.mxu0 0.0
    %2288 = vmatpush1.xpose.msra.mxu0 0.0
    %2289 = vmatprep.subr.mxu0 0.0
    %2290 = vmatpush1.xpose.msra.mxu0 0.0
    %2291 = vmatprep.subr.mxu0 0.0
    %2292 = vmatpush1.xpose.msra.mxu0 %v2259
    %2293 = vmatprep.subr.mxu0 0.0
    %2294 = vmatpush2.xpose.msra.mxu0 0.0
    %2295 = vmatprep.subr.mxu0 0.0
    %2296 = vmatpush2.xpose.msra.mxu0 0.0
    %2297 = vmatprep.subr.mxu0 0.0
    %2298 = vmatpush2.xpose.msra.mxu0 0.0
    %2299 = vmatprep.subr.mxu0 0.0
    %2300 = vmatpush2.xpose.msra.mxu0 0.0
    %2301 = vmatprep.subr.mxu0 0.0
    %2302 = vmatpush2.xpose.msra.mxu0 0.0
    %2303 = vmatprep.subr.mxu0 0.0
    %2304 = vmatpush2.xpose.msra.mxu0 0.0
    %2305 = vmatprep.subr.mxu0 0.0
    %2306 = vmatpush2.xpose.msra.mxu0 0.0
    %2307 = vmatprep.subr.mxu0 0.0
    %2308 = vmatpush2.xpose.msra.mxu0 0.0
    %2309 = vmatprep.subr.mxu0 0.0
    %2310 = vmatpush2.xpose.msra.mxu0 0.0
    %2311 = vmatprep.subr.mxu0 0.0
    %2312 = vmatpush2.xpose.msra.mxu0 0.0
    %2313 = vmatprep.subr.mxu0 0.0
    %2314 = vmatpush2.xpose.msra.mxu0 0.0
    %2315 = vmatprep.subr.mxu0 0.0
    %2316 = vmatpush2.xpose.msra.mxu0 0.0
    %2317 = vmatprep.subr.mxu0 0.0
    %2318 = vmatpush2.xpose.msra.mxu0 0.0
    %2319 = vmatprep.subr.mxu0 0.0
    %2320 = vmatpush2.xpose.msra.mxu0 0.0
    %2321 = vmatprep.subr.mxu0 0.0
    %2322 = vmatpush2.xpose.msra.mxu0 0.0
    %2323 = vmatprep.subr.mxu0 0.0
    %2324 = vmatpush2.xpose.msra.mxu0 0.0
    %2325 = vmatprep.mubr.f32.mxu0 0.0
    %2326 = vmatmul.mubr.f32.gmra.mxu0 %v2256
    %v2327 = vpop.f32.mrf.mxu0
    %v2328 = vadd.f32 0.0, %v2327
    %v2329 = vpop.f32.mrf.mxu0
    %2330 = vdwg.mxu0
    %v2332 = vsel %vm543, %v2160, 0
    %v2335 = vsel %vm543, %v2252, 0
    %2337 = vmatprep.subr.mxu0 0.0
    %2338 = vmatpush1.xpose.msra.mxu0 0.0
    %2339 = vmatprep.subr.mxu0 0.0
    %2340 = vmatpush1.xpose.msra.mxu0 0.0
    %2341 = vmatprep.subr.mxu0 0.0
    %2342 = vmatpush1.xpose.msra.mxu0 0.0
    %2343 = vmatprep.subr.mxu0 0.0
    %2344 = vmatpush1.xpose.msra.mxu0 0.0
    %2345 = vmatprep.subr.mxu0 0.0
    %2346 = vmatpush1.xpose.msra.mxu0 0.0
    %2347 = vmatprep.subr.mxu0 0.0
    %2348 = vmatpush1.xpose.msra.mxu0 0.0
    %2349 = vmatprep.subr.mxu0 0.0
    %2350 = vmatpush1.xpose.msra.mxu0 0.0
    %2351 = vmatprep.subr.mxu0 0.0
    %2352 = vmatpush1.xpose.msra.mxu0 0.0
    %2353 = vmatprep.subr.mxu0 0.0
    %2354 = vmatpush1.xpose.msra.mxu0 0.0
    %2355 = vmatprep.subr.mxu0 0.0
    %2356 = vmatpush1.xpose.msra.mxu0 0.0
    %2357 = vmatprep.subr.mxu0 0.0
    %2358 = vmatpush1.xpose.msra.mxu0 0.0
    %2359 = vmatprep.subr.mxu0 0.0
    %2360 = vmatpush1.xpose.msra.mxu0 0.0
    %2361 = vmatprep.subr.mxu0 0.0
    %2362 = vmatpush1.xpose.msra.mxu0 0.0
    %2363 = vmatprep.subr.mxu0 0.0
    %2364 = vmatpush1.xpose.msra.mxu0 0.0
    %2365 = vmatprep.subr.mxu0 0.0
    %2366 = vmatpush1.xpose.msra.mxu0 0.0
    %2367 = vmatprep.subr.mxu0 0.0
    %2368 = vmatpush1.xpose.msra.mxu0 %v2335
    %2369 = vmatprep.subr.mxu0 0.0
    %2370 = vmatpush2.xpose.msra.mxu0 0.0
    %2371 = vmatprep.subr.mxu0 0.0
    %2372 = vmatpush2.xpose.msra.mxu0 0.0
    %2373 = vmatprep.subr.mxu0 0.0
    %2374 = vmatpush2.xpose.msra.mxu0 0.0
    %2375 = vmatprep.subr.mxu0 0.0
    %2376 = vmatpush2.xpose.msra.mxu0 0.0
    %2377 = vmatprep.subr.mxu0 0.0
    %2378 = vmatpush2.xpose.msra.mxu0 0.0
    %2379 = vmatprep.subr.mxu0 0.0
    %2380 = vmatpush2.xpose.msra.mxu0 0.0
    %2381 = vmatprep.subr.mxu0 0.0
    %2382 = vmatpush2.xpose.msra.mxu0 0.0
    %2383 = vmatprep.subr.mxu0 0.0
    %2384 = vmatpush2.xpose.msra.mxu0 0.0
    %2385 = vmatprep.subr.mxu0 0.0
    %2386 = vmatpush2.xpose.msra.mxu0 0.0
    %2387 = vmatprep.subr.mxu0 0.0
    %2388 = vmatpush2.xpose.msra.mxu0 0.0
    %2389 = vmatprep.subr.mxu0 0.0
    %2390 = vmatpush2.xpose.msra.mxu0 0.0
    %2391 = vmatprep.subr.mxu0 0.0
    %2392 = vmatpush2.xpose.msra.mxu0 0.0
    %2393 = vmatprep.subr.mxu0 0.0
    %2394 = vmatpush2.xpose.msra.mxu0 0.0
    %2395 = vmatprep.subr.mxu0 0.0
    %2396 = vmatpush2.xpose.msra.mxu0 0.0
    %2397 = vmatprep.subr.mxu0 0.0
    %2398 = vmatpush2.xpose.msra.mxu0 0.0
    %2399 = vmatprep.subr.mxu0 0.0
    %2400 = vmatpush2.xpose.msra.mxu0 0.0
    %2401 = vmatprep.mubr.f32.mxu0 0.0
    %2402 = vmatmul.mubr.f32.gmra.mxu0 %v2332
    %v2403 = vpop.f32.mrf.mxu0
    %v2404 = vadd.f32 0.0, %v2403
    %v2405 = vpop.f32.mrf.mxu0
    %2406 = vdwg.mxu0
    %v2407 = vmul.f32 %v2328, 0.35355338
    %v2408 = vmul.f32 %v2404, 0.35355338
    %v2409 = vsel %vm443, -1e+09, %v2407
    %v2410 = vsel %vm444, -1e+09, %v2408
    %v2411 = vsel %vm543, %v2409, -inf
    %2412 = vmax.xlane.f32.xlu0 %v2411
    %v2413 = vpop.xlane.xlu0 %2412
    %v2414 = vsel %vm543, %v2410, -inf
    %2415 = vmax.xlane.f32.xlu0 %v2414
    %v2416 = vpop.xlane.xlu0 %2415
    %v2417 = vsub.f32 %v2409, %v2413
    %v2418 = vsub.f32 %v2410, %v2416
    %v2419 = vmul.f32 %v2417, 1.442695
    %v2420 = vpow.pop %v2419
    %v2421 = vmul.f32 %v2418, 1.442695
    %v2422 = vpow.pop %v2421
    %v2423 = vsel %vm543, %v2420, 0.0
    %2424 = vadd.xlane.f32.xlu0 %v2423
    %v2425 = vpop.xlane.xlu0 %2424
    %v2426 = vsel %vm543, %v2422, 0.0
    %2427 = vadd.xlane.f32.xlu0 %v2426
    %v2428 = vpop.xlane.xlu0 %2427
    %v2429 = vrcp.pop %v2425
    %v2430 = vrcp.pop %v2428
    %v2431 = vmul.f32 %v2420, %v2429
    %v2432 = vmul.f32 %v2422, %v2430
    %2433 = vrot.lane.b32.xlu0 %v2247, 96
    %v2434 = vpop.permute.xlu0 %2433
    %v2437 = vsel %vm543, %v2431, 0
    %2439 = vmatprep.subr.mxu0 0.0
    %2440 = vmatpush1.msra.mxu0 0.0
    %2441 = vmatprep.subr.mxu0 0.0
    %2442 = vmatpush1.msra.mxu0 0.0
    %2443 = vmatprep.subr.mxu0 0.0
    %2444 = vmatpush1.msra.mxu0 0.0
    %2445 = vmatprep.subr.mxu0 0.0
    %2446 = vmatpush1.msra.mxu0 0.0
    %2447 = vmatprep.subr.mxu0 0.0
    %2448 = vmatpush1.msra.mxu0 0.0
    %2449 = vmatprep.subr.mxu0 0.0
    %2450 = vmatpush1.msra.mxu0 0.0
    %2451 = vmatprep.subr.mxu0 0.0
    %2452 = vmatpush1.msra.mxu0 0.0
    %2453 = vmatprep.subr.mxu0 0.0
    %2454 = vmatpush1.msra.mxu0 0.0
    %2455 = vmatprep.subr.mxu0 0.0
    %2456 = vmatpush1.msra.mxu0 0.0
    %2457 = vmatprep.subr.mxu0 0.0
    %2458 = vmatpush1.msra.mxu0 0.0
    %2459 = vmatprep.subr.mxu0 0.0
    %2460 = vmatpush1.msra.mxu0 0.0
    %2461 = vmatprep.subr.mxu0 0.0
    %2462 = vmatpush1.msra.mxu0 0.0
    %2463 = vmatprep.subr.mxu0 0.0
    %2464 = vmatpush1.msra.mxu0 0.0
    %2465 = vmatprep.subr.mxu0 0.0
    %2466 = vmatpush1.msra.mxu0 0.0
    %2467 = vmatprep.subr.mxu0 0.0
    %2468 = vmatpush1.msra.mxu0 0.0
    %2469 = vmatprep.subr.mxu0 0.0
    %2470 = vmatpush1.msra.mxu0 %v2434
    %2471 = vmatprep.subr.mxu0 0.0
    %2472 = vmatpush2.msra.mxu0 0.0
    %2473 = vmatprep.subr.mxu0 0.0
    %2474 = vmatpush2.msra.mxu0 0.0
    %2475 = vmatprep.subr.mxu0 0.0
    %2476 = vmatpush2.msra.mxu0 0.0
    %2477 = vmatprep.subr.mxu0 0.0
    %2478 = vmatpush2.msra.mxu0 0.0
    %2479 = vmatprep.subr.mxu0 0.0
    %2480 = vmatpush2.msra.mxu0 0.0
    %2481 = vmatprep.subr.mxu0 0.0
    %2482 = vmatpush2.msra.mxu0 0.0
    %2483 = vmatprep.subr.mxu0 0.0
    %2484 = vmatpush2.msra.mxu0 0.0
    %2485 = vmatprep.subr.mxu0 0.0
    %2486 = vmatpush2.msra.mxu0 0.0
    %2487 = vmatprep.subr.mxu0 0.0
    %2488 = vmatpush2.msra.mxu0 0.0
    %2489 = vmatprep.subr.mxu0 0.0
    %2490 = vmatpush2.msra.mxu0 0.0
    %2491 = vmatprep.subr.mxu0 0.0
    %2492 = vmatpush2.msra.mxu0 0.0
    %2493 = vmatprep.subr.mxu0 0.0
    %2494 = vmatpush2.msra.mxu0 0.0
    %2495 = vmatprep.subr.mxu0 0.0
    %2496 = vmatpush2.msra.mxu0 0.0
    %2497 = vmatprep.subr.mxu0 0.0
    %2498 = vmatpush2.msra.mxu0 0.0
    %2499 = vmatprep.subr.mxu0 0.0
    %2500 = vmatpush2.msra.mxu0 0.0
    %2501 = vmatprep.subr.mxu0 0.0
    %2502 = vmatpush2.msra.mxu0 0.0
    %2503 = vmatprep.mubr.f32.mxu0 0.0
    %2504 = vmatmul.mubr.f32.gmra.mxu0 %v2437
    %v2505 = vpop.f32.mrf.mxu0
    %v2506 = vadd.f32 0.0, %v2505
    %v2507 = vpop.f32.mrf.mxu0
    %2508 = vdwg.mxu0
    %2509 = vrot.lane.b32.xlu0 %v2252, 96
    %v2510 = vpop.permute.xlu0 %2509
    %v2513 = vsel %vm543, %v2432, 0
    %2515 = vmatprep.subr.mxu0 0.0
    %2516 = vmatpush1.msra.mxu0 0.0
    %2517 = vmatprep.subr.mxu0 0.0
    %2518 = vmatpush1.msra.mxu0 0.0
    %2519 = vmatprep.subr.mxu0 0.0
    %2520 = vmatpush1.msra.mxu0 0.0
    %2521 = vmatprep.subr.mxu0 0.0
    %2522 = vmatpush1.msra.mxu0 0.0
    %2523 = vmatprep.subr.mxu0 0.0
    %2524 = vmatpush1.msra.mxu0 0.0
    %2525 = vmatprep.subr.mxu0 0.0
    %2526 = vmatpush1.msra.mxu0 0.0
    %2527 = vmatprep.subr.mxu0 0.0
    %2528 = vmatpush1.msra.mxu0 0.0
    %2529 = vmatprep.subr.mxu0 0.0
    %2530 = vmatpush1.msra.mxu0 0.0
    %2531 = vmatprep.subr.mxu0 0.0
    %2532 = vmatpush1.msra.mxu0 0.0
    %2533 = vmatprep.subr.mxu0 0.0
    %2534 = vmatpush1.msra.mxu0 0.0
    %2535 = vmatprep.subr.mxu0 0.0
    %2536 = vmatpush1.msra.mxu0 0.0
    %2537 = vmatprep.subr.mxu0 0.0
    %2538 = vmatpush1.msra.mxu0 0.0
    %2539 = vmatprep.subr.mxu0 0.0
    %2540 = vmatpush1.msra.mxu0 0.0
    %2541 = vmatprep.subr.mxu0 0.0
    %2542 = vmatpush1.msra.mxu0 0.0
    %2543 = vmatprep.subr.mxu0 0.0
    %2544 = vmatpush1.msra.mxu0 0.0
    %2545 = vmatprep.subr.mxu0 0.0
    %2546 = vmatpush1.msra.mxu0 %v2510
    %2547 = vmatprep.subr.mxu0 0.0
    %2548 = vmatpush2.msra.mxu0 0.0
    %2549 = vmatprep.subr.mxu0 0.0
    %2550 = vmatpush2.msra.mxu0 0.0
    %2551 = vmatprep.subr.mxu0 0.0
    %2552 = vmatpush2.msra.mxu0 0.0
    %2553 = vmatprep.subr.mxu0 0.0
    %2554 = vmatpush2.msra.mxu0 0.0
    %2555 = vmatprep.subr.mxu0 0.0
    %2556 = vmatpush2.msra.mxu0 0.0
    %2557 = vmatprep.subr.mxu0 0.0
    %2558 = vmatpush2.msra.mxu0 0.0
    %2559 = vmatprep.subr.mxu0 0.0
    %2560 = vmatpush2.msra.mxu0 0.0
    %2561 = vmatprep.subr.mxu0 0.0
    %2562 = vmatpush2.msra.mxu0 0.0
    %2563 = vmatprep.subr.mxu0 0.0
    %2564 = vmatpush2.msra.mxu0 0.0
    %2565 = vmatprep.subr.mxu0 0.0
    %2566 = vmatpush2.msra.mxu0 0.0
    %2567 = vmatprep.subr.mxu0 0.0
    %2568 = vmatpush2.msra.mxu0 0.0
    %2569 = vmatprep.subr.mxu0 0.0
    %2570 = vmatpush2.msra.mxu0 0.0
    %2571 = vmatprep.subr.mxu0 0.0
    %2572 = vmatpush2.msra.mxu0 0.0
    %2573 = vmatprep.subr.mxu0 0.0
    %2574 = vmatpush2.msra.mxu0 0.0
    %2575 = vmatprep.subr.mxu0 0.0
    %2576 = vmatpush2.msra.mxu0 0.0
    %2577 = vmatprep.subr.mxu0 0.0
    %2578 = vmatpush2.msra.mxu0 0.0
    %2579 = vmatprep.mubr.f32.mxu0 0.0
    %2580 = vmatmul.mubr.f32.gmra.mxu0 %v2513
    %v2581 = vpop.f32.mrf.mxu0
    %v2582 = vadd.f32 0.0, %v2581
    %v2583 = vpop.f32.mrf.mxu0
    %2584 = vdwg.mxu0
    %2585 = vrot.lane.b32.xlu0 %v2155, 120
    %v2586 = vpop.permute.xlu0 %2585
    %2587 = vrot.lane.b32.xlu0 %v2247, 120
    %v2588 = vpop.permute.xlu0 %2587
    %v2589 = vsel %vm543, %v2586, 0
    %v2591 = vsel %vm543, %v2588, 0
    %2593 = vmatprep.subr.mxu0 0.0
    %2594 = vmatpush1.xpose.msra.mxu0 0.0
    %2595 = vmatprep.subr.mxu0 0.0
    %2596 = vmatpush1.xpose.msra.mxu0 0.0
    %2597 = vmatprep.subr.mxu0 0.0
    %2598 = vmatpush1.xpose.msra.mxu0 0.0
    %2599 = vmatprep.subr.mxu0 0.0
    %2600 = vmatpush1.xpose.msra.mxu0 0.0
    %2601 = vmatprep.subr.mxu0 0.0
    %2602 = vmatpush1.xpose.msra.mxu0 0.0
    %2603 = vmatprep.subr.mxu0 0.0
    %2604 = vmatpush1.xpose.msra.mxu0 0.0
    %2605 = vmatprep.subr.mxu0 0.0
    %2606 = vmatpush1.xpose.msra.mxu0 0.0
    %2607 = vmatprep.subr.mxu0 0.0
    %2608 = vmatpush1.xpose.msra.mxu0 0.0
    %2609 = vmatprep.subr.mxu0 0.0
    %2610 = vmatpush1.xpose.msra.mxu0 0.0
    %2611 = vmatprep.subr.mxu0 0.0
    %2612 = vmatpush1.xpose.msra.mxu0 0.0
    %2613 = vmatprep.subr.mxu0 0.0
    %2614 = vmatpush1.xpose.msra.mxu0 0.0
    %2615 = vmatprep.subr.mxu0 0.0
    %2616 = vmatpush1.xpose.msra.mxu0 0.0
    %2617 = vmatprep.subr.mxu0 0.0
    %2618 = vmatpush1.xpose.msra.mxu0 0.0
    %2619 = vmatprep.subr.mxu0 0.0
    %2620 = vmatpush1.xpose.msra.mxu0 0.0
    %2621 = vmatprep.subr.mxu0 0.0
    %2622 = vmatpush1.xpose.msra.mxu0 0.0
    %2623 = vmatprep.subr.mxu0 0.0
    %2624 = vmatpush1.xpose.msra.mxu0 %v2591
    %2625 = vmatprep.subr.mxu0 0.0
    %2626 = vmatpush2.xpose.msra.mxu0 0.0
    %2627 = vmatprep.subr.mxu0 0.0
    %2628 = vmatpush2.xpose.msra.mxu0 0.0
    %2629 = vmatprep.subr.mxu0 0.0
    %2630 = vmatpush2.xpose.msra.mxu0 0.0
    %2631 = vmatprep.subr.mxu0 0.0
    %2632 = vmatpush2.xpose.msra.mxu0 0.0
    %2633 = vmatprep.subr.mxu0 0.0
    %2634 = vmatpush2.xpose.msra.mxu0 0.0
    %2635 = vmatprep.subr.mxu0 0.0
    %2636 = vmatpush2.xpose.msra.mxu0 0.0
    %2637 = vmatprep.subr.mxu0 0.0
    %2638 = vmatpush2.xpose.msra.mxu0 0.0
    %2639 = vmatprep.subr.mxu0 0.0
    %2640 = vmatpush2.xpose.msra.mxu0 0.0
    %2641 = vmatprep.subr.mxu0 0.0
    %2642 = vmatpush2.xpose.msra.mxu0 0.0
    %2643 = vmatprep.subr.mxu0 0.0
    %2644 = vmatpush2.xpose.msra.mxu0 0.0
    %2645 = vmatprep.subr.mxu0 0.0
    %2646 = vmatpush2.xpose.msra.mxu0 0.0
    %2647 = vmatprep.subr.mxu0 0.0
    %2648 = vmatpush2.xpose.msra.mxu0 0.0
    %2649 = vmatprep.subr.mxu0 0.0
    %2650 = vmatpush2.xpose.msra.mxu0 0.0
    %2651 = vmatprep.subr.mxu0 0.0
    %2652 = vmatpush2.xpose.msra.mxu0 0.0
    %2653 = vmatprep.subr.mxu0 0.0
    %2654 = vmatpush2.xpose.msra.mxu0 0.0
    %2655 = vmatprep.subr.mxu0 0.0
    %2656 = vmatpush2.xpose.msra.mxu0 0.0
    %2657 = vmatprep.mubr.f32.mxu0 0.0
    %2658 = vmatmul.mubr.f32.gmra.mxu0 %v2589
    %v2659 = vpop.f32.mrf.mxu0
    %v2660 = vadd.f32 0.0, %v2659
    %v2661 = vpop.f32.mrf.mxu0
    %2662 = vdwg.mxu0
    %2663 = vrot.lane.b32.xlu0 %v2160, 120
    %v2664 = vpop.permute.xlu0 %2663
    %2665 = vrot.lane.b32.xlu0 %v2252, 120
    %v2666 = vpop.permute.xlu0 %2665
    %v2667 = vsel %vm543, %v2664, 0
    %v2669 = vsel %vm543, %v2666, 0
    %2671 = vmatprep.subr.mxu0 0.0
    %2672 = vmatpush1.xpose.msra.mxu0 0.0
    %2673 = vmatprep.subr.mxu0 0.0
    %2674 = vmatpush1.xpose.msra.mxu0 0.0
    %2675 = vmatprep.subr.mxu0 0.0
    %2676 = vmatpush1.xpose.msra.mxu0 0.0
    %2677 = vmatprep.subr.mxu0 0.0
    %2678 = vmatpush1.xpose.msra.mxu0 0.0
    %2679 = vmatprep.subr.mxu0 0.0
    %2680 = vmatpush1.xpose.msra.mxu0 0.0
    %2681 = vmatprep.subr.mxu0 0.0
    %2682 = vmatpush1.xpose.msra.mxu0 0.0
    %2683 = vmatprep.subr.mxu0 0.0
    %2684 = vmatpush1.xpose.msra.mxu0 0.0
    %2685 = vmatprep.subr.mxu0 0.0
    %2686 = vmatpush1.xpose.msra.mxu0 0.0
    %2687 = vmatprep.subr.mxu0 0.0
    %2688 = vmatpush1.xpose.msra.mxu0 0.0
    %2689 = vmatprep.subr.mxu0 0.0
    %2690 = vmatpush1.xpose.msra.mxu0 0.0
    %2691 = vmatprep.subr.mxu0 0.0
    %2692 = vmatpush1.xpose.msra.mxu0 0.0
    %2693 = vmatprep.subr.mxu0 0.0
    %2694 = vmatpush1.xpose.msra.mxu0 0.0
    %2695 = vmatprep.subr.mxu0 0.0
    %2696 = vmatpush1.xpose.msra.mxu0 0.0
    %2697 = vmatprep.subr.mxu0 0.0
    %2698 = vmatpush1.xpose.msra.mxu0 0.0
    %2699 = vmatprep.subr.mxu0 0.0
    %2700 = vmatpush1.xpose.msra.mxu0 0.0
    %2701 = vmatprep.subr.mxu0 0.0
    %2702 = vmatpush1.xpose.msra.mxu0 %v2669
    %2703 = vmatprep.subr.mxu0 0.0
    %2704 = vmatpush2.xpose.msra.mxu0 0.0
    %2705 = vmatprep.subr.mxu0 0.0
    %2706 = vmatpush2.xpose.msra.mxu0 0.0
    %2707 = vmatprep.subr.mxu0 0.0
    %2708 = vmatpush2.xpose.msra.mxu0 0.0
    %2709 = vmatprep.subr.mxu0 0.0
    %2710 = vmatpush2.xpose.msra.mxu0 0.0
    %2711 = vmatprep.subr.mxu0 0.0
    %2712 = vmatpush2.xpose.msra.mxu0 0.0
    %2713 = vmatprep.subr.mxu0 0.0
    %2714 = vmatpush2.xpose.msra.mxu0 0.0
    %2715 = vmatprep.subr.mxu0 0.0
    %2716 = vmatpush2.xpose.msra.mxu0 0.0
    %2717 = vmatprep.subr.mxu0 0.0
    %2718 = vmatpush2.xpose.msra.mxu0 0.0
    %2719 = vmatprep.subr.mxu0 0.0
    %2720 = vmatpush2.xpose.msra.mxu0 0.0
    %2721 = vmatprep.subr.mxu0 0.0
    %2722 = vmatpush2.xpose.msra.mxu0 0.0
    %2723 = vmatprep.subr.mxu0 0.0
    %2724 = vmatpush2.xpose.msra.mxu0 0.0
    %2725 = vmatprep.subr.mxu0 0.0
    %2726 = vmatpush2.xpose.msra.mxu0 0.0
    %2727 = vmatprep.subr.mxu0 0.0
    %2728 = vmatpush2.xpose.msra.mxu0 0.0
    %2729 = vmatprep.subr.mxu0 0.0
    %2730 = vmatpush2.xpose.msra.mxu0 0.0
    %2731 = vmatprep.subr.mxu0 0.0
    %2732 = vmatpush2.xpose.msra.mxu0 0.0
    %2733 = vmatprep.subr.mxu0 0.0
    %2734 = vmatpush2.xpose.msra.mxu0 0.0
    %2735 = vmatprep.mubr.f32.mxu0 0.0
    %2736 = vmatmul.mubr.f32.gmra.mxu0 %v2667
    %v2737 = vpop.f32.mrf.mxu0
    %v2738 = vadd.f32 0.0, %v2737
    %v2739 = vpop.f32.mrf.mxu0
    %2740 = vdwg.mxu0
    %v2741 = vmul.f32 %v2660, 0.35355338
    %v2742 = vmul.f32 %v2738, 0.35355338
    %v2743 = vsel %vm443, -1e+09, %v2741
    %v2744 = vsel %vm444, -1e+09, %v2742
    %v2745 = vsel %vm543, %v2743, -inf
    %2746 = vmax.xlane.f32.xlu0 %v2745
    %v2747 = vpop.xlane.xlu0 %2746
    %v2748 = vsel %vm543, %v2744, -inf
    %2749 = vmax.xlane.f32.xlu0 %v2748
    %v2750 = vpop.xlane.xlu0 %2749
    %v2751 = vsub.f32 %v2743, %v2747
    %v2752 = vsub.f32 %v2744, %v2750
    %v2753 = vmul.f32 %v2751, 1.442695
    %v2754 = vpow.pop %v2753
    %v2755 = vmul.f32 %v2752, 1.442695
    %v2756 = vpow.pop %v2755
    %v2757 = vsel %vm543, %v2754, 0.0
    %2758 = vadd.xlane.f32.xlu0 %v2757
    %v2759 = vpop.xlane.xlu0 %2758
    %v2760 = vsel %vm543, %v2756, 0.0
    %2761 = vadd.xlane.f32.xlu0 %v2760
    %v2762 = vpop.xlane.xlu0 %2761
    %v2763 = vrcp.pop %v2759
    %v2764 = vrcp.pop %v2762
    %v2765 = vmul.f32 %v2754, %v2763
    %v2766 = vmul.f32 %v2756, %v2764
    %2767 = vrot.lane.b32.xlu0 %v2247, 88
    %v2768 = vpop.permute.xlu0 %2767
    %v2771 = vsel %vm543, %v2765, 0
    %2773 = vmatprep.subr.mxu0 0.0
    %2774 = vmatpush1.msra.mxu0 0.0
    %2775 = vmatprep.subr.mxu0 0.0
    %2776 = vmatpush1.msra.mxu0 0.0
    %2777 = vmatprep.subr.mxu0 0.0
    %2778 = vmatpush1.msra.mxu0 0.0
    %2779 = vmatprep.subr.mxu0 0.0
    %2780 = vmatpush1.msra.mxu0 0.0
    %2781 = vmatprep.subr.mxu0 0.0
    %2782 = vmatpush1.msra.mxu0 0.0
    %2783 = vmatprep.subr.mxu0 0.0
    %2784 = vmatpush1.msra.mxu0 0.0
    %2785 = vmatprep.subr.mxu0 0.0
    %2786 = vmatpush1.msra.mxu0 0.0
    %2787 = vmatprep.subr.mxu0 0.0
    %2788 = vmatpush1.msra.mxu0 0.0
    %2789 = vmatprep.subr.mxu0 0.0
    %2790 = vmatpush1.msra.mxu0 0.0
    %2791 = vmatprep.subr.mxu0 0.0
    %2792 = vmatpush1.msra.mxu0 0.0
    %2793 = vmatprep.subr.mxu0 0.0
    %2794 = vmatpush1.msra.mxu0 0.0
    %2795 = vmatprep.subr.mxu0 0.0
    %2796 = vmatpush1.msra.mxu0 0.0
    %2797 = vmatprep.subr.mxu0 0.0
    %2798 = vmatpush1.msra.mxu0 0.0
    %2799 = vmatprep.subr.mxu0 0.0
    %2800 = vmatpush1.msra.mxu0 0.0
    %2801 = vmatprep.subr.mxu0 0.0
    %2802 = vmatpush1.msra.mxu0 0.0
    %2803 = vmatprep.subr.mxu0 0.0
    %2804 = vmatpush1.msra.mxu0 %v2768
    %2805 = vmatprep.subr.mxu0 0.0
    %2806 = vmatpush2.msra.mxu0 0.0
    %2807 = vmatprep.subr.mxu0 0.0
    %2808 = vmatpush2.msra.mxu0 0.0
    %2809 = vmatprep.subr.mxu0 0.0
    %2810 = vmatpush2.msra.mxu0 0.0
    %2811 = vmatprep.subr.mxu0 0.0
    %2812 = vmatpush2.msra.mxu0 0.0
    %2813 = vmatprep.subr.mxu0 0.0
    %2814 = vmatpush2.msra.mxu0 0.0
    %2815 = vmatprep.subr.mxu0 0.0
    %2816 = vmatpush2.msra.mxu0 0.0
    %2817 = vmatprep.subr.mxu0 0.0
    %2818 = vmatpush2.msra.mxu0 0.0
    %2819 = vmatprep.subr.mxu0 0.0
    %2820 = vmatpush2.msra.mxu0 0.0
    %2821 = vmatprep.subr.mxu0 0.0
    %2822 = vmatpush2.msra.mxu0 0.0
    %2823 = vmatprep.subr.mxu0 0.0
    %2824 = vmatpush2.msra.mxu0 0.0
    %2825 = vmatprep.subr.mxu0 0.0
    %2826 = vmatpush2.msra.mxu0 0.0
    %2827 = vmatprep.subr.mxu0 0.0
    %2828 = vmatpush2.msra.mxu0 0.0
    %2829 = vmatprep.subr.mxu0 0.0
    %2830 = vmatpush2.msra.mxu0 0.0
    %2831 = vmatprep.subr.mxu0 0.0
    %2832 = vmatpush2.msra.mxu0 0.0
    %2833 = vmatprep.subr.mxu0 0.0
    %2834 = vmatpush2.msra.mxu0 0.0
    %2835 = vmatprep.subr.mxu0 0.0
    %2836 = vmatpush2.msra.mxu0 0.0
    %2837 = vmatprep.mubr.f32.mxu0 0.0
    %2838 = vmatmul.mubr.f32.gmra.mxu0 %v2771
    %v2839 = vpop.f32.mrf.mxu0
    %v2840 = vadd.f32 0.0, %v2839
    %v2841 = vpop.f32.mrf.mxu0
    %2842 = vdwg.mxu0
    %2843 = vrot.lane.b32.xlu0 %v2252, 88
    %v2844 = vpop.permute.xlu0 %2843
    %v2847 = vsel %vm543, %v2766, 0
    %2849 = vmatprep.subr.mxu0 0.0
    %2850 = vmatpush1.msra.mxu0 0.0
    %2851 = vmatprep.subr.mxu0 0.0
    %2852 = vmatpush1.msra.mxu0 0.0
    %2853 = vmatprep.subr.mxu0 0.0
    %2854 = vmatpush1.msra.mxu0 0.0
    %2855 = vmatprep.subr.mxu0 0.0
    %2856 = vmatpush1.msra.mxu0 0.0
    %2857 = vmatprep.subr.mxu0 0.0
    %2858 = vmatpush1.msra.mxu0 0.0
    %2859 = vmatprep.subr.mxu0 0.0
    %2860 = vmatpush1.msra.mxu0 0.0
    %2861 = vmatprep.subr.mxu0 0.0
    %2862 = vmatpush1.msra.mxu0 0.0
    %2863 = vmatprep.subr.mxu0 0.0
    %2864 = vmatpush1.msra.mxu0 0.0
    %2865 = vmatprep.subr.mxu0 0.0
    %2866 = vmatpush1.msra.mxu0 0.0
    %2867 = vmatprep.subr.mxu0 0.0
    %2868 = vmatpush1.msra.mxu0 0.0
    %2869 = vmatprep.subr.mxu0 0.0
    %2870 = vmatpush1.msra.mxu0 0.0
    %2871 = vmatprep.subr.mxu0 0.0
    %2872 = vmatpush1.msra.mxu0 0.0
    %2873 = vmatprep.subr.mxu0 0.0
    %2874 = vmatpush1.msra.mxu0 0.0
    %2875 = vmatprep.subr.mxu0 0.0
    %2876 = vmatpush1.msra.mxu0 0.0
    %2877 = vmatprep.subr.mxu0 0.0
    %2878 = vmatpush1.msra.mxu0 0.0
    %2879 = vmatprep.subr.mxu0 0.0
    %2880 = vmatpush1.msra.mxu0 %v2844
    %2881 = vmatprep.subr.mxu0 0.0
    %2882 = vmatpush2.msra.mxu0 0.0
    %2883 = vmatprep.subr.mxu0 0.0
    %2884 = vmatpush2.msra.mxu0 0.0
    %2885 = vmatprep.subr.mxu0 0.0
    %2886 = vmatpush2.msra.mxu0 0.0
    %2887 = vmatprep.subr.mxu0 0.0
    %2888 = vmatpush2.msra.mxu0 0.0
    %2889 = vmatprep.subr.mxu0 0.0
    %2890 = vmatpush2.msra.mxu0 0.0
    %2891 = vmatprep.subr.mxu0 0.0
    %2892 = vmatpush2.msra.mxu0 0.0
    %2893 = vmatprep.subr.mxu0 0.0
    %2894 = vmatpush2.msra.mxu0 0.0
    %2895 = vmatprep.subr.mxu0 0.0
    %2896 = vmatpush2.msra.mxu0 0.0
    %2897 = vmatprep.subr.mxu0 0.0
    %2898 = vmatpush2.msra.mxu0 0.0
    %2899 = vmatprep.subr.mxu0 0.0
    %2900 = vmatpush2.msra.mxu0 0.0
    %2901 = vmatprep.subr.mxu0 0.0
    %2902 = vmatpush2.msra.mxu0 0.0
    %2903 = vmatprep.subr.mxu0 0.0
    %2904 = vmatpush2.msra.mxu0 0.0
    %2905 = vmatprep.subr.mxu0 0.0
    %2906 = vmatpush2.msra.mxu0 0.0
    %2907 = vmatprep.subr.mxu0 0.0
    %2908 = vmatpush2.msra.mxu0 0.0
    %2909 = vmatprep.subr.mxu0 0.0
    %2910 = vmatpush2.msra.mxu0 0.0
    %2911 = vmatprep.subr.mxu0 0.0
    %2912 = vmatpush2.msra.mxu0 0.0
    %2913 = vmatprep.mubr.f32.mxu0 0.0
    %2914 = vmatmul.mubr.f32.gmra.mxu0 %v2847
    %v2915 = vpop.f32.mrf.mxu0
    %v2916 = vadd.f32 0.0, %v2915
    %v2917 = vpop.f32.mrf.mxu0
    %2918 = vdwg.mxu0
    %2919 = vrot.lane.b32.xlu0 %v2155, 112
    %v2920 = vpop.permute.xlu0 %2919
    %2921 = vrot.lane.b32.xlu0 %v2247, 112
    %v2922 = vpop.permute.xlu0 %2921
    %v2923 = vsel %vm543, %v2920, 0
    %v2925 = vsel %vm543, %v2922, 0
    %2927 = vmatprep.subr.mxu0 0.0
    %2928 = vmatpush1.xpose.msra.mxu0 0.0
    %2929 = vmatprep.subr.mxu0 0.0
    %2930 = vmatpush1.xpose.msra.mxu0 0.0
    %2931 = vmatprep.subr.mxu0 0.0
    %2932 = vmatpush1.xpose.msra.mxu0 0.0
    %2933 = vmatprep.subr.mxu0 0.0
    %2934 = vmatpush1.xpose.msra.mxu0 0.0
    %2935 = vmatprep.subr.mxu0 0.0
    %2936 = vmatpush1.xpose.msra.mxu0 0.0
    %2937 = vmatprep.subr.mxu0 0.0
    %2938 = vmatpush1.xpose.msra.mxu0 0.0
    %2939 = vmatprep.subr.mxu0 0.0
    %2940 = vmatpush1.xpose.msra.mxu0 0.0
    %2941 = vmatprep.subr.mxu0 0.0
    %2942 = vmatpush1.xpose.msra.mxu0 0.0
    %2943 = vmatprep.subr.mxu0 0.0
    %2944 = vmatpush1.xpose.msra.mxu0 0.0
    %2945 = vmatprep.subr.mxu0 0.0
    %2946 = vmatpush1.xpose.msra.mxu0 0.0
    %2947 = vmatprep.subr.mxu0 0.0
    %2948 = vmatpush1.xpose.msra.mxu0 0.0
    %2949 = vmatprep.subr.mxu0 0.0
    %2950 = vmatpush1.xpose.msra.mxu0 0.0
    %2951 = vmatprep.subr.mxu0 0.0
    %2952 = vmatpush1.xpose.msra.mxu0 0.0
    %2953 = vmatprep.subr.mxu0 0.0
    %2954 = vmatpush1.xpose.msra.mxu0 0.0
    %2955 = vmatprep.subr.mxu0 0.0
    %2956 = vmatpush1.xpose.msra.mxu0 0.0
    %2957 = vmatprep.subr.mxu0 0.0
    %2958 = vmatpush1.xpose.msra.mxu0 %v2925
    %2959 = vmatprep.subr.mxu0 0.0
    %2960 = vmatpush2.xpose.msra.mxu0 0.0
    %2961 = vmatprep.subr.mxu0 0.0
    %2962 = vmatpush2.xpose.msra.mxu0 0.0
    %2963 = vmatprep.subr.mxu0 0.0
    %2964 = vmatpush2.xpose.msra.mxu0 0.0
    %2965 = vmatprep.subr.mxu0 0.0
    %2966 = vmatpush2.xpose.msra.mxu0 0.0
    %2967 = vmatprep.subr.mxu0 0.0
    %2968 = vmatpush2.xpose.msra.mxu0 0.0
    %2969 = vmatprep.subr.mxu0 0.0
    %2970 = vmatpush2.xpose.msra.mxu0 0.0
    %2971 = vmatprep.subr.mxu0 0.0
    %2972 = vmatpush2.xpose.msra.mxu0 0.0
    %2973 = vmatprep.subr.mxu0 0.0
    %2974 = vmatpush2.xpose.msra.mxu0 0.0
    %2975 = vmatprep.subr.mxu0 0.0
    %2976 = vmatpush2.xpose.msra.mxu0 0.0
    %2977 = vmatprep.subr.mxu0 0.0
    %2978 = vmatpush2.xpose.msra.mxu0 0.0
    %2979 = vmatprep.subr.mxu0 0.0
    %2980 = vmatpush2.xpose.msra.mxu0 0.0
    %2981 = vmatprep.subr.mxu0 0.0
    %2982 = vmatpush2.xpose.msra.mxu0 0.0
    %2983 = vmatprep.subr.mxu0 0.0
    %2984 = vmatpush2.xpose.msra.mxu0 0.0
    %2985 = vmatprep.subr.mxu0 0.0
    %2986 = vmatpush2.xpose.msra.mxu0 0.0
    %2987 = vmatprep.subr.mxu0 0.0
    %2988 = vmatpush2.xpose.msra.mxu0 0.0
    %2989 = vmatprep.subr.mxu0 0.0
    %2990 = vmatpush2.xpose.msra.mxu0 0.0
    %2991 = vmatprep.mubr.f32.mxu0 0.0
    %2992 = vmatmul.mubr.f32.gmra.mxu0 %v2923
    %v2993 = vpop.f32.mrf.mxu0
    %v2994 = vadd.f32 0.0, %v2993
    %v2995 = vpop.f32.mrf.mxu0
    %2996 = vdwg.mxu0
    %2997 = vrot.lane.b32.xlu0 %v2160, 112
    %v2998 = vpop.permute.xlu0 %2997
    %2999 = vrot.lane.b32.xlu0 %v2252, 112
    %v3000 = vpop.permute.xlu0 %2999
    %v3001 = vsel %vm543, %v2998, 0
    %v3003 = vsel %vm543, %v3000, 0
    %3005 = vmatprep.subr.mxu0 0.0
    %3006 = vmatpush1.xpose.msra.mxu0 0.0
    %3007 = vmatprep.subr.mxu0 0.0
    %3008 = vmatpush1.xpose.msra.mxu0 0.0
    %3009 = vmatprep.subr.mxu0 0.0
    %3010 = vmatpush1.xpose.msra.mxu0 0.0
    %3011 = vmatprep.subr.mxu0 0.0
    %3012 = vmatpush1.xpose.msra.mxu0 0.0
    %3013 = vmatprep.subr.mxu0 0.0
    %3014 = vmatpush1.xpose.msra.mxu0 0.0
    %3015 = vmatprep.subr.mxu0 0.0
    %3016 = vmatpush1.xpose.msra.mxu0 0.0
    %3017 = vmatprep.subr.mxu0 0.0
    %3018 = vmatpush1.xpose.msra.mxu0 0.0
    %3019 = vmatprep.subr.mxu0 0.0
    %3020 = vmatpush1.xpose.msra.mxu0 0.0
    %3021 = vmatprep.subr.mxu0 0.0
    %3022 = vmatpush1.xpose.msra.mxu0 0.0
    %3023 = vmatprep.subr.mxu0 0.0
    %3024 = vmatpush1.xpose.msra.mxu0 0.0
    %3025 = vmatprep.subr.mxu0 0.0
    %3026 = vmatpush1.xpose.msra.mxu0 0.0
    %3027 = vmatprep.subr.mxu0 0.0
    %3028 = vmatpush1.xpose.msra.mxu0 0.0
    %3029 = vmatprep.subr.mxu0 0.0
    %3030 = vmatpush1.xpose.msra.mxu0 0.0
    %3031 = vmatprep.subr.mxu0 0.0
    %3032 = vmatpush1.xpose.msra.mxu0 0.0
    %3033 = vmatprep.subr.mxu0 0.0
    %3034 = vmatpush1.xpose.msra.mxu0 0.0
    %3035 = vmatprep.subr.mxu0 0.0
    %3036 = vmatpush1.xpose.msra.mxu0 %v3003
    %3037 = vmatprep.subr.mxu0 0.0
    %3038 = vmatpush2.xpose.msra.mxu0 0.0
    %3039 = vmatprep.subr.mxu0 0.0
    %3040 = vmatpush2.xpose.msra.mxu0 0.0
    %3041 = vmatprep.subr.mxu0 0.0
    %3042 = vmatpush2.xpose.msra.mxu0 0.0
    %3043 = vmatprep.subr.mxu0 0.0
    %3044 = vmatpush2.xpose.msra.mxu0 0.0
    %3045 = vmatprep.subr.mxu0 0.0
    %3046 = vmatpush2.xpose.msra.mxu0 0.0
    %3047 = vmatprep.subr.mxu0 0.0
    %3048 = vmatpush2.xpose.msra.mxu0 0.0
    %3049 = vmatprep.subr.mxu0 0.0
    %3050 = vmatpush2.xpose.msra.mxu0 0.0
    %3051 = vmatprep.subr.mxu0 0.0
    %3052 = vmatpush2.xpose.msra.mxu0 0.0
    %3053 = vmatprep.subr.mxu0 0.0
    %3054 = vmatpush2.xpose.msra.mxu0 0.0
    %3055 = vmatprep.subr.mxu0 0.0
    %3056 = vmatpush2.xpose.msra.mxu0 0.0
    %3057 = vmatprep.subr.mxu0 0.0
    %3058 = vmatpush2.xpose.msra.mxu0 0.0
    %3059 = vmatprep.subr.mxu0 0.0
    %3060 = vmatpush2.xpose.msra.mxu0 0.0
    %3061 = vmatprep.subr.mxu0 0.0
    %3062 = vmatpush2.xpose.msra.mxu0 0.0
    %3063 = vmatprep.subr.mxu0 0.0
    %3064 = vmatpush2.xpose.msra.mxu0 0.0
    %3065 = vmatprep.subr.mxu0 0.0
    %3066 = vmatpush2.xpose.msra.mxu0 0.0
    %3067 = vmatprep.subr.mxu0 0.0
    %3068 = vmatpush2.xpose.msra.mxu0 0.0
    %3069 = vmatprep.mubr.f32.mxu0 0.0
    %3070 = vmatmul.mubr.f32.gmra.mxu0 %v3001
    %v3071 = vpop.f32.mrf.mxu0
    %v3072 = vadd.f32 0.0, %v3071
    %v3073 = vpop.f32.mrf.mxu0
    %3074 = vdwg.mxu0
    %v3075 = vmul.f32 %v2994, 0.35355338
    %v3076 = vmul.f32 %v3072, 0.35355338
    %v3077 = vsel %vm443, -1e+09, %v3075
    %v3078 = vsel %vm444, -1e+09, %v3076
    %v3079 = vsel %vm543, %v3077, -inf
    %3080 = vmax.xlane.f32.xlu0 %v3079
    %v3081 = vpop.xlane.xlu0 %3080
    %v3082 = vsel %vm543, %v3078, -inf
    %3083 = vmax.xlane.f32.xlu0 %v3082
    %v3084 = vpop.xlane.xlu0 %3083
    %v3085 = vsub.f32 %v3077, %v3081
    %v3086 = vsub.f32 %v3078, %v3084
    %v3087 = vmul.f32 %v3085, 1.442695
    %v3088 = vpow.pop %v3087
    %v3089 = vmul.f32 %v3086, 1.442695
    %v3090 = vpow.pop %v3089
    %v3091 = vsel %vm543, %v3088, 0.0
    %3092 = vadd.xlane.f32.xlu0 %v3091
    %v3093 = vpop.xlane.xlu0 %3092
    %v3094 = vsel %vm543, %v3090, 0.0
    %3095 = vadd.xlane.f32.xlu0 %v3094
    %v3096 = vpop.xlane.xlu0 %3095
    %v3097 = vrcp.pop %v3093
    %v3098 = vrcp.pop %v3096
    %v3099 = vmul.f32 %v3088, %v3097
    %v3100 = vmul.f32 %v3090, %v3098
    %3101 = vrot.lane.b32.xlu0 %v2247, 80
    %v3102 = vpop.permute.xlu0 %3101
    %v3105 = vsel %vm543, %v3099, 0
    %3107 = vmatprep.subr.mxu0 0.0
    %3108 = vmatpush1.msra.mxu0 0.0
    %3109 = vmatprep.subr.mxu0 0.0
    %3110 = vmatpush1.msra.mxu0 0.0
    %3111 = vmatprep.subr.mxu0 0.0
    %3112 = vmatpush1.msra.mxu0 0.0
    %3113 = vmatprep.subr.mxu0 0.0
    %3114 = vmatpush1.msra.mxu0 0.0
    %3115 = vmatprep.subr.mxu0 0.0
    %3116 = vmatpush1.msra.mxu0 0.0
    %3117 = vmatprep.subr.mxu0 0.0
    %3118 = vmatpush1.msra.mxu0 0.0
    %3119 = vmatprep.subr.mxu0 0.0
    %3120 = vmatpush1.msra.mxu0 0.0
    %3121 = vmatprep.subr.mxu0 0.0
    %3122 = vmatpush1.msra.mxu0 0.0
    %3123 = vmatprep.subr.mxu0 0.0
    %3124 = vmatpush1.msra.mxu0 0.0
    %3125 = vmatprep.subr.mxu0 0.0
    %3126 = vmatpush1.msra.mxu0 0.0
    %3127 = vmatprep.subr.mxu0 0.0
    %3128 = vmatpush1.msra.mxu0 0.0
    %3129 = vmatprep.subr.mxu0 0.0
    %3130 = vmatpush1.msra.mxu0 0.0
    %3131 = vmatprep.subr.mxu0 0.0
    %3132 = vmatpush1.msra.mxu0 0.0
    %3133 = vmatprep.subr.mxu0 0.0
    %3134 = vmatpush1.msra.mxu0 0.0
    %3135 = vmatprep.subr.mxu0 0.0
    %3136 = vmatpush1.msra.mxu0 0.0
    %3137 = vmatprep.subr.mxu0 0.0
    %3138 = vmatpush1.msra.mxu0 %v3102
    %3139 = vmatprep.subr.mxu0 0.0
    %3140 = vmatpush2.msra.mxu0 0.0
    %3141 = vmatprep.subr.mxu0 0.0
    %3142 = vmatpush2.msra.mxu0 0.0
    %3143 = vmatprep.subr.mxu0 0.0
    %3144 = vmatpush2.msra.mxu0 0.0
    %3145 = vmatprep.subr.mxu0 0.0
    %3146 = vmatpush2.msra.mxu0 0.0
    %3147 = vmatprep.subr.mxu0 0.0
    %3148 = vmatpush2.msra.mxu0 0.0
    %3149 = vmatprep.subr.mxu0 0.0
    %3150 = vmatpush2.msra.mxu0 0.0
    %3151 = vmatprep.subr.mxu0 0.0
    %3152 = vmatpush2.msra.mxu0 0.0
    %3153 = vmatprep.subr.mxu0 0.0
    %3154 = vmatpush2.msra.mxu0 0.0
    %3155 = vmatprep.subr.mxu0 0.0
    %3156 = vmatpush2.msra.mxu0 0.0
    %3157 = vmatprep.subr.mxu0 0.0
    %3158 = vmatpush2.msra.mxu0 0.0
    %3159 = vmatprep.subr.mxu0 0.0
    %3160 = vmatpush2.msra.mxu0 0.0
    %3161 = vmatprep.subr.mxu0 0.0
    %3162 = vmatpush2.msra.mxu0 0.0
    %3163 = vmatprep.subr.mxu0 0.0
    %3164 = vmatpush2.msra.mxu0 0.0
    %3165 = vmatprep.subr.mxu0 0.0
    %3166 = vmatpush2.msra.mxu0 0.0
    %3167 = vmatprep.subr.mxu0 0.0
    %3168 = vmatpush2.msra.mxu0 0.0
    %3169 = vmatprep.subr.mxu0 0.0
    %3170 = vmatpush2.msra.mxu0 0.0
    %3171 = vmatprep.mubr.f32.mxu0 0.0
    %3172 = vmatmul.mubr.f32.gmra.mxu0 %v3105
    %v3173 = vpop.f32.mrf.mxu0
    %v3174 = vadd.f32 0.0, %v3173
    %v3175 = vpop.f32.mrf.mxu0
    %3176 = vdwg.mxu0
    %3177 = vrot.lane.b32.xlu0 %v2252, 80
    %v3178 = vpop.permute.xlu0 %3177
    %v3181 = vsel %vm543, %v3100, 0
    %3183 = vmatprep.subr.mxu0 0.0
    %3184 = vmatpush1.msra.mxu0 0.0
    %3185 = vmatprep.subr.mxu0 0.0
    %3186 = vmatpush1.msra.mxu0 0.0
    %3187 = vmatprep.subr.mxu0 0.0
    %3188 = vmatpush1.msra.mxu0 0.0
    %3189 = vmatprep.subr.mxu0 0.0
    %3190 = vmatpush1.msra.mxu0 0.0
    %3191 = vmatprep.subr.mxu0 0.0
    %3192 = vmatpush1.msra.mxu0 0.0
    %3193 = vmatprep.subr.mxu0 0.0
    %3194 = vmatpush1.msra.mxu0 0.0
    %3195 = vmatprep.subr.mxu0 0.0
    %3196 = vmatpush1.msra.mxu0 0.0
    %3197 = vmatprep.subr.mxu0 0.0
    %3198 = vmatpush1.msra.mxu0 0.0
    %3199 = vmatprep.subr.mxu0 0.0
    %3200 = vmatpush1.msra.mxu0 0.0
    %3201 = vmatprep.subr.mxu0 0.0
    %3202 = vmatpush1.msra.mxu0 0.0
    %3203 = vmatprep.subr.mxu0 0.0
    %3204 = vmatpush1.msra.mxu0 0.0
    %3205 = vmatprep.subr.mxu0 0.0
    %3206 = vmatpush1.msra.mxu0 0.0
    %3207 = vmatprep.subr.mxu0 0.0
    %3208 = vmatpush1.msra.mxu0 0.0
    %3209 = vmatprep.subr.mxu0 0.0
    %3210 = vmatpush1.msra.mxu0 0.0
    %3211 = vmatprep.subr.mxu0 0.0
    %3212 = vmatpush1.msra.mxu0 0.0
    %3213 = vmatprep.subr.mxu0 0.0
    %3214 = vmatpush1.msra.mxu0 %v3178
    %3215 = vmatprep.subr.mxu0 0.0
    %3216 = vmatpush2.msra.mxu0 0.0
    %3217 = vmatprep.subr.mxu0 0.0
    %3218 = vmatpush2.msra.mxu0 0.0
    %3219 = vmatprep.subr.mxu0 0.0
    %3220 = vmatpush2.msra.mxu0 0.0
    %3221 = vmatprep.subr.mxu0 0.0
    %3222 = vmatpush2.msra.mxu0 0.0
    %3223 = vmatprep.subr.mxu0 0.0
    %3224 = vmatpush2.msra.mxu0 0.0
    %3225 = vmatprep.subr.mxu0 0.0
    %3226 = vmatpush2.msra.mxu0 0.0
    %3227 = vmatprep.subr.mxu0 0.0
    %3228 = vmatpush2.msra.mxu0 0.0
    %3229 = vmatprep.subr.mxu0 0.0
    %3230 = vmatpush2.msra.mxu0 0.0
    %3231 = vmatprep.subr.mxu0 0.0
    %3232 = vmatpush2.msra.mxu0 0.0
    %3233 = vmatprep.subr.mxu0 0.0
    %3234 = vmatpush2.msra.mxu0 0.0
    %3235 = vmatprep.subr.mxu0 0.0
    %3236 = vmatpush2.msra.mxu0 0.0
    %3237 = vmatprep.subr.mxu0 0.0
    %3238 = vmatpush2.msra.mxu0 0.0
    %3239 = vmatprep.subr.mxu0 0.0
    %3240 = vmatpush2.msra.mxu0 0.0
    %3241 = vmatprep.subr.mxu0 0.0
    %3242 = vmatpush2.msra.mxu0 0.0
    %3243 = vmatprep.subr.mxu0 0.0
    %3244 = vmatpush2.msra.mxu0 0.0
    %3245 = vmatprep.subr.mxu0 0.0
    %3246 = vmatpush2.msra.mxu0 0.0
    %3247 = vmatprep.mubr.f32.mxu0 0.0
    %3248 = vmatmul.mubr.f32.gmra.mxu0 %v3181
    %v3249 = vpop.f32.mrf.mxu0
    %v3250 = vadd.f32 0.0, %v3249
    %v3251 = vpop.f32.mrf.mxu0
    %3252 = vdwg.mxu0
    %3253 = vrot.lane.b32.xlu0 %v2155, 104
    %v3254 = vpop.permute.xlu0 %3253
    %3255 = vrot.lane.b32.xlu0 %v2247, 104
    %v3256 = vpop.permute.xlu0 %3255
    %v3257 = vsel %vm543, %v3254, 0
    %v3259 = vsel %vm543, %v3256, 0
    %3261 = vmatprep.subr.mxu0 0.0
    %3262 = vmatpush1.xpose.msra.mxu0 0.0
    %3263 = vmatprep.subr.mxu0 0.0
    %3264 = vmatpush1.xpose.msra.mxu0 0.0
    %3265 = vmatprep.subr.mxu0 0.0
    %3266 = vmatpush1.xpose.msra.mxu0 0.0
    %3267 = vmatprep.subr.mxu0 0.0
    %3268 = vmatpush1.xpose.msra.mxu0 0.0
    %3269 = vmatprep.subr.mxu0 0.0
    %3270 = vmatpush1.xpose.msra.mxu0 0.0
    %3271 = vmatprep.subr.mxu0 0.0
    %3272 = vmatpush1.xpose.msra.mxu0 0.0
    %3273 = vmatprep.subr.mxu0 0.0
    %3274 = vmatpush1.xpose.msra.mxu0 0.0
    %3275 = vmatprep.subr.mxu0 0.0
    %3276 = vmatpush1.xpose.msra.mxu0 0.0
    %3277 = vmatprep.subr.mxu0 0.0
    %3278 = vmatpush1.xpose.msra.mxu0 0.0
    %3279 = vmatprep.subr.mxu0 0.0
    %3280 = vmatpush1.xpose.msra.mxu0 0.0
    %3281 = vmatprep.subr.mxu0 0.0
    %3282 = vmatpush1.xpose.msra.mxu0 0.0
    %3283 = vmatprep.subr.mxu0 0.0
    %3284 = vmatpush1.xpose.msra.mxu0 0.0
    %3285 = vmatprep.subr.mxu0 0.0
    %3286 = vmatpush1.xpose.msra.mxu0 0.0
    %3287 = vmatprep.subr.mxu0 0.0
    %3288 = vmatpush1.xpose.msra.mxu0 0.0
    %3289 = vmatprep.subr.mxu0 0.0
    %3290 = vmatpush1.xpose.msra.mxu0 0.0
    %3291 = vmatprep.subr.mxu0 0.0
    %3292 = vmatpush1.xpose.msra.mxu0 %v3259
    %3293 = vmatprep.subr.mxu0 0.0
    %3294 = vmatpush2.xpose.msra.mxu0 0.0
    %3295 = vmatprep.subr.mxu0 0.0
    %3296 = vmatpush2.xpose.msra.mxu0 0.0
    %3297 = vmatprep.subr.mxu0 0.0
    %3298 = vmatpush2.xpose.msra.mxu0 0.0
    %3299 = vmatprep.subr.mxu0 0.0
    %3300 = vmatpush2.xpose.msra.mxu0 0.0
    %3301 = vmatprep.subr.mxu0 0.0
    %3302 = vmatpush2.xpose.msra.mxu0 0.0
    %3303 = vmatprep.subr.mxu0 0.0
    %3304 = vmatpush2.xpose.msra.mxu0 0.0
    %3305 = vmatprep.subr.mxu0 0.0
    %3306 = vmatpush2.xpose.msra.mxu0 0.0
    %3307 = vmatprep.subr.mxu0 0.0
    %3308 = vmatpush2.xpose.msra.mxu0 0.0
    %3309 = vmatprep.subr.mxu0 0.0
    %3310 = vmatpush2.xpose.msra.mxu0 0.0
    %3311 = vmatprep.subr.mxu0 0.0
    %3312 = vmatpush2.xpose.msra.mxu0 0.0
    %3313 = vmatprep.subr.mxu0 0.0
    %3314 = vmatpush2.xpose.msra.mxu0 0.0
    %3315 = vmatprep.subr.mxu0 0.0
    %3316 = vmatpush2.xpose.msra.mxu0 0.0
    %3317 = vmatprep.subr.mxu0 0.0
    %3318 = vmatpush2.xpose.msra.mxu0 0.0
    %3319 = vmatprep.subr.mxu0 0.0
    %3320 = vmatpush2.xpose.msra.mxu0 0.0
    %3321 = vmatprep.subr.mxu0 0.0
    %3322 = vmatpush2.xpose.msra.mxu0 0.0
    %3323 = vmatprep.subr.mxu0 0.0
    %3324 = vmatpush2.xpose.msra.mxu0 0.0
    %3325 = vmatprep.mubr.f32.mxu0 0.0
    %3326 = vmatmul.mubr.f32.gmra.mxu0 %v3257
    %v3327 = vpop.f32.mrf.mxu0
    %v3328 = vadd.f32 0.0, %v3327
    %v3329 = vpop.f32.mrf.mxu0
    %3330 = vdwg.mxu0
    %3331 = vrot.lane.b32.xlu0 %v2160, 104
    %v3332 = vpop.permute.xlu0 %3331
    %3333 = vrot.lane.b32.xlu0 %v2252, 104
    %v3334 = vpop.permute.xlu0 %3333
    %v3335 = vsel %vm543, %v3332, 0
    %v3337 = vsel %vm543, %v3334, 0
    %3339 = vmatprep.subr.mxu0 0.0
    %3340 = vmatpush1.xpose.msra.mxu0 0.0
    %3341 = vmatprep.subr.mxu0 0.0
    %3342 = vmatpush1.xpose.msra.mxu0 0.0
    %3343 = vmatprep.subr.mxu0 0.0
    %3344 = vmatpush1.xpose.msra.mxu0 0.0
    %3345 = vmatprep.subr.mxu0 0.0
    %3346 = vmatpush1.xpose.msra.mxu0 0.0
    %3347 = vmatprep.subr.mxu0 0.0
    %3348 = vmatpush1.xpose.msra.mxu0 0.0
    %3349 = vmatprep.subr.mxu0 0.0
    %3350 = vmatpush1.xpose.msra.mxu0 0.0
    %3351 = vmatprep.subr.mxu0 0.0
    %3352 = vmatpush1.xpose.msra.mxu0 0.0
    %3353 = vmatprep.subr.mxu0 0.0
    %3354 = vmatpush1.xpose.msra.mxu0 0.0
    %3355 = vmatprep.subr.mxu0 0.0
    %3356 = vmatpush1.xpose.msra.mxu0 0.0
    %3357 = vmatprep.subr.mxu0 0.0
    %3358 = vmatpush1.xpose.msra.mxu0 0.0
    %3359 = vmatprep.subr.mxu0 0.0
    %3360 = vmatpush1.xpose.msra.mxu0 0.0
    %3361 = vmatprep.subr.mxu0 0.0
    %3362 = vmatpush1.xpose.msra.mxu0 0.0
    %3363 = vmatprep.subr.mxu0 0.0
    %3364 = vmatpush1.xpose.msra.mxu0 0.0
    %3365 = vmatprep.subr.mxu0 0.0
    %3366 = vmatpush1.xpose.msra.mxu0 0.0
    %3367 = vmatprep.subr.mxu0 0.0
    %3368 = vmatpush1.xpose.msra.mxu0 0.0
    %3369 = vmatprep.subr.mxu0 0.0
    %3370 = vmatpush1.xpose.msra.mxu0 %v3337
    %3371 = vmatprep.subr.mxu0 0.0
    %3372 = vmatpush2.xpose.msra.mxu0 0.0
    %3373 = vmatprep.subr.mxu0 0.0
    %3374 = vmatpush2.xpose.msra.mxu0 0.0
    %3375 = vmatprep.subr.mxu0 0.0
    %3376 = vmatpush2.xpose.msra.mxu0 0.0
    %3377 = vmatprep.subr.mxu0 0.0
    %3378 = vmatpush2.xpose.msra.mxu0 0.0
    %3379 = vmatprep.subr.mxu0 0.0
    %3380 = vmatpush2.xpose.msra.mxu0 0.0
    %3381 = vmatprep.subr.mxu0 0.0
    %3382 = vmatpush2.xpose.msra.mxu0 0.0
    %3383 = vmatprep.subr.mxu0 0.0
    %3384 = vmatpush2.xpose.msra.mxu0 0.0
    %3385 = vmatprep.subr.mxu0 0.0
    %3386 = vmatpush2.xpose.msra.mxu0 0.0
    %3387 = vmatprep.subr.mxu0 0.0
    %3388 = vmatpush2.xpose.msra.mxu0 0.0
    %3389 = vmatprep.subr.mxu0 0.0
    %3390 = vmatpush2.xpose.msra.mxu0 0.0
    %3391 = vmatprep.subr.mxu0 0.0
    %3392 = vmatpush2.xpose.msra.mxu0 0.0
    %3393 = vmatprep.subr.mxu0 0.0
    %3394 = vmatpush2.xpose.msra.mxu0 0.0
    %3395 = vmatprep.subr.mxu0 0.0
    %3396 = vmatpush2.xpose.msra.mxu0 0.0
    %3397 = vmatprep.subr.mxu0 0.0
    %3398 = vmatpush2.xpose.msra.mxu0 0.0
    %3399 = vmatprep.subr.mxu0 0.0
    %3400 = vmatpush2.xpose.msra.mxu0 0.0
    %3401 = vmatprep.subr.mxu0 0.0
    %3402 = vmatpush2.xpose.msra.mxu0 0.0
    %3403 = vmatprep.mubr.f32.mxu0 0.0
    %3404 = vmatmul.mubr.f32.gmra.mxu0 %v3335
    %v3405 = vpop.f32.mrf.mxu0
    %v3406 = vadd.f32 0.0, %v3405
    %v3407 = vpop.f32.mrf.mxu0
    %3408 = vdwg.mxu0
    %v3409 = vmul.f32 %v3328, 0.35355338
    %v3410 = vmul.f32 %v3406, 0.35355338
    %v3411 = vsel %vm443, -1e+09, %v3409
    %v3412 = vsel %vm444, -1e+09, %v3410
    %v3413 = vsel %vm543, %v3411, -inf
    %3414 = vmax.xlane.f32.xlu0 %v3413
    %v3415 = vpop.xlane.xlu0 %3414
    %v3416 = vsel %vm543, %v3412, -inf
    %3417 = vmax.xlane.f32.xlu0 %v3416
    %v3418 = vpop.xlane.xlu0 %3417
    %v3419 = vsub.f32 %v3411, %v3415
    %v3420 = vsub.f32 %v3412, %v3418
    %v3421 = vmul.f32 %v3419, 1.442695
    %v3422 = vpow.pop %v3421
    %v3423 = vmul.f32 %v3420, 1.442695
    %v3424 = vpow.pop %v3423
    %v3425 = vsel %vm543, %v3422, 0.0
    %3426 = vadd.xlane.f32.xlu0 %v3425
    %v3427 = vpop.xlane.xlu0 %3426
    %v3428 = vsel %vm543, %v3424, 0.0
    %3429 = vadd.xlane.f32.xlu0 %v3428
    %v3430 = vpop.xlane.xlu0 %3429
    %v3431 = vrcp.pop %v3427
    %v3432 = vrcp.pop %v3430
    %v3433 = vmul.f32 %v3422, %v3431
    %v3434 = vmul.f32 %v3424, %v3432
    %3435 = vrot.lane.b32.xlu0 %v2247, 72
    %v3436 = vpop.permute.xlu0 %3435
    %v3439 = vsel %vm543, %v3433, 0
    %3441 = vmatprep.subr.mxu0 0.0
    %3442 = vmatpush1.msra.mxu0 0.0
    %3443 = vmatprep.subr.mxu0 0.0
    %3444 = vmatpush1.msra.mxu0 0.0
    %3445 = vmatprep.subr.mxu0 0.0
    %3446 = vmatpush1.msra.mxu0 0.0
    %3447 = vmatprep.subr.mxu0 0.0
    %3448 = vmatpush1.msra.mxu0 0.0
    %3449 = vmatprep.subr.mxu0 0.0
    %3450 = vmatpush1.msra.mxu0 0.0
    %3451 = vmatprep.subr.mxu0 0.0
    %3452 = vmatpush1.msra.mxu0 0.0
    %3453 = vmatprep.subr.mxu0 0.0
    %3454 = vmatpush1.msra.mxu0 0.0
    %3455 = vmatprep.subr.mxu0 0.0
    %3456 = vmatpush1.msra.mxu0 0.0
    %3457 = vmatprep.subr.mxu0 0.0
    %3458 = vmatpush1.msra.mxu0 0.0
    %3459 = vmatprep.subr.mxu0 0.0
    %3460 = vmatpush1.msra.mxu0 0.0
    %3461 = vmatprep.subr.mxu0 0.0
    %3462 = vmatpush1.msra.mxu0 0.0
    %3463 = vmatprep.subr.mxu0 0.0
    %3464 = vmatpush1.msra.mxu0 0.0
    %3465 = vmatprep.subr.mxu0 0.0
    %3466 = vmatpush1.msra.mxu0 0.0
    %3467 = vmatprep.subr.mxu0 0.0
    %3468 = vmatpush1.msra.mxu0 0.0
    %3469 = vmatprep.subr.mxu0 0.0
    %3470 = vmatpush1.msra.mxu0 0.0
    %3471 = vmatprep.subr.mxu0 0.0
    %3472 = vmatpush1.msra.mxu0 %v3436
    %3473 = vmatprep.subr.mxu0 0.0
    %3474 = vmatpush2.msra.mxu0 0.0
    %3475 = vmatprep.subr.mxu0 0.0
    %3476 = vmatpush2.msra.mxu0 0.0
    %3477 = vmatprep.subr.mxu0 0.0
    %3478 = vmatpush2.msra.mxu0 0.0
    %3479 = vmatprep.subr.mxu0 0.0
    %3480 = vmatpush2.msra.mxu0 0.0
    %3481 = vmatprep.subr.mxu0 0.0
    %3482 = vmatpush2.msra.mxu0 0.0
    %3483 = vmatprep.subr.mxu0 0.0
    %3484 = vmatpush2.msra.mxu0 0.0
    %3485 = vmatprep.subr.mxu0 0.0
    %3486 = vmatpush2.msra.mxu0 0.0
    %3487 = vmatprep.subr.mxu0 0.0
    %3488 = vmatpush2.msra.mxu0 0.0
    %3489 = vmatprep.subr.mxu0 0.0
    %3490 = vmatpush2.msra.mxu0 0.0
    %3491 = vmatprep.subr.mxu0 0.0
    %3492 = vmatpush2.msra.mxu0 0.0
    %3493 = vmatprep.subr.mxu0 0.0
    %3494 = vmatpush2.msra.mxu0 0.0
    %3495 = vmatprep.subr.mxu0 0.0
    %3496 = vmatpush2.msra.mxu0 0.0
    %3497 = vmatprep.subr.mxu0 0.0
    %3498 = vmatpush2.msra.mxu0 0.0
    %3499 = vmatprep.subr.mxu0 0.0
    %3500 = vmatpush2.msra.mxu0 0.0
    %3501 = vmatprep.subr.mxu0 0.0
    %3502 = vmatpush2.msra.mxu0 0.0
    %3503 = vmatprep.subr.mxu0 0.0
    %3504 = vmatpush2.msra.mxu0 0.0
    %3505 = vmatprep.mubr.f32.mxu0 0.0
    %3506 = vmatmul.mubr.f32.gmra.mxu0 %v3439
    %v3507 = vpop.f32.mrf.mxu0
    %v3508 = vadd.f32 0.0, %v3507
    %v3509 = vpop.f32.mrf.mxu0
    %3510 = vdwg.mxu0
    %3511 = vrot.lane.b32.xlu0 %v2252, 72
    %v3512 = vpop.permute.xlu0 %3511
    %v3515 = vsel %vm543, %v3434, 0
    %3517 = vmatprep.subr.mxu0 0.0
    %3518 = vmatpush1.msra.mxu0 0.0
    %3519 = vmatprep.subr.mxu0 0.0
    %3520 = vmatpush1.msra.mxu0 0.0
    %3521 = vmatprep.subr.mxu0 0.0
    %3522 = vmatpush1.msra.mxu0 0.0
    %3523 = vmatprep.subr.mxu0 0.0
    %3524 = vmatpush1.msra.mxu0 0.0
    %3525 = vmatprep.subr.mxu0 0.0
    %3526 = vmatpush1.msra.mxu0 0.0
    %3527 = vmatprep.subr.mxu0 0.0
    %3528 = vmatpush1.msra.mxu0 0.0
    %3529 = vmatprep.subr.mxu0 0.0
    %3530 = vmatpush1.msra.mxu0 0.0
    %3531 = vmatprep.subr.mxu0 0.0
    %3532 = vmatpush1.msra.mxu0 0.0
    %3533 = vmatprep.subr.mxu0 0.0
    %3534 = vmatpush1.msra.mxu0 0.0
    %3535 = vmatprep.subr.mxu0 0.0
    %3536 = vmatpush1.msra.mxu0 0.0
    %3537 = vmatprep.subr.mxu0 0.0
    %3538 = vmatpush1.msra.mxu0 0.0
    %3539 = vmatprep.subr.mxu0 0.0
    %3540 = vmatpush1.msra.mxu0 0.0
    %3541 = vmatprep.subr.mxu0 0.0
    %3542 = vmatpush1.msra.mxu0 0.0
    %3543 = vmatprep.subr.mxu0 0.0
    %3544 = vmatpush1.msra.mxu0 0.0
    %3545 = vmatprep.subr.mxu0 0.0
    %3546 = vmatpush1.msra.mxu0 0.0
    %3547 = vmatprep.subr.mxu0 0.0
    %3548 = vmatpush1.msra.mxu0 %v3512
    %3549 = vmatprep.subr.mxu0 0.0
    %3550 = vmatpush2.msra.mxu0 0.0
    %3551 = vmatprep.subr.mxu0 0.0
    %3552 = vmatpush2.msra.mxu0 0.0
    %3553 = vmatprep.subr.mxu0 0.0
    %3554 = vmatpush2.msra.mxu0 0.0
    %3555 = vmatprep.subr.mxu0 0.0
    %3556 = vmatpush2.msra.mxu0 0.0
    %3557 = vmatprep.subr.mxu0 0.0
    %3558 = vmatpush2.msra.mxu0 0.0
    %3559 = vmatprep.subr.mxu0 0.0
    %3560 = vmatpush2.msra.mxu0 0.0
    %3561 = vmatprep.subr.mxu0 0.0
    %3562 = vmatpush2.msra.mxu0 0.0
    %3563 = vmatprep.subr.mxu0 0.0
    %3564 = vmatpush2.msra.mxu0 0.0
    %3565 = vmatprep.subr.mxu0 0.0
    %3566 = vmatpush2.msra.mxu0 0.0
    %3567 = vmatprep.subr.mxu0 0.0
    %3568 = vmatpush2.msra.mxu0 0.0
    %3569 = vmatprep.subr.mxu0 0.0
    %3570 = vmatpush2.msra.mxu0 0.0
    %3571 = vmatprep.subr.mxu0 0.0
    %3572 = vmatpush2.msra.mxu0 0.0
    %3573 = vmatprep.subr.mxu0 0.0
    %3574 = vmatpush2.msra.mxu0 0.0
    %3575 = vmatprep.subr.mxu0 0.0
    %3576 = vmatpush2.msra.mxu0 0.0
    %3577 = vmatprep.subr.mxu0 0.0
    %3578 = vmatpush2.msra.mxu0 0.0
    %3579 = vmatprep.subr.mxu0 0.0
    %3580 = vmatpush2.msra.mxu0 0.0
    %3581 = vmatprep.mubr.f32.mxu0 0.0
    %3582 = vmatmul.mubr.f32.gmra.mxu0 %v3515
    %v3583 = vpop.f32.mrf.mxu0
    %v3584 = vadd.f32 0.0, %v3583
    %v3585 = vpop.f32.mrf.mxu0
    %3586 = vdwg.mxu0
    %3589 = vrot.lane.b32.xlu0 %v2840, 8
    %v3590 = vpop.permute.xlu0 %3589
    %3591 = vrot.lane.b32.xlu0 %v2916, 8
    %v3592 = vpop.permute.xlu0 %3591
    %3597 = vrot.lane.b32.xlu0 %v3174, 16
    %v3598 = vpop.permute.xlu0 %3597
    %3599 = vrot.lane.b32.xlu0 %v3250, 16
    %v3600 = vpop.permute.xlu0 %3599
    %3605 = vrot.lane.b32.xlu0 %v3508, 24
    %v3606 = vpop.permute.xlu0 %3605
    %3607 = vrot.lane.b32.xlu0 %v3584, 24
    %v3608 = vpop.permute.xlu0 %3607
    %v3611 = vsel %vm543, %v2506, %v3590
    %v3612 = vsel %vm543, %v2582, %v3592
    %v3613 = vsel %vm324, %v3611, %v3598
    %v3614 = vsel %vm324, %v3612, %v3600
    %v3615 = vsel %vm1903, %v3613, %v3606
    %v3616 = vsel %vm1903, %v3614, %v3608
    %3617 = vrot.lane.b32.xlu0 %v2765, 8
    %v3618 = vpop.permute.xlu0 %3617
    %3619 = vrot.lane.b32.xlu0 %v2766, 8
    %v3620 = vpop.permute.xlu0 %3619
    %3623 = vrot.lane.b32.xlu0 %v3099, 16
    %v3624 = vpop.permute.xlu0 %3623
    %3625 = vrot.lane.b32.xlu0 %v3100, 16
    %v3626 = vpop.permute.xlu0 %3625
    %3629 = vrot.lane.b32.xlu0 %v3433, 24
    %v3630 = vpop.permute.xlu0 %3629
    %3631 = vrot.lane.b32.xlu0 %v3434, 24
    %v3632 = vpop.permute.xlu0 %3631
    %v3635 = vsel %vm543, %v2431, %v3618
    %v3636 = vsel %vm543, %v2432, %v3620
    %v3637 = vsel %vm324, %v3635, %v3624
    %v3638 = vsel %vm324, %v3636, %v3626
    %v3639 = vsel %vm1903, %v3637, %v3630
    %v3640 = vsel %vm1903, %v3638, %v3632
    %v3641 = vld [vmem:[%s16] sm:$0xff]
    %v3642 = vld [vmem:[%s16 + $0x8] sm:$0xff]
    %v3643 = vld [vmem:[%s16 + $0x10] sm:$0xff]
    %v3644 = vld [vmem:[%s16 + $0x18] sm:$0xff]
    %v3645 = vld [vmem:[#allocation16] sm:$0x1]
    %v3647 = vlaneseq
    %v3648 = vshrl.u32 %v3647, 7
    %v3649 = vsub.s32 0, %v3648
    %v3650 = vrot.slane %v3645, %v3649
    %v3653 = vsel %vm458, %v3615, 0
    %v3656 = vsel %vm458, %v3616, 0
    %3658 = vmatprep.subr.mxu0 0.0
    %3659 = vmatpush1.msra.mxu0 0.0
    %3660 = vmatprep.subr.mxu0 0.0
    %3661 = vmatpush1.msra.mxu0 0.0
    %3662 = vmatprep.subr.mxu0 0.0
    %3663 = vmatpush1.msra.mxu0 0.0
    %3664 = vmatprep.subr.mxu0 0.0
    %3665 = vmatpush1.msra.mxu0 0.0
    %3666 = vmatprep.subr.mxu0 0.0
    %3667 = vmatpush1.msra.mxu0 0.0
    %3668 = vmatprep.subr.mxu0 0.0
    %3669 = vmatpush1.msra.mxu0 0.0
    %3670 = vmatprep.subr.mxu0 0.0
    %3671 = vmatpush1.msra.mxu0 0.0
    %3672 = vmatprep.subr.mxu0 0.0
    %3673 = vmatpush1.msra.mxu0 0.0
    %3674 = vmatprep.subr.mxu0 0.0
    %3675 = vmatpush1.msra.mxu0 0.0
    %3676 = vmatprep.subr.mxu0 0.0
    %3677 = vmatpush1.msra.mxu0 0.0
    %3678 = vmatprep.subr.mxu0 0.0
    %3679 = vmatpush1.msra.mxu0 0.0
    %3680 = vmatprep.subr.mxu0 0.0
    %3681 = vmatpush1.msra.mxu0 0.0
    %3682 = vmatprep.subr.mxu0 0.0
    %3683 = vmatpush1.msra.mxu0 %v3644
    %3684 = vmatprep.subr.mxu0 0.0
    %3685 = vmatpush1.msra.mxu0 %v3643
    %3686 = vmatprep.subr.mxu0 0.0
    %3687 = vmatpush1.msra.mxu0 %v3642
    %3688 = vmatprep.subr.mxu0 0.0
    %3689 = vmatpush1.msra.mxu0 %v3641
    %3690 = vmatprep.subr.mxu0 0.0
    %3691 = vmatpush2.msra.mxu0 0.0
    %3692 = vmatprep.subr.mxu0 0.0
    %3693 = vmatpush2.msra.mxu0 0.0
    %3694 = vmatprep.subr.mxu0 0.0
    %3695 = vmatpush2.msra.mxu0 0.0
    %3696 = vmatprep.subr.mxu0 0.0
    %3697 = vmatpush2.msra.mxu0 0.0
    %3698 = vmatprep.subr.mxu0 0.0
    %3699 = vmatpush2.msra.mxu0 0.0
    %3700 = vmatprep.subr.mxu0 0.0
    %3701 = vmatpush2.msra.mxu0 0.0
    %3702 = vmatprep.subr.mxu0 0.0
    %3703 = vmatpush2.msra.mxu0 0.0
    %3704 = vmatprep.subr.mxu0 0.0
    %3705 = vmatpush2.msra.mxu0 0.0
    %3706 = vmatprep.subr.mxu0 0.0
    %3707 = vmatpush2.msra.mxu0 0.0
    %3708 = vmatprep.subr.mxu0 0.0
    %3709 = vmatpush2.msra.mxu0 0.0
    %3710 = vmatprep.subr.mxu0 0.0
    %3711 = vmatpush2.msra.mxu0 0.0
    %3712 = vmatprep.subr.mxu0 0.0
    %3713 = vmatpush2.msra.mxu0 0.0
    %3714 = vmatprep.subr.mxu0 0.0
    %3715 = vmatpush2.msra.mxu0 0.0
    %3716 = vmatprep.subr.mxu0 0.0
    %3717 = vmatpush2.msra.mxu0 0.0
    %3718 = vmatprep.subr.mxu0 0.0
    %3719 = vmatpush2.msra.mxu0 0.0
    %3720 = vmatprep.subr.mxu0 0.0
    %3721 = vmatpush2.msra.mxu0 0.0
    %3722 = vmatprep.mubr.f32.mxu0 0.0
    %3723 = vmatmul.mubr.f32.gmra.mxu0 %v3653
    %v3724 = vpop.f32.mrf.mxu0
    %v3725 = vadd.f32 %v3650, %v3724
    %v3726 = vpop.f32.mrf.mxu0
    %3727 = vmatprep.mubr.f32.mxu0 0.0
    %3728 = vmatmul.mubr.f32.gmra.mxu0 %v3656
    %v3729 = vpop.f32.mrf.mxu0
    %v3730 = vadd.f32 %v3650, %v3729
    %v3731 = vpop.f32.mrf.mxu0
    %3732 = vdwg.mxu0
    %v3733 = vadd.f32 %v3725, %v2067
    %v3734 = vadd.f32 %v3730, %v2068
    %v3735 = vld [vmem:[#allocation17] sm:$0x1]
    %v3736 = vld [vmem:[#allocation19] sm:$0x1]
    %v3737 = vsel %vm458, %v3733, 0.0
    %3738 = vadd.xlane.f32.xlu0 %v3737
    %v3739 = vpop.xlane.xlu0 %3738
    %v3740 = vsel %vm458, %v3734, 0.0
    %3741 = vadd.xlane.f32.xlu0 %v3740
    %v3742 = vpop.xlane.xlu0 %3741
    %v3743 = vmul.f32 %v3739, %v2032
    %v3744 = vmul.f32 %v3742, %v2032
    %v3745 = vsub.f32 %v3733, %v3743
    %v3746 = vsub.f32 %v3734, %v3744
    %v3747 = vmul.f32 %v3745, %v3745
    %v3748 = vmul.f32 %v3746, %v3746
    %v3749 = vsel %vm458, %v3747, 0.0
    %3750 = vadd.xlane.f32.xlu0 %v3749
    %v3751 = vpop.xlane.xlu0 %3750
    %v3752 = vsel %vm458, %v3748, 0.0
    %3753 = vadd.xlane.f32.xlu0 %v3752
    %v3754 = vpop.xlane.xlu0 %3753
    %v3755 = vmul.f32 %v3751, %v2032
    %v3756 = vmul.f32 %v3754, %v2032
    %v3757 = vadd.f32 %v3755, 1e-05
    %v3758 = vadd.f32 %v3756, 1e-05
    %v3759 = vrsqrt.pop %v3757
    %v3760 = vrsqrt.pop %v3758
    %v3761 = vmul.f32 %v3745, %v3759
    %v3762 = vmul.f32 %v3746, %v3760
    %v3764 = vlaneseq
    %v3765 = vshrl.u32 %v3764, 7
    %v3766 = vsub.s32 0, %v3765
    %v3767 = vrot.slane %v3735, %v3766
    %v3769 = vmul.f32 %v3761, %v3767
    %v3770 = vmul.f32 %v3762, %v3767
    %v3772 = vlaneseq
    %v3773 = vshrl.u32 %v3772, 7
    %v3774 = vsub.s32 0, %v3773
    %v3775 = vrot.slane %v3736, %v3774
    %v3777 = vadd.f32 %v3769, %v3775
    %v3778 = vadd.f32 %v3770, %v3775
    %3779 = vst.msk [vmem:[%s28] sm:$0xff] %vm458, %v3639
    %3780 = vst.msk [vmem:[%s28 + $0x8] sm:$0xff] %vm458, %v3640
    %v3781 = vld [vmem:[#allocation20] sm:$0xff]
    %v3782 = vld [vmem:[#allocation20 + $0x8] sm:$0xff]
    %v3783 = vld [vmem:[#allocation20 + $0x10] sm:$0xff]
    %v3784 = vld [vmem:[#allocation20 + $0x18] sm:$0xff]
    %v3785 = vld [vmem:[#allocation22] sm:$0x1]
    %v3787 = vlaneseq
    %v3788 = vshrl.u32 %v3787, 7
    %v3789 = vsub.s32 0, %v3788
    %v3790 = vrot.slane %v3785, %v3789
    %v3793 = vsel %vm458, %v3777, 0
    %v3796 = vsel %vm458, %v3778, 0
    %3798 = vmatprep.subr.mxu0 0.0
    %3799 = vmatpush1.msra.mxu0 0.0
    %3800 = vmatprep.subr.mxu0 0.0
    %3801 = vmatpush1.msra.mxu0 0.0
    %3802 = vmatprep.subr.mxu0 0.0
    %3803 = vmatpush1.msra.mxu0 0.0
    %3804 = vmatprep.subr.mxu0 0.0
    %3805 = vmatpush1.msra.mxu0 0.0
    %3806 = vmatprep.subr.mxu0 0.0
    %3807 = vmatpush1.msra.mxu0 0.0
    %3808 = vmatprep.subr.mxu0 0.0
    %3809 = vmatpush1.msra.mxu0 0.0
    %3810 = vmatprep.subr.mxu0 0.0
    %3811 = vmatpush1.msra.mxu0 0.0
    %3812 = vmatprep.subr.mxu0 0.0
    %3813 = vmatpush1.msra.mxu0 0.0
    %3814 = vmatprep.subr.mxu0 0.0
    %3815 = vmatpush1.msra.mxu0 0.0
    %3816 = vmatprep.subr.mxu0 0.0
    %3817 = vmatpush1.msra.mxu0 0.0
    %3818 = vmatprep.subr.mxu0 0.0
    %3819 = vmatpush1.msra.mxu0 0.0
    %3820 = vmatprep.subr.mxu0 0.0
    %3821 = vmatpush1.msra.mxu0 0.0
    %3822 = vmatprep.subr.mxu0 0.0
    %3823 = vmatpush1.msra.mxu0 %v3784
    %3824 = vmatprep.subr.mxu0 0.0
    %3825 = vmatpush1.msra.mxu0 %v3783
    %3826 = vmatprep.subr.mxu0 0.0
    %3827 = vmatpush1.msra.mxu0 %v3782
    %3828 = vmatprep.subr.mxu0 0.0
    %3829 = vmatpush1.msra.mxu0 %v3781
    %3830 = vmatprep.subr.mxu0 0.0
    %3831 = vmatpush2.msra.mxu0 0.0
    %3832 = vmatprep.subr.mxu0 0.0
    %3833 = vmatpush2.msra.mxu0 0.0
    %3834 = vmatprep.subr.mxu0 0.0
    %3835 = vmatpush2.msra.mxu0 0.0
    %3836 = vmatprep.subr.mxu0 0.0
    %3837 = vmatpush2.msra.mxu0 0.0
    %3838 = vmatprep.subr.mxu0 0.0
    %3839 = vmatpush2.msra.mxu0 0.0
    %3840 = vmatprep.subr.mxu0 0.0
    %3841 = vmatpush2.msra.mxu0 0.0
    %3842 = vmatprep.subr.mxu0 0.0
    %3843 = vmatpush2.msra.mxu0 0.0
    %3844 = vmatprep.subr.mxu0 0.0
    %3845 = vmatpush2.msra.mxu0 0.0
    %3846 = vmatprep.subr.mxu0 0.0
    %3847 = vmatpush2.msra.mxu0 0.0
    %3848 = vmatprep.subr.mxu0 0.0
    %3849 = vmatpush2.msra.mxu0 0.0
    %3850 = vmatprep.subr.mxu0 0.0
    %3851 = vmatpush2.msra.mxu0 0.0
    %3852 = vmatprep.subr.mxu0 0.0
    %3853 = vmatpush2.msra.mxu0 0.0
    %3854 = vmatprep.subr.mxu0 0.0
    %3855 = vmatpush2.msra.mxu0 0.0
    %3856 = vmatprep.subr.mxu0 0.0
    %3857 = vmatpush2.msra.mxu0 0.0
    %3858 = vmatprep.subr.mxu0 0.0
    %3859 = vmatpush2.msra.mxu0 0.0
    %3860 = vmatprep.subr.mxu0 0.0
    %3861 = vmatpush2.msra.mxu0 0.0
    %3862 = vmatprep.mubr.f32.mxu0 0.0
    %3863 = vmatmul.mubr.f32.gmra.mxu0 %v3793
    %v3864 = vpop.f32.mrf.mxu0
    %v3865 = vadd.f32 %v3790, %v3864
    %v3866 = vpop.f32.mrf.mxu0
    %3867 = vmatprep.mubr.f32.mxu0 0.0
    %3868 = vmatmul.mubr.f32.gmra.mxu0 %v3796
    %v3869 = vpop.f32.mrf.mxu0
    %v3870 = vadd.f32 %v3790, %v3869
    %v3871 = vpop.f32.mrf.mxu0
    %3872 = vdwg.mxu0
    %v3873 = vmax.f32 %v3865, 0.0
    %v3874 = vmax.f32 %v3870, 0.0
    %v3875 = vld [vmem:[%s22] sm:$0xff]
    %v3876 = vld [vmem:[%s22 + $0x8] sm:$0xff]
    %v3877 = vld [vmem:[%s22 + $0x10] sm:$0xff]
    %v3878 = vld [vmem:[%s22 + $0x18] sm:$0xff]
    %v3879 = vld [vmem:[%s22 + $0x20] sm:$0xff]
    %v3880 = vld [vmem:[%s22 + $0x28] sm:$0xff]
    %v3881 = vld [vmem:[%s22 + $0x30] sm:$0xff]
    %v3882 = vld [vmem:[%s22 + $0x38] sm:$0xff]
    %v3883 = vld [vmem:[#allocation23] sm:$0x1]
    %v3885 = vlaneseq
    %v3886 = vshrl.u32 %v3885, 7
    %v3887 = vsub.s32 0, %v3886
    %v3888 = vrot.slane %v3883, %v3887
    %vm3890 = vcmask 523264
    %v3892 = vsel %vm3890, %v3873, 0
    %v3895 = vsel %vm3890, %v3874, 0
    %3897 = vmatprep.subr.mxu0 0.0
    %3898 = vmatpush1.msra.mxu0 0.0
    %3899 = vmatprep.subr.mxu0 0.0
    %3900 = vmatpush1.msra.mxu0 0.0
    %3901 = vmatprep.subr.mxu0 0.0
    %3902 = vmatpush1.msra.mxu0 0.0
    %3903 = vmatprep.subr.mxu0 0.0
    %3904 = vmatpush1.msra.mxu0 0.0
    %3905 = vmatprep.subr.mxu0 0.0
    %3906 = vmatpush1.msra.mxu0 0.0
    %3907 = vmatprep.subr.mxu0 0.0
    %3908 = vmatpush1.msra.mxu0 0.0
    %3909 = vmatprep.subr.mxu0 0.0
    %3910 = vmatpush1.msra.mxu0 0.0
    %3911 = vmatprep.subr.mxu0 0.0
    %3912 = vmatpush1.msra.mxu0 0.0
    %3913 = vmatprep.subr.mxu0 0.0
    %3914 = vmatpush1.msra.mxu0 %v3882
    %3915 = vmatprep.subr.mxu0 0.0
    %3916 = vmatpush1.msra.mxu0 %v3881
    %3917 = vmatprep.subr.mxu0 0.0
    %3918 = vmatpush1.msra.mxu0 %v3880
    %3919 = vmatprep.subr.mxu0 0.0
    %3920 = vmatpush1.msra.mxu0 %v3879
    %3921 = vmatprep.subr.mxu0 0.0
    %3922 = vmatpush1.msra.mxu0 %v3878
    %3923 = vmatprep.subr.mxu0 0.0
    %3924 = vmatpush1.msra.mxu0 %v3877
    %3925 = vmatprep.subr.mxu0 0.0
    %3926 = vmatpush1.msra.mxu0 %v3876
    %3927 = vmatprep.subr.mxu0 0.0
    %3928 = vmatpush1.msra.mxu0 %v3875
    %3929 = vmatprep.subr.mxu0 0.0
    %3930 = vmatpush2.msra.mxu0 0.0
    %3931 = vmatprep.subr.mxu0 0.0
    %3932 = vmatpush2.msra.mxu0 0.0
    %3933 = vmatprep.subr.mxu0 0.0
    %3934 = vmatpush2.msra.mxu0 0.0
    %3935 = vmatprep.subr.mxu0 0.0
    %3936 = vmatpush2.msra.mxu0 0.0
    %3937 = vmatprep.subr.mxu0 0.0
    %3938 = vmatpush2.msra.mxu0 0.0
    %3939 = vmatprep.subr.mxu0 0.0
    %3940 = vmatpush2.msra.mxu0 0.0
    %3941 = vmatprep.subr.mxu0 0.0
    %3942 = vmatpush2.msra.mxu0 0.0
    %3943 = vmatprep.subr.mxu0 0.0
    %3944 = vmatpush2.msra.mxu0 0.0
    %3945 = vmatprep.subr.mxu0 0.0
    %3946 = vmatpush2.msra.mxu0 0.0
    %3947 = vmatprep.subr.mxu0 0.0
    %3948 = vmatpush2.msra.mxu0 0.0
    %3949 = vmatprep.subr.mxu0 0.0
    %3950 = vmatpush2.msra.mxu0 0.0
    %3951 = vmatprep.subr.mxu0 0.0
    %3952 = vmatpush2.msra.mxu0 0.0
    %3953 = vmatprep.subr.mxu0 0.0
    %3954 = vmatpush2.msra.mxu0 0.0
    %3955 = vmatprep.subr.mxu0 0.0
    %3956 = vmatpush2.msra.mxu0 0.0
    %3957 = vmatprep.subr.mxu0 0.0
    %3958 = vmatpush2.msra.mxu0 0.0
    %3959 = vmatprep.subr.mxu0 0.0
    %3960 = vmatpush2.msra.mxu0 0.0
    %3961 = vmatprep.mubr.f32.mxu0 0.0
    %3962 = vmatmul.mubr.f32.gmra.mxu0 %v3892
    %v3963 = vpop.f32.mrf.mxu0
    %v3964 = vadd.f32 %v3888, %v3963
    %v3965 = vpop.f32.mrf.mxu0
    %3966 = vmatprep.mubr.f32.mxu0 0.0
    %3967 = vmatmul.mubr.f32.gmra.mxu0 %v3895
    %v3968 = vpop.f32.mrf.mxu0
    %v3969 = vadd.f32 %v3888, %v3968
    %v3970 = vpop.f32.mrf.mxu0
    %3971 = vdwg.mxu0
    %v3972 = vadd.f32 %v3964, %v3777
    %v3973 = vadd.f32 %v3969, %v3778
    %v3974 = vld [vmem:[#allocation25] sm:$0x1]
    %v3975 = vld [vmem:[#allocation26] sm:$0x1]
    %v3976 = vsel %vm458, %v3972, 0.0
    %3977 = vadd.xlane.f32.xlu0 %v3976
    %v3978 = vpop.xlane.xlu0 %3977
    %v3979 = vsel %vm458, %v3973, 0.0
    %3980 = vadd.xlane.f32.xlu0 %v3979
    %v3981 = vpop.xlane.xlu0 %3980
    %v3982 = vmul.f32 %v3978, %v2032
    %v3983 = vmul.f32 %v3981, %v2032
    %v3984 = vsub.f32 %v3972, %v3982
    %v3985 = vsub.f32 %v3973, %v3983
    %v3986 = vmul.f32 %v3984, %v3984
    %v3987 = vmul.f32 %v3985, %v3985
    %v3988 = vsel %vm458, %v3986, 0.0
    %3989 = vadd.xlane.f32.xlu0 %v3988
    %v3990 = vpop.xlane.xlu0 %3989
    %v3991 = vsel %vm458, %v3987, 0.0
    %3992 = vadd.xlane.f32.xlu0 %v3991
    %v3993 = vpop.xlane.xlu0 %3992
    %v3994 = vmul.f32 %v3990, %v2032
    %v3995 = vmul.f32 %v3993, %v2032
    %v3996 = vadd.f32 %v3994, 1e-05
    %v3997 = vadd.f32 %v3995, 1e-05
    %v3998 = vrsqrt.pop %v3996
    %v3999 = vrsqrt.pop %v3997
    %v4000 = vmul.f32 %v3984, %v3998
    %v4001 = vmul.f32 %v3985, %v3999
    %v4003 = vlaneseq
    %v4004 = vshrl.u32 %v4003, 7
    %v4005 = vsub.s32 0, %v4004
    %v4006 = vrot.slane %v3974, %v4005
    %v4008 = vmul.f32 %v4000, %v4006
    %v4009 = vmul.f32 %v4001, %v4006
    %v4011 = vlaneseq
    %v4012 = vshrl.u32 %v4011, 7
    %v4013 = vsub.s32 0, %v4012
    %v4014 = vrot.slane %v3975, %v4013
    %v4016 = vadd.f32 %v4008, %v4014
    %v4017 = vadd.f32 %v4009, %v4014
    %s4018 = scalar_lea.vmem %s6, 32
    %v4019 = vld [vmem:[%s4018] sm:$0xff]
    %v4020 = vld [vmem:[%s4018 + $0x8] sm:$0xff]
    %v4021 = vld [vmem:[%s4018 + $0x10] sm:$0xff]
    %v4022 = vld [vmem:[%s4018 + $0x18] sm:$0xff]
    %s4023 = scalar_lea.vmem [#allocation7], 1
    %v4024 = vld [vmem:[%s4023] sm:$0x1]
    %v4026 = vlaneseq
    %v4027 = vshrl.u32 %v4026, 7
    %v4028 = vsub.s32 0, %v4027
    %v4029 = vrot.slane %v4024, %v4028
    %v4032 = vsel %vm458, %v4016, 0
    %v4035 = vsel %vm458, %v4017, 0
    %4037 = vmatprep.subr.mxu0 0.0
    %4038 = vmatpush1.msra.mxu0 0.0
    %4039 = vmatprep.subr.mxu0 0.0
    %4040 = vmatpush1.msra.mxu0 0.0
    %4041 = vmatprep.subr.mxu0 0.0
    %4042 = vmatpush1.msra.mxu0 0.0
    %4043 = vmatprep.subr.mxu0 0.0
    %4044 = vmatpush1.msra.mxu0 0.0
    %4045 = vmatprep.subr.mxu0 0.0
    %4046 = vmatpush1.msra.mxu0 0.0
    %4047 = vmatprep.subr.mxu0 0.0
    %4048 = vmatpush1.msra.mxu0 0.0
    %4049 = vmatprep.subr.mxu0 0.0
    %4050 = vmatpush1.msra.mxu0 0.0
    %4051 = vmatprep.subr.mxu0 0.0
    %4052 = vmatpush1.msra.mxu0 0.0
    %4053 = vmatprep.subr.mxu0 0.0
    %4054 = vmatpush1.msra.mxu0 0.0
    %4055 = vmatprep.subr.mxu0 0.0
    %4056 = vmatpush1.msra.mxu0 0.0
    %4057 = vmatprep.subr.mxu0 0.0
    %4058 = vmatpush1.msra.mxu0 0.0
    %4059 = vmatprep.subr.mxu0 0.0
    %4060 = vmatpush1.msra.mxu0 0.0
    %4061 = vmatprep.subr.mxu0 0.0
    %4062 = vmatpush1.msra.mxu0 %v4022
    %4063 = vmatprep.subr.mxu0 0.0
    %4064 = vmatpush1.msra.mxu0 %v4021
    %4065 = vmatprep.subr.mxu0 0.0
    %4066 = vmatpush1.msra.mxu0 %v4020
    %4067 = vmatprep.subr.mxu0 0.0
    %4068 = vmatpush1.msra.mxu0 %v4019
    %4069 = vmatprep.subr.mxu0 0.0
    %4070 = vmatpush2.msra.mxu0 0.0
    %4071 = vmatprep.subr.mxu0 0.0
    %4072 = vmatpush2.msra.mxu0 0.0
    %4073 = vmatprep.subr.mxu0 0.0
    %4074 = vmatpush2.msra.mxu0 0.0
    %4075 = vmatprep.subr.mxu0 0.0
    %4076 = vmatpush2.msra.mxu0 0.0
    %4077 = vmatprep.subr.mxu0 0.0
    %4078 = vmatpush2.msra.mxu0 0.0
    %4079 = vmatprep.subr.mxu0 0.0
    %4080 = vmatpush2.msra.mxu0 0.0
    %4081 = vmatprep.subr.mxu0 0.0
    %4082 = vmatpush2.msra.mxu0 0.0
    %4083 = vmatprep.subr.mxu0 0.0
    %4084 = vmatpush2.msra.mxu0 0.0
    %4085 = vmatprep.subr.mxu0 0.0
    %4086 = vmatpush2.msra.mxu0 0.0
    %4087 = vmatprep.subr.mxu0 0.0
    %4088 = vmatpush2.msra.mxu0 0.0
    %4089 = vmatprep.subr.mxu0 0.0
    %4090 = vmatpush2.msra.mxu0 0.0
    %4091 = vmatprep.subr.mxu0 0.0
    %4092 = vmatpush2.msra.mxu0 0.0
    %4093 = vmatprep.subr.mxu0 0.0
    %4094 = vmatpush2.msra.mxu0 0.0
    %4095 = vmatprep.subr.mxu0 0.0
    %4096 = vmatpush2.msra.mxu0 0.0
    %4097 = vmatprep.subr.mxu0 0.0
    %4098 = vmatpush2.msra.mxu0 0.0
    %4099 = vmatprep.subr.mxu0 0.0
    %4100 = vmatpush2.msra.mxu0 0.0
    %4101 = vmatprep.mubr.f32.mxu0 0.0
    %4102 = vmatmul.mubr.f32.gmra.mxu0 %v4032
    %v4103 = vpop.f32.mrf.mxu0
    %v4104 = vadd.f32 %v4029, %v4103
    %v4105 = vpop.f32.mrf.mxu0
    %4106 = vmatprep.mubr.f32.mxu0 0.0
    %4107 = vmatmul.mubr.f32.gmra.mxu0 %v4035
    %v4108 = vpop.f32.mrf.mxu0
    %v4109 = vadd.f32 %v4029, %v4108
    %v4110 = vpop.f32.mrf.mxu0
    %4111 = vdwg.mxu0
    %4113 = vrot.lane.b32.xlu0 %v4104, 96
    %v4114 = vpop.permute.xlu0 %4113
    %v4115 = vsel %vm543, %v4104, 0
    %v4117 = vsel %vm543, %v4114, 0
    %4119 = vmatprep.subr.mxu0 0.0
    %4120 = vmatpush1.xpose.msra.mxu0 0.0
    %4121 = vmatprep.subr.mxu0 0.0
    %4122 = vmatpush1.xpose.msra.mxu0 0.0
    %4123 = vmatprep.subr.mxu0 0.0
    %4124 = vmatpush1.xpose.msra.mxu0 0.0
    %4125 = vmatprep.subr.mxu0 0.0
    %4126 = vmatpush1.xpose.msra.mxu0 0.0
    %4127 = vmatprep.subr.mxu0 0.0
    %4128 = vmatpush1.xpose.msra.mxu0 0.0
    %4129 = vmatprep.subr.mxu0 0.0
    %4130 = vmatpush1.xpose.msra.mxu0 0.0
    %4131 = vmatprep.subr.mxu0 0.0
    %4132 = vmatpush1.xpose.msra.mxu0 0.0
    %4133 = vmatprep.subr.mxu0 0.0
    %4134 = vmatpush1.xpose.msra.mxu0 0.0
    %4135 = vmatprep.subr.mxu0 0.0
    %4136 = vmatpush1.xpose.msra.mxu0 0.0
    %4137 = vmatprep.subr.mxu0 0.0
    %4138 = vmatpush1.xpose.msra.mxu0 0.0
    %4139 = vmatprep.subr.mxu0 0.0
    %4140 = vmatpush1.xpose.msra.mxu0 0.0
    %4141 = vmatprep.subr.mxu0 0.0
    %4142 = vmatpush1.xpose.msra.mxu0 0.0
    %4143 = vmatprep.subr.mxu0 0.0
    %4144 = vmatpush1.xpose.msra.mxu0 0.0
    %4145 = vmatprep.subr.mxu0 0.0
    %4146 = vmatpush1.xpose.msra.mxu0 0.0
    %4147 = vmatprep.subr.mxu0 0.0
    %4148 = vmatpush1.xpose.msra.mxu0 0.0
    %4149 = vmatprep.subr.mxu0 0.0
    %4150 = vmatpush1.xpose.msra.mxu0 %v4117
    %4151 = vmatprep.subr.mxu0 0.0
    %4152 = vmatpush2.xpose.msra.mxu0 0.0
    %4153 = vmatprep.subr.mxu0 0.0
    %4154 = vmatpush2.xpose.msra.mxu0 0.0
    %4155 = vmatprep.subr.mxu0 0.0
    %4156 = vmatpush2.xpose.msra.mxu0 0.0
    %4157 = vmatprep.subr.mxu0 0.0
    %4158 = vmatpush2.xpose.msra.mxu0 0.0
    %4159 = vmatprep.subr.mxu0 0.0
    %4160 = vmatpush2.xpose.msra.mxu0 0.0
    %4161 = vmatprep.subr.mxu0 0.0
    %4162 = vmatpush2.xpose.msra.mxu0 0.0
    %4163 = vmatprep.subr.mxu0 0.0
    %4164 = vmatpush2.xpose.msra.mxu0 0.0
    %4165 = vmatprep.subr.mxu0 0.0
    %4166 = vmatpush2.xpose.msra.mxu0 0.0
    %4167 = vmatprep.subr.mxu0 0.0
    %4168 = vmatpush2.xpose.msra.mxu0 0.0
    %4169 = vmatprep.subr.mxu0 0.0
    %4170 = vmatpush2.xpose.msra.mxu0 0.0
    %4171 = vmatprep.subr.mxu0 0.0
    %4172 = vmatpush2.xpose.msra.mxu0 0.0
    %4173 = vmatprep.subr.mxu0 0.0
    %4174 = vmatpush2.xpose.msra.mxu0 0.0
    %4175 = vmatprep.subr.mxu0 0.0
    %4176 = vmatpush2.xpose.msra.mxu0 0.0
    %4177 = vmatprep.subr.mxu0 0.0
    %4178 = vmatpush2.xpose.msra.mxu0 0.0
    %4179 = vmatprep.subr.mxu0 0.0
    %4180 = vmatpush2.xpose.msra.mxu0 0.0
    %4181 = vmatprep.subr.mxu0 0.0
    %4182 = vmatpush2.xpose.msra.mxu0 0.0
    %4183 = vmatprep.mubr.f32.mxu0 0.0
    %4184 = vmatmul.mubr.f32.gmra.mxu0 %v4115
    %v4185 = vpop.f32.mrf.mxu0
    %v4186 = vadd.f32 0.0, %v4185
    %v4187 = vpop.f32.mrf.mxu0
    %4188 = vdwg.mxu0
    %4190 = vrot.lane.b32.xlu0 %v4109, 96
    %v4191 = vpop.permute.xlu0 %4190
    %v4192 = vsel %vm543, %v4109, 0
    %v4194 = vsel %vm543, %v4191, 0
    %4196 = vmatprep.subr.mxu0 0.0
    %4197 = vmatpush1.xpose.msra.mxu0 0.0
    %4198 = vmatprep.subr.mxu0 0.0
    %4199 = vmatpush1.xpose.msra.mxu0 0.0
    %4200 = vmatprep.subr.mxu0 0.0
    %4201 = vmatpush1.xpose.msra.mxu0 0.0
    %4202 = vmatprep.subr.mxu0 0.0
    %4203 = vmatpush1.xpose.msra.mxu0 0.0
    %4204 = vmatprep.subr.mxu0 0.0
    %4205 = vmatpush1.xpose.msra.mxu0 0.0
    %4206 = vmatprep.subr.mxu0 0.0
    %4207 = vmatpush1.xpose.msra.mxu0 0.0
    %4208 = vmatprep.subr.mxu0 0.0
    %4209 = vmatpush1.xpose.msra.mxu0 0.0
    %4210 = vmatprep.subr.mxu0 0.0
    %4211 = vmatpush1.xpose.msra.mxu0 0.0
    %4212 = vmatprep.subr.mxu0 0.0
    %4213 = vmatpush1.xpose.msra.mxu0 0.0
    %4214 = vmatprep.subr.mxu0 0.0
    %4215 = vmatpush1.xpose.msra.mxu0 0.0
    %4216 = vmatprep.subr.mxu0 0.0
    %4217 = vmatpush1.xpose.msra.mxu0 0.0
    %4218 = vmatprep.subr.mxu0 0.0
    %4219 = vmatpush1.xpose.msra.mxu0 0.0
    %4220 = vmatprep.subr.mxu0 0.0
    %4221 = vmatpush1.xpose.msra.mxu0 0.0
    %4222 = vmatprep.subr.mxu0 0.0
    %4223 = vmatpush1.xpose.msra.mxu0 0.0
    %4224 = vmatprep.subr.mxu0 0.0
    %4225 = vmatpush1.xpose.msra.mxu0 0.0
    %4226 = vmatprep.subr.mxu0 0.0
    %4227 = vmatpush1.xpose.msra.mxu0 %v4194
    %4228 = vmatprep.subr.mxu0 0.0
    %4229 = vmatpush2.xpose.msra.mxu0 0.0
    %4230 = vmatprep.subr.mxu0 0.0
    %4231 = vmatpush2.xpose.msra.mxu0 0.0
    %4232 = vmatprep.subr.mxu0 0.0
    %4233 = vmatpush2.xpose.msra.mxu0 0.0
    %4234 = vmatprep.subr.mxu0 0.0
    %4235 = vmatpush2.xpose.msra.mxu0 0.0
    %4236 = vmatprep.subr.mxu0 0.0
    %4237 = vmatpush2.xpose.msra.mxu0 0.0
    %4238 = vmatprep.subr.mxu0 0.0
    %4239 = vmatpush2.xpose.msra.mxu0 0.0
    %4240 = vmatprep.subr.mxu0 0.0
    %4241 = vmatpush2.xpose.msra.mxu0 0.0
    %4242 = vmatprep.subr.mxu0 0.0
    %4243 = vmatpush2.xpose.msra.mxu0 0.0
    %4244 = vmatprep.subr.mxu0 0.0
    %4245 = vmatpush2.xpose.msra.mxu0 0.0
    %4246 = vmatprep.subr.mxu0 0.0
    %4247 = vmatpush2.xpose.msra.mxu0 0.0
    %4248 = vmatprep.subr.mxu0 0.0
    %4249 = vmatpush2.xpose.msra.mxu0 0.0
    %4250 = vmatprep.subr.mxu0 0.0
    %4251 = vmatpush2.xpose.msra.mxu0 0.0
    %4252 = vmatprep.subr.mxu0 0.0
    %4253 = vmatpush2.xpose.msra.mxu0 0.0
    %4254 = vmatprep.subr.mxu0 0.0
    %4255 = vmatpush2.xpose.msra.mxu0 0.0
    %4256 = vmatprep.subr.mxu0 0.0
    %4257 = vmatpush2.xpose.msra.mxu0 0.0
    %4258 = vmatprep.subr.mxu0 0.0
    %4259 = vmatpush2.xpose.msra.mxu0 0.0
    %4260 = vmatprep.mubr.f32.mxu0 0.0
    %4261 = vmatmul.mubr.f32.gmra.mxu0 %v4192
    %v4262 = vpop.f32.mrf.mxu0
    %v4263 = vadd.f32 0.0, %v4262
    %v4264 = vpop.f32.mrf.mxu0
    %4265 = vdwg.mxu0
    %v4266 = vmul.f32 %v4186, 0.35355338
    %v4267 = vmul.f32 %v4263, 0.35355338
    %v4268 = vsel %vm427, -1e+09, %v4266
    %v4269 = vsel %vm428, -1e+09, %v4267
    %v4270 = vsel %vm543, %v4268, -inf
    %4271 = vmax.xlane.f32.xlu0 %v4270
    %v4272 = vpop.xlane.xlu0 %4271
    %v4273 = vsel %vm543, %v4269, -inf
    %4274 = vmax.xlane.f32.xlu0 %v4273
    %v4275 = vpop.xlane.xlu0 %4274
    %v4276 = vsub.f32 %v4268, %v4272
    %v4277 = vsub.f32 %v4269, %v4275
    %v4278 = vmul.f32 %v4276, 1.442695
    %v4279 = vpow.pop %v4278
    %v4280 = vmul.f32 %v4277, 1.442695
    %v4281 = vpow.pop %v4280
    %v4282 = vsel %vm543, %v4279, 0.0
    %4283 = vadd.xlane.f32.xlu0 %v4282
    %v4284 = vpop.xlane.xlu0 %4283
    %v4285 = vsel %vm543, %v4281, 0.0
    %4286 = vadd.xlane.f32.xlu0 %v4285
    %v4287 = vpop.xlane.xlu0 %4286
    %v4288 = vrcp.pop %v4284
    %v4289 = vrcp.pop %v4287
    %v4290 = vmul.f32 %v4279, %v4288
    %v4291 = vmul.f32 %v4281, %v4289
    %4292 = vrot.lane.b32.xlu0 %v4104, 64
    %v4293 = vpop.permute.xlu0 %4292
    %v4296 = vsel %vm543, %v4290, 0
    %4298 = vmatprep.subr.mxu0 0.0
    %4299 = vmatpush1.msra.mxu0 0.0
    %4300 = vmatprep.subr.mxu0 0.0
    %4301 = vmatpush1.msra.mxu0 0.0
    %4302 = vmatprep.subr.mxu0 0.0
    %4303 = vmatpush1.msra.mxu0 0.0
    %4304 = vmatprep.subr.mxu0 0.0
    %4305 = vmatpush1.msra.mxu0 0.0
    %4306 = vmatprep.subr.mxu0 0.0
    %4307 = vmatpush1.msra.mxu0 0.0
    %4308 = vmatprep.subr.mxu0 0.0
    %4309 = vmatpush1.msra.mxu0 0.0
    %4310 = vmatprep.subr.mxu0 0.0
    %4311 = vmatpush1.msra.mxu0 0.0
    %4312 = vmatprep.subr.mxu0 0.0
    %4313 = vmatpush1.msra.mxu0 0.0
    %4314 = vmatprep.subr.mxu0 0.0
    %4315 = vmatpush1.msra.mxu0 0.0
    %4316 = vmatprep.subr.mxu0 0.0
    %4317 = vmatpush1.msra.mxu0 0.0
    %4318 = vmatprep.subr.mxu0 0.0
    %4319 = vmatpush1.msra.mxu0 0.0
    %4320 = vmatprep.subr.mxu0 0.0
    %4321 = vmatpush1.msra.mxu0 0.0
    %4322 = vmatprep.subr.mxu0 0.0
    %4323 = vmatpush1.msra.mxu0 0.0
    %4324 = vmatprep.subr.mxu0 0.0
    %4325 = vmatpush1.msra.mxu0 0.0
    %4326 = vmatprep.subr.mxu0 0.0
    %4327 = vmatpush1.msra.mxu0 0.0
    %4328 = vmatprep.subr.mxu0 0.0
    %4329 = vmatpush1.msra.mxu0 %v4293
    %4330 = vmatprep.subr.mxu0 0.0
    %4331 = vmatpush2.msra.mxu0 0.0
    %4332 = vmatprep.subr.mxu0 0.0
    %4333 = vmatpush2.msra.mxu0 0.0
    %4334 = vmatprep.subr.mxu0 0.0
    %4335 = vmatpush2.msra.mxu0 0.0
    %4336 = vmatprep.subr.mxu0 0.0
    %4337 = vmatpush2.msra.mxu0 0.0
    %4338 = vmatprep.subr.mxu0 0.0
    %4339 = vmatpush2.msra.mxu0 0.0
    %4340 = vmatprep.subr.mxu0 0.0
    %4341 = vmatpush2.msra.mxu0 0.0
    %4342 = vmatprep.subr.mxu0 0.0
    %4343 = vmatpush2.msra.mxu0 0.0
    %4344 = vmatprep.subr.mxu0 0.0
    %4345 = vmatpush2.msra.mxu0 0.0
    %4346 = vmatprep.subr.mxu0 0.0
    %4347 = vmatpush2.msra.mxu0 0.0
    %4348 = vmatprep.subr.mxu0 0.0
    %4349 = vmatpush2.msra.mxu0 0.0
    %4350 = vmatprep.subr.mxu0 0.0
    %4351 = vmatpush2.msra.mxu0 0.0
    %4352 = vmatprep.subr.mxu0 0.0
    %4353 = vmatpush2.msra.mxu0 0.0
    %4354 = vmatprep.subr.mxu0 0.0
    %4355 = vmatpush2.msra.mxu0 0.0
    %4356 = vmatprep.subr.mxu0 0.0
    %4357 = vmatpush2.msra.mxu0 0.0
    %4358 = vmatprep.subr.mxu0 0.0
    %4359 = vmatpush2.msra.mxu0 0.0
    %4360 = vmatprep.subr.mxu0 0.0
    %4361 = vmatpush2.msra.mxu0 0.0
    %4362 = vmatprep.mubr.f32.mxu0 0.0
    %4363 = vmatmul.mubr.f32.gmra.mxu0 %v4296
    %v4364 = vpop.f32.mrf.mxu0
    %v4365 = vadd.f32 0.0, %v4364
    %v4366 = vpop.f32.mrf.mxu0
    %4367 = vdwg.mxu0
    %4368 = vrot.lane.b32.xlu0 %v4109, 64
    %v4369 = vpop.permute.xlu0 %4368
    %v4372 = vsel %vm543, %v4291, 0
    %4374 = vmatprep.subr.mxu0 0.0
    %4375 = vmatpush1.msra.mxu0 0.0
    %4376 = vmatprep.subr.mxu0 0.0
    %4377 = vmatpush1.msra.mxu0 0.0
    %4378 = vmatprep.subr.mxu0 0.0
    %4379 = vmatpush1.msra.mxu0 0.0
    %4380 = vmatprep.subr.mxu0 0.0
    %4381 = vmatpush1.msra.mxu0 0.0
    %4382 = vmatprep.subr.mxu0 0.0
    %4383 = vmatpush1.msra.mxu0 0.0
    %4384 = vmatprep.subr.mxu0 0.0
    %4385 = vmatpush1.msra.mxu0 0.0
    %4386 = vmatprep.subr.mxu0 0.0
    %4387 = vmatpush1.msra.mxu0 0.0
    %4388 = vmatprep.subr.mxu0 0.0
    %4389 = vmatpush1.msra.mxu0 0.0
    %4390 = vmatprep.subr.mxu0 0.0
    %4391 = vmatpush1.msra.mxu0 0.0
    %4392 = vmatprep.subr.mxu0 0.0
    %4393 = vmatpush1.msra.mxu0 0.0
    %4394 = vmatprep.subr.mxu0 0.0
    %4395 = vmatpush1.msra.mxu0 0.0
    %4396 = vmatprep.subr.mxu0 0.0
    %4397 = vmatpush1.msra.mxu0 0.0
    %4398 = vmatprep.subr.mxu0 0.0
    %4399 = vmatpush1.msra.mxu0 0.0
    %4400 = vmatprep.subr.mxu0 0.0
    %4401 = vmatpush1.msra.mxu0 0.0
    %4402 = vmatprep.subr.mxu0 0.0
    %4403 = vmatpush1.msra.mxu0 0.0
    %4404 = vmatprep.subr.mxu0 0.0
    %4405 = vmatpush1.msra.mxu0 %v4369
    %4406 = vmatprep.subr.mxu0 0.0
    %4407 = vmatpush2.msra.mxu0 0.0
    %4408 = vmatprep.subr.mxu0 0.0
    %4409 = vmatpush2.msra.mxu0 0.0
    %4410 = vmatprep.subr.mxu0 0.0
    %4411 = vmatpush2.msra.mxu0 0.0
    %4412 = vmatprep.subr.mxu0 0.0
    %4413 = vmatpush2.msra.mxu0 0.0
    %4414 = vmatprep.subr.mxu0 0.0
    %4415 = vmatpush2.msra.mxu0 0.0
    %4416 = vmatprep.subr.mxu0 0.0
    %4417 = vmatpush2.msra.mxu0 0.0
    %4418 = vmatprep.subr.mxu0 0.0
    %4419 = vmatpush2.msra.mxu0 0.0
    %4420 = vmatprep.subr.mxu0 0.0
    %4421 = vmatpush2.msra.mxu0 0.0
    %4422 = vmatprep.subr.mxu0 0.0
    %4423 = vmatpush2.msra.mxu0 0.0
    %4424 = vmatprep.subr.mxu0 0.0
    %4425 = vmatpush2.msra.mxu0 0.0
    %4426 = vmatprep.subr.mxu0 0.0
    %4427 = vmatpush2.msra.mxu0 0.0
    %4428 = vmatprep.subr.mxu0 0.0
    %4429 = vmatpush2.msra.mxu0 0.0
    %4430 = vmatprep.subr.mxu0 0.0
    %4431 = vmatpush2.msra.mxu0 0.0
    %4432 = vmatprep.subr.mxu0 0.0
    %4433 = vmatpush2.msra.mxu0 0.0
    %4434 = vmatprep.subr.mxu0 0.0
    %4435 = vmatpush2.msra.mxu0 0.0
    %4436 = vmatprep.subr.mxu0 0.0
    %4437 = vmatpush2.msra.mxu0 0.0
    %4438 = vmatprep.mubr.f32.mxu0 0.0
    %4439 = vmatmul.mubr.f32.gmra.mxu0 %v4372
    %v4440 = vpop.f32.mrf.mxu0
    %v4441 = vadd.f32 0.0, %v4440
    %v4442 = vpop.f32.mrf.mxu0
    %4443 = vdwg.mxu0
    %4444 = vrot.lane.b32.xlu0 %v4104, 120
    %v4445 = vpop.permute.xlu0 %4444
    %4446 = vrot.lane.b32.xlu0 %v4104, 88
    %v4447 = vpop.permute.xlu0 %4446
    %v4448 = vsel %vm543, %v4445, 0
    %v4450 = vsel %vm543, %v4447, 0
    %4452 = vmatprep.subr.mxu0 0.0
    %4453 = vmatpush1.xpose.msra.mxu0 0.0
    %4454 = vmatprep.subr.mxu0 0.0
    %4455 = vmatpush1.xpose.msra.mxu0 0.0
    %4456 = vmatprep.subr.mxu0 0.0
    %4457 = vmatpush1.xpose.msra.mxu0 0.0
    %4458 = vmatprep.subr.mxu0 0.0
    %4459 = vmatpush1.xpose.msra.mxu0 0.0
    %4460 = vmatprep.subr.mxu0 0.0
    %4461 = vmatpush1.xpose.msra.mxu0 0.0
    %4462 = vmatprep.subr.mxu0 0.0
    %4463 = vmatpush1.xpose.msra.mxu0 0.0
    %4464 = vmatprep.subr.mxu0 0.0
    %4465 = vmatpush1.xpose.msra.mxu0 0.0
    %4466 = vmatprep.subr.mxu0 0.0
    %4467 = vmatpush1.xpose.msra.mxu0 0.0
    %4468 = vmatprep.subr.mxu0 0.0
    %4469 = vmatpush1.xpose.msra.mxu0 0.0
    %4470 = vmatprep.subr.mxu0 0.0
    %4471 = vmatpush1.xpose.msra.mxu0 0.0
    %4472 = vmatprep.subr.mxu0 0.0
    %4473 = vmatpush1.xpose.msra.mxu0 0.0
    %4474 = vmatprep.subr.mxu0 0.0
    %4475 = vmatpush1.xpose.msra.mxu0 0.0
    %4476 = vmatprep.subr.mxu0 0.0
    %4477 = vmatpush1.xpose.msra.mxu0 0.0
    %4478 = vmatprep.subr.mxu0 0.0
    %4479 = vmatpush1.xpose.msra.mxu0 0.0
    %4480 = vmatprep.subr.mxu0 0.0
    %4481 = vmatpush1.xpose.msra.mxu0 0.0
    %4482 = vmatprep.subr.mxu0 0.0
    %4483 = vmatpush1.xpose.msra.mxu0 %v4450
    %4484 = vmatprep.subr.mxu0 0.0
    %4485 = vmatpush2.xpose.msra.mxu0 0.0
    %4486 = vmatprep.subr.mxu0 0.0
    %4487 = vmatpush2.xpose.msra.mxu0 0.0
    %4488 = vmatprep.subr.mxu0 0.0
    %4489 = vmatpush2.xpose.msra.mxu0 0.0
    %4490 = vmatprep.subr.mxu0 0.0
    %4491 = vmatpush2.xpose.msra.mxu0 0.0
    %4492 = vmatprep.subr.mxu0 0.0
    %4493 = vmatpush2.xpose.msra.mxu0 0.0
    %4494 = vmatprep.subr.mxu0 0.0
    %4495 = vmatpush2.xpose.msra.mxu0 0.0
    %4496 = vmatprep.subr.mxu0 0.0
    %4497 = vmatpush2.xpose.msra.mxu0 0.0
    %4498 = vmatprep.subr.mxu0 0.0
    %4499 = vmatpush2.xpose.msra.mxu0 0.0
    %4500 = vmatprep.subr.mxu0 0.0
    %4501 = vmatpush2.xpose.msra.mxu0 0.0
    %4502 = vmatprep.subr.mxu0 0.0
    %4503 = vmatpush2.xpose.msra.mxu0 0.0
    %4504 = vmatprep.subr.mxu0 0.0
    %4505 = vmatpush2.xpose.msra.mxu0 0.0
    %4506 = vmatprep.subr.mxu0 0.0
    %4507 = vmatpush2.xpose.msra.mxu0 0.0
    %4508 = vmatprep.subr.mxu0 0.0
    %4509 = vmatpush2.xpose.msra.mxu0 0.0
    %4510 = vmatprep.subr.mxu0 0.0
    %4511 = vmatpush2.xpose.msra.mxu0 0.0
    %4512 = vmatprep.subr.mxu0 0.0
    %4513 = vmatpush2.xpose.msra.mxu0 0.0
    %4514 = vmatprep.subr.mxu0 0.0
    %4515 = vmatpush2.xpose.msra.mxu0 0.0
    %4516 = vmatprep.mubr.f32.mxu0 0.0
    %4517 = vmatmul.mubr.f32.gmra.mxu0 %v4448
    %v4518 = vpop.f32.mrf.mxu0
    %v4519 = vadd.f32 0.0, %v4518
    %v4520 = vpop.f32.mrf.mxu0
    %4521 = vdwg.mxu0
    %4522 = vrot.lane.b32.xlu0 %v4109, 120
    %v4523 = vpop.permute.xlu0 %4522
    %4524 = vrot.lane.b32.xlu0 %v4109, 88
    %v4525 = vpop.permute.xlu0 %4524
    %v4526 = vsel %vm543, %v4523, 0
    %v4528 = vsel %vm543, %v4525, 0
    %4530 = vmatprep.subr.mxu0 0.0
    %4531 = vmatpush1.xpose.msra.mxu0 0.0
    %4532 = vmatprep.subr.mxu0 0.0
    %4533 = vmatpush1.xpose.msra.mxu0 0.0
    %4534 = vmatprep.subr.mxu0 0.0
    %4535 = vmatpush1.xpose.msra.mxu0 0.0
    %4536 = vmatprep.subr.mxu0 0.0
    %4537 = vmatpush1.xpose.msra.mxu0 0.0
    %4538 = vmatprep.subr.mxu0 0.0
    %4539 = vmatpush1.xpose.msra.mxu0 0.0
    %4540 = vmatprep.subr.mxu0 0.0
    %4541 = vmatpush1.xpose.msra.mxu0 0.0
    %4542 = vmatprep.subr.mxu0 0.0
    %4543 = vmatpush1.xpose.msra.mxu0 0.0
    %4544 = vmatprep.subr.mxu0 0.0
    %4545 = vmatpush1.xpose.msra.mxu0 0.0
    %4546 = vmatprep.subr.mxu0 0.0
    %4547 = vmatpush1.xpose.msra.mxu0 0.0
    %4548 = vmatprep.subr.mxu0 0.0
    %4549 = vmatpush1.xpose.msra.mxu0 0.0
    %4550 = vmatprep.subr.mxu0 0.0
    %4551 = vmatpush1.xpose.msra.mxu0 0.0
    %4552 = vmatprep.subr.mxu0 0.0
    %4553 = vmatpush1.xpose.msra.mxu0 0.0
    %4554 = vmatprep.subr.mxu0 0.0
    %4555 = vmatpush1.xpose.msra.mxu0 0.0
    %4556 = vmatprep.subr.mxu0 0.0
    %4557 = vmatpush1.xpose.msra.mxu0 0.0
    %4558 = vmatprep.subr.mxu0 0.0
    %4559 = vmatpush1.xpose.msra.mxu0 0.0
    %4560 = vmatprep.subr.mxu0 0.0
    %4561 = vmatpush1.xpose.msra.mxu0 %v4528
    %4562 = vmatprep.subr.mxu0 0.0
    %4563 = vmatpush2.xpose.msra.mxu0 0.0
    %4564 = vmatprep.subr.mxu0 0.0
    %4565 = vmatpush2.xpose.msra.mxu0 0.0
    %4566 = vmatprep.subr.mxu0 0.0
    %4567 = vmatpush2.xpose.msra.mxu0 0.0
    %4568 = vmatprep.subr.mxu0 0.0
    %4569 = vmatpush2.xpose.msra.mxu0 0.0
    %4570 = vmatprep.subr.mxu0 0.0
    %4571 = vmatpush2.xpose.msra.mxu0 0.0
    %4572 = vmatprep.subr.mxu0 0.0
    %4573 = vmatpush2.xpose.msra.mxu0 0.0
    %4574 = vmatprep.subr.mxu0 0.0
    %4575 = vmatpush2.xpose.msra.mxu0 0.0
    %4576 = vmatprep.subr.mxu0 0.0
    %4577 = vmatpush2.xpose.msra.mxu0 0.0
    %4578 = vmatprep.subr.mxu0 0.0
    %4579 = vmatpush2.xpose.msra.mxu0 0.0
    %4580 = vmatprep.subr.mxu0 0.0
    %4581 = vmatpush2.xpose.msra.mxu0 0.0
    %4582 = vmatprep.subr.mxu0 0.0
    %4583 = vmatpush2.xpose.msra.mxu0 0.0
    %4584 = vmatprep.subr.mxu0 0.0
    %4585 = vmatpush2.xpose.msra.mxu0 0.0
    %4586 = vmatprep.subr.mxu0 0.0
    %4587 = vmatpush2.xpose.msra.mxu0 0.0
    %4588 = vmatprep.subr.mxu0 0.0
    %4589 = vmatpush2.xpose.msra.mxu0 0.0
    %4590 = vmatprep.subr.mxu0 0.0
    %4591 = vmatpush2.xpose.msra.mxu0 0.0
    %4592 = vmatprep.subr.mxu0 0.0
    %4593 = vmatpush2.xpose.msra.mxu0 0.0
    %4594 = vmatprep.mubr.f32.mxu0 0.0
    %4595 = vmatmul.mubr.f32.gmra.mxu0 %v4526
    %v4596 = vpop.f32.mrf.mxu0
    %v4597 = vadd.f32 0.0, %v4596
    %v4598 = vpop.f32.mrf.mxu0
    %4599 = vdwg.mxu0
    %v4600 = vmul.f32 %v4519, 0.35355338
    %v4601 = vmul.f32 %v4597, 0.35355338
    %v4602 = vsel %vm427, -1e+09, %v4600
    %v4603 = vsel %vm428, -1e+09, %v4601
    %v4604 = vsel %vm543, %v4602, -inf
    %4605 = vmax.xlane.f32.xlu0 %v4604
    %v4606 = vpop.xlane.xlu0 %4605
    %v4607 = vsel %vm543, %v4603, -inf
    %4608 = vmax.xlane.f32.xlu0 %v4607
    %v4609 = vpop.xlane.xlu0 %4608
    %v4610 = vsub.f32 %v4602, %v4606
    %v4611 = vsub.f32 %v4603, %v4609
    %v4612 = vmul.f32 %v4610, 1.442695
    %v4613 = vpow.pop %v4612
    %v4614 = vmul.f32 %v4611, 1.442695
    %v4615 = vpow.pop %v4614
    %v4616 = vsel %vm543, %v4613, 0.0
    %4617 = vadd.xlane.f32.xlu0 %v4616
    %v4618 = vpop.xlane.xlu0 %4617
    %v4619 = vsel %vm543, %v4615, 0.0
    %4620 = vadd.xlane.f32.xlu0 %v4619
    %v4621 = vpop.xlane.xlu0 %4620
    %v4622 = vrcp.pop %v4618
    %v4623 = vrcp.pop %v4621
    %v4624 = vmul.f32 %v4613, %v4622
    %v4625 = vmul.f32 %v4615, %v4623
    %4626 = vrot.lane.b32.xlu0 %v4104, 56
    %v4627 = vpop.permute.xlu0 %4626
    %v4630 = vsel %vm543, %v4624, 0
    %4632 = vmatprep.subr.mxu0 0.0
    %4633 = vmatpush1.msra.mxu0 0.0
    %4634 = vmatprep.subr.mxu0 0.0
    %4635 = vmatpush1.msra.mxu0 0.0
    %4636 = vmatprep.subr.mxu0 0.0
    %4637 = vmatpush1.msra.mxu0 0.0
    %4638 = vmatprep.subr.mxu0 0.0
    %4639 = vmatpush1.msra.mxu0 0.0
    %4640 = vmatprep.subr.mxu0 0.0
    %4641 = vmatpush1.msra.mxu0 0.0
    %4642 = vmatprep.subr.mxu0 0.0
    %4643 = vmatpush1.msra.mxu0 0.0
    %4644 = vmatprep.subr.mxu0 0.0
    %4645 = vmatpush1.msra.mxu0 0.0
    %4646 = vmatprep.subr.mxu0 0.0
    %4647 = vmatpush1.msra.mxu0 0.0
    %4648 = vmatprep.subr.mxu0 0.0
    %4649 = vmatpush1.msra.mxu0 0.0
    %4650 = vmatprep.subr.mxu0 0.0
    %4651 = vmatpush1.msra.mxu0 0.0
    %4652 = vmatprep.subr.mxu0 0.0
    %4653 = vmatpush1.msra.mxu0 0.0
    %4654 = vmatprep.subr.mxu0 0.0
    %4655 = vmatpush1.msra.mxu0 0.0
    %4656 = vmatprep.subr.mxu0 0.0
    %4657 = vmatpush1.msra.mxu0 0.0
    %4658 = vmatprep.subr.mxu0 0.0
    %4659 = vmatpush1.msra.mxu0 0.0
    %4660 = vmatprep.subr.mxu0 0.0
    %4661 = vmatpush1.msra.mxu0 0.0
    %4662 = vmatprep.subr.mxu0 0.0
    %4663 = vmatpush1.msra.mxu0 %v4627
    %4664 = vmatprep.subr.mxu0 0.0
    %4665 = vmatpush2.msra.mxu0 0.0
    %4666 = vmatprep.subr.mxu0 0.0
    %4667 = vmatpush2.msra.mxu0 0.0
    %4668 = vmatprep.subr.mxu0 0.0
    %4669 = vmatpush2.msra.mxu0 0.0
    %4670 = vmatprep.subr.mxu0 0.0
    %4671 = vmatpush2.msra.mxu0 0.0
    %4672 = vmatprep.subr.mxu0 0.0
    %4673 = vmatpush2.msra.mxu0 0.0
    %4674 = vmatprep.subr.mxu0 0.0
    %4675 = vmatpush2.msra.mxu0 0.0
    %4676 = vmatprep.subr.mxu0 0.0
    %4677 = vmatpush2.msra.mxu0 0.0
    %4678 = vmatprep.subr.mxu0 0.0
    %4679 = vmatpush2.msra.mxu0 0.0
    %4680 = vmatprep.subr.mxu0 0.0
    %4681 = vmatpush2.msra.mxu0 0.0
    %4682 = vmatprep.subr.mxu0 0.0
    %4683 = vmatpush2.msra.mxu0 0.0
    %4684 = vmatprep.subr.mxu0 0.0
    %4685 = vmatpush2.msra.mxu0 0.0
    %4686 = vmatprep.subr.mxu0 0.0
    %4687 = vmatpush2.msra.mxu0 0.0
    %4688 = vmatprep.subr.mxu0 0.0
    %4689 = vmatpush2.msra.mxu0 0.0
    %4690 = vmatprep.subr.mxu0 0.0
    %4691 = vmatpush2.msra.mxu0 0.0
    %4692 = vmatprep.subr.mxu0 0.0
    %4693 = vmatpush2.msra.mxu0 0.0
    %4694 = vmatprep.subr.mxu0 0.0
    %4695 = vmatpush2.msra.mxu0 0.0
    %4696 = vmatprep.mubr.f32.mxu0 0.0
    %4697 = vmatmul.mubr.f32.gmra.mxu0 %v4630
    %v4698 = vpop.f32.mrf.mxu0
    %v4699 = vadd.f32 0.0, %v4698
    %v4700 = vpop.f32.mrf.mxu0
    %4701 = vdwg.mxu0
    %4702 = vrot.lane.b32.xlu0 %v4109, 56
    %v4703 = vpop.permute.xlu0 %4702
    %v4706 = vsel %vm543, %v4625, 0
    %4708 = vmatprep.subr.mxu0 0.0
    %4709 = vmatpush1.msra.mxu0 0.0
    %4710 = vmatprep.subr.mxu0 0.0
    %4711 = vmatpush1.msra.mxu0 0.0
    %4712 = vmatprep.subr.mxu0 0.0
    %4713 = vmatpush1.msra.mxu0 0.0
    %4714 = vmatprep.subr.mxu0 0.0
    %4715 = vmatpush1.msra.mxu0 0.0
    %4716 = vmatprep.subr.mxu0 0.0
    %4717 = vmatpush1.msra.mxu0 0.0
    %4718 = vmatprep.subr.mxu0 0.0
    %4719 = vmatpush1.msra.mxu0 0.0
    %4720 = vmatprep.subr.mxu0 0.0
    %4721 = vmatpush1.msra.mxu0 0.0
    %4722 = vmatprep.subr.mxu0 0.0
    %4723 = vmatpush1.msra.mxu0 0.0
    %4724 = vmatprep.subr.mxu0 0.0
    %4725 = vmatpush1.msra.mxu0 0.0
    %4726 = vmatprep.subr.mxu0 0.0
    %4727 = vmatpush1.msra.mxu0 0.0
    %4728 = vmatprep.subr.mxu0 0.0
    %4729 = vmatpush1.msra.mxu0 0.0
    %4730 = vmatprep.subr.mxu0 0.0
    %4731 = vmatpush1.msra.mxu0 0.0
    %4732 = vmatprep.subr.mxu0 0.0
    %4733 = vmatpush1.msra.mxu0 0.0
    %4734 = vmatprep.subr.mxu0 0.0
    %4735 = vmatpush1.msra.mxu0 0.0
    %4736 = vmatprep.subr.mxu0 0.0
    %4737 = vmatpush1.msra.mxu0 0.0
    %4738 = vmatprep.subr.mxu0 0.0
    %4739 = vmatpush1.msra.mxu0 %v4703
    %4740 = vmatprep.subr.mxu0 0.0
    %4741 = vmatpush2.msra.mxu0 0.0
    %4742 = vmatprep.subr.mxu0 0.0
    %4743 = vmatpush2.msra.mxu0 0.0
    %4744 = vmatprep.subr.mxu0 0.0
    %4745 = vmatpush2.msra.mxu0 0.0
    %4746 = vmatprep.subr.mxu0 0.0
    %4747 = vmatpush2.msra.mxu0 0.0
    %4748 = vmatprep.subr.mxu0 0.0
    %4749 = vmatpush2.msra.mxu0 0.0
    %4750 = vmatprep.subr.mxu0 0.0
    %4751 = vmatpush2.msra.mxu0 0.0
    %4752 = vmatprep.subr.mxu0 0.0
    %4753 = vmatpush2.msra.mxu0 0.0
    %4754 = vmatprep.subr.mxu0 0.0
    %4755 = vmatpush2.msra.mxu0 0.0
    %4756 = vmatprep.subr.mxu0 0.0
    %4757 = vmatpush2.msra.mxu0 0.0
    %4758 = vmatprep.subr.mxu0 0.0
    %4759 = vmatpush2.msra.mxu0 0.0
    %4760 = vmatprep.subr.mxu0 0.0
    %4761 = vmatpush2.msra.mxu0 0.0
    %4762 = vmatprep.subr.mxu0 0.0
    %4763 = vmatpush2.msra.mxu0 0.0
    %4764 = vmatprep.subr.mxu0 0.0
    %4765 = vmatpush2.msra.mxu0 0.0
    %4766 = vmatprep.subr.mxu0 0.0
    %4767 = vmatpush2.msra.mxu0 0.0
    %4768 = vmatprep.subr.mxu0 0.0
    %4769 = vmatpush2.msra.mxu0 0.0
    %4770 = vmatprep.subr.mxu0 0.0
    %4771 = vmatpush2.msra.mxu0 0.0
    %4772 = vmatprep.mubr.f32.mxu0 0.0
    %4773 = vmatmul.mubr.f32.gmra.mxu0 %v4706
    %v4774 = vpop.f32.mrf.mxu0
    %v4775 = vadd.f32 0.0, %v4774
    %v4776 = vpop.f32.mrf.mxu0
    %4777 = vdwg.mxu0
    %4778 = vrot.lane.b32.xlu0 %v4104, 112
    %v4779 = vpop.permute.xlu0 %4778
    %4780 = vrot.lane.b32.xlu0 %v4104, 80
    %v4781 = vpop.permute.xlu0 %4780
    %v4782 = vsel %vm543, %v4779, 0
    %v4784 = vsel %vm543, %v4781, 0
    %4786 = vmatprep.subr.mxu0 0.0
    %4787 = vmatpush1.xpose.msra.mxu0 0.0
    %4788 = vmatprep.subr.mxu0 0.0
    %4789 = vmatpush1.xpose.msra.mxu0 0.0
    %4790 = vmatprep.subr.mxu0 0.0
    %4791 = vmatpush1.xpose.msra.mxu0 0.0
    %4792 = vmatprep.subr.mxu0 0.0
    %4793 = vmatpush1.xpose.msra.mxu0 0.0
    %4794 = vmatprep.subr.mxu0 0.0
    %4795 = vmatpush1.xpose.msra.mxu0 0.0
    %4796 = vmatprep.subr.mxu0 0.0
    %4797 = vmatpush1.xpose.msra.mxu0 0.0
    %4798 = vmatprep.subr.mxu0 0.0
    %4799 = vmatpush1.xpose.msra.mxu0 0.0
    %4800 = vmatprep.subr.mxu0 0.0
    %4801 = vmatpush1.xpose.msra.mxu0 0.0
    %4802 = vmatprep.subr.mxu0 0.0
    %4803 = vmatpush1.xpose.msra.mxu0 0.0
    %4804 = vmatprep.subr.mxu0 0.0
    %4805 = vmatpush1.xpose.msra.mxu0 0.0
    %4806 = vmatprep.subr.mxu0 0.0
    %4807 = vmatpush1.xpose.msra.mxu0 0.0
    %4808 = vmatprep.subr.mxu0 0.0
    %4809 = vmatpush1.xpose.msra.mxu0 0.0
    %4810 = vmatprep.subr.mxu0 0.0
    %4811 = vmatpush1.xpose.msra.mxu0 0.0
    %4812 = vmatprep.subr.mxu0 0.0
    %4813 = vmatpush1.xpose.msra.mxu0 0.0
    %4814 = vmatprep.subr.mxu0 0.0
    %4815 = vmatpush1.xpose.msra.mxu0 0.0
    %4816 = vmatprep.subr.mxu0 0.0
    %4817 = vmatpush1.xpose.msra.mxu0 %v4784
    %4818 = vmatprep.subr.mxu0 0.0
    %4819 = vmatpush2.xpose.msra.mxu0 0.0
    %4820 = vmatprep.subr.mxu0 0.0
    %4821 = vmatpush2.xpose.msra.mxu0 0.0
    %4822 = vmatprep.subr.mxu0 0.0
    %4823 = vmatpush2.xpose.msra.mxu0 0.0
    %4824 = vmatprep.subr.mxu0 0.0
    %4825 = vmatpush2.xpose.msra.mxu0 0.0
    %4826 = vmatprep.subr.mxu0 0.0
    %4827 = vmatpush2.xpose.msra.mxu0 0.0
    %4828 = vmatprep.subr.mxu0 0.0
    %4829 = vmatpush2.xpose.msra.mxu0 0.0
    %4830 = vmatprep.subr.mxu0 0.0
    %4831 = vmatpush2.xpose.msra.mxu0 0.0
    %4832 = vmatprep.subr.mxu0 0.0
    %4833 = vmatpush2.xpose.msra.mxu0 0.0
    %4834 = vmatprep.subr.mxu0 0.0
    %4835 = vmatpush2.xpose.msra.mxu0 0.0
    %4836 = vmatprep.subr.mxu0 0.0
    %4837 = vmatpush2.xpose.msra.mxu0 0.0
    %4838 = vmatprep.subr.mxu0 0.0
    %4839 = vmatpush2.xpose.msra.mxu0 0.0
    %4840 = vmatprep.subr.mxu0 0.0
    %4841 = vmatpush2.xpose.msra.mxu0 0.0
    %4842 = vmatprep.subr.mxu0 0.0
    %4843 = vmatpush2.xpose.msra.mxu0 0.0
    %4844 = vmatprep.subr.mxu0 0.0
    %4845 = vmatpush2.xpose.msra.mxu0 0.0
    %4846 = vmatprep.subr.mxu0 0.0
    %4847 = vmatpush2.xpose.msra.mxu0 0.0
    %4848 = vmatprep.subr.mxu0 0.0
    %4849 = vmatpush2.xpose.msra.mxu0 0.0
    %4850 = vmatprep.mubr.f32.mxu0 0.0
    %4851 = vmatmul.mubr.f32.gmra.mxu0 %v4782
    %v4852 = vpop.f32.mrf.mxu0
    %v4853 = vadd.f32 0.0, %v4852
    %v4854 = vpop.f32.mrf.mxu0
    %4855 = vdwg.mxu0
    %4856 = vrot.lane.b32.xlu0 %v4109, 112
    %v4857 = vpop.permute.xlu0 %4856
    %4858 = vrot.lane.b32.xlu0 %v4109, 80
    %v4859 = vpop.permute.xlu0 %4858
    %v4860 = vsel %vm543, %v4857, 0
    %v4862 = vsel %vm543, %v4859, 0
    %4864 = vmatprep.subr.mxu0 0.0
    %4865 = vmatpush1.xpose.msra.mxu0 0.0
    %4866 = vmatprep.subr.mxu0 0.0
    %4867 = vmatpush1.xpose.msra.mxu0 0.0
    %4868 = vmatprep.subr.mxu0 0.0
    %4869 = vmatpush1.xpose.msra.mxu0 0.0
    %4870 = vmatprep.subr.mxu0 0.0
    %4871 = vmatpush1.xpose.msra.mxu0 0.0
    %4872 = vmatprep.subr.mxu0 0.0
    %4873 = vmatpush1.xpose.msra.mxu0 0.0
    %4874 = vmatprep.subr.mxu0 0.0
    %4875 = vmatpush1.xpose.msra.mxu0 0.0
    %4876 = vmatprep.subr.mxu0 0.0
    %4877 = vmatpush1.xpose.msra.mxu0 0.0
    %4878 = vmatprep.subr.mxu0 0.0
    %4879 = vmatpush1.xpose.msra.mxu0 0.0
    %4880 = vmatprep.subr.mxu0 0.0
    %4881 = vmatpush1.xpose.msra.mxu0 0.0
    %4882 = vmatprep.subr.mxu0 0.0
    %4883 = vmatpush1.xpose.msra.mxu0 0.0
    %4884 = vmatprep.subr.mxu0 0.0
    %4885 = vmatpush1.xpose.msra.mxu0 0.0
    %4886 = vmatprep.subr.mxu0 0.0
    %4887 = vmatpush1.xpose.msra.mxu0 0.0
    %4888 = vmatprep.subr.mxu0 0.0
    %4889 = vmatpush1.xpose.msra.mxu0 0.0
    %4890 = vmatprep.subr.mxu0 0.0
    %4891 = vmatpush1.xpose.msra.mxu0 0.0
    %4892 = vmatprep.subr.mxu0 0.0
    %4893 = vmatpush1.xpose.msra.mxu0 0.0
    %4894 = vmatprep.subr.mxu0 0.0
    %4895 = vmatpush1.xpose.msra.mxu0 %v4862
    %4896 = vmatprep.subr.mxu0 0.0
    %4897 = vmatpush2.xpose.msra.mxu0 0.0
    %4898 = vmatprep.subr.mxu0 0.0
    %4899 = vmatpush2.xpose.msra.mxu0 0.0
    %4900 = vmatprep.subr.mxu0 0.0
    %4901 = vmatpush2.xpose.msra.mxu0 0.0
    %4902 = vmatprep.subr.mxu0 0.0
    %4903 = vmatpush2.xpose.msra.mxu0 0.0
    %4904 = vmatprep.subr.mxu0 0.0
    %4905 = vmatpush2.xpose.msra.mxu0 0.0
    %4906 = vmatprep.subr.mxu0 0.0
    %4907 = vmatpush2.xpose.msra.mxu0 0.0
    %4908 = vmatprep.subr.mxu0 0.0
    %4909 = vmatpush2.xpose.msra.mxu0 0.0
    %4910 = vmatprep.subr.mxu0 0.0
    %4911 = vmatpush2.xpose.msra.mxu0 0.0
    %4912 = vmatprep.subr.mxu0 0.0
    %4913 = vmatpush2.xpose.msra.mxu0 0.0
    %4914 = vmatprep.subr.mxu0 0.0
    %4915 = vmatpush2.xpose.msra.mxu0 0.0
    %4916 = vmatprep.subr.mxu0 0.0
    %4917 = vmatpush2.xpose.msra.mxu0 0.0
    %4918 = vmatprep.subr.mxu0 0.0
    %4919 = vmatpush2.xpose.msra.mxu0 0.0
    %4920 = vmatprep.subr.mxu0 0.0
    %4921 = vmatpush2.xpose.msra.mxu0 0.0
    %4922 = vmatprep.subr.mxu0 0.0
    %4923 = vmatpush2.xpose.msra.mxu0 0.0
    %4924 = vmatprep.subr.mxu0 0.0
    %4925 = vmatpush2.xpose.msra.mxu0 0.0
    %4926 = vmatprep.subr.mxu0 0.0
    %4927 = vmatpush2.xpose.msra.mxu0 0.0
    %4928 = vmatprep.mubr.f32.mxu0 0.0
    %4929 = vmatmul.mubr.f32.gmra.mxu0 %v4860
    %v4930 = vpop.f32.mrf.mxu0
    %v4931 = vadd.f32 0.0, %v4930
    %v4932 = vpop.f32.mrf.mxu0
    %4933 = vdwg.mxu0
    %v4934 = vmul.f32 %v4853, 0.35355338
    %v4935 = vmul.f32 %v4931, 0.35355338
    %v4936 = vsel %vm427, -1e+09, %v4934
    %v4937 = vsel %vm428, -1e+09, %v4935
    %v4938 = vsel %vm543, %v4936, -inf
    %4939 = vmax.xlane.f32.xlu0 %v4938
    %v4940 = vpop.xlane.xlu0 %4939
    %v4941 = vsel %vm543, %v4937, -inf
    %4942 = vmax.xlane.f32.xlu0 %v4941
    %v4943 = vpop.xlane.xlu0 %4942
    %v4944 = vsub.f32 %v4936, %v4940
    %v4945 = vsub.f32 %v4937, %v4943
    %v4946 = vmul.f32 %v4944, 1.442695
    %v4947 = vpow.pop %v4946
    %v4948 = vmul.f32 %v4945, 1.442695
    %v4949 = vpow.pop %v4948
    %v4950 = vsel %vm543, %v4947, 0.0
    %4951 = vadd.xlane.f32.xlu0 %v4950
    %v4952 = vpop.xlane.xlu0 %4951
    %v4953 = vsel %vm543, %v4949, 0.0
    %4954 = vadd.xlane.f32.xlu0 %v4953
    %v4955 = vpop.xlane.xlu0 %4954
    %v4956 = vrcp.pop %v4952
    %v4957 = vrcp.pop %v4955
    %v4958 = vmul.f32 %v4947, %v4956
    %v4959 = vmul.f32 %v4949, %v4957
    %4960 = vrot.lane.b32.xlu0 %v4104, 48
    %v4961 = vpop.permute.xlu0 %4960
    %v4964 = vsel %vm543, %v4958, 0
    %4966 = vmatprep.subr.mxu0 0.0
    %4967 = vmatpush1.msra.mxu0 0.0
    %4968 = vmatprep.subr.mxu0 0.0
    %4969 = vmatpush1.msra.mxu0 0.0
    %4970 = vmatprep.subr.mxu0 0.0
    %4971 = vmatpush1.msra.mxu0 0.0
    %4972 = vmatprep.subr.mxu0 0.0
    %4973 = vmatpush1.msra.mxu0 0.0
    %4974 = vmatprep.subr.mxu0 0.0
    %4975 = vmatpush1.msra.mxu0 0.0
    %4976 = vmatprep.subr.mxu0 0.0
    %4977 = vmatpush1.msra.mxu0 0.0
    %4978 = vmatprep.subr.mxu0 0.0
    %4979 = vmatpush1.msra.mxu0 0.0
    %4980 = vmatprep.subr.mxu0 0.0
    %4981 = vmatpush1.msra.mxu0 0.0
    %4982 = vmatprep.subr.mxu0 0.0
    %4983 = vmatpush1.msra.mxu0 0.0
    %4984 = vmatprep.subr.mxu0 0.0
    %4985 = vmatpush1.msra.mxu0 0.0
    %4986 = vmatprep.subr.mxu0 0.0
    %4987 = vmatpush1.msra.mxu0 0.0
    %4988 = vmatprep.subr.mxu0 0.0
    %4989 = vmatpush1.msra.mxu0 0.0
    %4990 = vmatprep.subr.mxu0 0.0
    %4991 = vmatpush1.msra.mxu0 0.0
    %4992 = vmatprep.subr.mxu0 0.0
    %4993 = vmatpush1.msra.mxu0 0.0
    %4994 = vmatprep.subr.mxu0 0.0
    %4995 = vmatpush1.msra.mxu0 0.0
    %4996 = vmatprep.subr.mxu0 0.0
    %4997 = vmatpush1.msra.mxu0 %v4961
    %4998 = vmatprep.subr.mxu0 0.0
    %4999 = vmatpush2.msra.mxu0 0.0
    %5000 = vmatprep.subr.mxu0 0.0
    %5001 = vmatpush2.msra.mxu0 0.0
    %5002 = vmatprep.subr.mxu0 0.0
    %5003 = vmatpush2.msra.mxu0 0.0
    %5004 = vmatprep.subr.mxu0 0.0
    %5005 = vmatpush2.msra.mxu0 0.0
    %5006 = vmatprep.subr.mxu0 0.0
    %5007 = vmatpush2.msra.mxu0 0.0
    %5008 = vmatprep.subr.mxu0 0.0
    %5009 = vmatpush2.msra.mxu0 0.0
    %5010 = vmatprep.subr.mxu0 0.0
    %5011 = vmatpush2.msra.mxu0 0.0
    %5012 = vmatprep.subr.mxu0 0.0
    %5013 = vmatpush2.msra.mxu0 0.0
    %5014 = vmatprep.subr.mxu0 0.0
    %5015 = vmatpush2.msra.mxu0 0.0
    %5016 = vmatprep.subr.mxu0 0.0
    %5017 = vmatpush2.msra.mxu0 0.0
    %5018 = vmatprep.subr.mxu0 0.0
    %5019 = vmatpush2.msra.mxu0 0.0
    %5020 = vmatprep.subr.mxu0 0.0
    %5021 = vmatpush2.msra.mxu0 0.0
    %5022 = vmatprep.subr.mxu0 0.0
    %5023 = vmatpush2.msra.mxu0 0.0
    %5024 = vmatprep.subr.mxu0 0.0
    %5025 = vmatpush2.msra.mxu0 0.0
    %5026 = vmatprep.subr.mxu0 0.0
    %5027 = vmatpush2.msra.mxu0 0.0
    %5028 = vmatprep.subr.mxu0 0.0
    %5029 = vmatpush2.msra.mxu0 0.0
    %5030 = vmatprep.mubr.f32.mxu0 0.0
    %5031 = vmatmul.mubr.f32.gmra.mxu0 %v4964
    %v5032 = vpop.f32.mrf.mxu0
    %v5033 = vadd.f32 0.0, %v5032
    %v5034 = vpop.f32.mrf.mxu0
    %5035 = vdwg.mxu0
    %5036 = vrot.lane.b32.xlu0 %v4109, 48
    %v5037 = vpop.permute.xlu0 %5036
    %v5040 = vsel %vm543, %v4959, 0
    %5042 = vmatprep.subr.mxu0 0.0
    %5043 = vmatpush1.msra.mxu0 0.0
    %5044 = vmatprep.subr.mxu0 0.0
    %5045 = vmatpush1.msra.mxu0 0.0
    %5046 = vmatprep.subr.mxu0 0.0
    %5047 = vmatpush1.msra.mxu0 0.0
    %5048 = vmatprep.subr.mxu0 0.0
    %5049 = vmatpush1.msra.mxu0 0.0
    %5050 = vmatprep.subr.mxu0 0.0
    %5051 = vmatpush1.msra.mxu0 0.0
    %5052 = vmatprep.subr.mxu0 0.0
    %5053 = vmatpush1.msra.mxu0 0.0
    %5054 = vmatprep.subr.mxu0 0.0
    %5055 = vmatpush1.msra.mxu0 0.0
    %5056 = vmatprep.subr.mxu0 0.0
    %5057 = vmatpush1.msra.mxu0 0.0
    %5058 = vmatprep.subr.mxu0 0.0
    %5059 = vmatpush1.msra.mxu0 0.0
    %5060 = vmatprep.subr.mxu0 0.0
    %5061 = vmatpush1.msra.mxu0 0.0
    %5062 = vmatprep.subr.mxu0 0.0
    %5063 = vmatpush1.msra.mxu0 0.0
    %5064 = vmatprep.subr.mxu0 0.0
    %5065 = vmatpush1.msra.mxu0 0.0
    %5066 = vmatprep.subr.mxu0 0.0
    %5067 = vmatpush1.msra.mxu0 0.0
    %5068 = vmatprep.subr.mxu0 0.0
    %5069 = vmatpush1.msra.mxu0 0.0
    %5070 = vmatprep.subr.mxu0 0.0
    %5071 = vmatpush1.msra.mxu0 0.0
    %5072 = vmatprep.subr.mxu0 0.0
    %5073 = vmatpush1.msra.mxu0 %v5037
    %5074 = vmatprep.subr.mxu0 0.0
    %5075 = vmatpush2.msra.mxu0 0.0
    %5076 = vmatprep.subr.mxu0 0.0
    %5077 = vmatpush2.msra.mxu0 0.0
    %5078 = vmatprep.subr.mxu0 0.0
    %5079 = vmatpush2.msra.mxu0 0.0
    %5080 = vmatprep.subr.mxu0 0.0
    %5081 = vmatpush2.msra.mxu0 0.0
    %5082 = vmatprep.subr.mxu0 0.0
    %5083 = vmatpush2.msra.mxu0 0.0
    %5084 = vmatprep.subr.mxu0 0.0
    %5085 = vmatpush2.msra.mxu0 0.0
    %5086 = vmatprep.subr.mxu0 0.0
    %5087 = vmatpush2.msra.mxu0 0.0
    %5088 = vmatprep.subr.mxu0 0.0
    %5089 = vmatpush2.msra.mxu0 0.0
    %5090 = vmatprep.subr.mxu0 0.0
    %5091 = vmatpush2.msra.mxu0 0.0
    %5092 = vmatprep.subr.mxu0 0.0
    %5093 = vmatpush2.msra.mxu0 0.0
    %5094 = vmatprep.subr.mxu0 0.0
    %5095 = vmatpush2.msra.mxu0 0.0
    %5096 = vmatprep.subr.mxu0 0.0
    %5097 = vmatpush2.msra.mxu0 0.0
    %5098 = vmatprep.subr.mxu0 0.0
    %5099 = vmatpush2.msra.mxu0 0.0
    %5100 = vmatprep.subr.mxu0 0.0
    %5101 = vmatpush2.msra.mxu0 0.0
    %5102 = vmatprep.subr.mxu0 0.0
    %5103 = vmatpush2.msra.mxu0 0.0
    %5104 = vmatprep.subr.mxu0 0.0
    %5105 = vmatpush2.msra.mxu0 0.0
    %5106 = vmatprep.mubr.f32.mxu0 0.0
    %5107 = vmatmul.mubr.f32.gmra.mxu0 %v5040
    %v5108 = vpop.f32.mrf.mxu0
    %v5109 = vadd.f32 0.0, %v5108
    %v5110 = vpop.f32.mrf.mxu0
    %5111 = vdwg.mxu0
    %5112 = vrot.lane.b32.xlu0 %v4104, 104
    %v5113 = vpop.permute.xlu0 %5112
    %5114 = vrot.lane.b32.xlu0 %v4104, 72
    %v5115 = vpop.permute.xlu0 %5114
    %v5116 = vsel %vm543, %v5113, 0
    %v5118 = vsel %vm543, %v5115, 0
    %5120 = vmatprep.subr.mxu0 0.0
    %5121 = vmatpush1.xpose.msra.mxu0 0.0
    %5122 = vmatprep.subr.mxu0 0.0
    %5123 = vmatpush1.xpose.msra.mxu0 0.0
    %5124 = vmatprep.subr.mxu0 0.0
    %5125 = vmatpush1.xpose.msra.mxu0 0.0
    %5126 = vmatprep.subr.mxu0 0.0
    %5127 = vmatpush1.xpose.msra.mxu0 0.0
    %5128 = vmatprep.subr.mxu0 0.0
    %5129 = vmatpush1.xpose.msra.mxu0 0.0
    %5130 = vmatprep.subr.mxu0 0.0
    %5131 = vmatpush1.xpose.msra.mxu0 0.0
    %5132 = vmatprep.subr.mxu0 0.0
    %5133 = vmatpush1.xpose.msra.mxu0 0.0
    %5134 = vmatprep.subr.mxu0 0.0
    %5135 = vmatpush1.xpose.msra.mxu0 0.0
    %5136 = vmatprep.subr.mxu0 0.0
    %5137 = vmatpush1.xpose.msra.mxu0 0.0
    %5138 = vmatprep.subr.mxu0 0.0
    %5139 = vmatpush1.xpose.msra.mxu0 0.0
    %5140 = vmatprep.subr.mxu0 0.0
    %5141 = vmatpush1.xpose.msra.mxu0 0.0
    %5142 = vmatprep.subr.mxu0 0.0
    %5143 = vmatpush1.xpose.msra.mxu0 0.0
    %5144 = vmatprep.subr.mxu0 0.0
    %5145 = vmatpush1.xpose.msra.mxu0 0.0
    %5146 = vmatprep.subr.mxu0 0.0
    %5147 = vmatpush1.xpose.msra.mxu0 0.0
    %5148 = vmatprep.subr.mxu0 0.0
    %5149 = vmatpush1.xpose.msra.mxu0 0.0
    %5150 = vmatprep.subr.mxu0 0.0
    %5151 = vmatpush1.xpose.msra.mxu0 %v5118
    %5152 = vmatprep.subr.mxu0 0.0
    %5153 = vmatpush2.xpose.msra.mxu0 0.0
    %5154 = vmatprep.subr.mxu0 0.0
    %5155 = vmatpush2.xpose.msra.mxu0 0.0
    %5156 = vmatprep.subr.mxu0 0.0
    %5157 = vmatpush2.xpose.msra.mxu0 0.0
    %5158 = vmatprep.subr.mxu0 0.0
    %5159 = vmatpush2.xpose.msra.mxu0 0.0
    %5160 = vmatprep.subr.mxu0 0.0
    %5161 = vmatpush2.xpose.msra.mxu0 0.0
    %5162 = vmatprep.subr.mxu0 0.0
    %5163 = vmatpush2.xpose.msra.mxu0 0.0
    %5164 = vmatprep.subr.mxu0 0.0
    %5165 = vmatpush2.xpose.msra.mxu0 0.0
    %5166 = vmatprep.subr.mxu0 0.0
    %5167 = vmatpush2.xpose.msra.mxu0 0.0
    %5168 = vmatprep.subr.mxu0 0.0
    %5169 = vmatpush2.xpose.msra.mxu0 0.0
    %5170 = vmatprep.subr.mxu0 0.0
    %5171 = vmatpush2.xpose.msra.mxu0 0.0
    %5172 = vmatprep.subr.mxu0 0.0
    %5173 = vmatpush2.xpose.msra.mxu0 0.0
    %5174 = vmatprep.subr.mxu0 0.0
    %5175 = vmatpush2.xpose.msra.mxu0 0.0
    %5176 = vmatprep.subr.mxu0 0.0
    %5177 = vmatpush2.xpose.msra.mxu0 0.0
    %5178 = vmatprep.subr.mxu0 0.0
    %5179 = vmatpush2.xpose.msra.mxu0 0.0
    %5180 = vmatprep.subr.mxu0 0.0
    %5181 = vmatpush2.xpose.msra.mxu0 0.0
    %5182 = vmatprep.subr.mxu0 0.0
    %5183 = vmatpush2.xpose.msra.mxu0 0.0
    %5184 = vmatprep.mubr.f32.mxu0 0.0
    %5185 = vmatmul.mubr.f32.gmra.mxu0 %v5116
    %v5186 = vpop.f32.mrf.mxu0
    %v5187 = vadd.f32 0.0, %v5186
    %v5188 = vpop.f32.mrf.mxu0
    %5189 = vdwg.mxu0
    %5190 = vrot.lane.b32.xlu0 %v4109, 104
    %v5191 = vpop.permute.xlu0 %5190
    %5192 = vrot.lane.b32.xlu0 %v4109, 72
    %v5193 = vpop.permute.xlu0 %5192
    %v5194 = vsel %vm543, %v5191, 0
    %v5196 = vsel %vm543, %v5193, 0
    %5198 = vmatprep.subr.mxu0 0.0
    %5199 = vmatpush1.xpose.msra.mxu0 0.0
    %5200 = vmatprep.subr.mxu0 0.0
    %5201 = vmatpush1.xpose.msra.mxu0 0.0
    %5202 = vmatprep.subr.mxu0 0.0
    %5203 = vmatpush1.xpose.msra.mxu0 0.0
    %5204 = vmatprep.subr.mxu0 0.0
    %5205 = vmatpush1.xpose.msra.mxu0 0.0
    %5206 = vmatprep.subr.mxu0 0.0
    %5207 = vmatpush1.xpose.msra.mxu0 0.0
    %5208 = vmatprep.subr.mxu0 0.0
    %5209 = vmatpush1.xpose.msra.mxu0 0.0
    %5210 = vmatprep.subr.mxu0 0.0
    %5211 = vmatpush1.xpose.msra.mxu0 0.0
    %5212 = vmatprep.subr.mxu0 0.0
    %5213 = vmatpush1.xpose.msra.mxu0 0.0
    %5214 = vmatprep.subr.mxu0 0.0
    %5215 = vmatpush1.xpose.msra.mxu0 0.0
    %5216 = vmatprep.subr.mxu0 0.0
    %5217 = vmatpush1.xpose.msra.mxu0 0.0
    %5218 = vmatprep.subr.mxu0 0.0
    %5219 = vmatpush1.xpose.msra.mxu0 0.0
    %5220 = vmatprep.subr.mxu0 0.0
    %5221 = vmatpush1.xpose.msra.mxu0 0.0
    %5222 = vmatprep.subr.mxu0 0.0
    %5223 = vmatpush1.xpose.msra.mxu0 0.0
    %5224 = vmatprep.subr.mxu0 0.0
    %5225 = vmatpush1.xpose.msra.mxu0 0.0
    %5226 = vmatprep.subr.mxu0 0.0
    %5227 = vmatpush1.xpose.msra.mxu0 0.0
    %5228 = vmatprep.subr.mxu0 0.0
    %5229 = vmatpush1.xpose.msra.mxu0 %v5196
    %5230 = vmatprep.subr.mxu0 0.0
    %5231 = vmatpush2.xpose.msra.mxu0 0.0
    %5232 = vmatprep.subr.mxu0 0.0
    %5233 = vmatpush2.xpose.msra.mxu0 0.0
    %5234 = vmatprep.subr.mxu0 0.0
    %5235 = vmatpush2.xpose.msra.mxu0 0.0
    %5236 = vmatprep.subr.mxu0 0.0
    %5237 = vmatpush2.xpose.msra.mxu0 0.0
    %5238 = vmatprep.subr.mxu0 0.0
    %5239 = vmatpush2.xpose.msra.mxu0 0.0
    %5240 = vmatprep.subr.mxu0 0.0
    %5241 = vmatpush2.xpose.msra.mxu0 0.0
    %5242 = vmatprep.subr.mxu0 0.0
    %5243 = vmatpush2.xpose.msra.mxu0 0.0
    %5244 = vmatprep.subr.mxu0 0.0
    %5245 = vmatpush2.xpose.msra.mxu0 0.0
    %5246 = vmatprep.subr.mxu0 0.0
    %5247 = vmatpush2.xpose.msra.mxu0 0.0
    %5248 = vmatprep.subr.mxu0 0.0
    %5249 = vmatpush2.xpose.msra.mxu0 0.0
    %5250 = vmatprep.subr.mxu0 0.0
    %5251 = vmatpush2.xpose.msra.mxu0 0.0
    %5252 = vmatprep.subr.mxu0 0.0
    %5253 = vmatpush2.xpose.msra.mxu0 0.0
    %5254 = vmatprep.subr.mxu0 0.0
    %5255 = vmatpush2.xpose.msra.mxu0 0.0
    %5256 = vmatprep.subr.mxu0 0.0
    %5257 = vmatpush2.xpose.msra.mxu0 0.0
    %5258 = vmatprep.subr.mxu0 0.0
    %5259 = vmatpush2.xpose.msra.mxu0 0.0
    %5260 = vmatprep.subr.mxu0 0.0
    %5261 = vmatpush2.xpose.msra.mxu0 0.0
    %5262 = vmatprep.mubr.f32.mxu0 0.0
    %5263 = vmatmul.mubr.f32.gmra.mxu0 %v5194
    %v5264 = vpop.f32.mrf.mxu0
    %v5265 = vadd.f32 0.0, %v5264
    %v5266 = vpop.f32.mrf.mxu0
    %5267 = vdwg.mxu0
    %v5268 = vmul.f32 %v5187, 0.35355338
    %v5269 = vmul.f32 %v5265, 0.35355338
    %v5270 = vsel %vm427, -1e+09, %v5268
    %v5271 = vsel %vm428, -1e+09, %v5269
    %v5272 = vsel %vm543, %v5270, -inf
    %5273 = vmax.xlane.f32.xlu0 %v5272
    %v5274 = vpop.xlane.xlu0 %5273
    %v5275 = vsel %vm543, %v5271, -inf
    %5276 = vmax.xlane.f32.xlu0 %v5275
    %v5277 = vpop.xlane.xlu0 %5276
    %v5278 = vsub.f32 %v5270, %v5274
    %v5279 = vsub.f32 %v5271, %v5277
    %v5280 = vmul.f32 %v5278, 1.442695
    %v5281 = vpow.pop %v5280
    %v5282 = vmul.f32 %v5279, 1.442695
    %v5283 = vpow.pop %v5282
    %v5284 = vsel %vm543, %v5281, 0.0
    %5285 = vadd.xlane.f32.xlu0 %v5284
    %v5286 = vpop.xlane.xlu0 %5285
    %v5287 = vsel %vm543, %v5283, 0.0
    %5288 = vadd.xlane.f32.xlu0 %v5287
    %v5289 = vpop.xlane.xlu0 %5288
    %v5290 = vrcp.pop %v5286
    %v5291 = vrcp.pop %v5289
    %v5292 = vmul.f32 %v5281, %v5290
    %v5293 = vmul.f32 %v5283, %v5291
    %5294 = vrot.lane.b32.xlu0 %v4104, 40
    %v5295 = vpop.permute.xlu0 %5294
    %v5298 = vsel %vm543, %v5292, 0
    %5300 = vmatprep.subr.mxu0 0.0
    %5301 = vmatpush1.msra.mxu0 0.0
    %5302 = vmatprep.subr.mxu0 0.0
    %5303 = vmatpush1.msra.mxu0 0.0
    %5304 = vmatprep.subr.mxu0 0.0
    %5305 = vmatpush1.msra.mxu0 0.0
    %5306 = vmatprep.subr.mxu0 0.0
    %5307 = vmatpush1.msra.mxu0 0.0
    %5308 = vmatprep.subr.mxu0 0.0
    %5309 = vmatpush1.msra.mxu0 0.0
    %5310 = vmatprep.subr.mxu0 0.0
    %5311 = vmatpush1.msra.mxu0 0.0
    %5312 = vmatprep.subr.mxu0 0.0
    %5313 = vmatpush1.msra.mxu0 0.0
    %5314 = vmatprep.subr.mxu0 0.0
    %5315 = vmatpush1.msra.mxu0 0.0
    %5316 = vmatprep.subr.mxu0 0.0
    %5317 = vmatpush1.msra.mxu0 0.0
    %5318 = vmatprep.subr.mxu0 0.0
    %5319 = vmatpush1.msra.mxu0 0.0
    %5320 = vmatprep.subr.mxu0 0.0
    %5321 = vmatpush1.msra.mxu0 0.0
    %5322 = vmatprep.subr.mxu0 0.0
    %5323 = vmatpush1.msra.mxu0 0.0
    %5324 = vmatprep.subr.mxu0 0.0
    %5325 = vmatpush1.msra.mxu0 0.0
    %5326 = vmatprep.subr.mxu0 0.0
    %5327 = vmatpush1.msra.mxu0 0.0
    %5328 = vmatprep.subr.mxu0 0.0
    %5329 = vmatpush1.msra.mxu0 0.0
    %5330 = vmatprep.subr.mxu0 0.0
    %5331 = vmatpush1.msra.mxu0 %v5295
    %5332 = vmatprep.subr.mxu0 0.0
    %5333 = vmatpush2.msra.mxu0 0.0
    %5334 = vmatprep.subr.mxu0 0.0
    %5335 = vmatpush2.msra.mxu0 0.0
    %5336 = vmatprep.subr.mxu0 0.0
    %5337 = vmatpush2.msra.mxu0 0.0
    %5338 = vmatprep.subr.mxu0 0.0
    %5339 = vmatpush2.msra.mxu0 0.0
    %5340 = vmatprep.subr.mxu0 0.0
    %5341 = vmatpush2.msra.mxu0 0.0
    %5342 = vmatprep.subr.mxu0 0.0
    %5343 = vmatpush2.msra.mxu0 0.0
    %5344 = vmatprep.subr.mxu0 0.0
    %5345 = vmatpush2.msra.mxu0 0.0
    %5346 = vmatprep.subr.mxu0 0.0
    %5347 = vmatpush2.msra.mxu0 0.0
    %5348 = vmatprep.subr.mxu0 0.0
    %5349 = vmatpush2.msra.mxu0 0.0
    %5350 = vmatprep.subr.mxu0 0.0
    %5351 = vmatpush2.msra.mxu0 0.0
    %5352 = vmatprep.subr.mxu0 0.0
    %5353 = vmatpush2.msra.mxu0 0.0
    %5354 = vmatprep.subr.mxu0 0.0
    %5355 = vmatpush2.msra.mxu0 0.0
    %5356 = vmatprep.subr.mxu0 0.0
    %5357 = vmatpush2.msra.mxu0 0.0
    %5358 = vmatprep.subr.mxu0 0.0
    %5359 = vmatpush2.msra.mxu0 0.0
    %5360 = vmatprep.subr.mxu0 0.0
    %5361 = vmatpush2.msra.mxu0 0.0
    %5362 = vmatprep.subr.mxu0 0.0
    %5363 = vmatpush2.msra.mxu0 0.0
    %5364 = vmatprep.mubr.f32.mxu0 0.0
    %5365 = vmatmul.mubr.f32.gmra.mxu0 %v5298
    %v5366 = vpop.f32.mrf.mxu0
    %v5367 = vadd.f32 0.0, %v5366
    %v5368 = vpop.f32.mrf.mxu0
    %5369 = vdwg.mxu0
    %5370 = vrot.lane.b32.xlu0 %v4109, 40
    %v5371 = vpop.permute.xlu0 %5370
    %v5374 = vsel %vm543, %v5293, 0
    %5376 = vmatprep.subr.mxu0 0.0
    %5377 = vmatpush1.msra.mxu0 0.0
    %5378 = vmatprep.subr.mxu0 0.0
    %5379 = vmatpush1.msra.mxu0 0.0
    %5380 = vmatprep.subr.mxu0 0.0
    %5381 = vmatpush1.msra.mxu0 0.0
    %5382 = vmatprep.subr.mxu0 0.0
    %5383 = vmatpush1.msra.mxu0 0.0
    %5384 = vmatprep.subr.mxu0 0.0
    %5385 = vmatpush1.msra.mxu0 0.0
    %5386 = vmatprep.subr.mxu0 0.0
    %5387 = vmatpush1.msra.mxu0 0.0
    %5388 = vmatprep.subr.mxu0 0.0
    %5389 = vmatpush1.msra.mxu0 0.0
    %5390 = vmatprep.subr.mxu0 0.0
    %5391 = vmatpush1.msra.mxu0 0.0
    %5392 = vmatprep.subr.mxu0 0.0
    %5393 = vmatpush1.msra.mxu0 0.0
    %5394 = vmatprep.subr.mxu0 0.0
    %5395 = vmatpush1.msra.mxu0 0.0
    %5396 = vmatprep.subr.mxu0 0.0
    %5397 = vmatpush1.msra.mxu0 0.0
    %5398 = vmatprep.subr.mxu0 0.0
    %5399 = vmatpush1.msra.mxu0 0.0
    %5400 = vmatprep.subr.mxu0 0.0
    %5401 = vmatpush1.msra.mxu0 0.0
    %5402 = vmatprep.subr.mxu0 0.0
    %5403 = vmatpush1.msra.mxu0 0.0
    %5404 = vmatprep.subr.mxu0 0.0
    %5405 = vmatpush1.msra.mxu0 0.0
    %5406 = vmatprep.subr.mxu0 0.0
    %5407 = vmatpush1.msra.mxu0 %v5371
    %5408 = vmatprep.subr.mxu0 0.0
    %5409 = vmatpush2.msra.mxu0 0.0
    %5410 = vmatprep.subr.mxu0 0.0
    %5411 = vmatpush2.msra.mxu0 0.0
    %5412 = vmatprep.subr.mxu0 0.0
    %5413 = vmatpush2.msra.mxu0 0.0
    %5414 = vmatprep.subr.mxu0 0.0
    %5415 = vmatpush2.msra.mxu0 0.0
    %5416 = vmatprep.subr.mxu0 0.0
    %5417 = vmatpush2.msra.mxu0 0.0
    %5418 = vmatprep.subr.mxu0 0.0
    %5419 = vmatpush2.msra.mxu0 0.0
    %5420 = vmatprep.subr.mxu0 0.0
    %5421 = vmatpush2.msra.mxu0 0.0
    %5422 = vmatprep.subr.mxu0 0.0
    %5423 = vmatpush2.msra.mxu0 0.0
    %5424 = vmatprep.subr.mxu0 0.0
    %5425 = vmatpush2.msra.mxu0 0.0
    %5426 = vmatprep.subr.mxu0 0.0
    %5427 = vmatpush2.msra.mxu0 0.0
    %5428 = vmatprep.subr.mxu0 0.0
    %5429 = vmatpush2.msra.mxu0 0.0
    %5430 = vmatprep.subr.mxu0 0.0
    %5431 = vmatpush2.msra.mxu0 0.0
    %5432 = vmatprep.subr.mxu0 0.0
    %5433 = vmatpush2.msra.mxu0 0.0
    %5434 = vmatprep.subr.mxu0 0.0
    %5435 = vmatpush2.msra.mxu0 0.0
    %5436 = vmatprep.subr.mxu0 0.0
    %5437 = vmatpush2.msra.mxu0 0.0
    %5438 = vmatprep.subr.mxu0 0.0
    %5439 = vmatpush2.msra.mxu0 0.0
    %5440 = vmatprep.mubr.f32.mxu0 0.0
    %5441 = vmatmul.mubr.f32.gmra.mxu0 %v5374
    %v5442 = vpop.f32.mrf.mxu0
    %v5443 = vadd.f32 0.0, %v5442
    %v5444 = vpop.f32.mrf.mxu0
    %5445 = vdwg.mxu0
    %5448 = vrot.lane.b32.xlu0 %v4699, 8
    %v5449 = vpop.permute.xlu0 %5448
    %5450 = vrot.lane.b32.xlu0 %v4775, 8
    %v5451 = vpop.permute.xlu0 %5450
    %5456 = vrot.lane.b32.xlu0 %v5033, 16
    %v5457 = vpop.permute.xlu0 %5456
    %5458 = vrot.lane.b32.xlu0 %v5109, 16
    %v5459 = vpop.permute.xlu0 %5458
    %5464 = vrot.lane.b32.xlu0 %v5367, 24
    %v5465 = vpop.permute.xlu0 %5464
    %5466 = vrot.lane.b32.xlu0 %v5443, 24
    %v5467 = vpop.permute.xlu0 %5466
    %v5470 = vsel %vm543, %v4365, %v5449
    %v5471 = vsel %vm543, %v4441, %v5451
    %v5472 = vsel %vm324, %v5470, %v5457
    %v5473 = vsel %vm324, %v5471, %v5459
    %v5474 = vsel %vm1903, %v5472, %v5465
    %v5475 = vsel %vm1903, %v5473, %v5467
    %5476 = vrot.lane.b32.xlu0 %v4624, 8
    %v5477 = vpop.permute.xlu0 %5476
    %5478 = vrot.lane.b32.xlu0 %v4625, 8
    %v5479 = vpop.permute.xlu0 %5478
    %5482 = vrot.lane.b32.xlu0 %v4958, 16
    %v5483 = vpop.permute.xlu0 %5482
    %5484 = vrot.lane.b32.xlu0 %v4959, 16
    %v5485 = vpop.permute.xlu0 %5484
    %5488 = vrot.lane.b32.xlu0 %v5292, 24
    %v5489 = vpop.permute.xlu0 %5488
    %5490 = vrot.lane.b32.xlu0 %v5293, 24
    %v5491 = vpop.permute.xlu0 %5490
    %v5494 = vsel %vm543, %v4290, %v5477
    %v5495 = vsel %vm543, %v4291, %v5479
    %v5496 = vsel %vm324, %v5494, %v5483
    %v5497 = vsel %vm324, %v5495, %v5485
    %v5498 = vsel %vm1903, %v5496, %v5489
    %v5499 = vsel %vm1903, %v5497, %v5491
    %s5500 = scalar_lea.vmem %s8, 32
    %v5501 = vld [vmem:[%s5500] sm:$0xff]
    %v5502 = vld [vmem:[%s5500 + $0x8] sm:$0xff]
    %v5503 = vld [vmem:[%s5500 + $0x10] sm:$0xff]
    %v5504 = vld [vmem:[%s5500 + $0x18] sm:$0xff]
    %s5505 = scalar_lea.vmem [#allocation8], 1
    %v5506 = vld [vmem:[%s5505] sm:$0x1]
    %v5508 = vlaneseq
    %v5509 = vshrl.u32 %v5508, 7
    %v5510 = vsub.s32 0, %v5509
    %v5511 = vrot.slane %v5506, %v5510
    %v5514 = vsel %vm458, %v5474, 0
    %v5517 = vsel %vm458, %v5475, 0
    %5519 = vmatprep.subr.mxu0 0.0
    %5520 = vmatpush1.msra.mxu0 0.0
    %5521 = vmatprep.subr.mxu0 0.0
    %5522 = vmatpush1.msra.mxu0 0.0
    %5523 = vmatprep.subr.mxu0 0.0
    %5524 = vmatpush1.msra.mxu0 0.0
    %5525 = vmatprep.subr.mxu0 0.0
    %5526 = vmatpush1.msra.mxu0 0.0
    %5527 = vmatprep.subr.mxu0 0.0
    %5528 = vmatpush1.msra.mxu0 0.0
    %5529 = vmatprep.subr.mxu0 0.0
    %5530 = vmatpush1.msra.mxu0 0.0
    %5531 = vmatprep.subr.mxu0 0.0
    %5532 = vmatpush1.msra.mxu0 0.0
    %5533 = vmatprep.subr.mxu0 0.0
    %5534 = vmatpush1.msra.mxu0 0.0
    %5535 = vmatprep.subr.mxu0 0.0
    %5536 = vmatpush1.msra.mxu0 0.0
    %5537 = vmatprep.subr.mxu0 0.0
    %5538 = vmatpush1.msra.mxu0 0.0
    %5539 = vmatprep.subr.mxu0 0.0
    %5540 = vmatpush1.msra.mxu0 0.0
    %5541 = vmatprep.subr.mxu0 0.0
    %5542 = vmatpush1.msra.mxu0 0.0
    %5543 = vmatprep.subr.mxu0 0.0
    %5544 = vmatpush1.msra.mxu0 %v5504
    %5545 = vmatprep.subr.mxu0 0.0
    %5546 = vmatpush1.msra.mxu0 %v5503
    %5547 = vmatprep.subr.mxu0 0.0
    %5548 = vmatpush1.msra.mxu0 %v5502
    %5549 = vmatprep.subr.mxu0 0.0
    %5550 = vmatpush1.msra.mxu0 %v5501
    %5551 = vmatprep.subr.mxu0 0.0
    %5552 = vmatpush2.msra.mxu0 0.0
    %5553 = vmatprep.subr.mxu0 0.0
    %5554 = vmatpush2.msra.mxu0 0.0
    %5555 = vmatprep.subr.mxu0 0.0
    %5556 = vmatpush2.msra.mxu0 0.0
    %5557 = vmatprep.subr.mxu0 0.0
    %5558 = vmatpush2.msra.mxu0 0.0
    %5559 = vmatprep.subr.mxu0 0.0
    %5560 = vmatpush2.msra.mxu0 0.0
    %5561 = vmatprep.subr.mxu0 0.0
    %5562 = vmatpush2.msra.mxu0 0.0
    %5563 = vmatprep.subr.mxu0 0.0
    %5564 = vmatpush2.msra.mxu0 0.0
    %5565 = vmatprep.subr.mxu0 0.0
    %5566 = vmatpush2.msra.mxu0 0.0
    %5567 = vmatprep.subr.mxu0 0.0
    %5568 = vmatpush2.msra.mxu0 0.0
    %5569 = vmatprep.subr.mxu0 0.0
    %5570 = vmatpush2.msra.mxu0 0.0
    %5571 = vmatprep.subr.mxu0 0.0
    %5572 = vmatpush2.msra.mxu0 0.0
    %5573 = vmatprep.subr.mxu0 0.0
    %5574 = vmatpush2.msra.mxu0 0.0
    %5575 = vmatprep.subr.mxu0 0.0
    %5576 = vmatpush2.msra.mxu0 0.0
    %5577 = vmatprep.subr.mxu0 0.0
    %5578 = vmatpush2.msra.mxu0 0.0
    %5579 = vmatprep.subr.mxu0 0.0
    %5580 = vmatpush2.msra.mxu0 0.0
    %5581 = vmatprep.subr.mxu0 0.0
    %5582 = vmatpush2.msra.mxu0 0.0
    %5583 = vmatprep.mubr.f32.mxu0 0.0
    %5584 = vmatmul.mubr.f32.gmra.mxu0 %v5514
    %v5585 = vpop.f32.mrf.mxu0
    %v5586 = vadd.f32 %v5511, %v5585
    %v5587 = vpop.f32.mrf.mxu0
    %5588 = vmatprep.mubr.f32.mxu0 0.0
    %5589 = vmatmul.mubr.f32.gmra.mxu0 %v5517
    %v5590 = vpop.f32.mrf.mxu0
    %v5591 = vadd.f32 %v5511, %v5590
    %v5592 = vpop.f32.mrf.mxu0
    %5593 = vdwg.mxu0
    %v5594 = vadd.f32 %v5586, %v4016
    %v5595 = vadd.f32 %v5591, %v4017
    %s5596 = scalar_lea.vmem [#allocation10], 1
    %v5597 = vld [vmem:[%s5596] sm:$0x1]
    %s5598 = scalar_lea.vmem [#allocation11], 1
    %v5599 = vld [vmem:[%s5598] sm:$0x1]
    %v5600 = vsel %vm458, %v5594, 0.0
    %5601 = vadd.xlane.f32.xlu0 %v5600
    %v5602 = vpop.xlane.xlu0 %5601
    %v5603 = vsel %vm458, %v5595, 0.0
    %5604 = vadd.xlane.f32.xlu0 %v5603
    %v5605 = vpop.xlane.xlu0 %5604
    %v5606 = vmul.f32 %v5602, %v2032
    %v5607 = vmul.f32 %v5605, %v2032
    %v5608 = vsub.f32 %v5594, %v5606
    %v5609 = vsub.f32 %v5595, %v5607
    %v5610 = vmul.f32 %v5608, %v5608
    %v5611 = vmul.f32 %v5609, %v5609
    %v5612 = vsel %vm458, %v5610, 0.0
    %5613 = vadd.xlane.f32.xlu0 %v5612
    %v5614 = vpop.xlane.xlu0 %5613
    %v5615 = vsel %vm458, %v5611, 0.0
    %5616 = vadd.xlane.f32.xlu0 %v5615
    %v5617 = vpop.xlane.xlu0 %5616
    %v5618 = vmul.f32 %v5614, %v2032
    %v5619 = vmul.f32 %v5617, %v2032
    %v5620 = vadd.f32 %v5618, 1e-05
    %v5621 = vadd.f32 %v5619, 1e-05
    %v5622 = vrsqrt.pop %v5620
    %v5623 = vrsqrt.pop %v5621
    %v5624 = vmul.f32 %v5608, %v5622
    %v5625 = vmul.f32 %v5609, %v5623
    %v5627 = vlaneseq
    %v5628 = vshrl.u32 %v5627, 7
    %v5629 = vsub.s32 0, %v5628
    %v5630 = vrot.slane %v5597, %v5629
    %v5632 = vmul.f32 %v5624, %v5630
    %v5633 = vmul.f32 %v5625, %v5630
    %v5635 = vlaneseq
    %v5636 = vshrl.u32 %v5635, 7
    %v5637 = vsub.s32 0, %v5636
    %v5638 = vrot.slane %v5599, %v5637
    %v5640 = vadd.f32 %v5632, %v5638
    %v5641 = vadd.f32 %v5633, %v5638
    %s5642 = scalar_lea.vmem %s27, 16
    %5643 = vst.msk [vmem:[%s5642] sm:$0xff] %vm458, %v5498
    %5644 = vst.msk [vmem:[%s5642 + $0x8] sm:$0xff] %vm458, %v5499
    %s5645 = scalar_lea.vmem %s12, 32
    %v5646 = vld [vmem:[%s5645] sm:$0xff]
    %v5647 = vld [vmem:[%s5645 + $0x8] sm:$0xff]
    %v5648 = vld [vmem:[%s5645 + $0x10] sm:$0xff]
    %v5649 = vld [vmem:[%s5645 + $0x18] sm:$0xff]
    %s5650 = scalar_lea.vmem [#allocation13], 1
    %v5651 = vld [vmem:[%s5650] sm:$0x1]
    %v5653 = vlaneseq
    %v5654 = vshrl.u32 %v5653, 7
    %v5655 = vsub.s32 0, %v5654
    %v5656 = vrot.slane %v5651, %v5655
    %v5659 = vsel %vm458, %v5640, 0
    %v5662 = vsel %vm458, %v5641, 0
    %5664 = vmatprep.subr.mxu0 0.0
    %5665 = vmatpush1.msra.mxu0 0.0
    %5666 = vmatprep.subr.mxu0 0.0
    %5667 = vmatpush1.msra.mxu0 0.0
    %5668 = vmatprep.subr.mxu0 0.0
    %5669 = vmatpush1.msra.mxu0 0.0
    %5670 = vmatprep.subr.mxu0 0.0
    %5671 = vmatpush1.msra.mxu0 0.0
    %5672 = vmatprep.subr.mxu0 0.0
    %5673 = vmatpush1.msra.mxu0 0.0
    %5674 = vmatprep.subr.mxu0 0.0
    %5675 = vmatpush1.msra.mxu0 0.0
    %5676 = vmatprep.subr.mxu0 0.0
    %5677 = vmatpush1.msra.mxu0 0.0
    %5678 = vmatprep.subr.mxu0 0.0
    %5679 = vmatpush1.msra.mxu0 0.0
    %5680 = vmatprep.subr.mxu0 0.0
    %5681 = vmatpush1.msra.mxu0 0.0
    %5682 = vmatprep.subr.mxu0 0.0
    %5683 = vmatpush1.msra.mxu0 0.0
    %5684 = vmatprep.subr.mxu0 0.0
    %5685 = vmatpush1.msra.mxu0 0.0
    %5686 = vmatprep.subr.mxu0 0.0
    %5687 = vmatpush1.msra.mxu0 0.0
    %5688 = vmatprep.subr.mxu0 0.0
    %5689 = vmatpush1.msra.mxu0 %v5649
    %5690 = vmatprep.subr.mxu0 0.0
    %5691 = vmatpush1.msra.mxu0 %v5648
    %5692 = vmatprep.subr.mxu0 0.0
    %5693 = vmatpush1.msra.mxu0 %v5647
    %5694 = vmatprep.subr.mxu0 0.0
    %5695 = vmatpush1.msra.mxu0 %v5646
    %5696 = vmatprep.subr.mxu0 0.0
    %5697 = vmatpush2.msra.mxu0 0.0
    %5698 = vmatprep.subr.mxu0 0.0
    %5699 = vmatpush2.msra.mxu0 0.0
    %5700 = vmatprep.subr.mxu0 0.0
    %5701 = vmatpush2.msra.mxu0 0.0
    %5702 = vmatprep.subr.mxu0 0.0
    %5703 = vmatpush2.msra.mxu0 0.0
    %5704 = vmatprep.subr.mxu0 0.0
    %5705 = vmatpush2.msra.mxu0 0.0
    %5706 = vmatprep.subr.mxu0 0.0
    %5707 = vmatpush2.msra.mxu0 0.0
    %5708 = vmatprep.subr.mxu0 0.0
    %5709 = vmatpush2.msra.mxu0 0.0
    %5710 = vmatprep.subr.mxu0 0.0
    %5711 = vmatpush2.msra.mxu0 0.0
    %5712 = vmatprep.subr.mxu0 0.0
    %5713 = vmatpush2.msra.mxu0 0.0
    %5714 = vmatprep.subr.mxu0 0.0
    %5715 = vmatpush2.msra.mxu0 0.0
    %5716 = vmatprep.subr.mxu0 0.0
    %5717 = vmatpush2.msra.mxu0 0.0
    %5718 = vmatprep.subr.mxu0 0.0
    %5719 = vmatpush2.msra.mxu0 0.0
    %5720 = vmatprep.subr.mxu0 0.0
    %5721 = vmatpush2.msra.mxu0 0.0
    %5722 = vmatprep.subr.mxu0 0.0
    %5723 = vmatpush2.msra.mxu0 0.0
    %5724 = vmatprep.subr.mxu0 0.0
    %5725 = vmatpush2.msra.mxu0 0.0
    %5726 = vmatprep.subr.mxu0 0.0
    %5727 = vmatpush2.msra.mxu0 0.0
    %5728 = vmatprep.mubr.f32.mxu0 0.0
    %5729 = vmatmul.mubr.f32.gmra.mxu0 %v5659
    %v5730 = vpop.f32.mrf.mxu0
    %v5731 = vadd.f32 %v5656, %v5730
    %v5732 = vpop.f32.mrf.mxu0
    %5733 = vmatprep.mubr.f32.mxu0 0.0
    %5734 = vmatmul.mubr.f32.gmra.mxu0 %v5662
    %v5735 = vpop.f32.mrf.mxu0
    %v5736 = vadd.f32 %v5656, %v5735
    %v5737 = vpop.f32.mrf.mxu0
    %5738 = vdwg.mxu0
    %s5739 = scalar_lea.vmem %s14, 32
    %v5740 = vld [vmem:[%s5739] sm:$0xff]
    %v5741 = vld [vmem:[%s5739 + $0x8] sm:$0xff]
    %v5742 = vld [vmem:[%s5739 + $0x10] sm:$0xff]
    %v5743 = vld [vmem:[%s5739 + $0x18] sm:$0xff]
    %s5744 = scalar_lea.vmem [#allocation14], 1
    %v5745 = vld [vmem:[%s5744] sm:$0x1]
    %v5747 = vlaneseq
    %v5748 = vshrl.u32 %v5747, 7
    %v5749 = vsub.s32 0, %v5748
    %v5750 = vrot.slane %v5745, %v5749
    %5752 = vmatprep.subr.mxu0 0.0
    %5753 = vmatpush1.msra.mxu0 0.0
    %5754 = vmatprep.subr.mxu0 0.0
    %5755 = vmatpush1.msra.mxu0 0.0
    %5756 = vmatprep.subr.mxu0 0.0
    %5757 = vmatpush1.msra.mxu0 0.0
    %5758 = vmatprep.subr.mxu0 0.0
    %5759 = vmatpush1.msra.mxu0 0.0
    %5760 = vmatprep.subr.mxu0 0.0
    %5761 = vmatpush1.msra.mxu0 0.0
    %5762 = vmatprep.subr.mxu0 0.0
    %5763 = vmatpush1.msra.mxu0 0.0
    %5764 = vmatprep.subr.mxu0 0.0
    %5765 = vmatpush1.msra.mxu0 0.0
    %5766 = vmatprep.subr.mxu0 0.0
    %5767 = vmatpush1.msra.mxu0 0.0
    %5768 = vmatprep.subr.mxu0 0.0
    %5769 = vmatpush1.msra.mxu0 0.0
    %5770 = vmatprep.subr.mxu0 0.0
    %5771 = vmatpush1.msra.mxu0 0.0
    %5772 = vmatprep.subr.mxu0 0.0
    %5773 = vmatpush1.msra.mxu0 0.0
    %5774 = vmatprep.subr.mxu0 0.0
    %5775 = vmatpush1.msra.mxu0 0.0
    %5776 = vmatprep.subr.mxu0 0.0
    %5777 = vmatpush1.msra.mxu0 %v5743
    %5778 = vmatprep.subr.mxu0 0.0
    %5779 = vmatpush1.msra.mxu0 %v5742
    %5780 = vmatprep.subr.mxu0 0.0
    %5781 = vmatpush1.msra.mxu0 %v5741
    %5782 = vmatprep.subr.mxu0 0.0
    %5783 = vmatpush1.msra.mxu0 %v5740
    %5784 = vmatprep.subr.mxu0 0.0
    %5785 = vmatpush2.msra.mxu0 0.0
    %5786 = vmatprep.subr.mxu0 0.0
    %5787 = vmatpush2.msra.mxu0 0.0
    %5788 = vmatprep.subr.mxu0 0.0
    %5789 = vmatpush2.msra.mxu0 0.0
    %5790 = vmatprep.subr.mxu0 0.0
    %5791 = vmatpush2.msra.mxu0 0.0
    %5792 = vmatprep.subr.mxu0 0.0
    %5793 = vmatpush2.msra.mxu0 0.0
    %5794 = vmatprep.subr.mxu0 0.0
    %5795 = vmatpush2.msra.mxu0 0.0
    %5796 = vmatprep.subr.mxu0 0.0
    %5797 = vmatpush2.msra.mxu0 0.0
    %5798 = vmatprep.subr.mxu0 0.0
    %5799 = vmatpush2.msra.mxu0 0.0
    %5800 = vmatprep.subr.mxu0 0.0
    %5801 = vmatpush2.msra.mxu0 0.0
    %5802 = vmatprep.subr.mxu0 0.0
    %5803 = vmatpush2.msra.mxu0 0.0
    %5804 = vmatprep.subr.mxu0 0.0
    %5805 = vmatpush2.msra.mxu0 0.0
    %5806 = vmatprep.subr.mxu0 0.0
    %5807 = vmatpush2.msra.mxu0 0.0
    %5808 = vmatprep.subr.mxu0 0.0
    %5809 = vmatpush2.msra.mxu0 0.0
    %5810 = vmatprep.subr.mxu0 0.0
    %5811 = vmatpush2.msra.mxu0 0.0
    %5812 = vmatprep.subr.mxu0 0.0
    %5813 = vmatpush2.msra.mxu0 0.0
    %5814 = vmatprep.subr.mxu0 0.0
    %5815 = vmatpush2.msra.mxu0 0.0
    %5816 = vmatprep.mubr.f32.mxu0 0.0
    %5817 = vmatmul.mubr.f32.gmra.mxu0 %v2175
    %v5818 = vpop.f32.mrf.mxu0
    %v5819 = vadd.f32 %v5750, %v5818
    %v5820 = vpop.f32.mrf.mxu0
    %5821 = vmatprep.mubr.f32.mxu0 0.0
    %5822 = vmatmul.mubr.f32.gmra.mxu0 %v2178
    %v5823 = vpop.f32.mrf.mxu0
    %v5824 = vadd.f32 %v5750, %v5823
    %v5825 = vpop.f32.mrf.mxu0
    %5826 = vdwg.mxu0
    %v5828 = vsel %vm543, %v5731, 0
    %v5831 = vsel %vm543, %v5819, 0
    %5833 = vmatprep.subr.mxu0 0.0
    %5834 = vmatpush1.xpose.msra.mxu0 0.0
    %5835 = vmatprep.subr.mxu0 0.0
    %5836 = vmatpush1.xpose.msra.mxu0 0.0
    %5837 = vmatprep.subr.mxu0 0.0
    %5838 = vmatpush1.xpose.msra.mxu0 0.0
    %5839 = vmatprep.subr.mxu0 0.0
    %5840 = vmatpush1.xpose.msra.mxu0 0.0
    %5841 = vmatprep.subr.mxu0 0.0
    %5842 = vmatpush1.xpose.msra.mxu0 0.0
    %5843 = vmatprep.subr.mxu0 0.0
    %5844 = vmatpush1.xpose.msra.mxu0 0.0
    %5845 = vmatprep.subr.mxu0 0.0
    %5846 = vmatpush1.xpose.msra.mxu0 0.0
    %5847 = vmatprep.subr.mxu0 0.0
    %5848 = vmatpush1.xpose.msra.mxu0 0.0
    %5849 = vmatprep.subr.mxu0 0.0
    %5850 = vmatpush1.xpose.msra.mxu0 0.0
    %5851 = vmatprep.subr.mxu0 0.0
    %5852 = vmatpush1.xpose.msra.mxu0 0.0
    %5853 = vmatprep.subr.mxu0 0.0
    %5854 = vmatpush1.xpose.msra.mxu0 0.0
    %5855 = vmatprep.subr.mxu0 0.0
    %5856 = vmatpush1.xpose.msra.mxu0 0.0
    %5857 = vmatprep.subr.mxu0 0.0
    %5858 = vmatpush1.xpose.msra.mxu0 0.0
    %5859 = vmatprep.subr.mxu0 0.0
    %5860 = vmatpush1.xpose.msra.mxu0 0.0
    %5861 = vmatprep.subr.mxu0 0.0
    %5862 = vmatpush1.xpose.msra.mxu0 0.0
    %5863 = vmatprep.subr.mxu0 0.0
    %5864 = vmatpush1.xpose.msra.mxu0 %v5831
    %5865 = vmatprep.subr.mxu0 0.0
    %5866 = vmatpush2.xpose.msra.mxu0 0.0
    %5867 = vmatprep.subr.mxu0 0.0
    %5868 = vmatpush2.xpose.msra.mxu0 0.0
    %5869 = vmatprep.subr.mxu0 0.0
    %5870 = vmatpush2.xpose.msra.mxu0 0.0
    %5871 = vmatprep.subr.mxu0 0.0
    %5872 = vmatpush2.xpose.msra.mxu0 0.0
    %5873 = vmatprep.subr.mxu0 0.0
    %5874 = vmatpush2.xpose.msra.mxu0 0.0
    %5875 = vmatprep.subr.mxu0 0.0
    %5876 = vmatpush2.xpose.msra.mxu0 0.0
    %5877 = vmatprep.subr.mxu0 0.0
    %5878 = vmatpush2.xpose.msra.mxu0 0.0
    %5879 = vmatprep.subr.mxu0 0.0
    %5880 = vmatpush2.xpose.msra.mxu0 0.0
    %5881 = vmatprep.subr.mxu0 0.0
    %5882 = vmatpush2.xpose.msra.mxu0 0.0
    %5883 = vmatprep.subr.mxu0 0.0
    %5884 = vmatpush2.xpose.msra.mxu0 0.0
    %5885 = vmatprep.subr.mxu0 0.0
    %5886 = vmatpush2.xpose.msra.mxu0 0.0
    %5887 = vmatprep.subr.mxu0 0.0
    %5888 = vmatpush2.xpose.msra.mxu0 0.0
    %5889 = vmatprep.subr.mxu0 0.0
    %5890 = vmatpush2.xpose.msra.mxu0 0.0
    %5891 = vmatprep.subr.mxu0 0.0
    %5892 = vmatpush2.xpose.msra.mxu0 0.0
    %5893 = vmatprep.subr.mxu0 0.0
    %5894 = vmatpush2.xpose.msra.mxu0 0.0
    %5895 = vmatprep.subr.mxu0 0.0
    %5896 = vmatpush2.xpose.msra.mxu0 0.0
    %5897 = vmatprep.mubr.f32.mxu0 0.0
    %5898 = vmatmul.mubr.f32.gmra.mxu0 %v5828
    %v5899 = vpop.f32.mrf.mxu0
    %v5900 = vadd.f32 0.0, %v5899
    %v5901 = vpop.f32.mrf.mxu0
    %5902 = vdwg.mxu0
    %v5904 = vsel %vm543, %v5736, 0
    %v5907 = vsel %vm543, %v5824, 0
    %5909 = vmatprep.subr.mxu0 0.0
    %5910 = vmatpush1.xpose.msra.mxu0 0.0
    %5911 = vmatprep.subr.mxu0 0.0
    %5912 = vmatpush1.xpose.msra.mxu0 0.0
    %5913 = vmatprep.subr.mxu0 0.0
    %5914 = vmatpush1.xpose.msra.mxu0 0.0
    %5915 = vmatprep.subr.mxu0 0.0
    %5916 = vmatpush1.xpose.msra.mxu0 0.0
    %5917 = vmatprep.subr.mxu0 0.0
    %5918 = vmatpush1.xpose.msra.mxu0 0.0
    %5919 = vmatprep.subr.mxu0 0.0
    %5920 = vmatpush1.xpose.msra.mxu0 0.0
    %5921 = vmatprep.subr.mxu0 0.0
    %5922 = vmatpush1.xpose.msra.mxu0 0.0
    %5923 = vmatprep.subr.mxu0 0.0
    %5924 = vmatpush1.xpose.msra.mxu0 0.0
    %5925 = vmatprep.subr.mxu0 0.0
    %5926 = vmatpush1.xpose.msra.mxu0 0.0
    %5927 = vmatprep.subr.mxu0 0.0
    %5928 = vmatpush1.xpose.msra.mxu0 0.0
    %5929 = vmatprep.subr.mxu0 0.0
    %5930 = vmatpush1.xpose.msra.mxu0 0.0
    %5931 = vmatprep.subr.mxu0 0.0
    %5932 = vmatpush1.xpose.msra.mxu0 0.0
    %5933 = vmatprep.subr.mxu0 0.0
    %5934 = vmatpush1.xpose.msra.mxu0 0.0
    %5935 = vmatprep.subr.mxu0 0.0
    %5936 = vmatpush1.xpose.msra.mxu0 0.0
    %5937 = vmatprep.subr.mxu0 0.0
    %5938 = vmatpush1.xpose.msra.mxu0 0.0
    %5939 = vmatprep.subr.mxu0 0.0
    %5940 = vmatpush1.xpose.msra.mxu0 %v5907
    %5941 = vmatprep.subr.mxu0 0.0
    %5942 = vmatpush2.xpose.msra.mxu0 0.0
    %5943 = vmatprep.subr.mxu0 0.0
    %5944 = vmatpush2.xpose.msra.mxu0 0.0
    %5945 = vmatprep.subr.mxu0 0.0
    %5946 = vmatpush2.xpose.msra.mxu0 0.0
    %5947 = vmatprep.subr.mxu0 0.0
    %5948 = vmatpush2.xpose.msra.mxu0 0.0
    %5949 = vmatprep.subr.mxu0 0.0
    %5950 = vmatpush2.xpose.msra.mxu0 0.0
    %5951 = vmatprep.subr.mxu0 0.0
    %5952 = vmatpush2.xpose.msra.mxu0 0.0
    %5953 = vmatprep.subr.mxu0 0.0
    %5954 = vmatpush2.xpose.msra.mxu0 0.0
    %5955 = vmatprep.subr.mxu0 0.0
    %5956 = vmatpush2.xpose.msra.mxu0 0.0
    %5957 = vmatprep.subr.mxu0 0.0
    %5958 = vmatpush2.xpose.msra.mxu0 0.0
    %5959 = vmatprep.subr.mxu0 0.0
    %5960 = vmatpush2.xpose.msra.mxu0 0.0
    %5961 = vmatprep.subr.mxu0 0.0
    %5962 = vmatpush2.xpose.msra.mxu0 0.0
    %5963 = vmatprep.subr.mxu0 0.0
    %5964 = vmatpush2.xpose.msra.mxu0 0.0
    %5965 = vmatprep.subr.mxu0 0.0
    %5966 = vmatpush2.xpose.msra.mxu0 0.0
    %5967 = vmatprep.subr.mxu0 0.0
    %5968 = vmatpush2.xpose.msra.mxu0 0.0
    %5969 = vmatprep.subr.mxu0 0.0
    %5970 = vmatpush2.xpose.msra.mxu0 0.0
    %5971 = vmatprep.subr.mxu0 0.0
    %5972 = vmatpush2.xpose.msra.mxu0 0.0
    %5973 = vmatprep.mubr.f32.mxu0 0.0
    %5974 = vmatmul.mubr.f32.gmra.mxu0 %v5904
    %v5975 = vpop.f32.mrf.mxu0
    %v5976 = vadd.f32 0.0, %v5975
    %v5977 = vpop.f32.mrf.mxu0
    %5978 = vdwg.mxu0
    %v5979 = vmul.f32 %v5900, 0.35355338
    %v5980 = vmul.f32 %v5976, 0.35355338
    %v5981 = vsel %vm443, -1e+09, %v5979
    %v5982 = vsel %vm444, -1e+09, %v5980
    %v5983 = vsel %vm543, %v5981, -inf
    %5984 = vmax.xlane.f32.xlu0 %v5983
    %v5985 = vpop.xlane.xlu0 %5984
    %v5986 = vsel %vm543, %v5982, -inf
    %5987 = vmax.xlane.f32.xlu0 %v5986
    %v5988 = vpop.xlane.xlu0 %5987
    %v5989 = vsub.f32 %v5981, %v5985
    %v5990 = vsub.f32 %v5982, %v5988
    %v5991 = vmul.f32 %v5989, 1.442695
    %v5992 = vpow.pop %v5991
    %v5993 = vmul.f32 %v5990, 1.442695
    %v5994 = vpow.pop %v5993
    %v5995 = vsel %vm543, %v5992, 0.0
    %5996 = vadd.xlane.f32.xlu0 %v5995
    %v5997 = vpop.xlane.xlu0 %5996
    %v5998 = vsel %vm543, %v5994, 0.0
    %5999 = vadd.xlane.f32.xlu0 %v5998
    %v6000 = vpop.xlane.xlu0 %5999
    %v6001 = vrcp.pop %v5997
    %v6002 = vrcp.pop %v6000
    %v6003 = vmul.f32 %v5992, %v6001
    %v6004 = vmul.f32 %v5994, %v6002
    %6005 = vrot.lane.b32.xlu0 %v5819, 96
    %v6006 = vpop.permute.xlu0 %6005
    %v6009 = vsel %vm543, %v6003, 0
    %6011 = vmatprep.subr.mxu0 0.0
    %6012 = vmatpush1.msra.mxu0 0.0
    %6013 = vmatprep.subr.mxu0 0.0
    %6014 = vmatpush1.msra.mxu0 0.0
    %6015 = vmatprep.subr.mxu0 0.0
    %6016 = vmatpush1.msra.mxu0 0.0
    %6017 = vmatprep.subr.mxu0 0.0
    %6018 = vmatpush1.msra.mxu0 0.0
    %6019 = vmatprep.subr.mxu0 0.0
    %6020 = vmatpush1.msra.mxu0 0.0
    %6021 = vmatprep.subr.mxu0 0.0
    %6022 = vmatpush1.msra.mxu0 0.0
    %6023 = vmatprep.subr.mxu0 0.0
    %6024 = vmatpush1.msra.mxu0 0.0
    %6025 = vmatprep.subr.mxu0 0.0
    %6026 = vmatpush1.msra.mxu0 0.0
    %6027 = vmatprep.subr.mxu0 0.0
    %6028 = vmatpush1.msra.mxu0 0.0
    %6029 = vmatprep.subr.mxu0 0.0
    %6030 = vmatpush1.msra.mxu0 0.0
    %6031 = vmatprep.subr.mxu0 0.0
    %6032 = vmatpush1.msra.mxu0 0.0
    %6033 = vmatprep.subr.mxu0 0.0
    %6034 = vmatpush1.msra.mxu0 0.0
    %6035 = vmatprep.subr.mxu0 0.0
    %6036 = vmatpush1.msra.mxu0 0.0
    %6037 = vmatprep.subr.mxu0 0.0
    %6038 = vmatpush1.msra.mxu0 0.0
    %6039 = vmatprep.subr.mxu0 0.0
    %6040 = vmatpush1.msra.mxu0 0.0
    %6041 = vmatprep.subr.mxu0 0.0
    %6042 = vmatpush1.msra.mxu0 %v6006
    %6043 = vmatprep.subr.mxu0 0.0
    %6044 = vmatpush2.msra.mxu0 0.0
    %6045 = vmatprep.subr.mxu0 0.0
    %6046 = vmatpush2.msra.mxu0 0.0
    %6047 = vmatprep.subr.mxu0 0.0
    %6048 = vmatpush2.msra.mxu0 0.0
    %6049 = vmatprep.subr.mxu0 0.0
    %6050 = vmatpush2.msra.mxu0 0.0
    %6051 = vmatprep.subr.mxu0 0.0
    %6052 = vmatpush2.msra.mxu0 0.0
    %6053 = vmatprep.subr.mxu0 0.0
    %6054 = vmatpush2.msra.mxu0 0.0
    %6055 = vmatprep.subr.mxu0 0.0
    %6056 = vmatpush2.msra.mxu0 0.0
    %6057 = vmatprep.subr.mxu0 0.0
    %6058 = vmatpush2.msra.mxu0 0.0
    %6059 = vmatprep.subr.mxu0 0.0
    %6060 = vmatpush2.msra.mxu0 0.0
    %6061 = vmatprep.subr.mxu0 0.0
    %6062 = vmatpush2.msra.mxu0 0.0
    %6063 = vmatprep.subr.mxu0 0.0
    %6064 = vmatpush2.msra.mxu0 0.0
    %6065 = vmatprep.subr.mxu0 0.0
    %6066 = vmatpush2.msra.mxu0 0.0
    %6067 = vmatprep.subr.mxu0 0.0
    %6068 = vmatpush2.msra.mxu0 0.0
    %6069 = vmatprep.subr.mxu0 0.0
    %6070 = vmatpush2.msra.mxu0 0.0
    %6071 = vmatprep.subr.mxu0 0.0
    %6072 = vmatpush2.msra.mxu0 0.0
    %6073 = vmatprep.subr.mxu0 0.0
    %6074 = vmatpush2.msra.mxu0 0.0
    %6075 = vmatprep.mubr.f32.mxu0 0.0
    %6076 = vmatmul.mubr.f32.gmra.mxu0 %v6009
    %v6077 = vpop.f32.mrf.mxu0
    %v6078 = vadd.f32 0.0, %v6077
    %v6079 = vpop.f32.mrf.mxu0
    %6080 = vdwg.mxu0
    %6081 = vrot.lane.b32.xlu0 %v5824, 96
    %v6082 = vpop.permute.xlu0 %6081
    %v6085 = vsel %vm543, %v6004, 0
    %6087 = vmatprep.subr.mxu0 0.0
    %6088 = vmatpush1.msra.mxu0 0.0
    %6089 = vmatprep.subr.mxu0 0.0
    %6090 = vmatpush1.msra.mxu0 0.0
    %6091 = vmatprep.subr.mxu0 0.0
    %6092 = vmatpush1.msra.mxu0 0.0
    %6093 = vmatprep.subr.mxu0 0.0
    %6094 = vmatpush1.msra.mxu0 0.0
    %6095 = vmatprep.subr.mxu0 0.0
    %6096 = vmatpush1.msra.mxu0 0.0
    %6097 = vmatprep.subr.mxu0 0.0
    %6098 = vmatpush1.msra.mxu0 0.0
    %6099 = vmatprep.subr.mxu0 0.0
    %6100 = vmatpush1.msra.mxu0 0.0
    %6101 = vmatprep.subr.mxu0 0.0
    %6102 = vmatpush1.msra.mxu0 0.0
    %6103 = vmatprep.subr.mxu0 0.0
    %6104 = vmatpush1.msra.mxu0 0.0
    %6105 = vmatprep.subr.mxu0 0.0
    %6106 = vmatpush1.msra.mxu0 0.0
    %6107 = vmatprep.subr.mxu0 0.0
    %6108 = vmatpush1.msra.mxu0 0.0
    %6109 = vmatprep.subr.mxu0 0.0
    %6110 = vmatpush1.msra.mxu0 0.0
    %6111 = vmatprep.subr.mxu0 0.0
    %6112 = vmatpush1.msra.mxu0 0.0
    %6113 = vmatprep.subr.mxu0 0.0
    %6114 = vmatpush1.msra.mxu0 0.0
    %6115 = vmatprep.subr.mxu0 0.0
    %6116 = vmatpush1.msra.mxu0 0.0
    %6117 = vmatprep.subr.mxu0 0.0
    %6118 = vmatpush1.msra.mxu0 %v6082
    %6119 = vmatprep.subr.mxu0 0.0
    %6120 = vmatpush2.msra.mxu0 0.0
    %6121 = vmatprep.subr.mxu0 0.0
    %6122 = vmatpush2.msra.mxu0 0.0
    %6123 = vmatprep.subr.mxu0 0.0
    %6124 = vmatpush2.msra.mxu0 0.0
    %6125 = vmatprep.subr.mxu0 0.0
    %6126 = vmatpush2.msra.mxu0 0.0
    %6127 = vmatprep.subr.mxu0 0.0
    %6128 = vmatpush2.msra.mxu0 0.0
    %6129 = vmatprep.subr.mxu0 0.0
    %6130 = vmatpush2.msra.mxu0 0.0
    %6131 = vmatprep.subr.mxu0 0.0
    %6132 = vmatpush2.msra.mxu0 0.0
    %6133 = vmatprep.subr.mxu0 0.0
    %6134 = vmatpush2.msra.mxu0 0.0
    %6135 = vmatprep.subr.mxu0 0.0
    %6136 = vmatpush2.msra.mxu0 0.0
    %6137 = vmatprep.subr.mxu0 0.0
    %6138 = vmatpush2.msra.mxu0 0.0
    %6139 = vmatprep.subr.mxu0 0.0
    %6140 = vmatpush2.msra.mxu0 0.0
    %6141 = vmatprep.subr.mxu0 0.0
    %6142 = vmatpush2.msra.mxu0 0.0
    %6143 = vmatprep.subr.mxu0 0.0
    %6144 = vmatpush2.msra.mxu0 0.0
    %6145 = vmatprep.subr.mxu0 0.0
    %6146 = vmatpush2.msra.mxu0 0.0
    %6147 = vmatprep.subr.mxu0 0.0
    %6148 = vmatpush2.msra.mxu0 0.0
    %6149 = vmatprep.subr.mxu0 0.0
    %6150 = vmatpush2.msra.mxu0 0.0
    %6151 = vmatprep.mubr.f32.mxu0 0.0
    %6152 = vmatmul.mubr.f32.gmra.mxu0 %v6085
    %v6153 = vpop.f32.mrf.mxu0
    %v6154 = vadd.f32 0.0, %v6153
    %v6155 = vpop.f32.mrf.mxu0
    %6156 = vdwg.mxu0
    %6157 = vrot.lane.b32.xlu0 %v5731, 120
    %v6158 = vpop.permute.xlu0 %6157
    %6159 = vrot.lane.b32.xlu0 %v5819, 120
    %v6160 = vpop.permute.xlu0 %6159
    %v6161 = vsel %vm543, %v6158, 0
    %v6163 = vsel %vm543, %v6160, 0
    %6165 = vmatprep.subr.mxu0 0.0
    %6166 = vmatpush1.xpose.msra.mxu0 0.0
    %6167 = vmatprep.subr.mxu0 0.0
    %6168 = vmatpush1.xpose.msra.mxu0 0.0
    %6169 = vmatprep.subr.mxu0 0.0
    %6170 = vmatpush1.xpose.msra.mxu0 0.0
    %6171 = vmatprep.subr.mxu0 0.0
    %6172 = vmatpush1.xpose.msra.mxu0 0.0
    %6173 = vmatprep.subr.mxu0 0.0
    %6174 = vmatpush1.xpose.msra.mxu0 0.0
    %6175 = vmatprep.subr.mxu0 0.0
    %6176 = vmatpush1.xpose.msra.mxu0 0.0
    %6177 = vmatprep.subr.mxu0 0.0
    %6178 = vmatpush1.xpose.msra.mxu0 0.0
    %6179 = vmatprep.subr.mxu0 0.0
    %6180 = vmatpush1.xpose.msra.mxu0 0.0
    %6181 = vmatprep.subr.mxu0 0.0
    %6182 = vmatpush1.xpose.msra.mxu0 0.0
    %6183 = vmatprep.subr.mxu0 0.0
    %6184 = vmatpush1.xpose.msra.mxu0 0.0
    %6185 = vmatprep.subr.mxu0 0.0
    %6186 = vmatpush1.xpose.msra.mxu0 0.0
    %6187 = vmatprep.subr.mxu0 0.0
    %6188 = vmatpush1.xpose.msra.mxu0 0.0
    %6189 = vmatprep.subr.mxu0 0.0
    %6190 = vmatpush1.xpose.msra.mxu0 0.0
    %6191 = vmatprep.subr.mxu0 0.0
    %6192 = vmatpush1.xpose.msra.mxu0 0.0
    %6193 = vmatprep.subr.mxu0 0.0
    %6194 = vmatpush1.xpose.msra.mxu0 0.0
    %6195 = vmatprep.subr.mxu0 0.0
    %6196 = vmatpush1.xpose.msra.mxu0 %v6163
    %6197 = vmatprep.subr.mxu0 0.0
    %6198 = vmatpush2.xpose.msra.mxu0 0.0
    %6199 = vmatprep.subr.mxu0 0.0
    %6200 = vmatpush2.xpose.msra.mxu0 0.0
    %6201 = vmatprep.subr.mxu0 0.0
    %6202 = vmatpush2.xpose.msra.mxu0 0.0
    %6203 = vmatprep.subr.mxu0 0.0
    %6204 = vmatpush2.xpose.msra.mxu0 0.0
    %6205 = vmatprep.subr.mxu0 0.0
    %6206 = vmatpush2.xpose.msra.mxu0 0.0
    %6207 = vmatprep.subr.mxu0 0.0
    %6208 = vmatpush2.xpose.msra.mxu0 0.0
    %6209 = vmatprep.subr.mxu0 0.0
    %6210 = vmatpush2.xpose.msra.mxu0 0.0
    %6211 = vmatprep.subr.mxu0 0.0
    %6212 = vmatpush2.xpose.msra.mxu0 0.0
    %6213 = vmatprep.subr.mxu0 0.0
    %6214 = vmatpush2.xpose.msra.mxu0 0.0
    %6215 = vmatprep.subr.mxu0 0.0
    %6216 = vmatpush2.xpose.msra.mxu0 0.0
    %6217 = vmatprep.subr.mxu0 0.0
    %6218 = vmatpush2.xpose.msra.mxu0 0.0
    %6219 = vmatprep.subr.mxu0 0.0
    %6220 = vmatpush2.xpose.msra.mxu0 0.0
    %6221 = vmatprep.subr.mxu0 0.0
    %6222 = vmatpush2.xpose.msra.mxu0 0.0
    %6223 = vmatprep.subr.mxu0 0.0
    %6224 = vmatpush2.xpose.msra.mxu0 0.0
    %6225 = vmatprep.subr.mxu0 0.0
    %6226 = vmatpush2.xpose.msra.mxu0 0.0
    %6227 = vmatprep.subr.mxu0 0.0
    %6228 = vmatpush2.xpose.msra.mxu0 0.0
    %6229 = vmatprep.mubr.f32.mxu0 0.0
    %6230 = vmatmul.mubr.f32.gmra.mxu0 %v6161
    %v6231 = vpop.f32.mrf.mxu0
    %v6232 = vadd.f32 0.0, %v6231
    %v6233 = vpop.f32.mrf.mxu0
    %6234 = vdwg.mxu0
    %6235 = vrot.lane.b32.xlu0 %v5736, 120
    %v6236 = vpop.permute.xlu0 %6235
    %6237 = vrot.lane.b32.xlu0 %v5824, 120
    %v6238 = vpop.permute.xlu0 %6237
    %v6239 = vsel %vm543, %v6236, 0
    %v6241 = vsel %vm543, %v6238, 0
    %6243 = vmatprep.subr.mxu0 0.0
    %6244 = vmatpush1.xpose.msra.mxu0 0.0
    %6245 = vmatprep.subr.mxu0 0.0
    %6246 = vmatpush1.xpose.msra.mxu0 0.0
    %6247 = vmatprep.subr.mxu0 0.0
    %6248 = vmatpush1.xpose.msra.mxu0 0.0
    %6249 = vmatprep.subr.mxu0 0.0
    %6250 = vmatpush1.xpose.msra.mxu0 0.0
    %6251 = vmatprep.subr.mxu0 0.0
    %6252 = vmatpush1.xpose.msra.mxu0 0.0
    %6253 = vmatprep.subr.mxu0 0.0
    %6254 = vmatpush1.xpose.msra.mxu0 0.0
    %6255 = vmatprep.subr.mxu0 0.0
    %6256 = vmatpush1.xpose.msra.mxu0 0.0
    %6257 = vmatprep.subr.mxu0 0.0
    %6258 = vmatpush1.xpose.msra.mxu0 0.0
    %6259 = vmatprep.subr.mxu0 0.0
    %6260 = vmatpush1.xpose.msra.mxu0 0.0
    %6261 = vmatprep.subr.mxu0 0.0
    %6262 = vmatpush1.xpose.msra.mxu0 0.0
    %6263 = vmatprep.subr.mxu0 0.0
    %6264 = vmatpush1.xpose.msra.mxu0 0.0
    %6265 = vmatprep.subr.mxu0 0.0
    %6266 = vmatpush1.xpose.msra.mxu0 0.0
    %6267 = vmatprep.subr.mxu0 0.0
    %6268 = vmatpush1.xpose.msra.mxu0 0.0
    %6269 = vmatprep.subr.mxu0 0.0
    %6270 = vmatpush1.xpose.msra.mxu0 0.0
    %6271 = vmatprep.subr.mxu0 0.0
    %6272 = vmatpush1.xpose.msra.mxu0 0.0
    %6273 = vmatprep.subr.mxu0 0.0
    %6274 = vmatpush1.xpose.msra.mxu0 %v6241
    %6275 = vmatprep.subr.mxu0 0.0
    %6276 = vmatpush2.xpose.msra.mxu0 0.0
    %6277 = vmatprep.subr.mxu0 0.0
    %6278 = vmatpush2.xpose.msra.mxu0 0.0
    %6279 = vmatprep.subr.mxu0 0.0
    %6280 = vmatpush2.xpose.msra.mxu0 0.0
    %6281 = vmatprep.subr.mxu0 0.0
    %6282 = vmatpush2.xpose.msra.mxu0 0.0
    %6283 = vmatprep.subr.mxu0 0.0
    %6284 = vmatpush2.xpose.msra.mxu0 0.0
    %6285 = vmatprep.subr.mxu0 0.0
    %6286 = vmatpush2.xpose.msra.mxu0 0.0
    %6287 = vmatprep.subr.mxu0 0.0
    %6288 = vmatpush2.xpose.msra.mxu0 0.0
    %6289 = vmatprep.subr.mxu0 0.0
    %6290 = vmatpush2.xpose.msra.mxu0 0.0
    %6291 = vmatprep.subr.mxu0 0.0
    %6292 = vmatpush2.xpose.msra.mxu0 0.0
    %6293 = vmatprep.subr.mxu0 0.0
    %6294 = vmatpush2.xpose.msra.mxu0 0.0
    %6295 = vmatprep.subr.mxu0 0.0
    %6296 = vmatpush2.xpose.msra.mxu0 0.0
    %6297 = vmatprep.subr.mxu0 0.0
    %6298 = vmatpush2.xpose.msra.mxu0 0.0
    %6299 = vmatprep.subr.mxu0 0.0
    %6300 = vmatpush2.xpose.msra.mxu0 0.0
    %6301 = vmatprep.subr.mxu0 0.0
    %6302 = vmatpush2.xpose.msra.mxu0 0.0
    %6303 = vmatprep.subr.mxu0 0.0
    %6304 = vmatpush2.xpose.msra.mxu0 0.0
    %6305 = vmatprep.subr.mxu0 0.0
    %6306 = vmatpush2.xpose.msra.mxu0 0.0
    %6307 = vmatprep.mubr.f32.mxu0 0.0
    %6308 = vmatmul.mubr.f32.gmra.mxu0 %v6239
    %v6309 = vpop.f32.mrf.mxu0
    %v6310 = vadd.f32 0.0, %v6309
    %v6311 = vpop.f32.mrf.mxu0
    %6312 = vdwg.mxu0
    %v6313 = vmul.f32 %v6232, 0.35355338
    %v6314 = vmul.f32 %v6310, 0.35355338
    %v6315 = vsel %vm443, -1e+09, %v6313
    %v6316 = vsel %vm444, -1e+09, %v6314
    %v6317 = vsel %vm543, %v6315, -inf
    %6318 = vmax.xlane.f32.xlu0 %v6317
    %v6319 = vpop.xlane.xlu0 %6318
    %v6320 = vsel %vm543, %v6316, -inf
    %6321 = vmax.xlane.f32.xlu0 %v6320
    %v6322 = vpop.xlane.xlu0 %6321
    %v6323 = vsub.f32 %v6315, %v6319
    %v6324 = vsub.f32 %v6316, %v6322
    %v6325 = vmul.f32 %v6323, 1.442695
    %v6326 = vpow.pop %v6325
    %v6327 = vmul.f32 %v6324, 1.442695
    %v6328 = vpow.pop %v6327
    %v6329 = vsel %vm543, %v6326, 0.0
    %6330 = vadd.xlane.f32.xlu0 %v6329
    %v6331 = vpop.xlane.xlu0 %6330
    %v6332 = vsel %vm543, %v6328, 0.0
    %6333 = vadd.xlane.f32.xlu0 %v6332
    %v6334 = vpop.xlane.xlu0 %6333
    %v6335 = vrcp.pop %v6331
    %v6336 = vrcp.pop %v6334
    %v6337 = vmul.f32 %v6326, %v6335
    %v6338 = vmul.f32 %v6328, %v6336
    %6339 = vrot.lane.b32.xlu0 %v5819, 88
    %v6340 = vpop.permute.xlu0 %6339
    %v6343 = vsel %vm543, %v6337, 0
    %6345 = vmatprep.subr.mxu0 0.0
    %6346 = vmatpush1.msra.mxu0 0.0
    %6347 = vmatprep.subr.mxu0 0.0
    %6348 = vmatpush1.msra.mxu0 0.0
    %6349 = vmatprep.subr.mxu0 0.0
    %6350 = vmatpush1.msra.mxu0 0.0
    %6351 = vmatprep.subr.mxu0 0.0
    %6352 = vmatpush1.msra.mxu0 0.0
    %6353 = vmatprep.subr.mxu0 0.0
    %6354 = vmatpush1.msra.mxu0 0.0
    %6355 = vmatprep.subr.mxu0 0.0
    %6356 = vmatpush1.msra.mxu0 0.0
    %6357 = vmatprep.subr.mxu0 0.0
    %6358 = vmatpush1.msra.mxu0 0.0
    %6359 = vmatprep.subr.mxu0 0.0
    %6360 = vmatpush1.msra.mxu0 0.0
    %6361 = vmatprep.subr.mxu0 0.0
    %6362 = vmatpush1.msra.mxu0 0.0
    %6363 = vmatprep.subr.mxu0 0.0
    %6364 = vmatpush1.msra.mxu0 0.0
    %6365 = vmatprep.subr.mxu0 0.0
    %6366 = vmatpush1.msra.mxu0 0.0
    %6367 = vmatprep.subr.mxu0 0.0
    %6368 = vmatpush1.msra.mxu0 0.0
    %6369 = vmatprep.subr.mxu0 0.0
    %6370 = vmatpush1.msra.mxu0 0.0
    %6371 = vmatprep.subr.mxu0 0.0
    %6372 = vmatpush1.msra.mxu0 0.0
    %6373 = vmatprep.subr.mxu0 0.0
    %6374 = vmatpush1.msra.mxu0 0.0
    %6375 = vmatprep.subr.mxu0 0.0
    %6376 = vmatpush1.msra.mxu0 %v6340
    %6377 = vmatprep.subr.mxu0 0.0
    %6378 = vmatpush2.msra.mxu0 0.0
    %6379 = vmatprep.subr.mxu0 0.0
    %6380 = vmatpush2.msra.mxu0 0.0
    %6381 = vmatprep.subr.mxu0 0.0
    %6382 = vmatpush2.msra.mxu0 0.0
    %6383 = vmatprep.subr.mxu0 0.0
    %6384 = vmatpush2.msra.mxu0 0.0
    %6385 = vmatprep.subr.mxu0 0.0
    %6386 = vmatpush2.msra.mxu0 0.0
    %6387 = vmatprep.subr.mxu0 0.0
    %6388 = vmatpush2.msra.mxu0 0.0
    %6389 = vmatprep.subr.mxu0 0.0
    %6390 = vmatpush2.msra.mxu0 0.0
    %6391 = vmatprep.subr.mxu0 0.0
    %6392 = vmatpush2.msra.mxu0 0.0
    %6393 = vmatprep.subr.mxu0 0.0
    %6394 = vmatpush2.msra.mxu0 0.0
    %6395 = vmatprep.subr.mxu0 0.0
    %6396 = vmatpush2.msra.mxu0 0.0
    %6397 = vmatprep.subr.mxu0 0.0
    %6398 = vmatpush2.msra.mxu0 0.0
    %6399 = vmatprep.subr.mxu0 0.0
    %6400 = vmatpush2.msra.mxu0 0.0
    %6401 = vmatprep.subr.mxu0 0.0
    %6402 = vmatpush2.msra.mxu0 0.0
    %6403 = vmatprep.subr.mxu0 0.0
    %6404 = vmatpush2.msra.mxu0 0.0
    %6405 = vmatprep.subr.mxu0 0.0
    %6406 = vmatpush2.msra.mxu0 0.0
    %6407 = vmatprep.subr.mxu0 0.0
    %6408 = vmatpush2.msra.mxu0 0.0
    %6409 = vmatprep.mubr.f32.mxu0 0.0
    %6410 = vmatmul.mubr.f32.gmra.mxu0 %v6343
    %v6411 = vpop.f32.mrf.mxu0
    %v6412 = vadd.f32 0.0, %v6411
    %v6413 = vpop.f32.mrf.mxu0
    %6414 = vdwg.mxu0
    %6415 = vrot.lane.b32.xlu0 %v5824, 88
    %v6416 = vpop.permute.xlu0 %6415
    %v6419 = vsel %vm543, %v6338, 0
    %6421 = vmatprep.subr.mxu0 0.0
    %6422 = vmatpush1.msra.mxu0 0.0
    %6423 = vmatprep.subr.mxu0 0.0
    %6424 = vmatpush1.msra.mxu0 0.0
    %6425 = vmatprep.subr.mxu0 0.0
    %6426 = vmatpush1.msra.mxu0 0.0
    %6427 = vmatprep.subr.mxu0 0.0
    %6428 = vmatpush1.msra.mxu0 0.0
    %6429 = vmatprep.subr.mxu0 0.0
    %6430 = vmatpush1.msra.mxu0 0.0
    %6431 = vmatprep.subr.mxu0 0.0
    %6432 = vmatpush1.msra.mxu0 0.0
    %6433 = vmatprep.subr.mxu0 0.0
    %6434 = vmatpush1.msra.mxu0 0.0
    %6435 = vmatprep.subr.mxu0 0.0
    %6436 = vmatpush1.msra.mxu0 0.0
    %6437 = vmatprep.subr.mxu0 0.0
    %6438 = vmatpush1.msra.mxu0 0.0
    %6439 = vmatprep.subr.mxu0 0.0
    %6440 = vmatpush1.msra.mxu0 0.0
    %6441 = vmatprep.subr.mxu0 0.0
    %6442 = vmatpush1.msra.mxu0 0.0
    %6443 = vmatprep.subr.mxu0 0.0
    %6444 = vmatpush1.msra.mxu0 0.0
    %6445 = vmatprep.subr.mxu0 0.0
    %6446 = vmatpush1.msra.mxu0 0.0
    %6447 = vmatprep.subr.mxu0 0.0
    %6448 = vmatpush1.msra.mxu0 0.0
    %6449 = vmatprep.subr.mxu0 0.0
    %6450 = vmatpush1.msra.mxu0 0.0
    %6451 = vmatprep.subr.mxu0 0.0
    %6452 = vmatpush1.msra.mxu0 %v6416
    %6453 = vmatprep.subr.mxu0 0.0
    %6454 = vmatpush2.msra.mxu0 0.0
    %6455 = vmatprep.subr.mxu0 0.0
    %6456 = vmatpush2.msra.mxu0 0.0
    %6457 = vmatprep.subr.mxu0 0.0
    %6458 = vmatpush2.msra.mxu0 0.0
    %6459 = vmatprep.subr.mxu0 0.0
    %6460 = vmatpush2.msra.mxu0 0.0
    %6461 = vmatprep.subr.mxu0 0.0
    %6462 = vmatpush2.msra.mxu0 0.0
    %6463 = vmatprep.subr.mxu0 0.0
    %6464 = vmatpush2.msra.mxu0 0.0
    %6465 = vmatprep.subr.mxu0 0.0
    %6466 = vmatpush2.msra.mxu0 0.0
    %6467 = vmatprep.subr.mxu0 0.0
    %6468 = vmatpush2.msra.mxu0 0.0
    %6469 = vmatprep.subr.mxu0 0.0
    %6470 = vmatpush2.msra.mxu0 0.0
    %6471 = vmatprep.subr.mxu0 0.0
    %6472 = vmatpush2.msra.mxu0 0.0
    %6473 = vmatprep.subr.mxu0 0.0
    %6474 = vmatpush2.msra.mxu0 0.0
    %6475 = vmatprep.subr.mxu0 0.0
    %6476 = vmatpush2.msra.mxu0 0.0
    %6477 = vmatprep.subr.mxu0 0.0
    %6478 = vmatpush2.msra.mxu0 0.0
    %6479 = vmatprep.subr.mxu0 0.0
    %6480 = vmatpush2.msra.mxu0 0.0
    %6481 = vmatprep.subr.mxu0 0.0
    %6482 = vmatpush2.msra.mxu0 0.0
    %6483 = vmatprep.subr.mxu0 0.0
    %6484 = vmatpush2.msra.mxu0 0.0
    %6485 = vmatprep.mubr.f32.mxu0 0.0
    %6486 = vmatmul.mubr.f32.gmra.mxu0 %v6419
    %v6487 = vpop.f32.mrf.mxu0
    %v6488 = vadd.f32 0.0, %v6487
    %v6489 = vpop.f32.mrf.mxu0
    %6490 = vdwg.mxu0
    %6491 = vrot.lane.b32.xlu0 %v5731, 112
    %v6492 = vpop.permute.xlu0 %6491
    %6493 = vrot.lane.b32.xlu0 %v5819, 112
    %v6494 = vpop.permute.xlu0 %6493
    %v6495 = vsel %vm543, %v6492, 0
    %v6497 = vsel %vm543, %v6494, 0
    %6499 = vmatprep.subr.mxu0 0.0
    %6500 = vmatpush1.xpose.msra.mxu0 0.0
    %6501 = vmatprep.subr.mxu0 0.0
    %6502 = vmatpush1.xpose.msra.mxu0 0.0
    %6503 = vmatprep.subr.mxu0 0.0
    %6504 = vmatpush1.xpose.msra.mxu0 0.0
    %6505 = vmatprep.subr.mxu0 0.0
    %6506 = vmatpush1.xpose.msra.mxu0 0.0
    %6507 = vmatprep.subr.mxu0 0.0
    %6508 = vmatpush1.xpose.msra.mxu0 0.0
    %6509 = vmatprep.subr.mxu0 0.0
    %6510 = vmatpush1.xpose.msra.mxu0 0.0
    %6511 = vmatprep.subr.mxu0 0.0
    %6512 = vmatpush1.xpose.msra.mxu0 0.0
    %6513 = vmatprep.subr.mxu0 0.0
    %6514 = vmatpush1.xpose.msra.mxu0 0.0
    %6515 = vmatprep.subr.mxu0 0.0
    %6516 = vmatpush1.xpose.msra.mxu0 0.0
    %6517 = vmatprep.subr.mxu0 0.0
    %6518 = vmatpush1.xpose.msra.mxu0 0.0
    %6519 = vmatprep.subr.mxu0 0.0
    %6520 = vmatpush1.xpose.msra.mxu0 0.0
    %6521 = vmatprep.subr.mxu0 0.0
    %6522 = vmatpush1.xpose.msra.mxu0 0.0
    %6523 = vmatprep.subr.mxu0 0.0
    %6524 = vmatpush1.xpose.msra.mxu0 0.0
    %6525 = vmatprep.subr.mxu0 0.0
    %6526 = vmatpush1.xpose.msra.mxu0 0.0
    %6527 = vmatprep.subr.mxu0 0.0
    %6528 = vmatpush1.xpose.msra.mxu0 0.0
    %6529 = vmatprep.subr.mxu0 0.0
    %6530 = vmatpush1.xpose.msra.mxu0 %v6497
    %6531 = vmatprep.subr.mxu0 0.0
    %6532 = vmatpush2.xpose.msra.mxu0 0.0
    %6533 = vmatprep.subr.mxu0 0.0
    %6534 = vmatpush2.xpose.msra.mxu0 0.0
    %6535 = vmatprep.subr.mxu0 0.0
    %6536 = vmatpush2.xpose.msra.mxu0 0.0
    %6537 = vmatprep.subr.mxu0 0.0
    %6538 = vmatpush2.xpose.msra.mxu0 0.0
    %6539 = vmatprep.subr.mxu0 0.0
    %6540 = vmatpush2.xpose.msra.mxu0 0.0
    %6541 = vmatprep.subr.mxu0 0.0
    %6542 = vmatpush2.xpose.msra.mxu0 0.0
    %6543 = vmatprep.subr.mxu0 0.0
    %6544 = vmatpush2.xpose.msra.mxu0 0.0
    %6545 = vmatprep.subr.mxu0 0.0
    %6546 = vmatpush2.xpose.msra.mxu0 0.0
    %6547 = vmatprep.subr.mxu0 0.0
    %6548 = vmatpush2.xpose.msra.mxu0 0.0
    %6549 = vmatprep.subr.mxu0 0.0
    %6550 = vmatpush2.xpose.msra.mxu0 0.0
    %6551 = vmatprep.subr.mxu0 0.0
    %6552 = vmatpush2.xpose.msra.mxu0 0.0
    %6553 = vmatprep.subr.mxu0 0.0
    %6554 = vmatpush2.xpose.msra.mxu0 0.0
    %6555 = vmatprep.subr.mxu0 0.0
    %6556 = vmatpush2.xpose.msra.mxu0 0.0
    %6557 = vmatprep.subr.mxu0 0.0
    %6558 = vmatpush2.xpose.msra.mxu0 0.0
    %6559 = vmatprep.subr.mxu0 0.0
    %6560 = vmatpush2.xpose.msra.mxu0 0.0
    %6561 = vmatprep.subr.mxu0 0.0
    %6562 = vmatpush2.xpose.msra.mxu0 0.0
    %6563 = vmatprep.mubr.f32.mxu0 0.0
    %6564 = vmatmul.mubr.f32.gmra.mxu0 %v6495
    %v6565 = vpop.f32.mrf.mxu0
    %v6566 = vadd.f32 0.0, %v6565
    %v6567 = vpop.f32.mrf.mxu0
    %6568 = vdwg.mxu0
    %6569 = vrot.lane.b32.xlu0 %v5736, 112
    %v6570 = vpop.permute.xlu0 %6569
    %6571 = vrot.lane.b32.xlu0 %v5824, 112
    %v6572 = vpop.permute.xlu0 %6571
    %v6573 = vsel %vm543, %v6570, 0
    %v6575 = vsel %vm543, %v6572, 0
    %6577 = vmatprep.subr.mxu0 0.0
    %6578 = vmatpush1.xpose.msra.mxu0 0.0
    %6579 = vmatprep.subr.mxu0 0.0
    %6580 = vmatpush1.xpose.msra.mxu0 0.0
    %6581 = vmatprep.subr.mxu0 0.0
    %6582 = vmatpush1.xpose.msra.mxu0 0.0
    %6583 = vmatprep.subr.mxu0 0.0
    %6584 = vmatpush1.xpose.msra.mxu0 0.0
    %6585 = vmatprep.subr.mxu0 0.0
    %6586 = vmatpush1.xpose.msra.mxu0 0.0
    %6587 = vmatprep.subr.mxu0 0.0
    %6588 = vmatpush1.xpose.msra.mxu0 0.0
    %6589 = vmatprep.subr.mxu0 0.0
    %6590 = vmatpush1.xpose.msra.mxu0 0.0
    %6591 = vmatprep.subr.mxu0 0.0
    %6592 = vmatpush1.xpose.msra.mxu0 0.0
    %6593 = vmatprep.subr.mxu0 0.0
    %6594 = vmatpush1.xpose.msra.mxu0 0.0
    %6595 = vmatprep.subr.mxu0 0.0
    %6596 = vmatpush1.xpose.msra.mxu0 0.0
    %6597 = vmatprep.subr.mxu0 0.0
    %6598 = vmatpush1.xpose.msra.mxu0 0.0
    %6599 = vmatprep.subr.mxu0 0.0
    %6600 = vmatpush1.xpose.msra.mxu0 0.0
    %6601 = vmatprep.subr.mxu0 0.0
    %6602 = vmatpush1.xpose.msra.mxu0 0.0
    %6603 = vmatprep.subr.mxu0 0.0
    %6604 = vmatpush1.xpose.msra.mxu0 0.0
    %6605 = vmatprep.subr.mxu0 0.0
    %6606 = vmatpush1.xpose.msra.mxu0 0.0
    %6607 = vmatprep.subr.mxu0 0.0
    %6608 = vmatpush1.xpose.msra.mxu0 %v6575
    %6609 = vmatprep.subr.mxu0 0.0
    %6610 = vmatpush2.xpose.msra.mxu0 0.0
    %6611 = vmatprep.subr.mxu0 0.0
    %6612 = vmatpush2.xpose.msra.mxu0 0.0
    %6613 = vmatprep.subr.mxu0 0.0
    %6614 = vmatpush2.xpose.msra.mxu0 0.0
    %6615 = vmatprep.subr.mxu0 0.0
    %6616 = vmatpush2.xpose.msra.mxu0 0.0
    %6617 = vmatprep.subr.mxu0 0.0
    %6618 = vmatpush2.xpose.msra.mxu0 0.0
    %6619 = vmatprep.subr.mxu0 0.0
    %6620 = vmatpush2.xpose.msra.mxu0 0.0
    %6621 = vmatprep.subr.mxu0 0.0
    %6622 = vmatpush2.xpose.msra.mxu0 0.0
    %6623 = vmatprep.subr.mxu0 0.0
    %6624 = vmatpush2.xpose.msra.mxu0 0.0
    %6625 = vmatprep.subr.mxu0 0.0
    %6626 = vmatpush2.xpose.msra.mxu0 0.0
    %6627 = vmatprep.subr.mxu0 0.0
    %6628 = vmatpush2.xpose.msra.mxu0 0.0
    %6629 = vmatprep.subr.mxu0 0.0
    %6630 = vmatpush2.xpose.msra.mxu0 0.0
    %6631 = vmatprep.subr.mxu0 0.0
    %6632 = vmatpush2.xpose.msra.mxu0 0.0
    %6633 = vmatprep.subr.mxu0 0.0
    %6634 = vmatpush2.xpose.msra.mxu0 0.0
    %6635 = vmatprep.subr.mxu0 0.0
    %6636 = vmatpush2.xpose.msra.mxu0 0.0
    %6637 = vmatprep.subr.mxu0 0.0
    %6638 = vmatpush2.xpose.msra.mxu0 0.0
    %6639 = vmatprep.subr.mxu0 0.0
    %6640 = vmatpush2.xpose.msra.mxu0 0.0
    %6641 = vmatprep.mubr.f32.mxu0 0.0
    %6642 = vmatmul.mubr.f32.gmra.mxu0 %v6573
    %v6643 = vpop.f32.mrf.mxu0
    %v6644 = vadd.f32 0.0, %v6643
    %v6645 = vpop.f32.mrf.mxu0
    %6646 = vdwg.mxu0
    %v6647 = vmul.f32 %v6566, 0.35355338
    %v6648 = vmul.f32 %v6644, 0.35355338
    %v6649 = vsel %vm443, -1e+09, %v6647
    %v6650 = vsel %vm444, -1e+09, %v6648
    %v6651 = vsel %vm543, %v6649, -inf
    %6652 = vmax.xlane.f32.xlu0 %v6651
    %v6653 = vpop.xlane.xlu0 %6652
    %v6654 = vsel %vm543, %v6650, -inf
    %6655 = vmax.xlane.f32.xlu0 %v6654
    %v6656 = vpop.xlane.xlu0 %6655
    %v6657 = vsub.f32 %v6649, %v6653
    %v6658 = vsub.f32 %v6650, %v6656
    %v6659 = vmul.f32 %v6657, 1.442695
    %v6660 = vpow.pop %v6659
    %v6661 = vmul.f32 %v6658, 1.442695
    %v6662 = vpow.pop %v6661
    %v6663 = vsel %vm543, %v6660, 0.0
    %6664 = vadd.xlane.f32.xlu0 %v6663
    %v6665 = vpop.xlane.xlu0 %6664
    %v6666 = vsel %vm543, %v6662, 0.0
    %6667 = vadd.xlane.f32.xlu0 %v6666
    %v6668 = vpop.xlane.xlu0 %6667
    %v6669 = vrcp.pop %v6665
    %v6670 = vrcp.pop %v6668
    %v6671 = vmul.f32 %v6660, %v6669
    %v6672 = vmul.f32 %v6662, %v6670
    %6673 = vrot.lane.b32.xlu0 %v5819, 80
    %v6674 = vpop.permute.xlu0 %6673
    %v6677 = vsel %vm543, %v6671, 0
    %6679 = vmatprep.subr.mxu0 0.0
    %6680 = vmatpush1.msra.mxu0 0.0
    %6681 = vmatprep.subr.mxu0 0.0
    %6682 = vmatpush1.msra.mxu0 0.0
    %6683 = vmatprep.subr.mxu0 0.0
    %6684 = vmatpush1.msra.mxu0 0.0
    %6685 = vmatprep.subr.mxu0 0.0
    %6686 = vmatpush1.msra.mxu0 0.0
    %6687 = vmatprep.subr.mxu0 0.0
    %6688 = vmatpush1.msra.mxu0 0.0
    %6689 = vmatprep.subr.mxu0 0.0
    %6690 = vmatpush1.msra.mxu0 0.0
    %6691 = vmatprep.subr.mxu0 0.0
    %6692 = vmatpush1.msra.mxu0 0.0
    %6693 = vmatprep.subr.mxu0 0.0
    %6694 = vmatpush1.msra.mxu0 0.0
    %6695 = vmatprep.subr.mxu0 0.0
    %6696 = vmatpush1.msra.mxu0 0.0
    %6697 = vmatprep.subr.mxu0 0.0
    %6698 = vmatpush1.msra.mxu0 0.0
    %6699 = vmatprep.subr.mxu0 0.0
    %6700 = vmatpush1.msra.mxu0 0.0
    %6701 = vmatprep.subr.mxu0 0.0
    %6702 = vmatpush1.msra.mxu0 0.0
    %6703 = vmatprep.subr.mxu0 0.0
    %6704 = vmatpush1.msra.mxu0 0.0
    %6705 = vmatprep.subr.mxu0 0.0
    %6706 = vmatpush1.msra.mxu0 0.0
    %6707 = vmatprep.subr.mxu0 0.0
    %6708 = vmatpush1.msra.mxu0 0.0
    %6709 = vmatprep.subr.mxu0 0.0
    %6710 = vmatpush1.msra.mxu0 %v6674
    %6711 = vmatprep.subr.mxu0 0.0
    %6712 = vmatpush2.msra.mxu0 0.0
    %6713 = vmatprep.subr.mxu0 0.0
    %6714 = vmatpush2.msra.mxu0 0.0
    %6715 = vmatprep.subr.mxu0 0.0
    %6716 = vmatpush2.msra.mxu0 0.0
    %6717 = vmatprep.subr.mxu0 0.0
    %6718 = vmatpush2.msra.mxu0 0.0
    %6719 = vmatprep.subr.mxu0 0.0
    %6720 = vmatpush2.msra.mxu0 0.0
    %6721 = vmatprep.subr.mxu0 0.0
    %6722 = vmatpush2.msra.mxu0 0.0
    %6723 = vmatprep.subr.mxu0 0.0
    %6724 = vmatpush2.msra.mxu0 0.0
    %6725 = vmatprep.subr.mxu0 0.0
    %6726 = vmatpush2.msra.mxu0 0.0
    %6727 = vmatprep.subr.mxu0 0.0
    %6728 = vmatpush2.msra.mxu0 0.0
    %6729 = vmatprep.subr.mxu0 0.0
    %6730 = vmatpush2.msra.mxu0 0.0
    %6731 = vmatprep.subr.mxu0 0.0
    %6732 = vmatpush2.msra.mxu0 0.0
    %6733 = vmatprep.subr.mxu0 0.0
    %6734 = vmatpush2.msra.mxu0 0.0
    %6735 = vmatprep.subr.mxu0 0.0
    %6736 = vmatpush2.msra.mxu0 0.0
    %6737 = vmatprep.subr.mxu0 0.0
    %6738 = vmatpush2.msra.mxu0 0.0
    %6739 = vmatprep.subr.mxu0 0.0
    %6740 = vmatpush2.msra.mxu0 0.0
    %6741 = vmatprep.subr.mxu0 0.0
    %6742 = vmatpush2.msra.mxu0 0.0
    %6743 = vmatprep.mubr.f32.mxu0 0.0
    %6744 = vmatmul.mubr.f32.gmra.mxu0 %v6677
    %v6745 = vpop.f32.mrf.mxu0
    %v6746 = vadd.f32 0.0, %v6745
    %v6747 = vpop.f32.mrf.mxu0
    %6748 = vdwg.mxu0
    %6749 = vrot.lane.b32.xlu0 %v5824, 80
    %v6750 = vpop.permute.xlu0 %6749
    %v6753 = vsel %vm543, %v6672, 0
    %6755 = vmatprep.subr.mxu0 0.0
    %6756 = vmatpush1.msra.mxu0 0.0
    %6757 = vmatprep.subr.mxu0 0.0
    %6758 = vmatpush1.msra.mxu0 0.0
    %6759 = vmatprep.subr.mxu0 0.0
    %6760 = vmatpush1.msra.mxu0 0.0
    %6761 = vmatprep.subr.mxu0 0.0
    %6762 = vmatpush1.msra.mxu0 0.0
    %6763 = vmatprep.subr.mxu0 0.0
    %6764 = vmatpush1.msra.mxu0 0.0
    %6765 = vmatprep.subr.mxu0 0.0
    %6766 = vmatpush1.msra.mxu0 0.0
    %6767 = vmatprep.subr.mxu0 0.0
    %6768 = vmatpush1.msra.mxu0 0.0
    %6769 = vmatprep.subr.mxu0 0.0
    %6770 = vmatpush1.msra.mxu0 0.0
    %6771 = vmatprep.subr.mxu0 0.0
    %6772 = vmatpush1.msra.mxu0 0.0
    %6773 = vmatprep.subr.mxu0 0.0
    %6774 = vmatpush1.msra.mxu0 0.0
    %6775 = vmatprep.subr.mxu0 0.0
    %6776 = vmatpush1.msra.mxu0 0.0
    %6777 = vmatprep.subr.mxu0 0.0
    %6778 = vmatpush1.msra.mxu0 0.0
    %6779 = vmatprep.subr.mxu0 0.0
    %6780 = vmatpush1.msra.mxu0 0.0
    %6781 = vmatprep.subr.mxu0 0.0
    %6782 = vmatpush1.msra.mxu0 0.0
    %6783 = vmatprep.subr.mxu0 0.0
    %6784 = vmatpush1.msra.mxu0 0.0
    %6785 = vmatprep.subr.mxu0 0.0
    %6786 = vmatpush1.msra.mxu0 %v6750
    %6787 = vmatprep.subr.mxu0 0.0
    %6788 = vmatpush2.msra.mxu0 0.0
    %6789 = vmatprep.subr.mxu0 0.0
    %6790 = vmatpush2.msra.mxu0 0.0
    %6791 = vmatprep.subr.mxu0 0.0
    %6792 = vmatpush2.msra.mxu0 0.0
    %6793 = vmatprep.subr.mxu0 0.0
    %6794 = vmatpush2.msra.mxu0 0.0
    %6795 = vmatprep.subr.mxu0 0.0
    %6796 = vmatpush2.msra.mxu0 0.0
    %6797 = vmatprep.subr.mxu0 0.0
    %6798 = vmatpush2.msra.mxu0 0.0
    %6799 = vmatprep.subr.mxu0 0.0
    %6800 = vmatpush2.msra.mxu0 0.0
    %6801 = vmatprep.subr.mxu0 0.0
    %6802 = vmatpush2.msra.mxu0 0.0
    %6803 = vmatprep.subr.mxu0 0.0
    %6804 = vmatpush2.msra.mxu0 0.0
    %6805 = vmatprep.subr.mxu0 0.0
    %6806 = vmatpush2.msra.mxu0 0.0
    %6807 = vmatprep.subr.mxu0 0.0
    %6808 = vmatpush2.msra.mxu0 0.0
    %6809 = vmatprep.subr.mxu0 0.0
    %6810 = vmatpush2.msra.mxu0 0.0
    %6811 = vmatprep.subr.mxu0 0.0
    %6812 = vmatpush2.msra.mxu0 0.0
    %6813 = vmatprep.subr.mxu0 0.0
    %6814 = vmatpush2.msra.mxu0 0.0
    %6815 = vmatprep.subr.mxu0 0.0
    %6816 = vmatpush2.msra.mxu0 0.0
    %6817 = vmatprep.subr.mxu0 0.0
    %6818 = vmatpush2.msra.mxu0 0.0
    %6819 = vmatprep.mubr.f32.mxu0 0.0
    %6820 = vmatmul.mubr.f32.gmra.mxu0 %v6753
    %v6821 = vpop.f32.mrf.mxu0
    %v6822 = vadd.f32 0.0, %v6821
    %v6823 = vpop.f32.mrf.mxu0
    %6824 = vdwg.mxu0
    %6825 = vrot.lane.b32.xlu0 %v5731, 104
    %v6826 = vpop.permute.xlu0 %6825
    %6827 = vrot.lane.b32.xlu0 %v5819, 104
    %v6828 = vpop.permute.xlu0 %6827
    %v6829 = vsel %vm543, %v6826, 0
    %v6831 = vsel %vm543, %v6828, 0
    %6833 = vmatprep.subr.mxu0 0.0
    %6834 = vmatpush1.xpose.msra.mxu0 0.0
    %6835 = vmatprep.subr.mxu0 0.0
    %6836 = vmatpush1.xpose.msra.mxu0 0.0
    %6837 = vmatprep.subr.mxu0 0.0
    %6838 = vmatpush1.xpose.msra.mxu0 0.0
    %6839 = vmatprep.subr.mxu0 0.0
    %6840 = vmatpush1.xpose.msra.mxu0 0.0
    %6841 = vmatprep.subr.mxu0 0.0
    %6842 = vmatpush1.xpose.msra.mxu0 0.0
    %6843 = vmatprep.subr.mxu0 0.0
    %6844 = vmatpush1.xpose.msra.mxu0 0.0
    %6845 = vmatprep.subr.mxu0 0.0
    %6846 = vmatpush1.xpose.msra.mxu0 0.0
    %6847 = vmatprep.subr.mxu0 0.0
    %6848 = vmatpush1.xpose.msra.mxu0 0.0
    %6849 = vmatprep.subr.mxu0 0.0
    %6850 = vmatpush1.xpose.msra.mxu0 0.0
    %6851 = vmatprep.subr.mxu0 0.0
    %6852 = vmatpush1.xpose.msra.mxu0 0.0
    %6853 = vmatprep.subr.mxu0 0.0
    %6854 = vmatpush1.xpose.msra.mxu0 0.0
    %6855 = vmatprep.subr.mxu0 0.0
    %6856 = vmatpush1.xpose.msra.mxu0 0.0
    %6857 = vmatprep.subr.mxu0 0.0
    %6858 = vmatpush1.xpose.msra.mxu0 0.0
    %6859 = vmatprep.subr.mxu0 0.0
    %6860 = vmatpush1.xpose.msra.mxu0 0.0
    %6861 = vmatprep.subr.mxu0 0.0
    %6862 = vmatpush1.xpose.msra.mxu0 0.0
    %6863 = vmatprep.subr.mxu0 0.0
    %6864 = vmatpush1.xpose.msra.mxu0 %v6831
    %6865 = vmatprep.subr.mxu0 0.0
    %6866 = vmatpush2.xpose.msra.mxu0 0.0
    %6867 = vmatprep.subr.mxu0 0.0
    %6868 = vmatpush2.xpose.msra.mxu0 0.0
    %6869 = vmatprep.subr.mxu0 0.0
    %6870 = vmatpush2.xpose.msra.mxu0 0.0
    %6871 = vmatprep.subr.mxu0 0.0
    %6872 = vmatpush2.xpose.msra.mxu0 0.0
    %6873 = vmatprep.subr.mxu0 0.0
    %6874 = vmatpush2.xpose.msra.mxu0 0.0
    %6875 = vmatprep.subr.mxu0 0.0
    %6876 = vmatpush2.xpose.msra.mxu0 0.0
    %6877 = vmatprep.subr.mxu0 0.0
    %6878 = vmatpush2.xpose.msra.mxu0 0.0
    %6879 = vmatprep.subr.mxu0 0.0
    %6880 = vmatpush2.xpose.msra.mxu0 0.0
    %6881 = vmatprep.subr.mxu0 0.0
    %6882 = vmatpush2.xpose.msra.mxu0 0.0
    %6883 = vmatprep.subr.mxu0 0.0
    %6884 = vmatpush2.xpose.msra.mxu0 0.0
    %6885 = vmatprep.subr.mxu0 0.0
    %6886 = vmatpush2.xpose.msra.mxu0 0.0
    %6887 = vmatprep.subr.mxu0 0.0
    %6888 = vmatpush2.xpose.msra.mxu0 0.0
    %6889 = vmatprep.subr.mxu0 0.0
    %6890 = vmatpush2.xpose.msra.mxu0 0.0
    %6891 = vmatprep.subr.mxu0 0.0
    %6892 = vmatpush2.xpose.msra.mxu0 0.0
    %6893 = vmatprep.subr.mxu0 0.0
    %6894 = vmatpush2.xpose.msra.mxu0 0.0
    %6895 = vmatprep.subr.mxu0 0.0
    %6896 = vmatpush2.xpose.msra.mxu0 0.0
    %6897 = vmatprep.mubr.f32.mxu0 0.0
    %6898 = vmatmul.mubr.f32.gmra.mxu0 %v6829
    %v6899 = vpop.f32.mrf.mxu0
    %v6900 = vadd.f32 0.0, %v6899
    %v6901 = vpop.f32.mrf.mxu0
    %6902 = vdwg.mxu0
    %6903 = vrot.lane.b32.xlu0 %v5736, 104
    %v6904 = vpop.permute.xlu0 %6903
    %6905 = vrot.lane.b32.xlu0 %v5824, 104
    %v6906 = vpop.permute.xlu0 %6905
    %v6907 = vsel %vm543, %v6904, 0
    %v6909 = vsel %vm543, %v6906, 0
    %6911 = vmatprep.subr.mxu0 0.0
    %6912 = vmatpush1.xpose.msra.mxu0 0.0
    %6913 = vmatprep.subr.mxu0 0.0
    %6914 = vmatpush1.xpose.msra.mxu0 0.0
    %6915 = vmatprep.subr.mxu0 0.0
    %6916 = vmatpush1.xpose.msra.mxu0 0.0
    %6917 = vmatprep.subr.mxu0 0.0
    %6918 = vmatpush1.xpose.msra.mxu0 0.0
    %6919 = vmatprep.subr.mxu0 0.0
    %6920 = vmatpush1.xpose.msra.mxu0 0.0
    %6921 = vmatprep.subr.mxu0 0.0
    %6922 = vmatpush1.xpose.msra.mxu0 0.0
    %6923 = vmatprep.subr.mxu0 0.0
    %6924 = vmatpush1.xpose.msra.mxu0 0.0
    %6925 = vmatprep.subr.mxu0 0.0
    %6926 = vmatpush1.xpose.msra.mxu0 0.0
    %6927 = vmatprep.subr.mxu0 0.0
    %6928 = vmatpush1.xpose.msra.mxu0 0.0
    %6929 = vmatprep.subr.mxu0 0.0
    %6930 = vmatpush1.xpose.msra.mxu0 0.0
    %6931 = vmatprep.subr.mxu0 0.0
    %6932 = vmatpush1.xpose.msra.mxu0 0.0
    %6933 = vmatprep.subr.mxu0 0.0
    %6934 = vmatpush1.xpose.msra.mxu0 0.0
    %6935 = vmatprep.subr.mxu0 0.0
    %6936 = vmatpush1.xpose.msra.mxu0 0.0
    %6937 = vmatprep.subr.mxu0 0.0
    %6938 = vmatpush1.xpose.msra.mxu0 0.0
    %6939 = vmatprep.subr.mxu0 0.0
    %6940 = vmatpush1.xpose.msra.mxu0 0.0
    %6941 = vmatprep.subr.mxu0 0.0
    %6942 = vmatpush1.xpose.msra.mxu0 %v6909
    %6943 = vmatprep.subr.mxu0 0.0
    %6944 = vmatpush2.xpose.msra.mxu0 0.0
    %6945 = vmatprep.subr.mxu0 0.0
    %6946 = vmatpush2.xpose.msra.mxu0 0.0
    %6947 = vmatprep.subr.mxu0 0.0
    %6948 = vmatpush2.xpose.msra.mxu0 0.0
    %6949 = vmatprep.subr.mxu0 0.0
    %6950 = vmatpush2.xpose.msra.mxu0 0.0
    %6951 = vmatprep.subr.mxu0 0.0
    %6952 = vmatpush2.xpose.msra.mxu0 0.0
    %6953 = vmatprep.subr.mxu0 0.0
    %6954 = vmatpush2.xpose.msra.mxu0 0.0
    %6955 = vmatprep.subr.mxu0 0.0
    %6956 = vmatpush2.xpose.msra.mxu0 0.0
    %6957 = vmatprep.subr.mxu0 0.0
    %6958 = vmatpush2.xpose.msra.mxu0 0.0
    %6959 = vmatprep.subr.mxu0 0.0
    %6960 = vmatpush2.xpose.msra.mxu0 0.0
    %6961 = vmatprep.subr.mxu0 0.0
    %6962 = vmatpush2.xpose.msra.mxu0 0.0
    %6963 = vmatprep.subr.mxu0 0.0
    %6964 = vmatpush2.xpose.msra.mxu0 0.0
    %6965 = vmatprep.subr.mxu0 0.0
    %6966 = vmatpush2.xpose.msra.mxu0 0.0
    %6967 = vmatprep.subr.mxu0 0.0
    %6968 = vmatpush2.xpose.msra.mxu0 0.0
    %6969 = vmatprep.subr.mxu0 0.0
    %6970 = vmatpush2.xpose.msra.mxu0 0.0
    %6971 = vmatprep.subr.mxu0 0.0
    %6972 = vmatpush2.xpose.msra.mxu0 0.0
    %6973 = vmatprep.subr.mxu0 0.0
    %6974 = vmatpush2.xpose.msra.mxu0 0.0
    %6975 = vmatprep.mubr.f32.mxu0 0.0
    %6976 = vmatmul.mubr.f32.gmra.mxu0 %v6907
    %v6977 = vpop.f32.mrf.mxu0
    %v6978 = vadd.f32 0.0, %v6977
    %v6979 = vpop.f32.mrf.mxu0
    %6980 = vdwg.mxu0
    %v6981 = vmul.f32 %v6900, 0.35355338
    %v6982 = vmul.f32 %v6978, 0.35355338
    %v6983 = vsel %vm443, -1e+09, %v6981
    %v6984 = vsel %vm444, -1e+09, %v6982
    %v6985 = vsel %vm543, %v6983, -inf
    %6986 = vmax.xlane.f32.xlu0 %v6985
    %v6987 = vpop.xlane.xlu0 %6986
    %v6988 = vsel %vm543, %v6984, -inf
    %6989 = vmax.xlane.f32.xlu0 %v6988
    %v6990 = vpop.xlane.xlu0 %6989
    %v6991 = vsub.f32 %v6983, %v6987
    %v6992 = vsub.f32 %v6984, %v6990
    %v6993 = vmul.f32 %v6991, 1.442695
    %v6994 = vpow.pop %v6993
    %v6995 = vmul.f32 %v6992, 1.442695
    %v6996 = vpow.pop %v6995
    %v6997 = vsel %vm543, %v6994, 0.0
    %6998 = vadd.xlane.f32.xlu0 %v6997
    %v6999 = vpop.xlane.xlu0 %6998
    %v7000 = vsel %vm543, %v6996, 0.0
    %7001 = vadd.xlane.f32.xlu0 %v7000
    %v7002 = vpop.xlane.xlu0 %7001
    %v7003 = vrcp.pop %v6999
    %v7004 = vrcp.pop %v7002
    %v7005 = vmul.f32 %v6994, %v7003
    %v7006 = vmul.f32 %v6996, %v7004
    %7007 = vrot.lane.b32.xlu0 %v5819, 72
    %v7008 = vpop.permute.xlu0 %7007
    %v7011 = vsel %vm543, %v7005, 0
    %7013 = vmatprep.subr.mxu0 0.0
    %7014 = vmatpush1.msra.mxu0 0.0
    %7015 = vmatprep.subr.mxu0 0.0
    %7016 = vmatpush1.msra.mxu0 0.0
    %7017 = vmatprep.subr.mxu0 0.0
    %7018 = vmatpush1.msra.mxu0 0.0
    %7019 = vmatprep.subr.mxu0 0.0
    %7020 = vmatpush1.msra.mxu0 0.0
    %7021 = vmatprep.subr.mxu0 0.0
    %7022 = vmatpush1.msra.mxu0 0.0
    %7023 = vmatprep.subr.mxu0 0.0
    %7024 = vmatpush1.msra.mxu0 0.0
    %7025 = vmatprep.subr.mxu0 0.0
    %7026 = vmatpush1.msra.mxu0 0.0
    %7027 = vmatprep.subr.mxu0 0.0
    %7028 = vmatpush1.msra.mxu0 0.0
    %7029 = vmatprep.subr.mxu0 0.0
    %7030 = vmatpush1.msra.mxu0 0.0
    %7031 = vmatprep.subr.mxu0 0.0
    %7032 = vmatpush1.msra.mxu0 0.0
    %7033 = vmatprep.subr.mxu0 0.0
    %7034 = vmatpush1.msra.mxu0 0.0
    %7035 = vmatprep.subr.mxu0 0.0
    %7036 = vmatpush1.msra.mxu0 0.0
    %7037 = vmatprep.subr.mxu0 0.0
    %7038 = vmatpush1.msra.mxu0 0.0
    %7039 = vmatprep.subr.mxu0 0.0
    %7040 = vmatpush1.msra.mxu0 0.0
    %7041 = vmatprep.subr.mxu0 0.0
    %7042 = vmatpush1.msra.mxu0 0.0
    %7043 = vmatprep.subr.mxu0 0.0
    %7044 = vmatpush1.msra.mxu0 %v7008
    %7045 = vmatprep.subr.mxu0 0.0
    %7046 = vmatpush2.msra.mxu0 0.0
    %7047 = vmatprep.subr.mxu0 0.0
    %7048 = vmatpush2.msra.mxu0 0.0
    %7049 = vmatprep.subr.mxu0 0.0
    %7050 = vmatpush2.msra.mxu0 0.0
    %7051 = vmatprep.subr.mxu0 0.0
    %7052 = vmatpush2.msra.mxu0 0.0
    %7053 = vmatprep.subr.mxu0 0.0
    %7054 = vmatpush2.msra.mxu0 0.0
    %7055 = vmatprep.subr.mxu0 0.0
    %7056 = vmatpush2.msra.mxu0 0.0
    %7057 = vmatprep.subr.mxu0 0.0
    %7058 = vmatpush2.msra.mxu0 0.0
    %7059 = vmatprep.subr.mxu0 0.0
    %7060 = vmatpush2.msra.mxu0 0.0
    %7061 = vmatprep.subr.mxu0 0.0
    %7062 = vmatpush2.msra.mxu0 0.0
    %7063 = vmatprep.subr.mxu0 0.0
    %7064 = vmatpush2.msra.mxu0 0.0
    %7065 = vmatprep.subr.mxu0 0.0
    %7066 = vmatpush2.msra.mxu0 0.0
    %7067 = vmatprep.subr.mxu0 0.0
    %7068 = vmatpush2.msra.mxu0 0.0
    %7069 = vmatprep.subr.mxu0 0.0
    %7070 = vmatpush2.msra.mxu0 0.0
    %7071 = vmatprep.subr.mxu0 0.0
    %7072 = vmatpush2.msra.mxu0 0.0
    %7073 = vmatprep.subr.mxu0 0.0
    %7074 = vmatpush2.msra.mxu0 0.0
    %7075 = vmatprep.subr.mxu0 0.0
    %7076 = vmatpush2.msra.mxu0 0.0
    %7077 = vmatprep.mubr.f32.mxu0 0.0
    %7078 = vmatmul.mubr.f32.gmra.mxu0 %v7011
    %v7079 = vpop.f32.mrf.mxu0
    %v7080 = vadd.f32 0.0, %v7079
    %v7081 = vpop.f32.mrf.mxu0
    %7082 = vdwg.mxu0
    %7083 = vrot.lane.b32.xlu0 %v5824, 72
    %v7084 = vpop.permute.xlu0 %7083
    %v7087 = vsel %vm543, %v7006, 0
    %7089 = vmatprep.subr.mxu0 0.0
    %7090 = vmatpush1.msra.mxu0 0.0
    %7091 = vmatprep.subr.mxu0 0.0
    %7092 = vmatpush1.msra.mxu0 0.0
    %7093 = vmatprep.subr.mxu0 0.0
    %7094 = vmatpush1.msra.mxu0 0.0
    %7095 = vmatprep.subr.mxu0 0.0
    %7096 = vmatpush1.msra.mxu0 0.0
    %7097 = vmatprep.subr.mxu0 0.0
    %7098 = vmatpush1.msra.mxu0 0.0
    %7099 = vmatprep.subr.mxu0 0.0
    %7100 = vmatpush1.msra.mxu0 0.0
    %7101 = vmatprep.subr.mxu0 0.0
    %7102 = vmatpush1.msra.mxu0 0.0
    %7103 = vmatprep.subr.mxu0 0.0
    %7104 = vmatpush1.msra.mxu0 0.0
    %7105 = vmatprep.subr.mxu0 0.0
    %7106 = vmatpush1.msra.mxu0 0.0
    %7107 = vmatprep.subr.mxu0 0.0
    %7108 = vmatpush1.msra.mxu0 0.0
    %7109 = vmatprep.subr.mxu0 0.0
    %7110 = vmatpush1.msra.mxu0 0.0
    %7111 = vmatprep.subr.mxu0 0.0
    %7112 = vmatpush1.msra.mxu0 0.0
    %7113 = vmatprep.subr.mxu0 0.0
    %7114 = vmatpush1.msra.mxu0 0.0
    %7115 = vmatprep.subr.mxu0 0.0
    %7116 = vmatpush1.msra.mxu0 0.0
    %7117 = vmatprep.subr.mxu0 0.0
    %7118 = vmatpush1.msra.mxu0 0.0
    %7119 = vmatprep.subr.mxu0 0.0
    %7120 = vmatpush1.msra.mxu0 %v7084
    %7121 = vmatprep.subr.mxu0 0.0
    %7122 = vmatpush2.msra.mxu0 0.0
    %7123 = vmatprep.subr.mxu0 0.0
    %7124 = vmatpush2.msra.mxu0 0.0
    %7125 = vmatprep.subr.mxu0 0.0
    %7126 = vmatpush2.msra.mxu0 0.0
    %7127 = vmatprep.subr.mxu0 0.0
    %7128 = vmatpush2.msra.mxu0 0.0
    %7129 = vmatprep.subr.mxu0 0.0
    %7130 = vmatpush2.msra.mxu0 0.0
    %7131 = vmatprep.subr.mxu0 0.0
    %7132 = vmatpush2.msra.mxu0 0.0
    %7133 = vmatprep.subr.mxu0 0.0
    %7134 = vmatpush2.msra.mxu0 0.0
    %7135 = vmatprep.subr.mxu0 0.0
    %7136 = vmatpush2.msra.mxu0 0.0
    %7137 = vmatprep.subr.mxu0 0.0
    %7138 = vmatpush2.msra.mxu0 0.0
    %7139 = vmatprep.subr.mxu0 0.0
    %7140 = vmatpush2.msra.mxu0 0.0
    %7141 = vmatprep.subr.mxu0 0.0
    %7142 = vmatpush2.msra.mxu0 0.0
    %7143 = vmatprep.subr.mxu0 0.0
    %7144 = vmatpush2.msra.mxu0 0.0
    %7145 = vmatprep.subr.mxu0 0.0
    %7146 = vmatpush2.msra.mxu0 0.0
    %7147 = vmatprep.subr.mxu0 0.0
    %7148 = vmatpush2.msra.mxu0 0.0
    %7149 = vmatprep.subr.mxu0 0.0
    %7150 = vmatpush2.msra.mxu0 0.0
    %7151 = vmatprep.subr.mxu0 0.0
    %7152 = vmatpush2.msra.mxu0 0.0
    %7153 = vmatprep.mubr.f32.mxu0 0.0
    %7154 = vmatmul.mubr.f32.gmra.mxu0 %v7087
    %v7155 = vpop.f32.mrf.mxu0
    %v7156 = vadd.f32 0.0, %v7155
    %v7157 = vpop.f32.mrf.mxu0
    %7158 = vdwg.mxu0
    %7161 = vrot.lane.b32.xlu0 %v6412, 8
    %v7162 = vpop.permute.xlu0 %7161
    %7163 = vrot.lane.b32.xlu0 %v6488, 8
    %v7164 = vpop.permute.xlu0 %7163
    %7169 = vrot.lane.b32.xlu0 %v6746, 16
    %v7170 = vpop.permute.xlu0 %7169
    %7171 = vrot.lane.b32.xlu0 %v6822, 16
    %v7172 = vpop.permute.xlu0 %7171
    %7177 = vrot.lane.b32.xlu0 %v7080, 24
    %v7178 = vpop.permute.xlu0 %7177
    %7179 = vrot.lane.b32.xlu0 %v7156, 24
    %v7180 = vpop.permute.xlu0 %7179
    %v7183 = vsel %vm543, %v6078, %v7162
    %v7184 = vsel %vm543, %v6154, %v7164
    %v7185 = vsel %vm324, %v7183, %v7170
    %v7186 = vsel %vm324, %v7184, %v7172
    %v7187 = vsel %vm1903, %v7185, %v7178
    %v7188 = vsel %vm1903, %v7186, %v7180
    %7189 = vrot.lane.b32.xlu0 %v6337, 8
    %v7190 = vpop.permute.xlu0 %7189
    %7191 = vrot.lane.b32.xlu0 %v6338, 8
    %v7192 = vpop.permute.xlu0 %7191
    %7195 = vrot.lane.b32.xlu0 %v6671, 16
    %v7196 = vpop.permute.xlu0 %7195
    %7197 = vrot.lane.b32.xlu0 %v6672, 16
    %v7198 = vpop.permute.xlu0 %7197
    %7201 = vrot.lane.b32.xlu0 %v7005, 24
    %v7202 = vpop.permute.xlu0 %7201
    %7203 = vrot.lane.b32.xlu0 %v7006, 24
    %v7204 = vpop.permute.xlu0 %7203
    %v7207 = vsel %vm543, %v6003, %v7190
    %v7208 = vsel %vm543, %v6004, %v7192
    %v7209 = vsel %vm324, %v7207, %v7196
    %v7210 = vsel %vm324, %v7208, %v7198
    %v7211 = vsel %vm1903, %v7209, %v7202
    %v7212 = vsel %vm1903, %v7210, %v7204
    %s7213 = scalar_lea.vmem %s16, 32
    %v7214 = vld [vmem:[%s7213] sm:$0xff]
    %v7215 = vld [vmem:[%s7213 + $0x8] sm:$0xff]
    %v7216 = vld [vmem:[%s7213 + $0x10] sm:$0xff]
    %v7217 = vld [vmem:[%s7213 + $0x18] sm:$0xff]
    %s7218 = scalar_lea.vmem [#allocation16], 1
    %v7219 = vld [vmem:[%s7218] sm:$0x1]
    %v7221 = vlaneseq
    %v7222 = vshrl.u32 %v7221, 7
    %v7223 = vsub.s32 0, %v7222
    %v7224 = vrot.slane %v7219, %v7223
    %v7227 = vsel %vm458, %v7187, 0
    %v7230 = vsel %vm458, %v7188, 0
    %7232 = vmatprep.subr.mxu0 0.0
    %7233 = vmatpush1.msra.mxu0 0.0
    %7234 = vmatprep.subr.mxu0 0.0
    %7235 = vmatpush1.msra.mxu0 0.0
    %7236 = vmatprep.subr.mxu0 0.0
    %7237 = vmatpush1.msra.mxu0 0.0
    %7238 = vmatprep.subr.mxu0 0.0
    %7239 = vmatpush1.msra.mxu0 0.0
    %7240 = vmatprep.subr.mxu0 0.0
    %7241 = vmatpush1.msra.mxu0 0.0
    %7242 = vmatprep.subr.mxu0 0.0
    %7243 = vmatpush1.msra.mxu0 0.0
    %7244 = vmatprep.subr.mxu0 0.0
    %7245 = vmatpush1.msra.mxu0 0.0
    %7246 = vmatprep.subr.mxu0 0.0
    %7247 = vmatpush1.msra.mxu0 0.0
    %7248 = vmatprep.subr.mxu0 0.0
    %7249 = vmatpush1.msra.mxu0 0.0
    %7250 = vmatprep.subr.mxu0 0.0
    %7251 = vmatpush1.msra.mxu0 0.0
    %7252 = vmatprep.subr.mxu0 0.0
    %7253 = vmatpush1.msra.mxu0 0.0
    %7254 = vmatprep.subr.mxu0 0.0
    %7255 = vmatpush1.msra.mxu0 0.0
    %7256 = vmatprep.subr.mxu0 0.0
    %7257 = vmatpush1.msra.mxu0 %v7217
    %7258 = vmatprep.subr.mxu0 0.0
    %7259 = vmatpush1.msra.mxu0 %v7216
    %7260 = vmatprep.subr.mxu0 0.0
    %7261 = vmatpush1.msra.mxu0 %v7215
    %7262 = vmatprep.subr.mxu0 0.0
    %7263 = vmatpush1.msra.mxu0 %v7214
    %7264 = vmatprep.subr.mxu0 0.0
    %7265 = vmatpush2.msra.mxu0 0.0
    %7266 = vmatprep.subr.mxu0 0.0
    %7267 = vmatpush2.msra.mxu0 0.0
    %7268 = vmatprep.subr.mxu0 0.0
    %7269 = vmatpush2.msra.mxu0 0.0
    %7270 = vmatprep.subr.mxu0 0.0
    %7271 = vmatpush2.msra.mxu0 0.0
    %7272 = vmatprep.subr.mxu0 0.0
    %7273 = vmatpush2.msra.mxu0 0.0
    %7274 = vmatprep.subr.mxu0 0.0
    %7275 = vmatpush2.msra.mxu0 0.0
    %7276 = vmatprep.subr.mxu0 0.0
    %7277 = vmatpush2.msra.mxu0 0.0
    %7278 = vmatprep.subr.mxu0 0.0
    %7279 = vmatpush2.msra.mxu0 0.0
    %7280 = vmatprep.subr.mxu0 0.0
    %7281 = vmatpush2.msra.mxu0 0.0
    %7282 = vmatprep.subr.mxu0 0.0
    %7283 = vmatpush2.msra.mxu0 0.0
    %7284 = vmatprep.subr.mxu0 0.0
    %7285 = vmatpush2.msra.mxu0 0.0
    %7286 = vmatprep.subr.mxu0 0.0
    %7287 = vmatpush2.msra.mxu0 0.0
    %7288 = vmatprep.subr.mxu0 0.0
    %7289 = vmatpush2.msra.mxu0 0.0
    %7290 = vmatprep.subr.mxu0 0.0
    %7291 = vmatpush2.msra.mxu0 0.0
    %7292 = vmatprep.subr.mxu0 0.0
    %7293 = vmatpush2.msra.mxu0 0.0
    %7294 = vmatprep.subr.mxu0 0.0
    %7295 = vmatpush2.msra.mxu0 0.0
    %7296 = vmatprep.mubr.f32.mxu0 0.0
    %7297 = vmatmul.mubr.f32.gmra.mxu0 %v7227
    %v7298 = vpop.f32.mrf.mxu0
    %v7299 = vadd.f32 %v7224, %v7298
    %v7300 = vpop.f32.mrf.mxu0
    %7301 = vmatprep.mubr.f32.mxu0 0.0
    %7302 = vmatmul.mubr.f32.gmra.mxu0 %v7230
    %v7303 = vpop.f32.mrf.mxu0
    %v7304 = vadd.f32 %v7224, %v7303
    %v7305 = vpop.f32.mrf.mxu0
    %7306 = vdwg.mxu0
    %v7307 = vadd.f32 %v7299, %v5640
    %v7308 = vadd.f32 %v7304, %v5641
    %s7309 = scalar_lea.vmem [#allocation17], 1
    %v7310 = vld [vmem:[%s7309] sm:$0x1]
    %s7311 = scalar_lea.vmem [#allocation19], 1
    %v7312 = vld [vmem:[%s7311] sm:$0x1]
    %v7313 = vsel %vm458, %v7307, 0.0
    %7314 = vadd.xlane.f32.xlu0 %v7313
    %v7315 = vpop.xlane.xlu0 %7314
    %v7316 = vsel %vm458, %v7308, 0.0
    %7317 = vadd.xlane.f32.xlu0 %v7316
    %v7318 = vpop.xlane.xlu0 %7317
    %v7319 = vmul.f32 %v7315, %v2032
    %v7320 = vmul.f32 %v7318, %v2032
    %v7321 = vsub.f32 %v7307, %v7319
    %v7322 = vsub.f32 %v7308, %v7320
    %v7323 = vmul.f32 %v7321, %v7321
    %v7324 = vmul.f32 %v7322, %v7322
    %v7325 = vsel %vm458, %v7323, 0.0
    %7326 = vadd.xlane.f32.xlu0 %v7325
    %v7327 = vpop.xlane.xlu0 %7326
    %v7328 = vsel %vm458, %v7324, 0.0
    %7329 = vadd.xlane.f32.xlu0 %v7328
    %v7330 = vpop.xlane.xlu0 %7329
    %v7331 = vmul.f32 %v7327, %v2032
    %v7332 = vmul.f32 %v7330, %v2032
    %v7333 = vadd.f32 %v7331, 1e-05
    %v7334 = vadd.f32 %v7332, 1e-05
    %v7335 = vrsqrt.pop %v7333
    %v7336 = vrsqrt.pop %v7334
    %v7337 = vmul.f32 %v7321, %v7335
    %v7338 = vmul.f32 %v7322, %v7336
    %v7340 = vlaneseq
    %v7341 = vshrl.u32 %v7340, 7
    %v7342 = vsub.s32 0, %v7341
    %v7343 = vrot.slane %v7310, %v7342
    %v7345 = vmul.f32 %v7337, %v7343
    %v7346 = vmul.f32 %v7338, %v7343
    %v7348 = vlaneseq
    %v7349 = vshrl.u32 %v7348, 7
    %v7350 = vsub.s32 0, %v7349
    %v7351 = vrot.slane %v7312, %v7350
    %v7353 = vadd.f32 %v7345, %v7351
    %v7354 = vadd.f32 %v7346, %v7351
    %s7355 = scalar_lea.vmem %s28, 16
    %7356 = vst.msk [vmem:[%s7355] sm:$0xff] %vm458, %v7211
    %7357 = vst.msk [vmem:[%s7355 + $0x8] sm:$0xff] %vm458, %v7212
    %s7358 = scalar_lea.vmem [#allocation20], 32
    %v7359 = vld [vmem:[%s7358] sm:$0xff]
    %v7360 = vld [vmem:[%s7358 + $0x8] sm:$0xff]
    %v7361 = vld [vmem:[%s7358 + $0x10] sm:$0xff]
    %v7362 = vld [vmem:[%s7358 + $0x18] sm:$0xff]
    %s7363 = scalar_lea.vmem [#allocation22], 1
    %v7364 = vld [vmem:[%s7363] sm:$0x1]
    %v7366 = vlaneseq
    %v7367 = vshrl.u32 %v7366, 7
    %v7368 = vsub.s32 0, %v7367
    %v7369 = vrot.slane %v7364, %v7368
    %v7372 = vsel %vm458, %v7353, 0
    %v7375 = vsel %vm458, %v7354, 0
    %7377 = vmatprep.subr.mxu0 0.0
    %7378 = vmatpush1.msra.mxu0 0.0
    %7379 = vmatprep.subr.mxu0 0.0
    %7380 = vmatpush1.msra.mxu0 0.0
    %7381 = vmatprep.subr.mxu0 0.0
    %7382 = vmatpush1.msra.mxu0 0.0
    %7383 = vmatprep.subr.mxu0 0.0
    %7384 = vmatpush1.msra.mxu0 0.0
    %7385 = vmatprep.subr.mxu0 0.0
    %7386 = vmatpush1.msra.mxu0 0.0
    %7387 = vmatprep.subr.mxu0 0.0
    %7388 = vmatpush1.msra.mxu0 0.0
    %7389 = vmatprep.subr.mxu0 0.0
    %7390 = vmatpush1.msra.mxu0 0.0
    %7391 = vmatprep.subr.mxu0 0.0
    %7392 = vmatpush1.msra.mxu0 0.0
    %7393 = vmatprep.subr.mxu0 0.0
    %7394 = vmatpush1.msra.mxu0 0.0
    %7395 = vmatprep.subr.mxu0 0.0
    %7396 = vmatpush1.msra.mxu0 0.0
    %7397 = vmatprep.subr.mxu0 0.0
    %7398 = vmatpush1.msra.mxu0 0.0
    %7399 = vmatprep.subr.mxu0 0.0
    %7400 = vmatpush1.msra.mxu0 0.0
    %7401 = vmatprep.subr.mxu0 0.0
    %7402 = vmatpush1.msra.mxu0 %v7362
    %7403 = vmatprep.subr.mxu0 0.0
    %7404 = vmatpush1.msra.mxu0 %v7361
    %7405 = vmatprep.subr.mxu0 0.0
    %7406 = vmatpush1.msra.mxu0 %v7360
    %7407 = vmatprep.subr.mxu0 0.0
    %7408 = vmatpush1.msra.mxu0 %v7359
    %7409 = vmatprep.subr.mxu0 0.0
    %7410 = vmatpush2.msra.mxu0 0.0
    %7411 = vmatprep.subr.mxu0 0.0
    %7412 = vmatpush2.msra.mxu0 0.0
    %7413 = vmatprep.subr.mxu0 0.0
    %7414 = vmatpush2.msra.mxu0 0.0
    %7415 = vmatprep.subr.mxu0 0.0
    %7416 = vmatpush2.msra.mxu0 0.0
    %7417 = vmatprep.subr.mxu0 0.0
    %7418 = vmatpush2.msra.mxu0 0.0
    %7419 = vmatprep.subr.mxu0 0.0
    %7420 = vmatpush2.msra.mxu0 0.0
    %7421 = vmatprep.subr.mxu0 0.0
    %7422 = vmatpush2.msra.mxu0 0.0
    %7423 = vmatprep.subr.mxu0 0.0
    %7424 = vmatpush2.msra.mxu0 0.0
    %7425 = vmatprep.subr.mxu0 0.0
    %7426 = vmatpush2.msra.mxu0 0.0
    %7427 = vmatprep.subr.mxu0 0.0
    %7428 = vmatpush2.msra.mxu0 0.0
    %7429 = vmatprep.subr.mxu0 0.0
    %7430 = vmatpush2.msra.mxu0 0.0
    %7431 = vmatprep.subr.mxu0 0.0
    %7432 = vmatpush2.msra.mxu0 0.0
    %7433 = vmatprep.subr.mxu0 0.0
    %7434 = vmatpush2.msra.mxu0 0.0
    %7435 = vmatprep.subr.mxu0 0.0
    %7436 = vmatpush2.msra.mxu0 0.0
    %7437 = vmatprep.subr.mxu0 0.0
    %7438 = vmatpush2.msra.mxu0 0.0
    %7439 = vmatprep.subr.mxu0 0.0
    %7440 = vmatpush2.msra.mxu0 0.0
    %7441 = vmatprep.mubr.f32.mxu0 0.0
    %7442 = vmatmul.mubr.f32.gmra.mxu0 %v7372
    %v7443 = vpop.f32.mrf.mxu0
    %v7444 = vadd.f32 %v7369, %v7443
    %v7445 = vpop.f32.mrf.mxu0
    %7446 = vmatprep.mubr.f32.mxu0 0.0
    %7447 = vmatmul.mubr.f32.gmra.mxu0 %v7375
    %v7448 = vpop.f32.mrf.mxu0
    %v7449 = vadd.f32 %v7369, %v7448
    %v7450 = vpop.f32.mrf.mxu0
    %7451 = vdwg.mxu0
    %v7452 = vmax.f32 %v7444, 0.0
    %v7453 = vmax.f32 %v7449, 0.0
    %s7454 = scalar_lea.vmem %s22, 64
    %v7455 = vld [vmem:[%s7454] sm:$0xff]
    %v7456 = vld [vmem:[%s7454 + $0x8] sm:$0xff]
    %v7457 = vld [vmem:[%s7454 + $0x10] sm:$0xff]
    %v7458 = vld [vmem:[%s7454 + $0x18] sm:$0xff]
    %v7459 = vld [vmem:[%s7454 + $0x20] sm:$0xff]
    %v7460 = vld [vmem:[%s7454 + $0x28] sm:$0xff]
    %v7461 = vld [vmem:[%s7454 + $0x30] sm:$0xff]
    %v7462 = vld [vmem:[%s7454 + $0x38] sm:$0xff]
    %s7463 = scalar_lea.vmem [#allocation23], 1
    %v7464 = vld [vmem:[%s7463] sm:$0x1]
    %v7466 = vlaneseq
    %v7467 = vshrl.u32 %v7466, 7
    %v7468 = vsub.s32 0, %v7467
    %v7469 = vrot.slane %v7464, %v7468
    %v7472 = vsel %vm3890, %v7452, 0
    %v7475 = vsel %vm3890, %v7453, 0
    %7477 = vmatprep.subr.mxu0 0.0
    %7478 = vmatpush1.msra.mxu0 0.0
    %7479 = vmatprep.subr.mxu0 0.0
    %7480 = vmatpush1.msra.mxu0 0.0
    %7481 = vmatprep.subr.mxu0 0.0
    %7482 = vmatpush1.msra.mxu0 0.0
    %7483 = vmatprep.subr.mxu0 0.0
    %7484 = vmatpush1.msra.mxu0 0.0
    %7485 = vmatprep.subr.mxu0 0.0
    %7486 = vmatpush1.msra.mxu0 0.0
    %7487 = vmatprep.subr.mxu0 0.0
    %7488 = vmatpush1.msra.mxu0 0.0
    %7489 = vmatprep.subr.mxu0 0.0
    %7490 = vmatpush1.msra.mxu0 0.0
    %7491 = vmatprep.subr.mxu0 0.0
    %7492 = vmatpush1.msra.mxu0 0.0
    %7493 = vmatprep.subr.mxu0 0.0
    %7494 = vmatpush1.msra.mxu0 %v7462
    %7495 = vmatprep.subr.mxu0 0.0
    %7496 = vmatpush1.msra.mxu0 %v7461
    %7497 = vmatprep.subr.mxu0 0.0
    %7498 = vmatpush1.msra.mxu0 %v7460
    %7499 = vmatprep.subr.mxu0 0.0
    %7500 = vmatpush1.msra.mxu0 %v7459
    %7501 = vmatprep.subr.mxu0 0.0
    %7502 = vmatpush1.msra.mxu0 %v7458
    %7503 = vmatprep.subr.mxu0 0.0
    %7504 = vmatpush1.msra.mxu0 %v7457
    %7505 = vmatprep.subr.mxu0 0.0
    %7506 = vmatpush1.msra.mxu0 %v7456
    %7507 = vmatprep.subr.mxu0 0.0
    %7508 = vmatpush1.msra.mxu0 %v7455
    %7509 = vmatprep.subr.mxu0 0.0
    %7510 = vmatpush2.msra.mxu0 0.0
    %7511 = vmatprep.subr.mxu0 0.0
    %7512 = vmatpush2.msra.mxu0 0.0
    %7513 = vmatprep.subr.mxu0 0.0
    %7514 = vmatpush2.msra.mxu0 0.0
    %7515 = vmatprep.subr.mxu0 0.0
    %7516 = vmatpush2.msra.mxu0 0.0
    %7517 = vmatprep.subr.mxu0 0.0
    %7518 = vmatpush2.msra.mxu0 0.0
    %7519 = vmatprep.subr.mxu0 0.0
    %7520 = vmatpush2.msra.mxu0 0.0
    %7521 = vmatprep.subr.mxu0 0.0
    %7522 = vmatpush2.msra.mxu0 0.0
    %7523 = vmatprep.subr.mxu0 0.0
    %7524 = vmatpush2.msra.mxu0 0.0
    %7525 = vmatprep.subr.mxu0 0.0
    %7526 = vmatpush2.msra.mxu0 0.0
    %7527 = vmatprep.subr.mxu0 0.0
    %7528 = vmatpush2.msra.mxu0 0.0
    %7529 = vmatprep.subr.mxu0 0.0
    %7530 = vmatpush2.msra.mxu0 0.0
    %7531 = vmatprep.subr.mxu0 0.0
    %7532 = vmatpush2.msra.mxu0 0.0
    %7533 = vmatprep.subr.mxu0 0.0
    %7534 = vmatpush2.msra.mxu0 0.0
    %7535 = vmatprep.subr.mxu0 0.0
    %7536 = vmatpush2.msra.mxu0 0.0
    %7537 = vmatprep.subr.mxu0 0.0
    %7538 = vmatpush2.msra.mxu0 0.0
    %7539 = vmatprep.subr.mxu0 0.0
    %7540 = vmatpush2.msra.mxu0 0.0
    %7541 = vmatprep.mubr.f32.mxu0 0.0
    %7542 = vmatmul.mubr.f32.gmra.mxu0 %v7472
    %v7543 = vpop.f32.mrf.mxu0
    %v7544 = vadd.f32 %v7469, %v7543
    %v7545 = vpop.f32.mrf.mxu0
    %7546 = vmatprep.mubr.f32.mxu0 0.0
    %7547 = vmatmul.mubr.f32.gmra.mxu0 %v7475
    %v7548 = vpop.f32.mrf.mxu0
    %v7549 = vadd.f32 %v7469, %v7548
    %v7550 = vpop.f32.mrf.mxu0
    %7551 = vdwg.mxu0
    %v7552 = vadd.f32 %v7544, %v7353
    %v7553 = vadd.f32 %v7549, %v7354
    %s7554 = scalar_lea.vmem [#allocation25], 1
    %v7555 = vld [vmem:[%s7554] sm:$0x1]
    %s7556 = scalar_lea.vmem [#allocation26], 1
    %v7557 = vld [vmem:[%s7556] sm:$0x1]
    %v7558 = vsel %vm458, %v7552, 0.0
    %7559 = vadd.xlane.f32.xlu0 %v7558
    %v7560 = vpop.xlane.xlu0 %7559
    %v7561 = vsel %vm458, %v7553, 0.0
    %7562 = vadd.xlane.f32.xlu0 %v7561
    %v7563 = vpop.xlane.xlu0 %7562
    %v7564 = vmul.f32 %v7560, %v2032
    %v7565 = vmul.f32 %v7563, %v2032
    %v7566 = vsub.f32 %v7552, %v7564
    %v7567 = vsub.f32 %v7553, %v7565
    %v7568 = vmul.f32 %v7566, %v7566
    %v7569 = vmul.f32 %v7567, %v7567
    %v7570 = vsel %vm458, %v7568, 0.0
    %7571 = vadd.xlane.f32.xlu0 %v7570
    %v7572 = vpop.xlane.xlu0 %7571
    %v7573 = vsel %vm458, %v7569, 0.0
    %7574 = vadd.xlane.f32.xlu0 %v7573
    %v7575 = vpop.xlane.xlu0 %7574
    %v7576 = vmul.f32 %v7572, %v2032
    %v7577 = vmul.f32 %v7575, %v2032
    %v7578 = vadd.f32 %v7576, 1e-05
    %v7579 = vadd.f32 %v7577, 1e-05
    %v7580 = vrsqrt.pop %v7578
    %v7581 = vrsqrt.pop %v7579
    %v7582 = vmul.f32 %v7566, %v7580
    %v7583 = vmul.f32 %v7567, %v7581
    %v7585 = vlaneseq
    %v7586 = vshrl.u32 %v7585, 7
    %v7587 = vsub.s32 0, %v7586
    %v7588 = vrot.slane %v7555, %v7587
    %v7590 = vmul.f32 %v7582, %v7588
    %v7591 = vmul.f32 %v7583, %v7588
    %v7593 = vlaneseq
    %v7594 = vshrl.u32 %v7593, 7
    %v7595 = vsub.s32 0, %v7594
    %v7596 = vrot.slane %v7557, %v7595
    %v7598 = vadd.f32 %v7590, %v7596
    %v7599 = vadd.f32 %v7591, %v7596
    %7600 = vst.msk [vmem:[#allocation28] sm:$0xff] %vm458, %v7598
    %7601 = vst.msk [vmem:[#allocation28 + $0x8] sm:$0xff] %vm458, %v7599
    // Predicated region
    $region170: #{decoder_forward.1} parent=1 // pred_check
      _
    $region171: #{decoder_forward.1} parent=1 // pred_check_branch
      %7603 = sbr.rel (0) target = $region173
    $region172: #{decoder_forward.1} parent=1 // pred_region
      %s7605 = ssub.s32 256, 256
      %7606 = vsyncadd [#allocation4], %s7605
      %s7607 = sshll.u32 [#allocation28], 4
      %s7608 = int_to_ptr.vmem [resolvable:$true] %s7607
      %7613 = dma.vmem_to_hbm [thread:$0]  %s7608, 256, %s26, [#allocation4], 128, 128, 8
    $region173: #{decoder_forward.1} parent=1 // pred_fallthru
      _
    // Predicated region
    $region174: #{decoder_forward.1} parent=1 // pred_check
      _
    $region175: #{decoder_forward.1} parent=1 // pred_check_branch
      %7615 = sbr.rel (0) target = $region177
    $region176: #{decoder_forward.1} parent=1 // pred_region
      _
    $region177: #{decoder_forward.1} parent=1 // pred_fallthru
      _
    // Predicated region
    $region178: #{decoder_forward.1} parent=1 // pred_check
      _
    $region179: #{decoder_forward.1} parent=1 // pred_check_branch
      %7617 = sbr.rel (0) target = $region181
    $region180: #{decoder_forward.1} parent=1 // pred_region
      _
    $region181: #{decoder_forward.1} parent=1 // pred_fallthru
      _
    // Predicated region
    $region182: #{decoder_forward.1} parent=1 // pred_check
      _
    $region183: #{decoder_forward.1} parent=1 // pred_check_branch
      %7619 = sbr.rel (0) target = $region185
    $region184: #{decoder_forward.1} parent=1 // pred_region
      %7620 = dma.done [#allocation4], 256
    $region185: #{decoder_forward.1} parent=1 // pred_fallthru
      _
    // Predicated region
    $region186: #{decoder_forward.1} parent=1 // pred_check
      _
    $region187: #{decoder_forward.1} parent=1 // pred_check_branch
      %7622 = sbr.rel (0) target = $region189
    $region188: #{decoder_forward.1} parent=1 // pred_region
      _
    $region189: #{decoder_forward.1} parent=1 // pred_fallthru
      _
    // Predicated region
    $region190: #{decoder_forward.1} parent=1 // pred_check
      _
    $region191: #{decoder_forward.1} parent=1 // pred_check_branch
      %7624 = sbr.rel (0) target = $region193
    $region192: #{decoder_forward.1} parent=1 // pred_region
      _
    $region193: #{decoder_forward.1} parent=1 // pred_fallthru
      _
    %7625 = vsyncpa [#allocation3], 1
    %7626 = vsyncpa [#allocation6], 1
    %7627 = vsyncpa [#allocation9], 1
    %7628 = vsyncpa [#allocation12], 1
    %7629 = vsyncpa [#allocation15], 1
    %7630 = vsyncpa [#allocation18], 1
    %7631 = vsyncpa [#allocation21], 1
    %7632 = vsyncpa [#allocation24], 1
    %7633 = vsyncpa [#allocation27], 1
    %7634 = vsyncpa [#allocation4], 1

</llo_original>
